<compile_context>
chip_gen: v7x
topology: tpu7x:2x2x1
jax: 0.10.0
libtpu: 0.0.40
codegen_flags: <defaults>
</compile_context>

<pallas_src>
import functools

import jax
import jax.numpy as jnp
import numpy as np
from jax.experimental import pallas as pl
from jax.experimental.pallas import tpu as pltpu

FEATURES = [256, 512, 256, 256, 128, 128, 64, 3]
DEGREES = [2, 2, 2, 2, 2, 4, 16]
SUPPORT = 10
NEG_SLOPE = 0.2                         # torch.nn.LeakyReLU(0.2)
LANES = 128
VMEM_LIMIT = 32 * 1024 * 1024           # <= 32 MiB: safe on v5e/v6e and on v7x (64 MiB VMEM)


def _leaky(x):
    return jnp.where(x >= 0, x, NEG_SLOPE * x)


# ---------------------------------------------------------------------------
# Generic 2-D matmul kernel (bf16 operands, f32 accumulation) -- used for the
# per-layer root term and for the one-time W_loop1 @ W_loop2 weight fold.
# ---------------------------------------------------------------------------
def _matmul_kernel(x_ref, w_ref, o_ref):
    o_ref[...] = jnp.dot(x_ref[...], w_ref[...],
                         preferred_element_type=jnp.float32)


def pallas_matmul(x, w):
    """[M, K] @ [K, N] -> [M, N] f32 on the MXU (bf16 inputs, f32 accumulate)."""
    M, K = x.shape
    K2, N = w.shape
    assert K == K2
    tm = 512 if (M % 512 == 0) else M          # full-dim blocks are always legal
    tn = 512 if (N % 512 == 0) else N
    return pl.pallas_call(
        _matmul_kernel,
        out_shape=jax.ShapeDtypeStruct((M, N), jnp.float32),
        grid=(M // tm, N // tn),
        in_specs=[pl.BlockSpec((tm, K), lambda i, j: (i, 0)),
                  pl.BlockSpec((K, tn), lambda i, j: (0, j))],
        out_specs=pl.BlockSpec((tm, tn), lambda i, j: (i, j)),
        compiler_params=pltpu.CompilerParams(
            dimension_semantics=("parallel", "parallel"),
            vmem_limit_bytes=VMEM_LIMIT),
    )(x, w)


# ---------------------------------------------------------------------------
# Fused TreeGCN kernel: per-node branch matmul -> leaky_relu -> (folded) loop
# matmul -> + root (degree-repeat folded into indexing) -> + bias -> leaky_relu.
# Grid iterates over chunks of `nn` tree nodes; each chunk is independent.
# ---------------------------------------------------------------------------
def _treegcn_fused_kernel(x_ref, wb_ref, root_ref, wloop_ref, bias_ref, o_ref,
                          *, degree, fin, activation):
    # x_ref    : (nn, B, fin)          bf16  current tree level (node chunk)
    # wb_ref   : (nn, fin, degree*fin) bf16  per-node branch weights
    # root_ref : (nn, B, outp)         f32   ancestor/root term for these nodes
    # wloop_ref: (fin, outp)           bf16  folded W_loop1 @ W_loop2
    # bias_ref : (degree, outp)        f32
    # o_ref    : (nn*degree, B, outp)
    nn = wb_ref.shape[0]
    wl = wloop_ref[...]
    bias = bias_ref[...] if activation else None
    for i in range(nn):                            # static unroll over nodes in chunk
        xi = x_ref[i]                                                   # (B, fin)
        bp = jnp.dot(xi, wb_ref[i], preferred_element_type=jnp.float32)  # (B, degree*fin)
        ba = _leaky(bp).astype(jnp.bfloat16)       # leaky_relu in f32, bf16 for MXU
        ri = root_ref[i]                                                # (B, outp) f32
        for d in range(degree):                    # static unroll over children
            seg = ba[:, d * fin:(d + 1) * fin]                          # (B, fin)
            h = jnp.dot(seg, wl, preferred_element_type=jnp.float32)    # (B, outp)
            y = ri + h
            if activation:
                y = _leaky(y + bias[d:d + 1, :])
            o_ref[i * degree + d] = y.astype(o_ref.dtype)


def treegcn_fused(x, w_branch, root, w_loop, bias, *, degree, activation,
                  out_dtype):
    node, B, fin = x.shape
    G = w_branch.shape[2]
    outp = w_loop.shape[1]
    nn = 8 if node >= 8 else node                  # nodes per grid step
    kernel = functools.partial(_treegcn_fused_kernel, degree=degree, fin=fin,
                               activation=activation)
    return pl.pallas_call(
        kernel,
        out_shape=jax.ShapeDtypeStruct((node * degree, B, outp), out_dtype),
        grid=(node // nn,),
        in_specs=[
            pl.BlockSpec((nn, B, fin), lambda i: (i, 0, 0)),
            pl.BlockSpec((nn, fin, G), lambda i: (i, 0, 0)),
            pl.BlockSpec((nn, B, outp), lambda i: (i, 0, 0)),
            pl.BlockSpec((fin, outp), lambda i: (0, 0)),
            pl.BlockSpec((degree, outp), lambda i: (0, 0)),
        ],
        out_specs=pl.BlockSpec((nn * degree, B, outp), lambda i: (i, 0, 0)),
        compiler_params=pltpu.CompilerParams(
            dimension_semantics=("parallel",),
            vmem_limit_bytes=VMEM_LIMIT),
    )(x, w_branch, root, w_loop, bias)


# ---------------------------------------------------------------------------
# One-time weight preparation (bf16 cast, W_loop fold, W_root stack, lane pad).
# ---------------------------------------------------------------------------
def prepare_params(params):
    prepped = []
    for depth in range(len(DEGREES)):
        p = params[depth]
        degree = DEGREES[depth]
        out_feat = FEATURES[depth + 1]
        last = depth == len(DEGREES) - 1
        outp = LANES if (last and out_feat < LANES) else out_feat
        pad = outp - out_feat

        w2 = p["w_loop2"]
        wr = jnp.concatenate(p["w_root"], axis=0)        # [sum_j F_j, out_feat]
        bias = p["bias"].reshape(degree, out_feat)
        if pad:
            w2 = jnp.pad(w2, ((0, 0), (0, pad)))
            wr = jnp.pad(wr, ((0, 0), (0, pad)))
            bias = jnp.pad(bias, ((0, 0), (0, pad)))
        # Fold the two loop linears (no nonlinearity between them): exact up to rounding.
        w_loop = pallas_matmul(p["w_loop1"].astype(jnp.bfloat16),
                               w2.astype(jnp.bfloat16)).astype(jnp.bfloat16)
        prepped.append({
            "w_branch": p["w_branch"].astype(jnp.bfloat16),
            "w_root_cat": wr.astype(jnp.bfloat16),
            "w_loop": w_loop,
            "bias": bias.astype(jnp.float32),
        })
    return prepped


# ---------------------------------------------------------------------------
# Decoder forward (Pallas hot path): 2 pallas_calls per layer.
# ---------------------------------------------------------------------------
def decoder_forward(z, prepped):
    B = z.shape[0]
    x = jnp.transpose(z, (1, 0, 2)).astype(jnp.bfloat16)   # node-major [node, B, F]
    anc = x                                                # concat of ancestor features
    node = 1
    out = None
    last = len(DEGREES) - 1
    for depth in range(len(DEGREES)):
        p = prepped[depth]
        degree = DEGREES[depth]
        activation = depth != last
        outp = p["w_root_cat"].shape[1]

        # root term: single matmul over the concatenated ancestor features.
        root = pallas_matmul(anc.reshape(node * B, anc.shape[2]), p["w_root_cat"])
        root = root.reshape(node, B, outp)

        out = treegcn_fused(x, p["w_branch"], root, p["w_loop"], p["bias"],
                            degree=degree, activation=activation,
                            out_dtype=jnp.float32 if depth == last else jnp.bfloat16)
        node *= degree
        if depth != last:
            x = out
            # ancestor-feature carry:  anc'[m] = concat(anc[m // degree], out[m])
            anc = jnp.concatenate([jnp.repeat(anc, degree, axis=0), out], axis=-1)

    # back to [B, 2048, C] and drop the 128-lane padding of the final layer.
    return jnp.transpose(out, (1, 0, 2))[:, :, :FEATURES[-1]]


# ---------------------------------------------------------------------------
# Pure-JAX f32 reference (exact module semantics, for correctness check).
# ---------------------------------------------------------------------------
def decoder_forward_ref(z, params):
    tree = [z]
    node = 1
    batch = z.shape[0]
    for depth in range(len(DEGREES)):
        p = params[depth]
        in_feat, out_feat, degree = FEATURES[depth], FEATURES[depth + 1], DEGREES[depth]
        root = jnp.zeros((batch, node, out_feat), jnp.float32)
        for j in range(depth + 1):
            x = tree[j]
            rn = x.shape[1]
            y = jnp.einsum("brf,fo->bro", x, p["w_root"][j], precision="highest")
            root = root + jnp.repeat(y, node // rn, axis=1)
        br = jnp.einsum("bnf,nfg->bng", tree[-1], p["w_branch"], precision="highest")
        br = jnp.where(br >= 0, br, NEG_SLOPE * br)
        br = br.reshape(batch, node * degree, in_feat)
        h = jnp.einsum("bnf,fh->bnh", br, p["w_loop1"], precision="highest")
        h = jnp.einsum("bnh,ho->bno", h, p["w_loop2"], precision="highest")
        out = jnp.repeat(root, degree, axis=1) + h
        if depth != len(DEGREES) - 1:
            bias = jnp.tile(p["bias"].reshape(degree, out_feat), (node, 1))[None]
            y2 = out + bias
            out = jnp.where(y2 >= 0, y2, NEG_SLOPE * y2)
        tree = tree + [out]
        node *= degree
    return tree[-1]


# ---------------------------------------------------------------------------
# Deterministic parameter init (shapes from the module's __init__).
# ---------------------------------------------------------------------------
def init_params(key):
    # TODO(synk): PyTorch uses xavier_uniform for W_branch; here we use a
    # deterministic fan-in-scaled normal of the same shapes (synthetic weights).
    params = []
    node = 1
    for depth in range(len(DEGREES)):
        in_feat, out_feat, degree = FEATURES[depth], FEATURES[depth + 1], DEGREES[depth]
        p = {}
        w_root = []
        for j in range(depth + 1):
            key, k = jax.random.split(key)
            w_root.append(jax.random.normal(k, (FEATURES[j], out_feat), jnp.float32)
                          * np.float32(1.0 / np.sqrt(FEATURES[j])))
        p["w_root"] = w_root
        key, k = jax.random.split(key)
        p["w_branch"] = (jax.random.normal(k, (node, in_feat, degree * in_feat), jnp.float32)
                         * np.float32(1.0 / np.sqrt(in_feat)))
        key, k = jax.random.split(key)
        p["w_loop1"] = (jax.random.normal(k, (in_feat, in_feat * SUPPORT), jnp.float32)
                        * np.float32(1.0 / np.sqrt(in_feat)))
        key, k = jax.random.split(key)
        p["w_loop2"] = (jax.random.normal(k, (in_feat * SUPPORT, out_feat), jnp.float32)
                        * np.float32(1.0 / np.sqrt(in_feat * SUPPORT)))
        key, k = jax.random.split(key)
        stdv = float(1.0 / np.sqrt(out_feat))
        p["bias"] = jax.random.uniform(k, (1, degree, out_feat), jnp.float32, -stdv, stdv)
        params.append(p)
        node *= degree
    return params, key


if __name__ == "__main__":
    key = jax.random.PRNGKey(0)
    B = 2  # small batch (cfg.CONST.BATCH_SIZE / cfg.CONST.DEVICE_NUM)

    params, key = init_params(key)
    prepped = prepare_params(params)           # one-time weight preparation

    key, k = jax.random.split(key)
    z = jax.random.normal(k, (B, 1, FEATURES[0]), jnp.float32)   # tree = [z]

    fwd = jax.jit(decoder_forward)
    out = jax.block_until_ready(fwd(z, prepped))
    assert out.shape == (B, int(np.prod(DEGREES)), FEATURES[-1])  # (2, 2048, 3)

    ref = jax.block_until_ready(decoder_forward_ref(z, params))
    rel = float(jnp.linalg.norm(out.astype(jnp.float32) - ref) / jnp.linalg.norm(ref))
    # bf16 MXU operands + folded W_loop => small numerical drift vs the f32 reference.
    assert rel < 5e-2, f"relative L2 error too large: {rel}"

    print("KERNEL_OK")
</pallas_src>

<mosaic_0001>
module attributes {stable_mosaic.version = 11 : i64} {
  func.func @_matmul_kernel(%arg0: i32, %arg1: i32, %arg2: memref<256x2560xbf16, #tpu.memory_space<vmem>>, %arg3: memref<2560x512xbf16, #tpu.memory_space<vmem>>, %arg4: memref<256x512xf32, #tpu.memory_space<vmem>>) attributes {dimension_semantics = [#tpu.dimension_semantics<parallel>, #tpu.dimension_semantics<parallel>], iteration_bounds = array<i64: 1, 1>, scalar_prefetch = 0 : i64, scratch_operands = 0 : i64, tpu.core_type = #tpu.core_type<tc>, window_params = [{transform_indices = @transform_0, window_bounds = array<i64: 256, 2560>}, {transform_indices = @transform_1, window_bounds = array<i64: 2560, 512>}, {transform_indices = @transform_2, window_bounds = array<i64: 256, 512>}]} {
    %c0 = arith.constant 0 : index
    %c0_0 = arith.constant 0 : index
    %0 = vector.load %arg2[%c0, %c0_0] : memref<256x2560xbf16, #tpu.memory_space<vmem>>, vector<256x2560xbf16>
    %c0_1 = arith.constant 0 : index
    %c0_2 = arith.constant 0 : index
    %1 = vector.load %arg3[%c0_1, %c0_2] : memref<2560x512xbf16, #tpu.memory_space<vmem>>, vector<2560x512xbf16>
    %cst = arith.constant dense<0.000000e+00> : vector<256x512xf32>
    %2 = tpu.matmul %0, %1, %cst {dimension_numbers = #tpu.dot_dimension_numbers<[1], [0], [0], [1], [0, 0, 1, 1], [], []>} : vector<256x2560xbf16>, vector<2560x512xbf16>, vector<256x512xf32> -> vector<256x512xf32>
    %c0_3 = arith.constant 0 : index
    %c0_4 = arith.constant 0 : index
    %3 = vector.load %arg4[%c0_3, %c0_4] : memref<256x512xf32, #tpu.memory_space<vmem>>, vector<256x512xf32>
    tpu.vector_store %arg4[%c0_3, %c0_4], %2 {strides = array<i32>} : memref<256x512xf32, #tpu.memory_space<vmem>>, vector<256x512xf32>,
    return
  }
  func.func @transform_0(%arg0: i32, %arg1: i32) -> (i32, i32) {
    %c0_i32 = arith.constant 0 : i32
    %c0_i32_0 = arith.constant 0 : i32
    return %arg0, %c0_i32 : i32, i32
  }
  func.func @transform_1(%arg0: i32, %arg1: i32) -> (i32, i32) {
    %c0_i32 = arith.constant 0 : i32
    %c0_i32_0 = arith.constant 0 : i32
    return %c0_i32, %arg1 : i32, i32
  }
  func.func @transform_2(%arg0: i32, %arg1: i32) -> (i32, i32) {
    %c0_i32 = arith.constant 0 : i32
    return %arg0, %arg1 : i32, i32
  }
}

</mosaic_0001>

<llo_original>
// kernel: tpu_custom_call.1
$region0: #{tpu_custom_call.1}
  #allocation0 [shape = 'u32[]', space=smem, size = 0x4, offset = 0x4, fixed_abs, tag = 'smem constant byte address 0x4 - core index']
  #allocation1 [shape = 'u32[144,128]{1,0:T(1,128)}', space=vmem, size = 0x12000, scoped, tag = 'internal scratch']
  %s0 = inlined_call_operand.hbm [shape: bf16[256,2560], index: 0, kind: input, shape index: {}]
  %s1 = inlined_call_operand.hbm [shape: bf16[2560,512], index: 1, kind: input, shape index: {}]
  %s2 = inlined_call_operand.hbm [shape: f32[256,512], index: 2, kind: output, shape index: {}]
  %s3 = sld [smem:[#allocation0]]
  $region26: #{tpu_custom_call.1} parent=0
    _
  %s5 = ssub.s32 1, %s3
  %s6 = scalar_select 0, %s5, %s3
  $region1: #{tpu_custom_call.1} parent=0
    #allocation2 [shape = 'u8[1310720]{0}', space=vmem, size = 0x140000, scoped, tag = 'input window, operand 0, single buffered']
    #allocation3 [shape = 's32[1]{0}', space=sflag, size = 0x4, scoped, tag = 'scoped memory for tpu_custom_call.1']
    #allocation4 [shape = 's32[1]{0}', space=sflag, size = 0x4, scoped, tag = 'scoped memory for tpu_custom_call.1']
    #allocation5 [shape = 'u8[2621440]{0}', space=vmem, size = 0x280000, scoped, tag = 'input window, operand 1, single buffered']
    #allocation6 [shape = 's32[1]{0}', space=sflag, size = 0x4, scoped, tag = 'scoped memory for tpu_custom_call.1']
    #allocation7 [shape = 'u8[524288]{0}', space=vmem, size = 0x80000, scoped, tag = 'output window, operand 0, single buffered']
    %7 = vsyncpa [#allocation3], 0
    %8 = vsyncpa [#allocation6], 0
    %9 = vsyncpa [#allocation4], 0
    // Predicated region
    $region2: #{tpu_custom_call.1} parent=1 // pred_check
      _
    $region3: #{tpu_custom_call.1} parent=1 // pred_check_branch
      %11 = sbr.rel (0) target = $region5
    $region4: #{tpu_custom_call.1} parent=1 // pred_region
      %s13 = ssub.s32 40960, 40960
      %14 = vsyncadd [#allocation3], %s13
      %s15 = sshll.u32 [#allocation2], 4
      %s16 = int_to_ptr.vmem [resolvable:$true] %s15
      %21 = dma.hbm_to_vmem [thread:$0]  %s0, 40960, %s16, [#allocation3], 1280, 1280, 80
    $region5: #{tpu_custom_call.1} parent=1 // pred_fallthru
      _
    // Predicated region
    $region6: #{tpu_custom_call.1} parent=1 // pred_check
      _
    $region7: #{tpu_custom_call.1} parent=1 // pred_check_branch
      %23 = sbr.rel (0) target = $region9
    $region8: #{tpu_custom_call.1} parent=1 // pred_region
      %s25 = ssub.s32 81920, 81920
      %26 = vsyncadd [#allocation6], %s25
      %s27 = sshll.u32 [#allocation5], 4
      %s28 = int_to_ptr.vmem [resolvable:$true] %s27
      %33 = dma.hbm_to_vmem [thread:$0]  %s1, 81920, %s28, [#allocation6], 256, 256, 16
    $region9: #{tpu_custom_call.1} parent=1 // pred_fallthru
      _
    // Predicated region
    $region10: #{tpu_custom_call.1} parent=1 // pred_check
      _
    $region11: #{tpu_custom_call.1} parent=1 // pred_check_branch
      %35 = sbr.rel (0) target = $region13
    $region12: #{tpu_custom_call.1} parent=1 // pred_region
      %36 = dma.done [#allocation3], 40960
    $region13: #{tpu_custom_call.1} parent=1 // pred_fallthru
      _
    // Predicated region
    $region14: #{tpu_custom_call.1} parent=1 // pred_check
      _
    $region15: #{tpu_custom_call.1} parent=1 // pred_check_branch
      %38 = sbr.rel (0) target = $region17
    $region16: #{tpu_custom_call.1} parent=1 // pred_region
      %39 = dma.done [#allocation6], 81920
    $region17: #{tpu_custom_call.1} parent=1 // pred_fallthru
      _
    %v40 = vld [vmem:[#allocation2] sm:$0xff]
    %v41 = vld [vmem:[#allocation2 + $0x8] sm:$0xff]
    %v42 = vld [vmem:[#allocation2 + $0x10] sm:$0xff]
    %v43 = vld [vmem:[#allocation2 + $0x18] sm:$0xff]
    %v44 = vld [vmem:[#allocation2 + $0x20] sm:$0xff]
    %v45 = vld [vmem:[#allocation2 + $0x28] sm:$0xff]
    %v46 = vld [vmem:[#allocation2 + $0x30] sm:$0xff]
    %v47 = vld [vmem:[#allocation2 + $0x38] sm:$0xff]
    %v48 = vld [vmem:[#allocation2 + $0x40] sm:$0xff]
    %v49 = vld [vmem:[#allocation2 + $0x48] sm:$0xff]
    %v50 = vld [vmem:[#allocation2 + $0x50] sm:$0xff]
    %v51 = vld [vmem:[#allocation2 + $0x58] sm:$0xff]
    %v52 = vld [vmem:[#allocation2 + $0x60] sm:$0xff]
    %v53 = vld [vmem:[#allocation2 + $0x68] sm:$0xff]
    %v54 = vld [vmem:[#allocation2 + $0x70] sm:$0xff]
    %v55 = vld [vmem:[#allocation2 + $0x78] sm:$0xff]
    %v56 = vld [vmem:[#allocation2 + $0x80] sm:$0xff]
    %v57 = vld [vmem:[#allocation2 + $0x88] sm:$0xff]
    %v58 = vld [vmem:[#allocation2 + $0x90] sm:$0xff]
    %v59 = vld [vmem:[#allocation2 + $0x98] sm:$0xff]
    %v60 = vld [vmem:[#allocation2 + $0xa0] sm:$0xff]
    %v61 = vld [vmem:[#allocation2 + $0xa8] sm:$0xff]
    %v62 = vld [vmem:[#allocation2 + $0xb0] sm:$0xff]
    %v63 = vld [vmem:[#allocation2 + $0xb8] sm:$0xff]
    %v64 = vld [vmem:[#allocation2 + $0xc0] sm:$0xff]
    %v65 = vld [vmem:[#allocation2 + $0xc8] sm:$0xff]
    %v66 = vld [vmem:[#allocation2 + $0xd0] sm:$0xff]
    %v67 = vld [vmem:[#allocation2 + $0xd8] sm:$0xff]
    %v68 = vld [vmem:[#allocation2 + $0xe0] sm:$0xff]
    %v69 = vld [vmem:[#allocation2 + $0xe8] sm:$0xff]
    %v70 = vld [vmem:[#allocation2 + $0xf0] sm:$0xff]
    %v71 = vld [vmem:[#allocation2 + $0xf8] sm:$0xff]
    %v72 = vld [vmem:[#allocation2 + $0x100] sm:$0xff]
    %v73 = vld [vmem:[#allocation2 + $0x108] sm:$0xff]
    %v74 = vld [vmem:[#allocation2 + $0x110] sm:$0xff]
    %v75 = vld [vmem:[#allocation2 + $0x118] sm:$0xff]
    %v76 = vld [vmem:[#allocation2 + $0x120] sm:$0xff]
    %v77 = vld [vmem:[#allocation2 + $0x128] sm:$0xff]
    %v78 = vld [vmem:[#allocation2 + $0x130] sm:$0xff]
    %v79 = vld [vmem:[#allocation2 + $0x138] sm:$0xff]
    %v80 = vld [vmem:[#allocation2 + $0x140] sm:$0xff]
    %v81 = vld [vmem:[#allocation2 + $0x148] sm:$0xff]
    %v82 = vld [vmem:[#allocation2 + $0x150] sm:$0xff]
    %v83 = vld [vmem:[#allocation2 + $0x158] sm:$0xff]
    %v84 = vld [vmem:[#allocation2 + $0x160] sm:$0xff]
    %v85 = vld [vmem:[#allocation2 + $0x168] sm:$0xff]
    %v86 = vld [vmem:[#allocation2 + $0x170] sm:$0xff]
    %v87 = vld [vmem:[#allocation2 + $0x178] sm:$0xff]
    %v88 = vld [vmem:[#allocation2 + $0x180] sm:$0xff]
    %v89 = vld [vmem:[#allocation2 + $0x188] sm:$0xff]
    %v90 = vld [vmem:[#allocation2 + $0x190] sm:$0xff]
    %v91 = vld [vmem:[#allocation2 + $0x198] sm:$0xff]
    %v92 = vld [vmem:[#allocation2 + $0x1a0] sm:$0xff]
    %v93 = vld [vmem:[#allocation2 + $0x1a8] sm:$0xff]
    %v94 = vld [vmem:[#allocation2 + $0x1b0] sm:$0xff]
    %v95 = vld [vmem:[#allocation2 + $0x1b8] sm:$0xff]
    %v96 = vld [vmem:[#allocation2 + $0x1c0] sm:$0xff]
    %v97 = vld [vmem:[#allocation2 + $0x1c8] sm:$0xff]
    %v98 = vld [vmem:[#allocation2 + $0x1d0] sm:$0xff]
    %v99 = vld [vmem:[#allocation2 + $0x1d8] sm:$0xff]
    %v100 = vld [vmem:[#allocation2 + $0x1e0] sm:$0xff]
    %v101 = vld [vmem:[#allocation2 + $0x1e8] sm:$0xff]
    %v102 = vld [vmem:[#allocation2 + $0x1f0] sm:$0xff]
    %v103 = vld [vmem:[#allocation2 + $0x1f8] sm:$0xff]
    %v104 = vld [vmem:[#allocation2 + $0x200] sm:$0xff]
    %v105 = vld [vmem:[#allocation2 + $0x208] sm:$0xff]
    %v106 = vld [vmem:[#allocation2 + $0x210] sm:$0xff]
    %v107 = vld [vmem:[#allocation2 + $0x218] sm:$0xff]
    %v108 = vld [vmem:[#allocation2 + $0x220] sm:$0xff]
    %v109 = vld [vmem:[#allocation2 + $0x228] sm:$0xff]
    %v110 = vld [vmem:[#allocation2 + $0x230] sm:$0xff]
    %v111 = vld [vmem:[#allocation2 + $0x238] sm:$0xff]
    %v112 = vld [vmem:[#allocation2 + $0x240] sm:$0xff]
    %v113 = vld [vmem:[#allocation2 + $0x248] sm:$0xff]
    %v114 = vld [vmem:[#allocation2 + $0x250] sm:$0xff]
    %v115 = vld [vmem:[#allocation2 + $0x258] sm:$0xff]
    %v116 = vld [vmem:[#allocation2 + $0x260] sm:$0xff]
    %v117 = vld [vmem:[#allocation2 + $0x268] sm:$0xff]
    %v118 = vld [vmem:[#allocation2 + $0x270] sm:$0xff]
    %v119 = vld [vmem:[#allocation2 + $0x278] sm:$0xff]
    %v120 = vld [vmem:[#allocation2 + $0x280] sm:$0xff]
    %v121 = vld [vmem:[#allocation2 + $0x288] sm:$0xff]
    %v122 = vld [vmem:[#allocation2 + $0x290] sm:$0xff]
    %v123 = vld [vmem:[#allocation2 + $0x298] sm:$0xff]
    %v124 = vld [vmem:[#allocation2 + $0x2a0] sm:$0xff]
    %v125 = vld [vmem:[#allocation2 + $0x2a8] sm:$0xff]
    %v126 = vld [vmem:[#allocation2 + $0x2b0] sm:$0xff]
    %v127 = vld [vmem:[#allocation2 + $0x2b8] sm:$0xff]
    %v128 = vld [vmem:[#allocation2 + $0x2c0] sm:$0xff]
    %v129 = vld [vmem:[#allocation2 + $0x2c8] sm:$0xff]
    %v130 = vld [vmem:[#allocation2 + $0x2d0] sm:$0xff]
    %v131 = vld [vmem:[#allocation2 + $0x2d8] sm:$0xff]
    %v132 = vld [vmem:[#allocation2 + $0x2e0] sm:$0xff]
    %v133 = vld [vmem:[#allocation2 + $0x2e8] sm:$0xff]
    %v134 = vld [vmem:[#allocation2 + $0x2f0] sm:$0xff]
    %v135 = vld [vmem:[#allocation2 + $0x2f8] sm:$0xff]
    %v136 = vld [vmem:[#allocation2 + $0x300] sm:$0xff]
    %v137 = vld [vmem:[#allocation2 + $0x308] sm:$0xff]
    %v138 = vld [vmem:[#allocation2 + $0x310] sm:$0xff]
    %v139 = vld [vmem:[#allocation2 + $0x318] sm:$0xff]
    %v140 = vld [vmem:[#allocation2 + $0x320] sm:$0xff]
    %v141 = vld [vmem:[#allocation2 + $0x328] sm:$0xff]
    %v142 = vld [vmem:[#allocation2 + $0x330] sm:$0xff]
    %v143 = vld [vmem:[#allocation2 + $0x338] sm:$0xff]
    %v144 = vld [vmem:[#allocation2 + $0x340] sm:$0xff]
    %v145 = vld [vmem:[#allocation2 + $0x348] sm:$0xff]
    %v146 = vld [vmem:[#allocation2 + $0x350] sm:$0xff]
    %v147 = vld [vmem:[#allocation2 + $0x358] sm:$0xff]
    %v148 = vld [vmem:[#allocation2 + $0x360] sm:$0xff]
    %v149 = vld [vmem:[#allocation2 + $0x368] sm:$0xff]
    %v150 = vld [vmem:[#allocation2 + $0x370] sm:$0xff]
    %v151 = vld [vmem:[#allocation2 + $0x378] sm:$0xff]
    %v152 = vld [vmem:[#allocation2 + $0x380] sm:$0xff]
    %v153 = vld [vmem:[#allocation2 + $0x388] sm:$0xff]
    %v154 = vld [vmem:[#allocation2 + $0x390] sm:$0xff]
    %v155 = vld [vmem:[#allocation2 + $0x398] sm:$0xff]
    %v156 = vld [vmem:[#allocation2 + $0x3a0] sm:$0xff]
    %v157 = vld [vmem:[#allocation2 + $0x3a8] sm:$0xff]
    %v158 = vld [vmem:[#allocation2 + $0x3b0] sm:$0xff]
    %v159 = vld [vmem:[#allocation2 + $0x3b8] sm:$0xff]
    %v160 = vld [vmem:[#allocation2 + $0x3c0] sm:$0xff]
    %v161 = vld [vmem:[#allocation2 + $0x3c8] sm:$0xff]
    %v162 = vld [vmem:[#allocation2 + $0x3d0] sm:$0xff]
    %v163 = vld [vmem:[#allocation2 + $0x3d8] sm:$0xff]
    %v164 = vld [vmem:[#allocation2 + $0x3e0] sm:$0xff]
    %v165 = vld [vmem:[#allocation2 + $0x3e8] sm:$0xff]
    %v166 = vld [vmem:[#allocation2 + $0x3f0] sm:$0xff]
    %v167 = vld [vmem:[#allocation2 + $0x3f8] sm:$0xff]
    %v168 = vld [vmem:[#allocation2 + $0x400] sm:$0xff]
    %v169 = vld [vmem:[#allocation2 + $0x408] sm:$0xff]
    %v170 = vld [vmem:[#allocation2 + $0x410] sm:$0xff]
    %v171 = vld [vmem:[#allocation2 + $0x418] sm:$0xff]
    %v172 = vld [vmem:[#allocation2 + $0x420] sm:$0xff]
    %v173 = vld [vmem:[#allocation2 + $0x428] sm:$0xff]
    %v174 = vld [vmem:[#allocation2 + $0x430] sm:$0xff]
    %v175 = vld [vmem:[#allocation2 + $0x438] sm:$0xff]
    %v176 = vld [vmem:[#allocation2 + $0x440] sm:$0xff]
    %v177 = vld [vmem:[#allocation2 + $0x448] sm:$0xff]
    %v178 = vld [vmem:[#allocation2 + $0x450] sm:$0xff]
    %v179 = vld [vmem:[#allocation2 + $0x458] sm:$0xff]
    %v180 = vld [vmem:[#allocation2 + $0x460] sm:$0xff]
    %v181 = vld [vmem:[#allocation2 + $0x468] sm:$0xff]
    %v182 = vld [vmem:[#allocation2 + $0x470] sm:$0xff]
    %v183 = vld [vmem:[#allocation2 + $0x478] sm:$0xff]
    %v184 = vld [vmem:[#allocation2 + $0x480] sm:$0xff]
    %v185 = vld [vmem:[#allocation2 + $0x488] sm:$0xff]
    %v186 = vld [vmem:[#allocation2 + $0x490] sm:$0xff]
    %v187 = vld [vmem:[#allocation2 + $0x498] sm:$0xff]
    %v188 = vld [vmem:[#allocation2 + $0x4a0] sm:$0xff]
    %v189 = vld [vmem:[#allocation2 + $0x4a8] sm:$0xff]
    %v190 = vld [vmem:[#allocation2 + $0x4b0] sm:$0xff]
    %v191 = vld [vmem:[#allocation2 + $0x4b8] sm:$0xff]
    %v192 = vld [vmem:[#allocation2 + $0x4c0] sm:$0xff]
    %v193 = vld [vmem:[#allocation2 + $0x4c8] sm:$0xff]
    %v194 = vld [vmem:[#allocation2 + $0x4d0] sm:$0xff]
    %v195 = vld [vmem:[#allocation2 + $0x4d8] sm:$0xff]
    %v196 = vld [vmem:[#allocation2 + $0x4e0] sm:$0xff]
    %v197 = vld [vmem:[#allocation2 + $0x4e8] sm:$0xff]
    %v198 = vld [vmem:[#allocation2 + $0x4f0] sm:$0xff]
    %v199 = vld [vmem:[#allocation2 + $0x4f8] sm:$0xff]
    %v200 = vld [vmem:[#allocation2 + $0x500] sm:$0xff]
    %v201 = vld [vmem:[#allocation2 + $0x508] sm:$0xff]
    %v202 = vld [vmem:[#allocation2 + $0x510] sm:$0xff]
    %v203 = vld [vmem:[#allocation2 + $0x518] sm:$0xff]
    %v204 = vld [vmem:[#allocation2 + $0x520] sm:$0xff]
    %v205 = vld [vmem:[#allocation2 + $0x528] sm:$0xff]
    %v206 = vld [vmem:[#allocation2 + $0x530] sm:$0xff]
    %v207 = vld [vmem:[#allocation2 + $0x538] sm:$0xff]
    %v208 = vld [vmem:[#allocation2 + $0x540] sm:$0xff]
    %v209 = vld [vmem:[#allocation2 + $0x548] sm:$0xff]
    %v210 = vld [vmem:[#allocation2 + $0x550] sm:$0xff]
    %v211 = vld [vmem:[#allocation2 + $0x558] sm:$0xff]
    %v212 = vld [vmem:[#allocation2 + $0x560] sm:$0xff]
    %v213 = vld [vmem:[#allocation2 + $0x568] sm:$0xff]
    %v214 = vld [vmem:[#allocation2 + $0x570] sm:$0xff]
    %v215 = vld [vmem:[#allocation2 + $0x578] sm:$0xff]
    %v216 = vld [vmem:[#allocation2 + $0x580] sm:$0xff]
    %v217 = vld [vmem:[#allocation2 + $0x588] sm:$0xff]
    %v218 = vld [vmem:[#allocation2 + $0x590] sm:$0xff]
    %v219 = vld [vmem:[#allocation2 + $0x598] sm:$0xff]
    %v220 = vld [vmem:[#allocation2 + $0x5a0] sm:$0xff]
    %v221 = vld [vmem:[#allocation2 + $0x5a8] sm:$0xff]
    %v222 = vld [vmem:[#allocation2 + $0x5b0] sm:$0xff]
    %v223 = vld [vmem:[#allocation2 + $0x5b8] sm:$0xff]
    %v224 = vld [vmem:[#allocation2 + $0x5c0] sm:$0xff]
    %v225 = vld [vmem:[#allocation2 + $0x5c8] sm:$0xff]
    %v226 = vld [vmem:[#allocation2 + $0x5d0] sm:$0xff]
    %v227 = vld [vmem:[#allocation2 + $0x5d8] sm:$0xff]
    %v228 = vld [vmem:[#allocation2 + $0x5e0] sm:$0xff]
    %v229 = vld [vmem:[#allocation2 + $0x5e8] sm:$0xff]
    %v230 = vld [vmem:[#allocation2 + $0x5f0] sm:$0xff]
    %v231 = vld [vmem:[#allocation2 + $0x5f8] sm:$0xff]
    %v232 = vld [vmem:[#allocation2 + $0x600] sm:$0xff]
    %v233 = vld [vmem:[#allocation2 + $0x608] sm:$0xff]
    %v234 = vld [vmem:[#allocation2 + $0x610] sm:$0xff]
    %v235 = vld [vmem:[#allocation2 + $0x618] sm:$0xff]
    %v236 = vld [vmem:[#allocation2 + $0x620] sm:$0xff]
    %v237 = vld [vmem:[#allocation2 + $0x628] sm:$0xff]
    %v238 = vld [vmem:[#allocation2 + $0x630] sm:$0xff]
    %v239 = vld [vmem:[#allocation2 + $0x638] sm:$0xff]
    %v240 = vld [vmem:[#allocation2 + $0x640] sm:$0xff]
    %v241 = vld [vmem:[#allocation2 + $0x648] sm:$0xff]
    %v242 = vld [vmem:[#allocation2 + $0x650] sm:$0xff]
    %v243 = vld [vmem:[#allocation2 + $0x658] sm:$0xff]
    %v244 = vld [vmem:[#allocation2 + $0x660] sm:$0xff]
    %v245 = vld [vmem:[#allocation2 + $0x668] sm:$0xff]
    %v246 = vld [vmem:[#allocation2 + $0x670] sm:$0xff]
    %v247 = vld [vmem:[#allocation2 + $0x678] sm:$0xff]
    %v248 = vld [vmem:[#allocation2 + $0x680] sm:$0xff]
    %v249 = vld [vmem:[#allocation2 + $0x688] sm:$0xff]
    %v250 = vld [vmem:[#allocation2 + $0x690] sm:$0xff]
    %v251 = vld [vmem:[#allocation2 + $0x698] sm:$0xff]
    %v252 = vld [vmem:[#allocation2 + $0x6a0] sm:$0xff]
    %v253 = vld [vmem:[#allocation2 + $0x6a8] sm:$0xff]
    %v254 = vld [vmem:[#allocation2 + $0x6b0] sm:$0xff]
    %v255 = vld [vmem:[#allocation2 + $0x6b8] sm:$0xff]
    %v256 = vld [vmem:[#allocation2 + $0x6c0] sm:$0xff]
    %v257 = vld [vmem:[#allocation2 + $0x6c8] sm:$0xff]
    %v258 = vld [vmem:[#allocation2 + $0x6d0] sm:$0xff]
    %v259 = vld [vmem:[#allocation2 + $0x6d8] sm:$0xff]
    %v260 = vld [vmem:[#allocation2 + $0x6e0] sm:$0xff]
    %v261 = vld [vmem:[#allocation2 + $0x6e8] sm:$0xff]
    %v262 = vld [vmem:[#allocation2 + $0x6f0] sm:$0xff]
    %v263 = vld [vmem:[#allocation2 + $0x6f8] sm:$0xff]
    %v264 = vld [vmem:[#allocation2 + $0x700] sm:$0xff]
    %v265 = vld [vmem:[#allocation2 + $0x708] sm:$0xff]
    %v266 = vld [vmem:[#allocation2 + $0x710] sm:$0xff]
    %v267 = vld [vmem:[#allocation2 + $0x718] sm:$0xff]
    %v268 = vld [vmem:[#allocation2 + $0x720] sm:$0xff]
    %v269 = vld [vmem:[#allocation2 + $0x728] sm:$0xff]
    %v270 = vld [vmem:[#allocation2 + $0x730] sm:$0xff]
    %v271 = vld [vmem:[#allocation2 + $0x738] sm:$0xff]
    %v272 = vld [vmem:[#allocation2 + $0x740] sm:$0xff]
    %v273 = vld [vmem:[#allocation2 + $0x748] sm:$0xff]
    %v274 = vld [vmem:[#allocation2 + $0x750] sm:$0xff]
    %v275 = vld [vmem:[#allocation2 + $0x758] sm:$0xff]
    %v276 = vld [vmem:[#allocation2 + $0x760] sm:$0xff]
    %v277 = vld [vmem:[#allocation2 + $0x768] sm:$0xff]
    %v278 = vld [vmem:[#allocation2 + $0x770] sm:$0xff]
    %v279 = vld [vmem:[#allocation2 + $0x778] sm:$0xff]
    %v280 = vld [vmem:[#allocation2 + $0x780] sm:$0xff]
    %v281 = vld [vmem:[#allocation2 + $0x788] sm:$0xff]
    %v282 = vld [vmem:[#allocation2 + $0x790] sm:$0xff]
    %v283 = vld [vmem:[#allocation2 + $0x798] sm:$0xff]
    %v284 = vld [vmem:[#allocation2 + $0x7a0] sm:$0xff]
    %v285 = vld [vmem:[#allocation2 + $0x7a8] sm:$0xff]
    %v286 = vld [vmem:[#allocation2 + $0x7b0] sm:$0xff]
    %v287 = vld [vmem:[#allocation2 + $0x7b8] sm:$0xff]
    %v288 = vld [vmem:[#allocation2 + $0x7c0] sm:$0xff]
    %v289 = vld [vmem:[#allocation2 + $0x7c8] sm:$0xff]
    %v290 = vld [vmem:[#allocation2 + $0x7d0] sm:$0xff]
    %v291 = vld [vmem:[#allocation2 + $0x7d8] sm:$0xff]
    %v292 = vld [vmem:[#allocation2 + $0x7e0] sm:$0xff]
    %v293 = vld [vmem:[#allocation2 + $0x7e8] sm:$0xff]
    %v294 = vld [vmem:[#allocation2 + $0x7f0] sm:$0xff]
    %v295 = vld [vmem:[#allocation2 + $0x7f8] sm:$0xff]
    %v296 = vld [vmem:[#allocation2 + $0x800] sm:$0xff]
    %v297 = vld [vmem:[#allocation2 + $0x808] sm:$0xff]
    %v298 = vld [vmem:[#allocation2 + $0x810] sm:$0xff]
    %v299 = vld [vmem:[#allocation2 + $0x818] sm:$0xff]
    %v300 = vld [vmem:[#allocation2 + $0x820] sm:$0xff]
    %v301 = vld [vmem:[#allocation2 + $0x828] sm:$0xff]
    %v302 = vld [vmem:[#allocation2 + $0x830] sm:$0xff]
    %v303 = vld [vmem:[#allocation2 + $0x838] sm:$0xff]
    %v304 = vld [vmem:[#allocation2 + $0x840] sm:$0xff]
    %v305 = vld [vmem:[#allocation2 + $0x848] sm:$0xff]
    %v306 = vld [vmem:[#allocation2 + $0x850] sm:$0xff]
    %v307 = vld [vmem:[#allocation2 + $0x858] sm:$0xff]
    %v308 = vld [vmem:[#allocation2 + $0x860] sm:$0xff]
    %v309 = vld [vmem:[#allocation2 + $0x868] sm:$0xff]
    %v310 = vld [vmem:[#allocation2 + $0x870] sm:$0xff]
    %v311 = vld [vmem:[#allocation2 + $0x878] sm:$0xff]
    %v312 = vld [vmem:[#allocation2 + $0x880] sm:$0xff]
    %v313 = vld [vmem:[#allocation2 + $0x888] sm:$0xff]
    %v314 = vld [vmem:[#allocation2 + $0x890] sm:$0xff]
    %v315 = vld [vmem:[#allocation2 + $0x898] sm:$0xff]
    %v316 = vld [vmem:[#allocation2 + $0x8a0] sm:$0xff]
    %v317 = vld [vmem:[#allocation2 + $0x8a8] sm:$0xff]
    %v318 = vld [vmem:[#allocation2 + $0x8b0] sm:$0xff]
    %v319 = vld [vmem:[#allocation2 + $0x8b8] sm:$0xff]
    %v320 = vld [vmem:[#allocation2 + $0x8c0] sm:$0xff]
    %v321 = vld [vmem:[#allocation2 + $0x8c8] sm:$0xff]
    %v322 = vld [vmem:[#allocation2 + $0x8d0] sm:$0xff]
    %v323 = vld [vmem:[#allocation2 + $0x8d8] sm:$0xff]
    %v324 = vld [vmem:[#allocation2 + $0x8e0] sm:$0xff]
    %v325 = vld [vmem:[#allocation2 + $0x8e8] sm:$0xff]
    %v326 = vld [vmem:[#allocation2 + $0x8f0] sm:$0xff]
    %v327 = vld [vmem:[#allocation2 + $0x8f8] sm:$0xff]
    %v328 = vld [vmem:[#allocation2 + $0x900] sm:$0xff]
    %v329 = vld [vmem:[#allocation2 + $0x908] sm:$0xff]
    %v330 = vld [vmem:[#allocation2 + $0x910] sm:$0xff]
    %v331 = vld [vmem:[#allocation2 + $0x918] sm:$0xff]
    %v332 = vld [vmem:[#allocation2 + $0x920] sm:$0xff]
    %v333 = vld [vmem:[#allocation2 + $0x928] sm:$0xff]
    %v334 = vld [vmem:[#allocation2 + $0x930] sm:$0xff]
    %v335 = vld [vmem:[#allocation2 + $0x938] sm:$0xff]
    %v336 = vld [vmem:[#allocation2 + $0x940] sm:$0xff]
    %v337 = vld [vmem:[#allocation2 + $0x948] sm:$0xff]
    %v338 = vld [vmem:[#allocation2 + $0x950] sm:$0xff]
    %v339 = vld [vmem:[#allocation2 + $0x958] sm:$0xff]
    %v340 = vld [vmem:[#allocation2 + $0x960] sm:$0xff]
    %v341 = vld [vmem:[#allocation2 + $0x968] sm:$0xff]
    %v342 = vld [vmem:[#allocation2 + $0x970] sm:$0xff]
    %v343 = vld [vmem:[#allocation2 + $0x978] sm:$0xff]
    %v344 = vld [vmem:[#allocation2 + $0x980] sm:$0xff]
    %v345 = vld [vmem:[#allocation2 + $0x988] sm:$0xff]
    %v346 = vld [vmem:[#allocation2 + $0x990] sm:$0xff]
    %v347 = vld [vmem:[#allocation2 + $0x998] sm:$0xff]
    %v348 = vld [vmem:[#allocation2 + $0x9a0] sm:$0xff]
    %v349 = vld [vmem:[#allocation2 + $0x9a8] sm:$0xff]
    %v350 = vld [vmem:[#allocation2 + $0x9b0] sm:$0xff]
    %v351 = vld [vmem:[#allocation2 + $0x9b8] sm:$0xff]
    %v352 = vld [vmem:[#allocation2 + $0x9c0] sm:$0xff]
    %v353 = vld [vmem:[#allocation2 + $0x9c8] sm:$0xff]
    %v354 = vld [vmem:[#allocation2 + $0x9d0] sm:$0xff]
    %v355 = vld [vmem:[#allocation2 + $0x9d8] sm:$0xff]
    %v356 = vld [vmem:[#allocation2 + $0x9e0] sm:$0xff]
    %v357 = vld [vmem:[#allocation2 + $0x9e8] sm:$0xff]
    %v358 = vld [vmem:[#allocation2 + $0x9f0] sm:$0xff]
    %v359 = vld [vmem:[#allocation2 + $0x9f8] sm:$0xff]
    %v360 = vld [vmem:[#allocation5] sm:$0xff]
    %v361 = vld [vmem:[#allocation5 + $0x8] sm:$0xff]
    %v362 = vld [vmem:[#allocation5 + $0x10] sm:$0xff]
    %v363 = vld [vmem:[#allocation5 + $0x18] sm:$0xff]
    %v364 = vld [vmem:[#allocation5 + $0x20] sm:$0xff]
    %v365 = vld [vmem:[#allocation5 + $0x28] sm:$0xff]
    %v366 = vld [vmem:[#allocation5 + $0x30] sm:$0xff]
    %v367 = vld [vmem:[#allocation5 + $0x38] sm:$0xff]
    %v368 = vld [vmem:[#allocation5 + $0x40] sm:$0xff]
    %v369 = vld [vmem:[#allocation5 + $0x48] sm:$0xff]
    %v370 = vld [vmem:[#allocation5 + $0x50] sm:$0xff]
    %v371 = vld [vmem:[#allocation5 + $0x58] sm:$0xff]
    %v372 = vld [vmem:[#allocation5 + $0x60] sm:$0xff]
    %v373 = vld [vmem:[#allocation5 + $0x68] sm:$0xff]
    %v374 = vld [vmem:[#allocation5 + $0x70] sm:$0xff]
    %v375 = vld [vmem:[#allocation5 + $0x78] sm:$0xff]
    %v376 = vld [vmem:[#allocation5 + $0x80] sm:$0xff]
    %v377 = vld [vmem:[#allocation5 + $0x88] sm:$0xff]
    %v378 = vld [vmem:[#allocation5 + $0x90] sm:$0xff]
    %v379 = vld [vmem:[#allocation5 + $0x98] sm:$0xff]
    %v380 = vld [vmem:[#allocation5 + $0xa0] sm:$0xff]
    %v381 = vld [vmem:[#allocation5 + $0xa8] sm:$0xff]
    %v382 = vld [vmem:[#allocation5 + $0xb0] sm:$0xff]
    %v383 = vld [vmem:[#allocation5 + $0xb8] sm:$0xff]
    %v384 = vld [vmem:[#allocation5 + $0xc0] sm:$0xff]
    %v385 = vld [vmem:[#allocation5 + $0xc8] sm:$0xff]
    %v386 = vld [vmem:[#allocation5 + $0xd0] sm:$0xff]
    %v387 = vld [vmem:[#allocation5 + $0xd8] sm:$0xff]
    %v388 = vld [vmem:[#allocation5 + $0xe0] sm:$0xff]
    %v389 = vld [vmem:[#allocation5 + $0xe8] sm:$0xff]
    %v390 = vld [vmem:[#allocation5 + $0xf0] sm:$0xff]
    %v391 = vld [vmem:[#allocation5 + $0xf8] sm:$0xff]
    %v392 = vld [vmem:[#allocation5 + $0x100] sm:$0xff]
    %v393 = vld [vmem:[#allocation5 + $0x108] sm:$0xff]
    %v394 = vld [vmem:[#allocation5 + $0x110] sm:$0xff]
    %v395 = vld [vmem:[#allocation5 + $0x118] sm:$0xff]
    %v396 = vld [vmem:[#allocation5 + $0x120] sm:$0xff]
    %v397 = vld [vmem:[#allocation5 + $0x128] sm:$0xff]
    %v398 = vld [vmem:[#allocation5 + $0x130] sm:$0xff]
    %v399 = vld [vmem:[#allocation5 + $0x138] sm:$0xff]
    %v400 = vld [vmem:[#allocation5 + $0x140] sm:$0xff]
    %v401 = vld [vmem:[#allocation5 + $0x148] sm:$0xff]
    %v402 = vld [vmem:[#allocation5 + $0x150] sm:$0xff]
    %v403 = vld [vmem:[#allocation5 + $0x158] sm:$0xff]
    %v404 = vld [vmem:[#allocation5 + $0x160] sm:$0xff]
    %v405 = vld [vmem:[#allocation5 + $0x168] sm:$0xff]
    %v406 = vld [vmem:[#allocation5 + $0x170] sm:$0xff]
    %v407 = vld [vmem:[#allocation5 + $0x178] sm:$0xff]
    %v408 = vld [vmem:[#allocation5 + $0x180] sm:$0xff]
    %v409 = vld [vmem:[#allocation5 + $0x188] sm:$0xff]
    %v410 = vld [vmem:[#allocation5 + $0x190] sm:$0xff]
    %v411 = vld [vmem:[#allocation5 + $0x198] sm:$0xff]
    %v412 = vld [vmem:[#allocation5 + $0x1a0] sm:$0xff]
    %v413 = vld [vmem:[#allocation5 + $0x1a8] sm:$0xff]
    %v414 = vld [vmem:[#allocation5 + $0x1b0] sm:$0xff]
    %v415 = vld [vmem:[#allocation5 + $0x1b8] sm:$0xff]
    %v416 = vld [vmem:[#allocation5 + $0x1c0] sm:$0xff]
    %v417 = vld [vmem:[#allocation5 + $0x1c8] sm:$0xff]
    %v418 = vld [vmem:[#allocation5 + $0x1d0] sm:$0xff]
    %v419 = vld [vmem:[#allocation5 + $0x1d8] sm:$0xff]
    %v420 = vld [vmem:[#allocation5 + $0x1e0] sm:$0xff]
    %v421 = vld [vmem:[#allocation5 + $0x1e8] sm:$0xff]
    %v422 = vld [vmem:[#allocation5 + $0x1f0] sm:$0xff]
    %v423 = vld [vmem:[#allocation5 + $0x1f8] sm:$0xff]
    %v424 = vld [vmem:[#allocation5 + $0x200] sm:$0xff]
    %v425 = vld [vmem:[#allocation5 + $0x208] sm:$0xff]
    %v426 = vld [vmem:[#allocation5 + $0x210] sm:$0xff]
    %v427 = vld [vmem:[#allocation5 + $0x218] sm:$0xff]
    %v428 = vld [vmem:[#allocation5 + $0x220] sm:$0xff]
    %v429 = vld [vmem:[#allocation5 + $0x228] sm:$0xff]
    %v430 = vld [vmem:[#allocation5 + $0x230] sm:$0xff]
    %v431 = vld [vmem:[#allocation5 + $0x238] sm:$0xff]
    %v432 = vld [vmem:[#allocation5 + $0x240] sm:$0xff]
    %v433 = vld [vmem:[#allocation5 + $0x248] sm:$0xff]
    %v434 = vld [vmem:[#allocation5 + $0x250] sm:$0xff]
    %v435 = vld [vmem:[#allocation5 + $0x258] sm:$0xff]
    %v436 = vld [vmem:[#allocation5 + $0x260] sm:$0xff]
    %v437 = vld [vmem:[#allocation5 + $0x268] sm:$0xff]
    %v438 = vld [vmem:[#allocation5 + $0x270] sm:$0xff]
    %v439 = vld [vmem:[#allocation5 + $0x278] sm:$0xff]
    %v440 = vld [vmem:[#allocation5 + $0x280] sm:$0xff]
    %v441 = vld [vmem:[#allocation5 + $0x288] sm:$0xff]
    %v442 = vld [vmem:[#allocation5 + $0x290] sm:$0xff]
    %v443 = vld [vmem:[#allocation5 + $0x298] sm:$0xff]
    %v444 = vld [vmem:[#allocation5 + $0x2a0] sm:$0xff]
    %v445 = vld [vmem:[#allocation5 + $0x2a8] sm:$0xff]
    %v446 = vld [vmem:[#allocation5 + $0x2b0] sm:$0xff]
    %v447 = vld [vmem:[#allocation5 + $0x2b8] sm:$0xff]
    %v448 = vld [vmem:[#allocation5 + $0x2c0] sm:$0xff]
    %v449 = vld [vmem:[#allocation5 + $0x2c8] sm:$0xff]
    %v450 = vld [vmem:[#allocation5 + $0x2d0] sm:$0xff]
    %v451 = vld [vmem:[#allocation5 + $0x2d8] sm:$0xff]
    %v452 = vld [vmem:[#allocation5 + $0x2e0] sm:$0xff]
    %v453 = vld [vmem:[#allocation5 + $0x2e8] sm:$0xff]
    %v454 = vld [vmem:[#allocation5 + $0x2f0] sm:$0xff]
    %v455 = vld [vmem:[#allocation5 + $0x2f8] sm:$0xff]
    %v456 = vld [vmem:[#allocation5 + $0x300] sm:$0xff]
    %v457 = vld [vmem:[#allocation5 + $0x308] sm:$0xff]
    %v458 = vld [vmem:[#allocation5 + $0x310] sm:$0xff]
    %v459 = vld [vmem:[#allocation5 + $0x318] sm:$0xff]
    %v460 = vld [vmem:[#allocation5 + $0x320] sm:$0xff]
    %v461 = vld [vmem:[#allocation5 + $0x328] sm:$0xff]
    %v462 = vld [vmem:[#allocation5 + $0x330] sm:$0xff]
    %v463 = vld [vmem:[#allocation5 + $0x338] sm:$0xff]
    %v464 = vld [vmem:[#allocation5 + $0x340] sm:$0xff]
    %v465 = vld [vmem:[#allocation5 + $0x348] sm:$0xff]
    %v466 = vld [vmem:[#allocation5 + $0x350] sm:$0xff]
    %v467 = vld [vmem:[#allocation5 + $0x358] sm:$0xff]
    %v468 = vld [vmem:[#allocation5 + $0x360] sm:$0xff]
    %v469 = vld [vmem:[#allocation5 + $0x368] sm:$0xff]
    %v470 = vld [vmem:[#allocation5 + $0x370] sm:$0xff]
    %v471 = vld [vmem:[#allocation5 + $0x378] sm:$0xff]
    %v472 = vld [vmem:[#allocation5 + $0x380] sm:$0xff]
    %v473 = vld [vmem:[#allocation5 + $0x388] sm:$0xff]
    %v474 = vld [vmem:[#allocation5 + $0x390] sm:$0xff]
    %v475 = vld [vmem:[#allocation5 + $0x398] sm:$0xff]
    %v476 = vld [vmem:[#allocation5 + $0x3a0] sm:$0xff]
    %v477 = vld [vmem:[#allocation5 + $0x3a8] sm:$0xff]
    %v478 = vld [vmem:[#allocation5 + $0x3b0] sm:$0xff]
    %v479 = vld [vmem:[#allocation5 + $0x3b8] sm:$0xff]
    %v480 = vld [vmem:[#allocation5 + $0x3c0] sm:$0xff]
    %v481 = vld [vmem:[#allocation5 + $0x3c8] sm:$0xff]
    %v482 = vld [vmem:[#allocation5 + $0x3d0] sm:$0xff]
    %v483 = vld [vmem:[#allocation5 + $0x3d8] sm:$0xff]
    %v484 = vld [vmem:[#allocation5 + $0x3e0] sm:$0xff]
    %v485 = vld [vmem:[#allocation5 + $0x3e8] sm:$0xff]
    %v486 = vld [vmem:[#allocation5 + $0x3f0] sm:$0xff]
    %v487 = vld [vmem:[#allocation5 + $0x3f8] sm:$0xff]
    %v488 = vld [vmem:[#allocation5 + $0x400] sm:$0xff]
    %v489 = vld [vmem:[#allocation5 + $0x408] sm:$0xff]
    %v490 = vld [vmem:[#allocation5 + $0x410] sm:$0xff]
    %v491 = vld [vmem:[#allocation5 + $0x418] sm:$0xff]
    %v492 = vld [vmem:[#allocation5 + $0x420] sm:$0xff]
    %v493 = vld [vmem:[#allocation5 + $0x428] sm:$0xff]
    %v494 = vld [vmem:[#allocation5 + $0x430] sm:$0xff]
    %v495 = vld [vmem:[#allocation5 + $0x438] sm:$0xff]
    %v496 = vld [vmem:[#allocation5 + $0x440] sm:$0xff]
    %v497 = vld [vmem:[#allocation5 + $0x448] sm:$0xff]
    %v498 = vld [vmem:[#allocation5 + $0x450] sm:$0xff]
    %v499 = vld [vmem:[#allocation5 + $0x458] sm:$0xff]
    %v500 = vld [vmem:[#allocation5 + $0x460] sm:$0xff]
    %v501 = vld [vmem:[#allocation5 + $0x468] sm:$0xff]
    %v502 = vld [vmem:[#allocation5 + $0x470] sm:$0xff]
    %v503 = vld [vmem:[#allocation5 + $0x478] sm:$0xff]
    %v504 = vld [vmem:[#allocation5 + $0x480] sm:$0xff]
    %v505 = vld [vmem:[#allocation5 + $0x488] sm:$0xff]
    %v506 = vld [vmem:[#allocation5 + $0x490] sm:$0xff]
    %v507 = vld [vmem:[#allocation5 + $0x498] sm:$0xff]
    %v508 = vld [vmem:[#allocation5 + $0x4a0] sm:$0xff]
    %v509 = vld [vmem:[#allocation5 + $0x4a8] sm:$0xff]
    %v510 = vld [vmem:[#allocation5 + $0x4b0] sm:$0xff]
    %v511 = vld [vmem:[#allocation5 + $0x4b8] sm:$0xff]
    %v512 = vld [vmem:[#allocation5 + $0x4c0] sm:$0xff]
    %v513 = vld [vmem:[#allocation5 + $0x4c8] sm:$0xff]
    %v514 = vld [vmem:[#allocation5 + $0x4d0] sm:$0xff]
    %v515 = vld [vmem:[#allocation5 + $0x4d8] sm:$0xff]
    %v516 = vld [vmem:[#allocation5 + $0x4e0] sm:$0xff]
    %v517 = vld [vmem:[#allocation5 + $0x4e8] sm:$0xff]
    %v518 = vld [vmem:[#allocation5 + $0x4f0] sm:$0xff]
    %v519 = vld [vmem:[#allocation5 + $0x4f8] sm:$0xff]
    %v520 = vld [vmem:[#allocation5 + $0x500] sm:$0xff]
    %v521 = vld [vmem:[#allocation5 + $0x508] sm:$0xff]
    %v522 = vld [vmem:[#allocation5 + $0x510] sm:$0xff]
    %v523 = vld [vmem:[#allocation5 + $0x518] sm:$0xff]
    %v524 = vld [vmem:[#allocation5 + $0x520] sm:$0xff]
    %v525 = vld [vmem:[#allocation5 + $0x528] sm:$0xff]
    %v526 = vld [vmem:[#allocation5 + $0x530] sm:$0xff]
    %v527 = vld [vmem:[#allocation5 + $0x538] sm:$0xff]
    %v528 = vld [vmem:[#allocation5 + $0x540] sm:$0xff]
    %v529 = vld [vmem:[#allocation5 + $0x548] sm:$0xff]
    %v530 = vld [vmem:[#allocation5 + $0x550] sm:$0xff]
    %v531 = vld [vmem:[#allocation5 + $0x558] sm:$0xff]
    %v532 = vld [vmem:[#allocation5 + $0x560] sm:$0xff]
    %v533 = vld [vmem:[#allocation5 + $0x568] sm:$0xff]
    %v534 = vld [vmem:[#allocation5 + $0x570] sm:$0xff]
    %v535 = vld [vmem:[#allocation5 + $0x578] sm:$0xff]
    %v536 = vld [vmem:[#allocation5 + $0x580] sm:$0xff]
    %v537 = vld [vmem:[#allocation5 + $0x588] sm:$0xff]
    %v538 = vld [vmem:[#allocation5 + $0x590] sm:$0xff]
    %v539 = vld [vmem:[#allocation5 + $0x598] sm:$0xff]
    %v540 = vld [vmem:[#allocation5 + $0x5a0] sm:$0xff]
    %v541 = vld [vmem:[#allocation5 + $0x5a8] sm:$0xff]
    %v542 = vld [vmem:[#allocation5 + $0x5b0] sm:$0xff]
    %v543 = vld [vmem:[#allocation5 + $0x5b8] sm:$0xff]
    %v544 = vld [vmem:[#allocation5 + $0x5c0] sm:$0xff]
    %v545 = vld [vmem:[#allocation5 + $0x5c8] sm:$0xff]
    %v546 = vld [vmem:[#allocation5 + $0x5d0] sm:$0xff]
    %v547 = vld [vmem:[#allocation5 + $0x5d8] sm:$0xff]
    %v548 = vld [vmem:[#allocation5 + $0x5e0] sm:$0xff]
    %v549 = vld [vmem:[#allocation5 + $0x5e8] sm:$0xff]
    %v550 = vld [vmem:[#allocation5 + $0x5f0] sm:$0xff]
    %v551 = vld [vmem:[#allocation5 + $0x5f8] sm:$0xff]
    %v552 = vld [vmem:[#allocation5 + $0x600] sm:$0xff]
    %v553 = vld [vmem:[#allocation5 + $0x608] sm:$0xff]
    %v554 = vld [vmem:[#allocation5 + $0x610] sm:$0xff]
    %v555 = vld [vmem:[#allocation5 + $0x618] sm:$0xff]
    %v556 = vld [vmem:[#allocation5 + $0x620] sm:$0xff]
    %v557 = vld [vmem:[#allocation5 + $0x628] sm:$0xff]
    %v558 = vld [vmem:[#allocation5 + $0x630] sm:$0xff]
    %v559 = vld [vmem:[#allocation5 + $0x638] sm:$0xff]
    %v560 = vld [vmem:[#allocation5 + $0x640] sm:$0xff]
    %v561 = vld [vmem:[#allocation5 + $0x648] sm:$0xff]
    %v562 = vld [vmem:[#allocation5 + $0x650] sm:$0xff]
    %v563 = vld [vmem:[#allocation5 + $0x658] sm:$0xff]
    %v564 = vld [vmem:[#allocation5 + $0x660] sm:$0xff]
    %v565 = vld [vmem:[#allocation5 + $0x668] sm:$0xff]
    %v566 = vld [vmem:[#allocation5 + $0x670] sm:$0xff]
    %v567 = vld [vmem:[#allocation5 + $0x678] sm:$0xff]
    %v568 = vld [vmem:[#allocation5 + $0x680] sm:$0xff]
    %v569 = vld [vmem:[#allocation5 + $0x688] sm:$0xff]
    %v570 = vld [vmem:[#allocation5 + $0x690] sm:$0xff]
    %v571 = vld [vmem:[#allocation5 + $0x698] sm:$0xff]
    %v572 = vld [vmem:[#allocation5 + $0x6a0] sm:$0xff]
    %v573 = vld [vmem:[#allocation5 + $0x6a8] sm:$0xff]
    %v574 = vld [vmem:[#allocation5 + $0x6b0] sm:$0xff]
    %v575 = vld [vmem:[#allocation5 + $0x6b8] sm:$0xff]
    %v576 = vld [vmem:[#allocation5 + $0x6c0] sm:$0xff]
    %v577 = vld [vmem:[#allocation5 + $0x6c8] sm:$0xff]
    %v578 = vld [vmem:[#allocation5 + $0x6d0] sm:$0xff]
    %v579 = vld [vmem:[#allocation5 + $0x6d8] sm:$0xff]
    %v580 = vld [vmem:[#allocation5 + $0x6e0] sm:$0xff]
    %v581 = vld [vmem:[#allocation5 + $0x6e8] sm:$0xff]
    %v582 = vld [vmem:[#allocation5 + $0x6f0] sm:$0xff]
    %v583 = vld [vmem:[#allocation5 + $0x6f8] sm:$0xff]
    %v584 = vld [vmem:[#allocation5 + $0x700] sm:$0xff]
    %v585 = vld [vmem:[#allocation5 + $0x708] sm:$0xff]
    %v586 = vld [vmem:[#allocation5 + $0x710] sm:$0xff]
    %v587 = vld [vmem:[#allocation5 + $0x718] sm:$0xff]
    %v588 = vld [vmem:[#allocation5 + $0x720] sm:$0xff]
    %v589 = vld [vmem:[#allocation5 + $0x728] sm:$0xff]
    %v590 = vld [vmem:[#allocation5 + $0x730] sm:$0xff]
    %v591 = vld [vmem:[#allocation5 + $0x738] sm:$0xff]
    %v592 = vld [vmem:[#allocation5 + $0x740] sm:$0xff]
    %v593 = vld [vmem:[#allocation5 + $0x748] sm:$0xff]
    %v594 = vld [vmem:[#allocation5 + $0x750] sm:$0xff]
    %v595 = vld [vmem:[#allocation5 + $0x758] sm:$0xff]
    %v596 = vld [vmem:[#allocation5 + $0x760] sm:$0xff]
    %v597 = vld [vmem:[#allocation5 + $0x768] sm:$0xff]
    %v598 = vld [vmem:[#allocation5 + $0x770] sm:$0xff]
    %v599 = vld [vmem:[#allocation5 + $0x778] sm:$0xff]
    %v600 = vld [vmem:[#allocation5 + $0x780] sm:$0xff]
    %v601 = vld [vmem:[#allocation5 + $0x788] sm:$0xff]
    %v602 = vld [vmem:[#allocation5 + $0x790] sm:$0xff]
    %v603 = vld [vmem:[#allocation5 + $0x798] sm:$0xff]
    %v604 = vld [vmem:[#allocation5 + $0x7a0] sm:$0xff]
    %v605 = vld [vmem:[#allocation5 + $0x7a8] sm:$0xff]
    %v606 = vld [vmem:[#allocation5 + $0x7b0] sm:$0xff]
    %v607 = vld [vmem:[#allocation5 + $0x7b8] sm:$0xff]
    %v608 = vld [vmem:[#allocation5 + $0x7c0] sm:$0xff]
    %v609 = vld [vmem:[#allocation5 + $0x7c8] sm:$0xff]
    %v610 = vld [vmem:[#allocation5 + $0x7d0] sm:$0xff]
    %v611 = vld [vmem:[#allocation5 + $0x7d8] sm:$0xff]
    %v612 = vld [vmem:[#allocation5 + $0x7e0] sm:$0xff]
    %v613 = vld [vmem:[#allocation5 + $0x7e8] sm:$0xff]
    %v614 = vld [vmem:[#allocation5 + $0x7f0] sm:$0xff]
    %v615 = vld [vmem:[#allocation5 + $0x7f8] sm:$0xff]
    %v616 = vld [vmem:[#allocation5 + $0x800] sm:$0xff]
    %v617 = vld [vmem:[#allocation5 + $0x808] sm:$0xff]
    %v618 = vld [vmem:[#allocation5 + $0x810] sm:$0xff]
    %v619 = vld [vmem:[#allocation5 + $0x818] sm:$0xff]
    %v620 = vld [vmem:[#allocation5 + $0x820] sm:$0xff]
    %v621 = vld [vmem:[#allocation5 + $0x828] sm:$0xff]
    %v622 = vld [vmem:[#allocation5 + $0x830] sm:$0xff]
    %v623 = vld [vmem:[#allocation5 + $0x838] sm:$0xff]
    %v624 = vld [vmem:[#allocation5 + $0x840] sm:$0xff]
    %v625 = vld [vmem:[#allocation5 + $0x848] sm:$0xff]
    %v626 = vld [vmem:[#allocation5 + $0x850] sm:$0xff]
    %v627 = vld [vmem:[#allocation5 + $0x858] sm:$0xff]
    %v628 = vld [vmem:[#allocation5 + $0x860] sm:$0xff]
    %v629 = vld [vmem:[#allocation5 + $0x868] sm:$0xff]
    %v630 = vld [vmem:[#allocation5 + $0x870] sm:$0xff]
    %v631 = vld [vmem:[#allocation5 + $0x878] sm:$0xff]
    %v632 = vld [vmem:[#allocation5 + $0x880] sm:$0xff]
    %v633 = vld [vmem:[#allocation5 + $0x888] sm:$0xff]
    %v634 = vld [vmem:[#allocation5 + $0x890] sm:$0xff]
    %v635 = vld [vmem:[#allocation5 + $0x898] sm:$0xff]
    %v636 = vld [vmem:[#allocation5 + $0x8a0] sm:$0xff]
    %v637 = vld [vmem:[#allocation5 + $0x8a8] sm:$0xff]
    %v638 = vld [vmem:[#allocation5 + $0x8b0] sm:$0xff]
    %v639 = vld [vmem:[#allocation5 + $0x8b8] sm:$0xff]
    %v640 = vld [vmem:[#allocation5 + $0x8c0] sm:$0xff]
    %v641 = vld [vmem:[#allocation5 + $0x8c8] sm:$0xff]
    %v642 = vld [vmem:[#allocation5 + $0x8d0] sm:$0xff]
    %v643 = vld [vmem:[#allocation5 + $0x8d8] sm:$0xff]
    %v644 = vld [vmem:[#allocation5 + $0x8e0] sm:$0xff]
    %v645 = vld [vmem:[#allocation5 + $0x8e8] sm:$0xff]
    %v646 = vld [vmem:[#allocation5 + $0x8f0] sm:$0xff]
    %v647 = vld [vmem:[#allocation5 + $0x8f8] sm:$0xff]
    %v648 = vld [vmem:[#allocation5 + $0x900] sm:$0xff]
    %v649 = vld [vmem:[#allocation5 + $0x908] sm:$0xff]
    %v650 = vld [vmem:[#allocation5 + $0x910] sm:$0xff]
    %v651 = vld [vmem:[#allocation5 + $0x918] sm:$0xff]
    %v652 = vld [vmem:[#allocation5 + $0x920] sm:$0xff]
    %v653 = vld [vmem:[#allocation5 + $0x928] sm:$0xff]
    %v654 = vld [vmem:[#allocation5 + $0x930] sm:$0xff]
    %v655 = vld [vmem:[#allocation5 + $0x938] sm:$0xff]
    %v656 = vld [vmem:[#allocation5 + $0x940] sm:$0xff]
    %v657 = vld [vmem:[#allocation5 + $0x948] sm:$0xff]
    %v658 = vld [vmem:[#allocation5 + $0x950] sm:$0xff]
    %v659 = vld [vmem:[#allocation5 + $0x958] sm:$0xff]
    %v660 = vld [vmem:[#allocation5 + $0x960] sm:$0xff]
    %v661 = vld [vmem:[#allocation5 + $0x968] sm:$0xff]
    %v662 = vld [vmem:[#allocation5 + $0x970] sm:$0xff]
    %v663 = vld [vmem:[#allocation5 + $0x978] sm:$0xff]
    %v664 = vld [vmem:[#allocation5 + $0x980] sm:$0xff]
    %v665 = vld [vmem:[#allocation5 + $0x988] sm:$0xff]
    %v666 = vld [vmem:[#allocation5 + $0x990] sm:$0xff]
    %v667 = vld [vmem:[#allocation5 + $0x998] sm:$0xff]
    %v668 = vld [vmem:[#allocation5 + $0x9a0] sm:$0xff]
    %v669 = vld [vmem:[#allocation5 + $0x9a8] sm:$0xff]
    %v670 = vld [vmem:[#allocation5 + $0x9b0] sm:$0xff]
    %v671 = vld [vmem:[#allocation5 + $0x9b8] sm:$0xff]
    %v672 = vld [vmem:[#allocation5 + $0x9c0] sm:$0xff]
    %v673 = vld [vmem:[#allocation5 + $0x9c8] sm:$0xff]
    %v674 = vld [vmem:[#allocation5 + $0x9d0] sm:$0xff]
    %v675 = vld [vmem:[#allocation5 + $0x9d8] sm:$0xff]
    %v676 = vld [vmem:[#allocation5 + $0x9e0] sm:$0xff]
    %v677 = vld [vmem:[#allocation5 + $0x9e8] sm:$0xff]
    %v678 = vld [vmem:[#allocation5 + $0x9f0] sm:$0xff]
    %v679 = vld [vmem:[#allocation5 + $0x9f8] sm:$0xff]
    %v680 = vld [vmem:[#allocation5 + $0xa00] sm:$0xff]
    %v681 = vld [vmem:[#allocation5 + $0xa08] sm:$0xff]
    %v682 = vld [vmem:[#allocation5 + $0xa10] sm:$0xff]
    %v683 = vld [vmem:[#allocation5 + $0xa18] sm:$0xff]
    %v684 = vld [vmem:[#allocation5 + $0xa20] sm:$0xff]
    %v685 = vld [vmem:[#allocation5 + $0xa28] sm:$0xff]
    %v686 = vld [vmem:[#allocation5 + $0xa30] sm:$0xff]
    %v687 = vld [vmem:[#allocation5 + $0xa38] sm:$0xff]
    %v688 = vld [vmem:[#allocation5 + $0xa40] sm:$0xff]
    %v689 = vld [vmem:[#allocation5 + $0xa48] sm:$0xff]
    %v690 = vld [vmem:[#allocation5 + $0xa50] sm:$0xff]
    %v691 = vld [vmem:[#allocation5 + $0xa58] sm:$0xff]
    %v692 = vld [vmem:[#allocation5 + $0xa60] sm:$0xff]
    %v693 = vld [vmem:[#allocation5 + $0xa68] sm:$0xff]
    %v694 = vld [vmem:[#allocation5 + $0xa70] sm:$0xff]
    %v695 = vld [vmem:[#allocation5 + $0xa78] sm:$0xff]
    %v696 = vld [vmem:[#allocation5 + $0xa80] sm:$0xff]
    %v697 = vld [vmem:[#allocation5 + $0xa88] sm:$0xff]
    %v698 = vld [vmem:[#allocation5 + $0xa90] sm:$0xff]
    %v699 = vld [vmem:[#allocation5 + $0xa98] sm:$0xff]
    %v700 = vld [vmem:[#allocation5 + $0xaa0] sm:$0xff]
    %v701 = vld [vmem:[#allocation5 + $0xaa8] sm:$0xff]
    %v702 = vld [vmem:[#allocation5 + $0xab0] sm:$0xff]
    %v703 = vld [vmem:[#allocation5 + $0xab8] sm:$0xff]
    %v704 = vld [vmem:[#allocation5 + $0xac0] sm:$0xff]
    %v705 = vld [vmem:[#allocation5 + $0xac8] sm:$0xff]
    %v706 = vld [vmem:[#allocation5 + $0xad0] sm:$0xff]
    %v707 = vld [vmem:[#allocation5 + $0xad8] sm:$0xff]
    %v708 = vld [vmem:[#allocation5 + $0xae0] sm:$0xff]
    %v709 = vld [vmem:[#allocation5 + $0xae8] sm:$0xff]
    %v710 = vld [vmem:[#allocation5 + $0xaf0] sm:$0xff]
    %v711 = vld [vmem:[#allocation5 + $0xaf8] sm:$0xff]
    %v712 = vld [vmem:[#allocation5 + $0xb00] sm:$0xff]
    %v713 = vld [vmem:[#allocation5 + $0xb08] sm:$0xff]
    %v714 = vld [vmem:[#allocation5 + $0xb10] sm:$0xff]
    %v715 = vld [vmem:[#allocation5 + $0xb18] sm:$0xff]
    %v716 = vld [vmem:[#allocation5 + $0xb20] sm:$0xff]
    %v717 = vld [vmem:[#allocation5 + $0xb28] sm:$0xff]
    %v718 = vld [vmem:[#allocation5 + $0xb30] sm:$0xff]
    %v719 = vld [vmem:[#allocation5 + $0xb38] sm:$0xff]
    %v720 = vld [vmem:[#allocation5 + $0xb40] sm:$0xff]
    %v721 = vld [vmem:[#allocation5 + $0xb48] sm:$0xff]
    %v722 = vld [vmem:[#allocation5 + $0xb50] sm:$0xff]
    %v723 = vld [vmem:[#allocation5 + $0xb58] sm:$0xff]
    %v724 = vld [vmem:[#allocation5 + $0xb60] sm:$0xff]
    %v725 = vld [vmem:[#allocation5 + $0xb68] sm:$0xff]
    %v726 = vld [vmem:[#allocation5 + $0xb70] sm:$0xff]
    %v727 = vld [vmem:[#allocation5 + $0xb78] sm:$0xff]
    %v728 = vld [vmem:[#allocation5 + $0xb80] sm:$0xff]
    %v729 = vld [vmem:[#allocation5 + $0xb88] sm:$0xff]
    %v730 = vld [vmem:[#allocation5 + $0xb90] sm:$0xff]
    %v731 = vld [vmem:[#allocation5 + $0xb98] sm:$0xff]
    %v732 = vld [vmem:[#allocation5 + $0xba0] sm:$0xff]
    %v733 = vld [vmem:[#allocation5 + $0xba8] sm:$0xff]
    %v734 = vld [vmem:[#allocation5 + $0xbb0] sm:$0xff]
    %v735 = vld [vmem:[#allocation5 + $0xbb8] sm:$0xff]
    %v736 = vld [vmem:[#allocation5 + $0xbc0] sm:$0xff]
    %v737 = vld [vmem:[#allocation5 + $0xbc8] sm:$0xff]
    %v738 = vld [vmem:[#allocation5 + $0xbd0] sm:$0xff]
    %v739 = vld [vmem:[#allocation5 + $0xbd8] sm:$0xff]
    %v740 = vld [vmem:[#allocation5 + $0xbe0] sm:$0xff]
    %v741 = vld [vmem:[#allocation5 + $0xbe8] sm:$0xff]
    %v742 = vld [vmem:[#allocation5 + $0xbf0] sm:$0xff]
    %v743 = vld [vmem:[#allocation5 + $0xbf8] sm:$0xff]
    %v744 = vld [vmem:[#allocation5 + $0xc00] sm:$0xff]
    %v745 = vld [vmem:[#allocation5 + $0xc08] sm:$0xff]
    %v746 = vld [vmem:[#allocation5 + $0xc10] sm:$0xff]
    %v747 = vld [vmem:[#allocation5 + $0xc18] sm:$0xff]
    %v748 = vld [vmem:[#allocation5 + $0xc20] sm:$0xff]
    %v749 = vld [vmem:[#allocation5 + $0xc28] sm:$0xff]
    %v750 = vld [vmem:[#allocation5 + $0xc30] sm:$0xff]
    %v751 = vld [vmem:[#allocation5 + $0xc38] sm:$0xff]
    %v752 = vld [vmem:[#allocation5 + $0xc40] sm:$0xff]
    %v753 = vld [vmem:[#allocation5 + $0xc48] sm:$0xff]
    %v754 = vld [vmem:[#allocation5 + $0xc50] sm:$0xff]
    %v755 = vld [vmem:[#allocation5 + $0xc58] sm:$0xff]
    %v756 = vld [vmem:[#allocation5 + $0xc60] sm:$0xff]
    %v757 = vld [vmem:[#allocation5 + $0xc68] sm:$0xff]
    %v758 = vld [vmem:[#allocation5 + $0xc70] sm:$0xff]
    %v759 = vld [vmem:[#allocation5 + $0xc78] sm:$0xff]
    %v760 = vld [vmem:[#allocation5 + $0xc80] sm:$0xff]
    %v761 = vld [vmem:[#allocation5 + $0xc88] sm:$0xff]
    %v762 = vld [vmem:[#allocation5 + $0xc90] sm:$0xff]
    %v763 = vld [vmem:[#allocation5 + $0xc98] sm:$0xff]
    %v764 = vld [vmem:[#allocation5 + $0xca0] sm:$0xff]
    %v765 = vld [vmem:[#allocation5 + $0xca8] sm:$0xff]
    %v766 = vld [vmem:[#allocation5 + $0xcb0] sm:$0xff]
    %v767 = vld [vmem:[#allocation5 + $0xcb8] sm:$0xff]
    %v768 = vld [vmem:[#allocation5 + $0xcc0] sm:$0xff]
    %v769 = vld [vmem:[#allocation5 + $0xcc8] sm:$0xff]
    %v770 = vld [vmem:[#allocation5 + $0xcd0] sm:$0xff]
    %v771 = vld [vmem:[#allocation5 + $0xcd8] sm:$0xff]
    %v772 = vld [vmem:[#allocation5 + $0xce0] sm:$0xff]
    %v773 = vld [vmem:[#allocation5 + $0xce8] sm:$0xff]
    %v774 = vld [vmem:[#allocation5 + $0xcf0] sm:$0xff]
    %v775 = vld [vmem:[#allocation5 + $0xcf8] sm:$0xff]
    %v776 = vld [vmem:[#allocation5 + $0xd00] sm:$0xff]
    %v777 = vld [vmem:[#allocation5 + $0xd08] sm:$0xff]
    %v778 = vld [vmem:[#allocation5 + $0xd10] sm:$0xff]
    %v779 = vld [vmem:[#allocation5 + $0xd18] sm:$0xff]
    %v780 = vld [vmem:[#allocation5 + $0xd20] sm:$0xff]
    %v781 = vld [vmem:[#allocation5 + $0xd28] sm:$0xff]
    %v782 = vld [vmem:[#allocation5 + $0xd30] sm:$0xff]
    %v783 = vld [vmem:[#allocation5 + $0xd38] sm:$0xff]
    %v784 = vld [vmem:[#allocation5 + $0xd40] sm:$0xff]
    %v785 = vld [vmem:[#allocation5 + $0xd48] sm:$0xff]
    %v786 = vld [vmem:[#allocation5 + $0xd50] sm:$0xff]
    %v787 = vld [vmem:[#allocation5 + $0xd58] sm:$0xff]
    %v788 = vld [vmem:[#allocation5 + $0xd60] sm:$0xff]
    %v789 = vld [vmem:[#allocation5 + $0xd68] sm:$0xff]
    %v790 = vld [vmem:[#allocation5 + $0xd70] sm:$0xff]
    %v791 = vld [vmem:[#allocation5 + $0xd78] sm:$0xff]
    %v792 = vld [vmem:[#allocation5 + $0xd80] sm:$0xff]
    %v793 = vld [vmem:[#allocation5 + $0xd88] sm:$0xff]
    %v794 = vld [vmem:[#allocation5 + $0xd90] sm:$0xff]
    %v795 = vld [vmem:[#allocation5 + $0xd98] sm:$0xff]
    %v796 = vld [vmem:[#allocation5 + $0xda0] sm:$0xff]
    %v797 = vld [vmem:[#allocation5 + $0xda8] sm:$0xff]
    %v798 = vld [vmem:[#allocation5 + $0xdb0] sm:$0xff]
    %v799 = vld [vmem:[#allocation5 + $0xdb8] sm:$0xff]
    %v800 = vld [vmem:[#allocation5 + $0xdc0] sm:$0xff]
    %v801 = vld [vmem:[#allocation5 + $0xdc8] sm:$0xff]
    %v802 = vld [vmem:[#allocation5 + $0xdd0] sm:$0xff]
    %v803 = vld [vmem:[#allocation5 + $0xdd8] sm:$0xff]
    %v804 = vld [vmem:[#allocation5 + $0xde0] sm:$0xff]
    %v805 = vld [vmem:[#allocation5 + $0xde8] sm:$0xff]
    %v806 = vld [vmem:[#allocation5 + $0xdf0] sm:$0xff]
    %v807 = vld [vmem:[#allocation5 + $0xdf8] sm:$0xff]
    %v808 = vld [vmem:[#allocation5 + $0xe00] sm:$0xff]
    %v809 = vld [vmem:[#allocation5 + $0xe08] sm:$0xff]
    %v810 = vld [vmem:[#allocation5 + $0xe10] sm:$0xff]
    %v811 = vld [vmem:[#allocation5 + $0xe18] sm:$0xff]
    %v812 = vld [vmem:[#allocation5 + $0xe20] sm:$0xff]
    %v813 = vld [vmem:[#allocation5 + $0xe28] sm:$0xff]
    %v814 = vld [vmem:[#allocation5 + $0xe30] sm:$0xff]
    %v815 = vld [vmem:[#allocation5 + $0xe38] sm:$0xff]
    %v816 = vld [vmem:[#allocation5 + $0xe40] sm:$0xff]
    %v817 = vld [vmem:[#allocation5 + $0xe48] sm:$0xff]
    %v818 = vld [vmem:[#allocation5 + $0xe50] sm:$0xff]
    %v819 = vld [vmem:[#allocation5 + $0xe58] sm:$0xff]
    %v820 = vld [vmem:[#allocation5 + $0xe60] sm:$0xff]
    %v821 = vld [vmem:[#allocation5 + $0xe68] sm:$0xff]
    %v822 = vld [vmem:[#allocation5 + $0xe70] sm:$0xff]
    %v823 = vld [vmem:[#allocation5 + $0xe78] sm:$0xff]
    %v824 = vld [vmem:[#allocation5 + $0xe80] sm:$0xff]
    %v825 = vld [vmem:[#allocation5 + $0xe88] sm:$0xff]
    %v826 = vld [vmem:[#allocation5 + $0xe90] sm:$0xff]
    %v827 = vld [vmem:[#allocation5 + $0xe98] sm:$0xff]
    %v828 = vld [vmem:[#allocation5 + $0xea0] sm:$0xff]
    %v829 = vld [vmem:[#allocation5 + $0xea8] sm:$0xff]
    %v830 = vld [vmem:[#allocation5 + $0xeb0] sm:$0xff]
    %v831 = vld [vmem:[#allocation5 + $0xeb8] sm:$0xff]
    %v832 = vld [vmem:[#allocation5 + $0xec0] sm:$0xff]
    %v833 = vld [vmem:[#allocation5 + $0xec8] sm:$0xff]
    %v834 = vld [vmem:[#allocation5 + $0xed0] sm:$0xff]
    %v835 = vld [vmem:[#allocation5 + $0xed8] sm:$0xff]
    %v836 = vld [vmem:[#allocation5 + $0xee0] sm:$0xff]
    %v837 = vld [vmem:[#allocation5 + $0xee8] sm:$0xff]
    %v838 = vld [vmem:[#allocation5 + $0xef0] sm:$0xff]
    %v839 = vld [vmem:[#allocation5 + $0xef8] sm:$0xff]
    %v840 = vld [vmem:[#allocation5 + $0xf00] sm:$0xff]
    %v841 = vld [vmem:[#allocation5 + $0xf08] sm:$0xff]
    %v842 = vld [vmem:[#allocation5 + $0xf10] sm:$0xff]
    %v843 = vld [vmem:[#allocation5 + $0xf18] sm:$0xff]
    %v844 = vld [vmem:[#allocation5 + $0xf20] sm:$0xff]
    %v845 = vld [vmem:[#allocation5 + $0xf28] sm:$0xff]
    %v846 = vld [vmem:[#allocation5 + $0xf30] sm:$0xff]
    %v847 = vld [vmem:[#allocation5 + $0xf38] sm:$0xff]
    %v848 = vld [vmem:[#allocation5 + $0xf40] sm:$0xff]
    %v849 = vld [vmem:[#allocation5 + $0xf48] sm:$0xff]
    %v850 = vld [vmem:[#allocation5 + $0xf50] sm:$0xff]
    %v851 = vld [vmem:[#allocation5 + $0xf58] sm:$0xff]
    %v852 = vld [vmem:[#allocation5 + $0xf60] sm:$0xff]
    %v853 = vld [vmem:[#allocation5 + $0xf68] sm:$0xff]
    %v854 = vld [vmem:[#allocation5 + $0xf70] sm:$0xff]
    %v855 = vld [vmem:[#allocation5 + $0xf78] sm:$0xff]
    %v856 = vld [vmem:[#allocation5 + $0xf80] sm:$0xff]
    %v857 = vld [vmem:[#allocation5 + $0xf88] sm:$0xff]
    %v858 = vld [vmem:[#allocation5 + $0xf90] sm:$0xff]
    %v859 = vld [vmem:[#allocation5 + $0xf98] sm:$0xff]
    %v860 = vld [vmem:[#allocation5 + $0xfa0] sm:$0xff]
    %v861 = vld [vmem:[#allocation5 + $0xfa8] sm:$0xff]
    %v862 = vld [vmem:[#allocation5 + $0xfb0] sm:$0xff]
    %v863 = vld [vmem:[#allocation5 + $0xfb8] sm:$0xff]
    %v864 = vld [vmem:[#allocation5 + $0xfc0] sm:$0xff]
    %v865 = vld [vmem:[#allocation5 + $0xfc8] sm:$0xff]
    %v866 = vld [vmem:[#allocation5 + $0xfd0] sm:$0xff]
    %v867 = vld [vmem:[#allocation5 + $0xfd8] sm:$0xff]
    %v868 = vld [vmem:[#allocation5 + $0xfe0] sm:$0xff]
    %v869 = vld [vmem:[#allocation5 + $0xfe8] sm:$0xff]
    %v870 = vld [vmem:[#allocation5 + $0xff0] sm:$0xff]
    %v871 = vld [vmem:[#allocation5 + $0xff8] sm:$0xff]
    %v872 = vld [vmem:[#allocation5 + $0x1000] sm:$0xff]
    %v873 = vld [vmem:[#allocation5 + $0x1008] sm:$0xff]
    %v874 = vld [vmem:[#allocation5 + $0x1010] sm:$0xff]
    %v875 = vld [vmem:[#allocation5 + $0x1018] sm:$0xff]
    %v876 = vld [vmem:[#allocation5 + $0x1020] sm:$0xff]
    %v877 = vld [vmem:[#allocation5 + $0x1028] sm:$0xff]
    %v878 = vld [vmem:[#allocation5 + $0x1030] sm:$0xff]
    %v879 = vld [vmem:[#allocation5 + $0x1038] sm:$0xff]
    %v880 = vld [vmem:[#allocation5 + $0x1040] sm:$0xff]
    %v881 = vld [vmem:[#allocation5 + $0x1048] sm:$0xff]
    %v882 = vld [vmem:[#allocation5 + $0x1050] sm:$0xff]
    %v883 = vld [vmem:[#allocation5 + $0x1058] sm:$0xff]
    %v884 = vld [vmem:[#allocation5 + $0x1060] sm:$0xff]
    %v885 = vld [vmem:[#allocation5 + $0x1068] sm:$0xff]
    %v886 = vld [vmem:[#allocation5 + $0x1070] sm:$0xff]
    %v887 = vld [vmem:[#allocation5 + $0x1078] sm:$0xff]
    %v888 = vld [vmem:[#allocation5 + $0x1080] sm:$0xff]
    %v889 = vld [vmem:[#allocation5 + $0x1088] sm:$0xff]
    %v890 = vld [vmem:[#allocation5 + $0x1090] sm:$0xff]
    %v891 = vld [vmem:[#allocation5 + $0x1098] sm:$0xff]
    %v892 = vld [vmem:[#allocation5 + $0x10a0] sm:$0xff]
    %v893 = vld [vmem:[#allocation5 + $0x10a8] sm:$0xff]
    %v894 = vld [vmem:[#allocation5 + $0x10b0] sm:$0xff]
    %v895 = vld [vmem:[#allocation5 + $0x10b8] sm:$0xff]
    %v896 = vld [vmem:[#allocation5 + $0x10c0] sm:$0xff]
    %v897 = vld [vmem:[#allocation5 + $0x10c8] sm:$0xff]
    %v898 = vld [vmem:[#allocation5 + $0x10d0] sm:$0xff]
    %v899 = vld [vmem:[#allocation5 + $0x10d8] sm:$0xff]
    %v900 = vld [vmem:[#allocation5 + $0x10e0] sm:$0xff]
    %v901 = vld [vmem:[#allocation5 + $0x10e8] sm:$0xff]
    %v902 = vld [vmem:[#allocation5 + $0x10f0] sm:$0xff]
    %v903 = vld [vmem:[#allocation5 + $0x10f8] sm:$0xff]
    %v904 = vld [vmem:[#allocation5 + $0x1100] sm:$0xff]
    %v905 = vld [vmem:[#allocation5 + $0x1108] sm:$0xff]
    %v906 = vld [vmem:[#allocation5 + $0x1110] sm:$0xff]
    %v907 = vld [vmem:[#allocation5 + $0x1118] sm:$0xff]
    %v908 = vld [vmem:[#allocation5 + $0x1120] sm:$0xff]
    %v909 = vld [vmem:[#allocation5 + $0x1128] sm:$0xff]
    %v910 = vld [vmem:[#allocation5 + $0x1130] sm:$0xff]
    %v911 = vld [vmem:[#allocation5 + $0x1138] sm:$0xff]
    %v912 = vld [vmem:[#allocation5 + $0x1140] sm:$0xff]
    %v913 = vld [vmem:[#allocation5 + $0x1148] sm:$0xff]
    %v914 = vld [vmem:[#allocation5 + $0x1150] sm:$0xff]
    %v915 = vld [vmem:[#allocation5 + $0x1158] sm:$0xff]
    %v916 = vld [vmem:[#allocation5 + $0x1160] sm:$0xff]
    %v917 = vld [vmem:[#allocation5 + $0x1168] sm:$0xff]
    %v918 = vld [vmem:[#allocation5 + $0x1170] sm:$0xff]
    %v919 = vld [vmem:[#allocation5 + $0x1178] sm:$0xff]
    %v920 = vld [vmem:[#allocation5 + $0x1180] sm:$0xff]
    %v921 = vld [vmem:[#allocation5 + $0x1188] sm:$0xff]
    %v922 = vld [vmem:[#allocation5 + $0x1190] sm:$0xff]
    %v923 = vld [vmem:[#allocation5 + $0x1198] sm:$0xff]
    %v924 = vld [vmem:[#allocation5 + $0x11a0] sm:$0xff]
    %v925 = vld [vmem:[#allocation5 + $0x11a8] sm:$0xff]
    %v926 = vld [vmem:[#allocation5 + $0x11b0] sm:$0xff]
    %v927 = vld [vmem:[#allocation5 + $0x11b8] sm:$0xff]
    %v928 = vld [vmem:[#allocation5 + $0x11c0] sm:$0xff]
    %v929 = vld [vmem:[#allocation5 + $0x11c8] sm:$0xff]
    %v930 = vld [vmem:[#allocation5 + $0x11d0] sm:$0xff]
    %v931 = vld [vmem:[#allocation5 + $0x11d8] sm:$0xff]
    %v932 = vld [vmem:[#allocation5 + $0x11e0] sm:$0xff]
    %v933 = vld [vmem:[#allocation5 + $0x11e8] sm:$0xff]
    %v934 = vld [vmem:[#allocation5 + $0x11f0] sm:$0xff]
    %v935 = vld [vmem:[#allocation5 + $0x11f8] sm:$0xff]
    %v936 = vld [vmem:[#allocation5 + $0x1200] sm:$0xff]
    %v937 = vld [vmem:[#allocation5 + $0x1208] sm:$0xff]
    %v938 = vld [vmem:[#allocation5 + $0x1210] sm:$0xff]
    %v939 = vld [vmem:[#allocation5 + $0x1218] sm:$0xff]
    %v940 = vld [vmem:[#allocation5 + $0x1220] sm:$0xff]
    %v941 = vld [vmem:[#allocation5 + $0x1228] sm:$0xff]
    %v942 = vld [vmem:[#allocation5 + $0x1230] sm:$0xff]
    %v943 = vld [vmem:[#allocation5 + $0x1238] sm:$0xff]
    %v944 = vld [vmem:[#allocation5 + $0x1240] sm:$0xff]
    %v945 = vld [vmem:[#allocation5 + $0x1248] sm:$0xff]
    %v946 = vld [vmem:[#allocation5 + $0x1250] sm:$0xff]
    %v947 = vld [vmem:[#allocation5 + $0x1258] sm:$0xff]
    %v948 = vld [vmem:[#allocation5 + $0x1260] sm:$0xff]
    %v949 = vld [vmem:[#allocation5 + $0x1268] sm:$0xff]
    %v950 = vld [vmem:[#allocation5 + $0x1270] sm:$0xff]
    %v951 = vld [vmem:[#allocation5 + $0x1278] sm:$0xff]
    %v952 = vld [vmem:[#allocation5 + $0x1280] sm:$0xff]
    %v953 = vld [vmem:[#allocation5 + $0x1288] sm:$0xff]
    %v954 = vld [vmem:[#allocation5 + $0x1290] sm:$0xff]
    %v955 = vld [vmem:[#allocation5 + $0x1298] sm:$0xff]
    %v956 = vld [vmem:[#allocation5 + $0x12a0] sm:$0xff]
    %v957 = vld [vmem:[#allocation5 + $0x12a8] sm:$0xff]
    %v958 = vld [vmem:[#allocation5 + $0x12b0] sm:$0xff]
    %v959 = vld [vmem:[#allocation5 + $0x12b8] sm:$0xff]
    %v960 = vld [vmem:[#allocation5 + $0x12c0] sm:$0xff]
    %v961 = vld [vmem:[#allocation5 + $0x12c8] sm:$0xff]
    %v962 = vld [vmem:[#allocation5 + $0x12d0] sm:$0xff]
    %v963 = vld [vmem:[#allocation5 + $0x12d8] sm:$0xff]
    %v964 = vld [vmem:[#allocation5 + $0x12e0] sm:$0xff]
    %v965 = vld [vmem:[#allocation5 + $0x12e8] sm:$0xff]
    %v966 = vld [vmem:[#allocation5 + $0x12f0] sm:$0xff]
    %v967 = vld [vmem:[#allocation5 + $0x12f8] sm:$0xff]
    %v968 = vld [vmem:[#allocation5 + $0x1300] sm:$0xff]
    %v969 = vld [vmem:[#allocation5 + $0x1308] sm:$0xff]
    %v970 = vld [vmem:[#allocation5 + $0x1310] sm:$0xff]
    %v971 = vld [vmem:[#allocation5 + $0x1318] sm:$0xff]
    %v972 = vld [vmem:[#allocation5 + $0x1320] sm:$0xff]
    %v973 = vld [vmem:[#allocation5 + $0x1328] sm:$0xff]
    %v974 = vld [vmem:[#allocation5 + $0x1330] sm:$0xff]
    %v975 = vld [vmem:[#allocation5 + $0x1338] sm:$0xff]
    %v976 = vld [vmem:[#allocation5 + $0x1340] sm:$0xff]
    %v977 = vld [vmem:[#allocation5 + $0x1348] sm:$0xff]
    %v978 = vld [vmem:[#allocation5 + $0x1350] sm:$0xff]
    %v979 = vld [vmem:[#allocation5 + $0x1358] sm:$0xff]
    %v980 = vld [vmem:[#allocation5 + $0x1360] sm:$0xff]
    %v981 = vld [vmem:[#allocation5 + $0x1368] sm:$0xff]
    %v982 = vld [vmem:[#allocation5 + $0x1370] sm:$0xff]
    %v983 = vld [vmem:[#allocation5 + $0x1378] sm:$0xff]
    %v984 = vld [vmem:[#allocation5 + $0x1380] sm:$0xff]
    %v985 = vld [vmem:[#allocation5 + $0x1388] sm:$0xff]
    %v986 = vld [vmem:[#allocation5 + $0x1390] sm:$0xff]
    %v987 = vld [vmem:[#allocation5 + $0x1398] sm:$0xff]
    %v988 = vld [vmem:[#allocation5 + $0x13a0] sm:$0xff]
    %v989 = vld [vmem:[#allocation5 + $0x13a8] sm:$0xff]
    %v990 = vld [vmem:[#allocation5 + $0x13b0] sm:$0xff]
    %v991 = vld [vmem:[#allocation5 + $0x13b8] sm:$0xff]
    %v992 = vld [vmem:[#allocation5 + $0x13c0] sm:$0xff]
    %v993 = vld [vmem:[#allocation5 + $0x13c8] sm:$0xff]
    %v994 = vld [vmem:[#allocation5 + $0x13d0] sm:$0xff]
    %v995 = vld [vmem:[#allocation5 + $0x13d8] sm:$0xff]
    %v996 = vld [vmem:[#allocation5 + $0x13e0] sm:$0xff]
    %v997 = vld [vmem:[#allocation5 + $0x13e8] sm:$0xff]
    %v998 = vld [vmem:[#allocation5 + $0x13f0] sm:$0xff]
    %v999 = vld [vmem:[#allocation5 + $0x13f8] sm:$0xff]
    %v1320 = vunpack.c.l.b16 %v40
    %v1321 = vunpack.c.h.b16 %v40
    %v1322 = vunpack.c.l.b16 %v41
    %v1323 = vunpack.c.h.b16 %v41
    %v1324 = vunpack.c.l.b16 %v42
    %v1325 = vunpack.c.h.b16 %v42
    %v1326 = vunpack.c.l.b16 %v43
    %v1327 = vunpack.c.h.b16 %v43
    %v1328 = vunpack.c.l.b16 %v44
    %v1329 = vunpack.c.h.b16 %v44
    %v1330 = vunpack.c.l.b16 %v45
    %v1331 = vunpack.c.h.b16 %v45
    %v1332 = vunpack.c.l.b16 %v46
    %v1333 = vunpack.c.h.b16 %v46
    %v1334 = vunpack.c.l.b16 %v47
    %v1335 = vunpack.c.h.b16 %v47
    %v1336 = vunpack.c.l.b16 %v48
    %v1337 = vunpack.c.h.b16 %v48
    %v1338 = vunpack.c.l.b16 %v49
    %v1339 = vunpack.c.h.b16 %v49
    %v1340 = vunpack.c.l.b16 %v50
    %v1341 = vunpack.c.h.b16 %v50
    %v1342 = vunpack.c.l.b16 %v51
    %v1343 = vunpack.c.h.b16 %v51
    %v1344 = vunpack.c.l.b16 %v52
    %v1345 = vunpack.c.h.b16 %v52
    %v1346 = vunpack.c.l.b16 %v53
    %v1347 = vunpack.c.h.b16 %v53
    %v1348 = vunpack.c.l.b16 %v54
    %v1349 = vunpack.c.h.b16 %v54
    %v1350 = vunpack.c.l.b16 %v55
    %v1351 = vunpack.c.h.b16 %v55
    %v1352 = vunpack.c.l.b16 %v56
    %v1353 = vunpack.c.h.b16 %v56
    %v1354 = vunpack.c.l.b16 %v57
    %v1355 = vunpack.c.h.b16 %v57
    %v1356 = vunpack.c.l.b16 %v58
    %v1357 = vunpack.c.h.b16 %v58
    %v1358 = vunpack.c.l.b16 %v59
    %v1359 = vunpack.c.h.b16 %v59
    %v1360 = vunpack.c.l.b16 %v60
    %v1361 = vunpack.c.h.b16 %v60
    %v1362 = vunpack.c.l.b16 %v61
    %v1363 = vunpack.c.h.b16 %v61
    %v1364 = vunpack.c.l.b16 %v62
    %v1365 = vunpack.c.h.b16 %v62
    %v1366 = vunpack.c.l.b16 %v63
    %v1367 = vunpack.c.h.b16 %v63
    %v1368 = vunpack.c.l.b16 %v64
    %v1369 = vunpack.c.h.b16 %v64
    %v1370 = vunpack.c.l.b16 %v65
    %v1371 = vunpack.c.h.b16 %v65
    %v1372 = vunpack.c.l.b16 %v66
    %v1373 = vunpack.c.h.b16 %v66
    %v1374 = vunpack.c.l.b16 %v67
    %v1375 = vunpack.c.h.b16 %v67
    %v1376 = vunpack.c.l.b16 %v68
    %v1377 = vunpack.c.h.b16 %v68
    %v1378 = vunpack.c.l.b16 %v69
    %v1379 = vunpack.c.h.b16 %v69
    %v1380 = vunpack.c.l.b16 %v70
    %v1381 = vunpack.c.h.b16 %v70
    %v1382 = vunpack.c.l.b16 %v71
    %v1383 = vunpack.c.h.b16 %v71
    %v1384 = vunpack.c.l.b16 %v72
    %v1385 = vunpack.c.h.b16 %v72
    %v1386 = vunpack.c.l.b16 %v73
    %v1387 = vunpack.c.h.b16 %v73
    %v1388 = vunpack.c.l.b16 %v74
    %v1389 = vunpack.c.h.b16 %v74
    %v1390 = vunpack.c.l.b16 %v75
    %v1391 = vunpack.c.h.b16 %v75
    %v1392 = vunpack.c.l.b16 %v76
    %v1393 = vunpack.c.h.b16 %v76
    %v1394 = vunpack.c.l.b16 %v77
    %v1395 = vunpack.c.h.b16 %v77
    %v1396 = vunpack.c.l.b16 %v78
    %v1397 = vunpack.c.h.b16 %v78
    %v1398 = vunpack.c.l.b16 %v79
    %v1399 = vunpack.c.h.b16 %v79
    %v1400 = vunpack.c.l.b16 %v80
    %v1401 = vunpack.c.h.b16 %v80
    %v1402 = vunpack.c.l.b16 %v81
    %v1403 = vunpack.c.h.b16 %v81
    %v1404 = vunpack.c.l.b16 %v82
    %v1405 = vunpack.c.h.b16 %v82
    %v1406 = vunpack.c.l.b16 %v83
    %v1407 = vunpack.c.h.b16 %v83
    %v1408 = vunpack.c.l.b16 %v84
    %v1409 = vunpack.c.h.b16 %v84
    %v1410 = vunpack.c.l.b16 %v85
    %v1411 = vunpack.c.h.b16 %v85
    %v1412 = vunpack.c.l.b16 %v86
    %v1413 = vunpack.c.h.b16 %v86
    %v1414 = vunpack.c.l.b16 %v87
    %v1415 = vunpack.c.h.b16 %v87
    %v1416 = vunpack.c.l.b16 %v88
    %v1417 = vunpack.c.h.b16 %v88
    %v1418 = vunpack.c.l.b16 %v89
    %v1419 = vunpack.c.h.b16 %v89
    %v1420 = vunpack.c.l.b16 %v90
    %v1421 = vunpack.c.h.b16 %v90
    %v1422 = vunpack.c.l.b16 %v91
    %v1423 = vunpack.c.h.b16 %v91
    %v1424 = vunpack.c.l.b16 %v92
    %v1425 = vunpack.c.h.b16 %v92
    %v1426 = vunpack.c.l.b16 %v93
    %v1427 = vunpack.c.h.b16 %v93
    %v1428 = vunpack.c.l.b16 %v94
    %v1429 = vunpack.c.h.b16 %v94
    %v1430 = vunpack.c.l.b16 %v95
    %v1431 = vunpack.c.h.b16 %v95
    %v1432 = vunpack.c.l.b16 %v96
    %v1433 = vunpack.c.h.b16 %v96
    %v1434 = vunpack.c.l.b16 %v97
    %v1435 = vunpack.c.h.b16 %v97
    %v1436 = vunpack.c.l.b16 %v98
    %v1437 = vunpack.c.h.b16 %v98
    %v1438 = vunpack.c.l.b16 %v99
    %v1439 = vunpack.c.h.b16 %v99
    %v1440 = vunpack.c.l.b16 %v100
    %v1441 = vunpack.c.h.b16 %v100
    %v1442 = vunpack.c.l.b16 %v101
    %v1443 = vunpack.c.h.b16 %v101
    %v1444 = vunpack.c.l.b16 %v102
    %v1445 = vunpack.c.h.b16 %v102
    %v1446 = vunpack.c.l.b16 %v103
    %v1447 = vunpack.c.h.b16 %v103
    %v1448 = vunpack.c.l.b16 %v104
    %v1449 = vunpack.c.h.b16 %v104
    %v1450 = vunpack.c.l.b16 %v105
    %v1451 = vunpack.c.h.b16 %v105
    %v1452 = vunpack.c.l.b16 %v106
    %v1453 = vunpack.c.h.b16 %v106
    %v1454 = vunpack.c.l.b16 %v107
    %v1455 = vunpack.c.h.b16 %v107
    %v1456 = vunpack.c.l.b16 %v108
    %v1457 = vunpack.c.h.b16 %v108
    %v1458 = vunpack.c.l.b16 %v109
    %v1459 = vunpack.c.h.b16 %v109
    %v1460 = vunpack.c.l.b16 %v110
    %v1461 = vunpack.c.h.b16 %v110
    %v1462 = vunpack.c.l.b16 %v111
    %v1463 = vunpack.c.h.b16 %v111
    %v1464 = vunpack.c.l.b16 %v112
    %v1465 = vunpack.c.h.b16 %v112
    %v1466 = vunpack.c.l.b16 %v113
    %v1467 = vunpack.c.h.b16 %v113
    %v1468 = vunpack.c.l.b16 %v114
    %v1469 = vunpack.c.h.b16 %v114
    %v1470 = vunpack.c.l.b16 %v115
    %v1471 = vunpack.c.h.b16 %v115
    %v1472 = vunpack.c.l.b16 %v116
    %v1473 = vunpack.c.h.b16 %v116
    %v1474 = vunpack.c.l.b16 %v117
    %v1475 = vunpack.c.h.b16 %v117
    %v1476 = vunpack.c.l.b16 %v118
    %v1477 = vunpack.c.h.b16 %v118
    %v1478 = vunpack.c.l.b16 %v119
    %v1479 = vunpack.c.h.b16 %v119
    %v1480 = vunpack.c.l.b16 %v120
    %v1481 = vunpack.c.h.b16 %v120
    %v1482 = vunpack.c.l.b16 %v121
    %v1483 = vunpack.c.h.b16 %v121
    %v1484 = vunpack.c.l.b16 %v122
    %v1485 = vunpack.c.h.b16 %v122
    %v1486 = vunpack.c.l.b16 %v123
    %v1487 = vunpack.c.h.b16 %v123
    %v1488 = vunpack.c.l.b16 %v124
    %v1489 = vunpack.c.h.b16 %v124
    %v1490 = vunpack.c.l.b16 %v125
    %v1491 = vunpack.c.h.b16 %v125
    %v1492 = vunpack.c.l.b16 %v126
    %v1493 = vunpack.c.h.b16 %v126
    %v1494 = vunpack.c.l.b16 %v127
    %v1495 = vunpack.c.h.b16 %v127
    %v1496 = vunpack.c.l.b16 %v128
    %v1497 = vunpack.c.h.b16 %v128
    %v1498 = vunpack.c.l.b16 %v129
    %v1499 = vunpack.c.h.b16 %v129
    %v1500 = vunpack.c.l.b16 %v130
    %v1501 = vunpack.c.h.b16 %v130
    %v1502 = vunpack.c.l.b16 %v131
    %v1503 = vunpack.c.h.b16 %v131
    %v1504 = vunpack.c.l.b16 %v132
    %v1505 = vunpack.c.h.b16 %v132
    %v1506 = vunpack.c.l.b16 %v133
    %v1507 = vunpack.c.h.b16 %v133
    %v1508 = vunpack.c.l.b16 %v134
    %v1509 = vunpack.c.h.b16 %v134
    %v1510 = vunpack.c.l.b16 %v135
    %v1511 = vunpack.c.h.b16 %v135
    %v1512 = vunpack.c.l.b16 %v136
    %v1513 = vunpack.c.h.b16 %v136
    %v1514 = vunpack.c.l.b16 %v137
    %v1515 = vunpack.c.h.b16 %v137
    %v1516 = vunpack.c.l.b16 %v138
    %v1517 = vunpack.c.h.b16 %v138
    %v1518 = vunpack.c.l.b16 %v139
    %v1519 = vunpack.c.h.b16 %v139
    %v1520 = vunpack.c.l.b16 %v140
    %v1521 = vunpack.c.h.b16 %v140
    %v1522 = vunpack.c.l.b16 %v141
    %v1523 = vunpack.c.h.b16 %v141
    %v1524 = vunpack.c.l.b16 %v142
    %v1525 = vunpack.c.h.b16 %v142
    %v1526 = vunpack.c.l.b16 %v143
    %v1527 = vunpack.c.h.b16 %v143
    %v1528 = vunpack.c.l.b16 %v144
    %v1529 = vunpack.c.h.b16 %v144
    %v1530 = vunpack.c.l.b16 %v145
    %v1531 = vunpack.c.h.b16 %v145
    %v1532 = vunpack.c.l.b16 %v146
    %v1533 = vunpack.c.h.b16 %v146
    %v1534 = vunpack.c.l.b16 %v147
    %v1535 = vunpack.c.h.b16 %v147
    %v1536 = vunpack.c.l.b16 %v148
    %v1537 = vunpack.c.h.b16 %v148
    %v1538 = vunpack.c.l.b16 %v149
    %v1539 = vunpack.c.h.b16 %v149
    %v1540 = vunpack.c.l.b16 %v150
    %v1541 = vunpack.c.h.b16 %v150
    %v1542 = vunpack.c.l.b16 %v151
    %v1543 = vunpack.c.h.b16 %v151
    %v1544 = vunpack.c.l.b16 %v152
    %v1545 = vunpack.c.h.b16 %v152
    %v1546 = vunpack.c.l.b16 %v153
    %v1547 = vunpack.c.h.b16 %v153
    %v1548 = vunpack.c.l.b16 %v154
    %v1549 = vunpack.c.h.b16 %v154
    %v1550 = vunpack.c.l.b16 %v155
    %v1551 = vunpack.c.h.b16 %v155
    %v1552 = vunpack.c.l.b16 %v156
    %v1553 = vunpack.c.h.b16 %v156
    %v1554 = vunpack.c.l.b16 %v157
    %v1555 = vunpack.c.h.b16 %v157
    %v1556 = vunpack.c.l.b16 %v158
    %v1557 = vunpack.c.h.b16 %v158
    %v1558 = vunpack.c.l.b16 %v159
    %v1559 = vunpack.c.h.b16 %v159
    %v1560 = vunpack.c.l.b16 %v160
    %v1561 = vunpack.c.h.b16 %v160
    %v1562 = vunpack.c.l.b16 %v161
    %v1563 = vunpack.c.h.b16 %v161
    %v1564 = vunpack.c.l.b16 %v162
    %v1565 = vunpack.c.h.b16 %v162
    %v1566 = vunpack.c.l.b16 %v163
    %v1567 = vunpack.c.h.b16 %v163
    %v1568 = vunpack.c.l.b16 %v164
    %v1569 = vunpack.c.h.b16 %v164
    %v1570 = vunpack.c.l.b16 %v165
    %v1571 = vunpack.c.h.b16 %v165
    %v1572 = vunpack.c.l.b16 %v166
    %v1573 = vunpack.c.h.b16 %v166
    %v1574 = vunpack.c.l.b16 %v167
    %v1575 = vunpack.c.h.b16 %v167
    %v1576 = vunpack.c.l.b16 %v168
    %v1577 = vunpack.c.h.b16 %v168
    %v1578 = vunpack.c.l.b16 %v169
    %v1579 = vunpack.c.h.b16 %v169
    %v1580 = vunpack.c.l.b16 %v170
    %v1581 = vunpack.c.h.b16 %v170
    %v1582 = vunpack.c.l.b16 %v171
    %v1583 = vunpack.c.h.b16 %v171
    %v1584 = vunpack.c.l.b16 %v172
    %v1585 = vunpack.c.h.b16 %v172
    %v1586 = vunpack.c.l.b16 %v173
    %v1587 = vunpack.c.h.b16 %v173
    %v1588 = vunpack.c.l.b16 %v174
    %v1589 = vunpack.c.h.b16 %v174
    %v1590 = vunpack.c.l.b16 %v175
    %v1591 = vunpack.c.h.b16 %v175
    %v1592 = vunpack.c.l.b16 %v176
    %v1593 = vunpack.c.h.b16 %v176
    %v1594 = vunpack.c.l.b16 %v177
    %v1595 = vunpack.c.h.b16 %v177
    %v1596 = vunpack.c.l.b16 %v178
    %v1597 = vunpack.c.h.b16 %v178
    %v1598 = vunpack.c.l.b16 %v179
    %v1599 = vunpack.c.h.b16 %v179
    %v1600 = vunpack.c.l.b16 %v180
    %v1601 = vunpack.c.h.b16 %v180
    %v1602 = vunpack.c.l.b16 %v181
    %v1603 = vunpack.c.h.b16 %v181
    %v1604 = vunpack.c.l.b16 %v182
    %v1605 = vunpack.c.h.b16 %v182
    %v1606 = vunpack.c.l.b16 %v183
    %v1607 = vunpack.c.h.b16 %v183
    %v1608 = vunpack.c.l.b16 %v184
    %v1609 = vunpack.c.h.b16 %v184
    %v1610 = vunpack.c.l.b16 %v185
    %v1611 = vunpack.c.h.b16 %v185
    %v1612 = vunpack.c.l.b16 %v186
    %v1613 = vunpack.c.h.b16 %v186
    %v1614 = vunpack.c.l.b16 %v187
    %v1615 = vunpack.c.h.b16 %v187
    %v1616 = vunpack.c.l.b16 %v188
    %v1617 = vunpack.c.h.b16 %v188
    %v1618 = vunpack.c.l.b16 %v189
    %v1619 = vunpack.c.h.b16 %v189
    %v1620 = vunpack.c.l.b16 %v190
    %v1621 = vunpack.c.h.b16 %v190
    %v1622 = vunpack.c.l.b16 %v191
    %v1623 = vunpack.c.h.b16 %v191
    %v1624 = vunpack.c.l.b16 %v192
    %v1625 = vunpack.c.h.b16 %v192
    %v1626 = vunpack.c.l.b16 %v193
    %v1627 = vunpack.c.h.b16 %v193
    %v1628 = vunpack.c.l.b16 %v194
    %v1629 = vunpack.c.h.b16 %v194
    %v1630 = vunpack.c.l.b16 %v195
    %v1631 = vunpack.c.h.b16 %v195
    %v1632 = vunpack.c.l.b16 %v196
    %v1633 = vunpack.c.h.b16 %v196
    %v1634 = vunpack.c.l.b16 %v197
    %v1635 = vunpack.c.h.b16 %v197
    %v1636 = vunpack.c.l.b16 %v198
    %v1637 = vunpack.c.h.b16 %v198
    %v1638 = vunpack.c.l.b16 %v199
    %v1639 = vunpack.c.h.b16 %v199
    %v1640 = vunpack.c.l.b16 %v200
    %v1641 = vunpack.c.h.b16 %v200
    %v1642 = vunpack.c.l.b16 %v201
    %v1643 = vunpack.c.h.b16 %v201
    %v1644 = vunpack.c.l.b16 %v202
    %v1645 = vunpack.c.h.b16 %v202
    %v1646 = vunpack.c.l.b16 %v203
    %v1647 = vunpack.c.h.b16 %v203
    %v1648 = vunpack.c.l.b16 %v204
    %v1649 = vunpack.c.h.b16 %v204
    %v1650 = vunpack.c.l.b16 %v205
    %v1651 = vunpack.c.h.b16 %v205
    %v1652 = vunpack.c.l.b16 %v206
    %v1653 = vunpack.c.h.b16 %v206
    %v1654 = vunpack.c.l.b16 %v207
    %v1655 = vunpack.c.h.b16 %v207
    %v1656 = vunpack.c.l.b16 %v208
    %v1657 = vunpack.c.h.b16 %v208
    %v1658 = vunpack.c.l.b16 %v209
    %v1659 = vunpack.c.h.b16 %v209
    %v1660 = vunpack.c.l.b16 %v210
    %v1661 = vunpack.c.h.b16 %v210
    %v1662 = vunpack.c.l.b16 %v211
    %v1663 = vunpack.c.h.b16 %v211
    %v1664 = vunpack.c.l.b16 %v212
    %v1665 = vunpack.c.h.b16 %v212
    %v1666 = vunpack.c.l.b16 %v213
    %v1667 = vunpack.c.h.b16 %v213
    %v1668 = vunpack.c.l.b16 %v214
    %v1669 = vunpack.c.h.b16 %v214
    %v1670 = vunpack.c.l.b16 %v215
    %v1671 = vunpack.c.h.b16 %v215
    %v1672 = vunpack.c.l.b16 %v216
    %v1673 = vunpack.c.h.b16 %v216
    %v1674 = vunpack.c.l.b16 %v217
    %v1675 = vunpack.c.h.b16 %v217
    %v1676 = vunpack.c.l.b16 %v218
    %v1677 = vunpack.c.h.b16 %v218
    %v1678 = vunpack.c.l.b16 %v219
    %v1679 = vunpack.c.h.b16 %v219
    %v1680 = vunpack.c.l.b16 %v220
    %v1681 = vunpack.c.h.b16 %v220
    %v1682 = vunpack.c.l.b16 %v221
    %v1683 = vunpack.c.h.b16 %v221
    %v1684 = vunpack.c.l.b16 %v222
    %v1685 = vunpack.c.h.b16 %v222
    %v1686 = vunpack.c.l.b16 %v223
    %v1687 = vunpack.c.h.b16 %v223
    %v1688 = vunpack.c.l.b16 %v224
    %v1689 = vunpack.c.h.b16 %v224
    %v1690 = vunpack.c.l.b16 %v225
    %v1691 = vunpack.c.h.b16 %v225
    %v1692 = vunpack.c.l.b16 %v226
    %v1693 = vunpack.c.h.b16 %v226
    %v1694 = vunpack.c.l.b16 %v227
    %v1695 = vunpack.c.h.b16 %v227
    %v1696 = vunpack.c.l.b16 %v228
    %v1697 = vunpack.c.h.b16 %v228
    %v1698 = vunpack.c.l.b16 %v229
    %v1699 = vunpack.c.h.b16 %v229
    %v1700 = vunpack.c.l.b16 %v230
    %v1701 = vunpack.c.h.b16 %v230
    %v1702 = vunpack.c.l.b16 %v231
    %v1703 = vunpack.c.h.b16 %v231
    %v1704 = vunpack.c.l.b16 %v232
    %v1705 = vunpack.c.h.b16 %v232
    %v1706 = vunpack.c.l.b16 %v233
    %v1707 = vunpack.c.h.b16 %v233
    %v1708 = vunpack.c.l.b16 %v234
    %v1709 = vunpack.c.h.b16 %v234
    %v1710 = vunpack.c.l.b16 %v235
    %v1711 = vunpack.c.h.b16 %v235
    %v1712 = vunpack.c.l.b16 %v236
    %v1713 = vunpack.c.h.b16 %v236
    %v1714 = vunpack.c.l.b16 %v237
    %v1715 = vunpack.c.h.b16 %v237
    %v1716 = vunpack.c.l.b16 %v238
    %v1717 = vunpack.c.h.b16 %v238
    %v1718 = vunpack.c.l.b16 %v239
    %v1719 = vunpack.c.h.b16 %v239
    %v1720 = vunpack.c.l.b16 %v240
    %v1721 = vunpack.c.h.b16 %v240
    %v1722 = vunpack.c.l.b16 %v241
    %v1723 = vunpack.c.h.b16 %v241
    %v1724 = vunpack.c.l.b16 %v242
    %v1725 = vunpack.c.h.b16 %v242
    %v1726 = vunpack.c.l.b16 %v243
    %v1727 = vunpack.c.h.b16 %v243
    %v1728 = vunpack.c.l.b16 %v244
    %v1729 = vunpack.c.h.b16 %v244
    %v1730 = vunpack.c.l.b16 %v245
    %v1731 = vunpack.c.h.b16 %v245
    %v1732 = vunpack.c.l.b16 %v246
    %v1733 = vunpack.c.h.b16 %v246
    %v1734 = vunpack.c.l.b16 %v247
    %v1735 = vunpack.c.h.b16 %v247
    %v1736 = vunpack.c.l.b16 %v248
    %v1737 = vunpack.c.h.b16 %v248
    %v1738 = vunpack.c.l.b16 %v249
    %v1739 = vunpack.c.h.b16 %v249
    %v1740 = vunpack.c.l.b16 %v250
    %v1741 = vunpack.c.h.b16 %v250
    %v1742 = vunpack.c.l.b16 %v251
    %v1743 = vunpack.c.h.b16 %v251
    %v1744 = vunpack.c.l.b16 %v252
    %v1745 = vunpack.c.h.b16 %v252
    %v1746 = vunpack.c.l.b16 %v253
    %v1747 = vunpack.c.h.b16 %v253
    %v1748 = vunpack.c.l.b16 %v254
    %v1749 = vunpack.c.h.b16 %v254
    %v1750 = vunpack.c.l.b16 %v255
    %v1751 = vunpack.c.h.b16 %v255
    %v1752 = vunpack.c.l.b16 %v256
    %v1753 = vunpack.c.h.b16 %v256
    %v1754 = vunpack.c.l.b16 %v257
    %v1755 = vunpack.c.h.b16 %v257
    %v1756 = vunpack.c.l.b16 %v258
    %v1757 = vunpack.c.h.b16 %v258
    %v1758 = vunpack.c.l.b16 %v259
    %v1759 = vunpack.c.h.b16 %v259
    %v1760 = vunpack.c.l.b16 %v260
    %v1761 = vunpack.c.h.b16 %v260
    %v1762 = vunpack.c.l.b16 %v261
    %v1763 = vunpack.c.h.b16 %v261
    %v1764 = vunpack.c.l.b16 %v262
    %v1765 = vunpack.c.h.b16 %v262
    %v1766 = vunpack.c.l.b16 %v263
    %v1767 = vunpack.c.h.b16 %v263
    %v1768 = vunpack.c.l.b16 %v264
    %v1769 = vunpack.c.h.b16 %v264
    %v1770 = vunpack.c.l.b16 %v265
    %v1771 = vunpack.c.h.b16 %v265
    %v1772 = vunpack.c.l.b16 %v266
    %v1773 = vunpack.c.h.b16 %v266
    %v1774 = vunpack.c.l.b16 %v267
    %v1775 = vunpack.c.h.b16 %v267
    %v1776 = vunpack.c.l.b16 %v268
    %v1777 = vunpack.c.h.b16 %v268
    %v1778 = vunpack.c.l.b16 %v269
    %v1779 = vunpack.c.h.b16 %v269
    %v1780 = vunpack.c.l.b16 %v270
    %v1781 = vunpack.c.h.b16 %v270
    %v1782 = vunpack.c.l.b16 %v271
    %v1783 = vunpack.c.h.b16 %v271
    %v1784 = vunpack.c.l.b16 %v272
    %v1785 = vunpack.c.h.b16 %v272
    %v1786 = vunpack.c.l.b16 %v273
    %v1787 = vunpack.c.h.b16 %v273
    %v1788 = vunpack.c.l.b16 %v274
    %v1789 = vunpack.c.h.b16 %v274
    %v1790 = vunpack.c.l.b16 %v275
    %v1791 = vunpack.c.h.b16 %v275
    %v1792 = vunpack.c.l.b16 %v276
    %v1793 = vunpack.c.h.b16 %v276
    %v1794 = vunpack.c.l.b16 %v277
    %v1795 = vunpack.c.h.b16 %v277
    %v1796 = vunpack.c.l.b16 %v278
    %v1797 = vunpack.c.h.b16 %v278
    %v1798 = vunpack.c.l.b16 %v279
    %v1799 = vunpack.c.h.b16 %v279
    %v1800 = vunpack.c.l.b16 %v280
    %v1801 = vunpack.c.h.b16 %v280
    %v1802 = vunpack.c.l.b16 %v281
    %v1803 = vunpack.c.h.b16 %v281
    %v1804 = vunpack.c.l.b16 %v282
    %v1805 = vunpack.c.h.b16 %v282
    %v1806 = vunpack.c.l.b16 %v283
    %v1807 = vunpack.c.h.b16 %v283
    %v1808 = vunpack.c.l.b16 %v284
    %v1809 = vunpack.c.h.b16 %v284
    %v1810 = vunpack.c.l.b16 %v285
    %v1811 = vunpack.c.h.b16 %v285
    %v1812 = vunpack.c.l.b16 %v286
    %v1813 = vunpack.c.h.b16 %v286
    %v1814 = vunpack.c.l.b16 %v287
    %v1815 = vunpack.c.h.b16 %v287
    %v1816 = vunpack.c.l.b16 %v288
    %v1817 = vunpack.c.h.b16 %v288
    %v1818 = vunpack.c.l.b16 %v289
    %v1819 = vunpack.c.h.b16 %v289
    %v1820 = vunpack.c.l.b16 %v290
    %v1821 = vunpack.c.h.b16 %v290
    %v1822 = vunpack.c.l.b16 %v291
    %v1823 = vunpack.c.h.b16 %v291
    %v1824 = vunpack.c.l.b16 %v292
    %v1825 = vunpack.c.h.b16 %v292
    %v1826 = vunpack.c.l.b16 %v293
    %v1827 = vunpack.c.h.b16 %v293
    %v1828 = vunpack.c.l.b16 %v294
    %v1829 = vunpack.c.h.b16 %v294
    %v1830 = vunpack.c.l.b16 %v295
    %v1831 = vunpack.c.h.b16 %v295
    %v1832 = vunpack.c.l.b16 %v296
    %v1833 = vunpack.c.h.b16 %v296
    %v1834 = vunpack.c.l.b16 %v297
    %v1835 = vunpack.c.h.b16 %v297
    %v1836 = vunpack.c.l.b16 %v298
    %v1837 = vunpack.c.h.b16 %v298
    %v1838 = vunpack.c.l.b16 %v299
    %v1839 = vunpack.c.h.b16 %v299
    %v1840 = vunpack.c.l.b16 %v300
    %v1841 = vunpack.c.h.b16 %v300
    %v1842 = vunpack.c.l.b16 %v301
    %v1843 = vunpack.c.h.b16 %v301
    %v1844 = vunpack.c.l.b16 %v302
    %v1845 = vunpack.c.h.b16 %v302
    %v1846 = vunpack.c.l.b16 %v303
    %v1847 = vunpack.c.h.b16 %v303
    %v1848 = vunpack.c.l.b16 %v304
    %v1849 = vunpack.c.h.b16 %v304
    %v1850 = vunpack.c.l.b16 %v305
    %v1851 = vunpack.c.h.b16 %v305
    %v1852 = vunpack.c.l.b16 %v306
    %v1853 = vunpack.c.h.b16 %v306
    %v1854 = vunpack.c.l.b16 %v307
    %v1855 = vunpack.c.h.b16 %v307
    %v1856 = vunpack.c.l.b16 %v308
    %v1857 = vunpack.c.h.b16 %v308
    %v1858 = vunpack.c.l.b16 %v309
    %v1859 = vunpack.c.h.b16 %v309
    %v1860 = vunpack.c.l.b16 %v310
    %v1861 = vunpack.c.h.b16 %v310
    %v1862 = vunpack.c.l.b16 %v311
    %v1863 = vunpack.c.h.b16 %v311
    %v1864 = vunpack.c.l.b16 %v312
    %v1865 = vunpack.c.h.b16 %v312
    %v1866 = vunpack.c.l.b16 %v313
    %v1867 = vunpack.c.h.b16 %v313
    %v1868 = vunpack.c.l.b16 %v314
    %v1869 = vunpack.c.h.b16 %v314
    %v1870 = vunpack.c.l.b16 %v315
    %v1871 = vunpack.c.h.b16 %v315
    %v1872 = vunpack.c.l.b16 %v316
    %v1873 = vunpack.c.h.b16 %v316
    %v1874 = vunpack.c.l.b16 %v317
    %v1875 = vunpack.c.h.b16 %v317
    %v1876 = vunpack.c.l.b16 %v318
    %v1877 = vunpack.c.h.b16 %v318
    %v1878 = vunpack.c.l.b16 %v319
    %v1879 = vunpack.c.h.b16 %v319
    %v1880 = vunpack.c.l.b16 %v320
    %v1881 = vunpack.c.h.b16 %v320
    %v1882 = vunpack.c.l.b16 %v321
    %v1883 = vunpack.c.h.b16 %v321
    %v1884 = vunpack.c.l.b16 %v322
    %v1885 = vunpack.c.h.b16 %v322
    %v1886 = vunpack.c.l.b16 %v323
    %v1887 = vunpack.c.h.b16 %v323
    %v1888 = vunpack.c.l.b16 %v324
    %v1889 = vunpack.c.h.b16 %v324
    %v1890 = vunpack.c.l.b16 %v325
    %v1891 = vunpack.c.h.b16 %v325
    %v1892 = vunpack.c.l.b16 %v326
    %v1893 = vunpack.c.h.b16 %v326
    %v1894 = vunpack.c.l.b16 %v327
    %v1895 = vunpack.c.h.b16 %v327
    %v1896 = vunpack.c.l.b16 %v328
    %v1897 = vunpack.c.h.b16 %v328
    %v1898 = vunpack.c.l.b16 %v329
    %v1899 = vunpack.c.h.b16 %v329
    %v1900 = vunpack.c.l.b16 %v330
    %v1901 = vunpack.c.h.b16 %v330
    %v1902 = vunpack.c.l.b16 %v331
    %v1903 = vunpack.c.h.b16 %v331
    %v1904 = vunpack.c.l.b16 %v332
    %v1905 = vunpack.c.h.b16 %v332
    %v1906 = vunpack.c.l.b16 %v333
    %v1907 = vunpack.c.h.b16 %v333
    %v1908 = vunpack.c.l.b16 %v334
    %v1909 = vunpack.c.h.b16 %v334
    %v1910 = vunpack.c.l.b16 %v335
    %v1911 = vunpack.c.h.b16 %v335
    %v1912 = vunpack.c.l.b16 %v336
    %v1913 = vunpack.c.h.b16 %v336
    %v1914 = vunpack.c.l.b16 %v337
    %v1915 = vunpack.c.h.b16 %v337
    %v1916 = vunpack.c.l.b16 %v338
    %v1917 = vunpack.c.h.b16 %v338
    %v1918 = vunpack.c.l.b16 %v339
    %v1919 = vunpack.c.h.b16 %v339
    %v1920 = vunpack.c.l.b16 %v340
    %v1921 = vunpack.c.h.b16 %v340
    %v1922 = vunpack.c.l.b16 %v341
    %v1923 = vunpack.c.h.b16 %v341
    %v1924 = vunpack.c.l.b16 %v342
    %v1925 = vunpack.c.h.b16 %v342
    %v1926 = vunpack.c.l.b16 %v343
    %v1927 = vunpack.c.h.b16 %v343
    %v1928 = vunpack.c.l.b16 %v344
    %v1929 = vunpack.c.h.b16 %v344
    %v1930 = vunpack.c.l.b16 %v345
    %v1931 = vunpack.c.h.b16 %v345
    %v1932 = vunpack.c.l.b16 %v346
    %v1933 = vunpack.c.h.b16 %v346
    %v1934 = vunpack.c.l.b16 %v347
    %v1935 = vunpack.c.h.b16 %v347
    %v1936 = vunpack.c.l.b16 %v348
    %v1937 = vunpack.c.h.b16 %v348
    %v1938 = vunpack.c.l.b16 %v349
    %v1939 = vunpack.c.h.b16 %v349
    %v1940 = vunpack.c.l.b16 %v350
    %v1941 = vunpack.c.h.b16 %v350
    %v1942 = vunpack.c.l.b16 %v351
    %v1943 = vunpack.c.h.b16 %v351
    %v1944 = vunpack.c.l.b16 %v352
    %v1945 = vunpack.c.h.b16 %v352
    %v1946 = vunpack.c.l.b16 %v353
    %v1947 = vunpack.c.h.b16 %v353
    %v1948 = vunpack.c.l.b16 %v354
    %v1949 = vunpack.c.h.b16 %v354
    %v1950 = vunpack.c.l.b16 %v355
    %v1951 = vunpack.c.h.b16 %v355
    %v1952 = vunpack.c.l.b16 %v356
    %v1953 = vunpack.c.h.b16 %v356
    %v1954 = vunpack.c.l.b16 %v357
    %v1955 = vunpack.c.h.b16 %v357
    %v1956 = vunpack.c.l.b16 %v358
    %v1957 = vunpack.c.h.b16 %v358
    %v1958 = vunpack.c.l.b16 %v359
    %v1959 = vunpack.c.h.b16 %v359
    %v1960 = vpack.c.b16 %v1340, %v1320
    %v1961 = vpack.c.b16 %v1341, %v1321
    %v1962 = vpack.c.b16 %v1342, %v1322
    %v1963 = vpack.c.b16 %v1343, %v1323
    %v1964 = vpack.c.b16 %v1344, %v1324
    %v1965 = vpack.c.b16 %v1345, %v1325
    %v1966 = vpack.c.b16 %v1346, %v1326
    %v1967 = vpack.c.b16 %v1347, %v1327
    %v1968 = vpack.c.b16 %v1348, %v1328
    %v1969 = vpack.c.b16 %v1349, %v1329
    %v1970 = vpack.c.b16 %v1350, %v1330
    %v1971 = vpack.c.b16 %v1351, %v1331
    %v1972 = vpack.c.b16 %v1352, %v1332
    %v1973 = vpack.c.b16 %v1353, %v1333
    %v1974 = vpack.c.b16 %v1354, %v1334
    %v1975 = vpack.c.b16 %v1355, %v1335
    %v1976 = vpack.c.b16 %v1356, %v1336
    %v1977 = vpack.c.b16 %v1357, %v1337
    %v1978 = vpack.c.b16 %v1358, %v1338
    %v1979 = vpack.c.b16 %v1359, %v1339
    %v1980 = vpack.c.b16 %v1380, %v1360
    %v1981 = vpack.c.b16 %v1381, %v1361
    %v1982 = vpack.c.b16 %v1382, %v1362
    %v1983 = vpack.c.b16 %v1383, %v1363
    %v1984 = vpack.c.b16 %v1384, %v1364
    %v1985 = vpack.c.b16 %v1385, %v1365
    %v1986 = vpack.c.b16 %v1386, %v1366
    %v1987 = vpack.c.b16 %v1387, %v1367
    %v1988 = vpack.c.b16 %v1388, %v1368
    %v1989 = vpack.c.b16 %v1389, %v1369
    %v1990 = vpack.c.b16 %v1390, %v1370
    %v1991 = vpack.c.b16 %v1391, %v1371
    %v1992 = vpack.c.b16 %v1392, %v1372
    %v1993 = vpack.c.b16 %v1393, %v1373
    %v1994 = vpack.c.b16 %v1394, %v1374
    %v1995 = vpack.c.b16 %v1395, %v1375
    %v1996 = vpack.c.b16 %v1396, %v1376
    %v1997 = vpack.c.b16 %v1397, %v1377
    %v1998 = vpack.c.b16 %v1398, %v1378
    %v1999 = vpack.c.b16 %v1399, %v1379
    %v2000 = vpack.c.b16 %v1420, %v1400
    %v2001 = vpack.c.b16 %v1421, %v1401
    %v2002 = vpack.c.b16 %v1422, %v1402
    %v2003 = vpack.c.b16 %v1423, %v1403
    %v2004 = vpack.c.b16 %v1424, %v1404
    %v2005 = vpack.c.b16 %v1425, %v1405
    %v2006 = vpack.c.b16 %v1426, %v1406
    %v2007 = vpack.c.b16 %v1427, %v1407
    %v2008 = vpack.c.b16 %v1428, %v1408
    %v2009 = vpack.c.b16 %v1429, %v1409
    %v2010 = vpack.c.b16 %v1430, %v1410
    %v2011 = vpack.c.b16 %v1431, %v1411
    %v2012 = vpack.c.b16 %v1432, %v1412
    %v2013 = vpack.c.b16 %v1433, %v1413
    %v2014 = vpack.c.b16 %v1434, %v1414
    %v2015 = vpack.c.b16 %v1435, %v1415
    %v2016 = vpack.c.b16 %v1436, %v1416
    %v2017 = vpack.c.b16 %v1437, %v1417
    %v2018 = vpack.c.b16 %v1438, %v1418
    %v2019 = vpack.c.b16 %v1439, %v1419
    %v2020 = vpack.c.b16 %v1460, %v1440
    %v2021 = vpack.c.b16 %v1461, %v1441
    %v2022 = vpack.c.b16 %v1462, %v1442
    %v2023 = vpack.c.b16 %v1463, %v1443
    %v2024 = vpack.c.b16 %v1464, %v1444
    %v2025 = vpack.c.b16 %v1465, %v1445
    %v2026 = vpack.c.b16 %v1466, %v1446
    %v2027 = vpack.c.b16 %v1467, %v1447
    %v2028 = vpack.c.b16 %v1468, %v1448
    %v2029 = vpack.c.b16 %v1469, %v1449
    %v2030 = vpack.c.b16 %v1470, %v1450
    %v2031 = vpack.c.b16 %v1471, %v1451
    %v2032 = vpack.c.b16 %v1472, %v1452
    %v2033 = vpack.c.b16 %v1473, %v1453
    %v2034 = vpack.c.b16 %v1474, %v1454
    %v2035 = vpack.c.b16 %v1475, %v1455
    %v2036 = vpack.c.b16 %v1476, %v1456
    %v2037 = vpack.c.b16 %v1477, %v1457
    %v2038 = vpack.c.b16 %v1478, %v1458
    %v2039 = vpack.c.b16 %v1479, %v1459
    %v2040 = vpack.c.b16 %v1500, %v1480
    %v2041 = vpack.c.b16 %v1501, %v1481
    %v2042 = vpack.c.b16 %v1502, %v1482
    %v2043 = vpack.c.b16 %v1503, %v1483
    %v2044 = vpack.c.b16 %v1504, %v1484
    %v2045 = vpack.c.b16 %v1505, %v1485
    %v2046 = vpack.c.b16 %v1506, %v1486
    %v2047 = vpack.c.b16 %v1507, %v1487
    %v2048 = vpack.c.b16 %v1508, %v1488
    %v2049 = vpack.c.b16 %v1509, %v1489
    %v2050 = vpack.c.b16 %v1510, %v1490
    %v2051 = vpack.c.b16 %v1511, %v1491
    %v2052 = vpack.c.b16 %v1512, %v1492
    %v2053 = vpack.c.b16 %v1513, %v1493
    %v2054 = vpack.c.b16 %v1514, %v1494
    %v2055 = vpack.c.b16 %v1515, %v1495
    %v2056 = vpack.c.b16 %v1516, %v1496
    %v2057 = vpack.c.b16 %v1517, %v1497
    %v2058 = vpack.c.b16 %v1518, %v1498
    %v2059 = vpack.c.b16 %v1519, %v1499
    %v2060 = vpack.c.b16 %v1540, %v1520
    %v2061 = vpack.c.b16 %v1541, %v1521
    %v2062 = vpack.c.b16 %v1542, %v1522
    %v2063 = vpack.c.b16 %v1543, %v1523
    %v2064 = vpack.c.b16 %v1544, %v1524
    %v2065 = vpack.c.b16 %v1545, %v1525
    %v2066 = vpack.c.b16 %v1546, %v1526
    %v2067 = vpack.c.b16 %v1547, %v1527
    %v2068 = vpack.c.b16 %v1548, %v1528
    %v2069 = vpack.c.b16 %v1549, %v1529
    %v2070 = vpack.c.b16 %v1550, %v1530
    %v2071 = vpack.c.b16 %v1551, %v1531
    %v2072 = vpack.c.b16 %v1552, %v1532
    %v2073 = vpack.c.b16 %v1553, %v1533
    %v2074 = vpack.c.b16 %v1554, %v1534
    %v2075 = vpack.c.b16 %v1555, %v1535
    %v2076 = vpack.c.b16 %v1556, %v1536
    %v2077 = vpack.c.b16 %v1557, %v1537
    %v2078 = vpack.c.b16 %v1558, %v1538
    %v2079 = vpack.c.b16 %v1559, %v1539
    %v2080 = vpack.c.b16 %v1580, %v1560
    %v2081 = vpack.c.b16 %v1581, %v1561
    %v2082 = vpack.c.b16 %v1582, %v1562
    %v2083 = vpack.c.b16 %v1583, %v1563
    %v2084 = vpack.c.b16 %v1584, %v1564
    %v2085 = vpack.c.b16 %v1585, %v1565
    %v2086 = vpack.c.b16 %v1586, %v1566
    %v2087 = vpack.c.b16 %v1587, %v1567
    %v2088 = vpack.c.b16 %v1588, %v1568
    %v2089 = vpack.c.b16 %v1589, %v1569
    %v2090 = vpack.c.b16 %v1590, %v1570
    %v2091 = vpack.c.b16 %v1591, %v1571
    %v2092 = vpack.c.b16 %v1592, %v1572
    %v2093 = vpack.c.b16 %v1593, %v1573
    %v2094 = vpack.c.b16 %v1594, %v1574
    %v2095 = vpack.c.b16 %v1595, %v1575
    %v2096 = vpack.c.b16 %v1596, %v1576
    %v2097 = vpack.c.b16 %v1597, %v1577
    %v2098 = vpack.c.b16 %v1598, %v1578
    %v2099 = vpack.c.b16 %v1599, %v1579
    %v2100 = vpack.c.b16 %v1620, %v1600
    %v2101 = vpack.c.b16 %v1621, %v1601
    %v2102 = vpack.c.b16 %v1622, %v1602
    %v2103 = vpack.c.b16 %v1623, %v1603
    %v2104 = vpack.c.b16 %v1624, %v1604
    %v2105 = vpack.c.b16 %v1625, %v1605
    %v2106 = vpack.c.b16 %v1626, %v1606
    %v2107 = vpack.c.b16 %v1627, %v1607
    %v2108 = vpack.c.b16 %v1628, %v1608
    %v2109 = vpack.c.b16 %v1629, %v1609
    %v2110 = vpack.c.b16 %v1630, %v1610
    %v2111 = vpack.c.b16 %v1631, %v1611
    %v2112 = vpack.c.b16 %v1632, %v1612
    %v2113 = vpack.c.b16 %v1633, %v1613
    %v2114 = vpack.c.b16 %v1634, %v1614
    %v2115 = vpack.c.b16 %v1635, %v1615
    %v2116 = vpack.c.b16 %v1636, %v1616
    %v2117 = vpack.c.b16 %v1637, %v1617
    %v2118 = vpack.c.b16 %v1638, %v1618
    %v2119 = vpack.c.b16 %v1639, %v1619
    %v2120 = vpack.c.b16 %v1660, %v1640
    %v2121 = vpack.c.b16 %v1661, %v1641
    %v2122 = vpack.c.b16 %v1662, %v1642
    %v2123 = vpack.c.b16 %v1663, %v1643
    %v2124 = vpack.c.b16 %v1664, %v1644
    %v2125 = vpack.c.b16 %v1665, %v1645
    %v2126 = vpack.c.b16 %v1666, %v1646
    %v2127 = vpack.c.b16 %v1667, %v1647
    %v2128 = vpack.c.b16 %v1668, %v1648
    %v2129 = vpack.c.b16 %v1669, %v1649
    %v2130 = vpack.c.b16 %v1670, %v1650
    %v2131 = vpack.c.b16 %v1671, %v1651
    %v2132 = vpack.c.b16 %v1672, %v1652
    %v2133 = vpack.c.b16 %v1673, %v1653
    %v2134 = vpack.c.b16 %v1674, %v1654
    %v2135 = vpack.c.b16 %v1675, %v1655
    %v2136 = vpack.c.b16 %v1676, %v1656
    %v2137 = vpack.c.b16 %v1677, %v1657
    %v2138 = vpack.c.b16 %v1678, %v1658
    %v2139 = vpack.c.b16 %v1679, %v1659
    %v2140 = vpack.c.b16 %v1700, %v1680
    %v2141 = vpack.c.b16 %v1701, %v1681
    %v2142 = vpack.c.b16 %v1702, %v1682
    %v2143 = vpack.c.b16 %v1703, %v1683
    %v2144 = vpack.c.b16 %v1704, %v1684
    %v2145 = vpack.c.b16 %v1705, %v1685
    %v2146 = vpack.c.b16 %v1706, %v1686
    %v2147 = vpack.c.b16 %v1707, %v1687
    %v2148 = vpack.c.b16 %v1708, %v1688
    %v2149 = vpack.c.b16 %v1709, %v1689
    %v2150 = vpack.c.b16 %v1710, %v1690
    %v2151 = vpack.c.b16 %v1711, %v1691
    %v2152 = vpack.c.b16 %v1712, %v1692
    %v2153 = vpack.c.b16 %v1713, %v1693
    %v2154 = vpack.c.b16 %v1714, %v1694
    %v2155 = vpack.c.b16 %v1715, %v1695
    %v2156 = vpack.c.b16 %v1716, %v1696
    %v2157 = vpack.c.b16 %v1717, %v1697
    %v2158 = vpack.c.b16 %v1718, %v1698
    %v2159 = vpack.c.b16 %v1719, %v1699
    %v2160 = vpack.c.b16 %v1740, %v1720
    %v2161 = vpack.c.b16 %v1741, %v1721
    %v2162 = vpack.c.b16 %v1742, %v1722
    %v2163 = vpack.c.b16 %v1743, %v1723
    %v2164 = vpack.c.b16 %v1744, %v1724
    %v2165 = vpack.c.b16 %v1745, %v1725
    %v2166 = vpack.c.b16 %v1746, %v1726
    %v2167 = vpack.c.b16 %v1747, %v1727
    %v2168 = vpack.c.b16 %v1748, %v1728
    %v2169 = vpack.c.b16 %v1749, %v1729
    %v2170 = vpack.c.b16 %v1750, %v1730
    %v2171 = vpack.c.b16 %v1751, %v1731
    %v2172 = vpack.c.b16 %v1752, %v1732
    %v2173 = vpack.c.b16 %v1753, %v1733
    %v2174 = vpack.c.b16 %v1754, %v1734
    %v2175 = vpack.c.b16 %v1755, %v1735
    %v2176 = vpack.c.b16 %v1756, %v1736
    %v2177 = vpack.c.b16 %v1757, %v1737
    %v2178 = vpack.c.b16 %v1758, %v1738
    %v2179 = vpack.c.b16 %v1759, %v1739
    %v2180 = vpack.c.b16 %v1780, %v1760
    %v2181 = vpack.c.b16 %v1781, %v1761
    %v2182 = vpack.c.b16 %v1782, %v1762
    %v2183 = vpack.c.b16 %v1783, %v1763
    %v2184 = vpack.c.b16 %v1784, %v1764
    %v2185 = vpack.c.b16 %v1785, %v1765
    %v2186 = vpack.c.b16 %v1786, %v1766
    %v2187 = vpack.c.b16 %v1787, %v1767
    %v2188 = vpack.c.b16 %v1788, %v1768
    %v2189 = vpack.c.b16 %v1789, %v1769
    %v2190 = vpack.c.b16 %v1790, %v1770
    %v2191 = vpack.c.b16 %v1791, %v1771
    %v2192 = vpack.c.b16 %v1792, %v1772
    %v2193 = vpack.c.b16 %v1793, %v1773
    %v2194 = vpack.c.b16 %v1794, %v1774
    %v2195 = vpack.c.b16 %v1795, %v1775
    %v2196 = vpack.c.b16 %v1796, %v1776
    %v2197 = vpack.c.b16 %v1797, %v1777
    %v2198 = vpack.c.b16 %v1798, %v1778
    %v2199 = vpack.c.b16 %v1799, %v1779
    %v2200 = vpack.c.b16 %v1820, %v1800
    %v2201 = vpack.c.b16 %v1821, %v1801
    %v2202 = vpack.c.b16 %v1822, %v1802
    %v2203 = vpack.c.b16 %v1823, %v1803
    %v2204 = vpack.c.b16 %v1824, %v1804
    %v2205 = vpack.c.b16 %v1825, %v1805
    %v2206 = vpack.c.b16 %v1826, %v1806
    %v2207 = vpack.c.b16 %v1827, %v1807
    %v2208 = vpack.c.b16 %v1828, %v1808
    %v2209 = vpack.c.b16 %v1829, %v1809
    %v2210 = vpack.c.b16 %v1830, %v1810
    %v2211 = vpack.c.b16 %v1831, %v1811
    %v2212 = vpack.c.b16 %v1832, %v1812
    %v2213 = vpack.c.b16 %v1833, %v1813
    %v2214 = vpack.c.b16 %v1834, %v1814
    %v2215 = vpack.c.b16 %v1835, %v1815
    %v2216 = vpack.c.b16 %v1836, %v1816
    %v2217 = vpack.c.b16 %v1837, %v1817
    %v2218 = vpack.c.b16 %v1838, %v1818
    %v2219 = vpack.c.b16 %v1839, %v1819
    %v2220 = vpack.c.b16 %v1860, %v1840
    %v2221 = vpack.c.b16 %v1861, %v1841
    %v2222 = vpack.c.b16 %v1862, %v1842
    %v2223 = vpack.c.b16 %v1863, %v1843
    %v2224 = vpack.c.b16 %v1864, %v1844
    %v2225 = vpack.c.b16 %v1865, %v1845
    %v2226 = vpack.c.b16 %v1866, %v1846
    %v2227 = vpack.c.b16 %v1867, %v1847
    %v2228 = vpack.c.b16 %v1868, %v1848
    %v2229 = vpack.c.b16 %v1869, %v1849
    %v2230 = vpack.c.b16 %v1870, %v1850
    %v2231 = vpack.c.b16 %v1871, %v1851
    %v2232 = vpack.c.b16 %v1872, %v1852
    %v2233 = vpack.c.b16 %v1873, %v1853
    %v2234 = vpack.c.b16 %v1874, %v1854
    %v2235 = vpack.c.b16 %v1875, %v1855
    %v2236 = vpack.c.b16 %v1876, %v1856
    %v2237 = vpack.c.b16 %v1877, %v1857
    %v2238 = vpack.c.b16 %v1878, %v1858
    %v2239 = vpack.c.b16 %v1879, %v1859
    %v2240 = vpack.c.b16 %v1900, %v1880
    %v2241 = vpack.c.b16 %v1901, %v1881
    %v2242 = vpack.c.b16 %v1902, %v1882
    %v2243 = vpack.c.b16 %v1903, %v1883
    %v2244 = vpack.c.b16 %v1904, %v1884
    %v2245 = vpack.c.b16 %v1905, %v1885
    %v2246 = vpack.c.b16 %v1906, %v1886
    %v2247 = vpack.c.b16 %v1907, %v1887
    %v2248 = vpack.c.b16 %v1908, %v1888
    %v2249 = vpack.c.b16 %v1909, %v1889
    %v2250 = vpack.c.b16 %v1910, %v1890
    %v2251 = vpack.c.b16 %v1911, %v1891
    %v2252 = vpack.c.b16 %v1912, %v1892
    %v2253 = vpack.c.b16 %v1913, %v1893
    %v2254 = vpack.c.b16 %v1914, %v1894
    %v2255 = vpack.c.b16 %v1915, %v1895
    %v2256 = vpack.c.b16 %v1916, %v1896
    %v2257 = vpack.c.b16 %v1917, %v1897
    %v2258 = vpack.c.b16 %v1918, %v1898
    %v2259 = vpack.c.b16 %v1919, %v1899
    %v2260 = vpack.c.b16 %v1940, %v1920
    %v2261 = vpack.c.b16 %v1941, %v1921
    %v2262 = vpack.c.b16 %v1942, %v1922
    %v2263 = vpack.c.b16 %v1943, %v1923
    %v2264 = vpack.c.b16 %v1944, %v1924
    %v2265 = vpack.c.b16 %v1945, %v1925
    %v2266 = vpack.c.b16 %v1946, %v1926
    %v2267 = vpack.c.b16 %v1947, %v1927
    %v2268 = vpack.c.b16 %v1948, %v1928
    %v2269 = vpack.c.b16 %v1949, %v1929
    %v2270 = vpack.c.b16 %v1950, %v1930
    %v2271 = vpack.c.b16 %v1951, %v1931
    %v2272 = vpack.c.b16 %v1952, %v1932
    %v2273 = vpack.c.b16 %v1953, %v1933
    %v2274 = vpack.c.b16 %v1954, %v1934
    %v2275 = vpack.c.b16 %v1955, %v1935
    %v2276 = vpack.c.b16 %v1956, %v1936
    %v2277 = vpack.c.b16 %v1957, %v1937
    %v2278 = vpack.c.b16 %v1958, %v1938
    %v2279 = vpack.c.b16 %v1959, %v1939
    %v3240 = vunpack.c.l.b16 %v360
    %v3241 = vunpack.c.h.b16 %v360
    %v3242 = vunpack.c.l.b16 %v361
    %v3243 = vunpack.c.h.b16 %v361
    %v3244 = vunpack.c.l.b16 %v362
    %v3245 = vunpack.c.h.b16 %v362
    %v3246 = vunpack.c.l.b16 %v363
    %v3247 = vunpack.c.h.b16 %v363
    %v3248 = vunpack.c.l.b16 %v364
    %v3249 = vunpack.c.h.b16 %v364
    %v3250 = vunpack.c.l.b16 %v365
    %v3251 = vunpack.c.h.b16 %v365
    %v3252 = vunpack.c.l.b16 %v366
    %v3253 = vunpack.c.h.b16 %v366
    %v3254 = vunpack.c.l.b16 %v367
    %v3255 = vunpack.c.h.b16 %v367
    %v3256 = vunpack.c.l.b16 %v368
    %v3257 = vunpack.c.h.b16 %v368
    %v3258 = vunpack.c.l.b16 %v369
    %v3259 = vunpack.c.h.b16 %v369
    %v3260 = vunpack.c.l.b16 %v370
    %v3261 = vunpack.c.h.b16 %v370
    %v3262 = vunpack.c.l.b16 %v371
    %v3263 = vunpack.c.h.b16 %v371
    %v3264 = vunpack.c.l.b16 %v372
    %v3265 = vunpack.c.h.b16 %v372
    %v3266 = vunpack.c.l.b16 %v373
    %v3267 = vunpack.c.h.b16 %v373
    %v3268 = vunpack.c.l.b16 %v374
    %v3269 = vunpack.c.h.b16 %v374
    %v3270 = vunpack.c.l.b16 %v375
    %v3271 = vunpack.c.h.b16 %v375
    %v3272 = vunpack.c.l.b16 %v376
    %v3273 = vunpack.c.h.b16 %v376
    %v3274 = vunpack.c.l.b16 %v377
    %v3275 = vunpack.c.h.b16 %v377
    %v3276 = vunpack.c.l.b16 %v378
    %v3277 = vunpack.c.h.b16 %v378
    %v3278 = vunpack.c.l.b16 %v379
    %v3279 = vunpack.c.h.b16 %v379
    %v3280 = vunpack.c.l.b16 %v380
    %v3281 = vunpack.c.h.b16 %v380
    %v3282 = vunpack.c.l.b16 %v381
    %v3283 = vunpack.c.h.b16 %v381
    %v3284 = vunpack.c.l.b16 %v382
    %v3285 = vunpack.c.h.b16 %v382
    %v3286 = vunpack.c.l.b16 %v383
    %v3287 = vunpack.c.h.b16 %v383
    %v3288 = vunpack.c.l.b16 %v384
    %v3289 = vunpack.c.h.b16 %v384
    %v3290 = vunpack.c.l.b16 %v385
    %v3291 = vunpack.c.h.b16 %v385
    %v3292 = vunpack.c.l.b16 %v386
    %v3293 = vunpack.c.h.b16 %v386
    %v3294 = vunpack.c.l.b16 %v387
    %v3295 = vunpack.c.h.b16 %v387
    %v3296 = vunpack.c.l.b16 %v388
    %v3297 = vunpack.c.h.b16 %v388
    %v3298 = vunpack.c.l.b16 %v389
    %v3299 = vunpack.c.h.b16 %v389
    %v3300 = vunpack.c.l.b16 %v390
    %v3301 = vunpack.c.h.b16 %v390
    %v3302 = vunpack.c.l.b16 %v391
    %v3303 = vunpack.c.h.b16 %v391
    %v3304 = vunpack.c.l.b16 %v392
    %v3305 = vunpack.c.h.b16 %v392
    %v3306 = vunpack.c.l.b16 %v393
    %v3307 = vunpack.c.h.b16 %v393
    %v3308 = vunpack.c.l.b16 %v394
    %v3309 = vunpack.c.h.b16 %v394
    %v3310 = vunpack.c.l.b16 %v395
    %v3311 = vunpack.c.h.b16 %v395
    %v3312 = vunpack.c.l.b16 %v396
    %v3313 = vunpack.c.h.b16 %v396
    %v3314 = vunpack.c.l.b16 %v397
    %v3315 = vunpack.c.h.b16 %v397
    %v3316 = vunpack.c.l.b16 %v398
    %v3317 = vunpack.c.h.b16 %v398
    %v3318 = vunpack.c.l.b16 %v399
    %v3319 = vunpack.c.h.b16 %v399
    %v3320 = vunpack.c.l.b16 %v400
    %v3321 = vunpack.c.h.b16 %v400
    %v3322 = vunpack.c.l.b16 %v401
    %v3323 = vunpack.c.h.b16 %v401
    %v3324 = vunpack.c.l.b16 %v402
    %v3325 = vunpack.c.h.b16 %v402
    %v3326 = vunpack.c.l.b16 %v403
    %v3327 = vunpack.c.h.b16 %v403
    %v3328 = vunpack.c.l.b16 %v404
    %v3329 = vunpack.c.h.b16 %v404
    %v3330 = vunpack.c.l.b16 %v405
    %v3331 = vunpack.c.h.b16 %v405
    %v3332 = vunpack.c.l.b16 %v406
    %v3333 = vunpack.c.h.b16 %v406
    %v3334 = vunpack.c.l.b16 %v407
    %v3335 = vunpack.c.h.b16 %v407
    %v3336 = vunpack.c.l.b16 %v408
    %v3337 = vunpack.c.h.b16 %v408
    %v3338 = vunpack.c.l.b16 %v409
    %v3339 = vunpack.c.h.b16 %v409
    %v3340 = vunpack.c.l.b16 %v410
    %v3341 = vunpack.c.h.b16 %v410
    %v3342 = vunpack.c.l.b16 %v411
    %v3343 = vunpack.c.h.b16 %v411
    %v3344 = vunpack.c.l.b16 %v412
    %v3345 = vunpack.c.h.b16 %v412
    %v3346 = vunpack.c.l.b16 %v413
    %v3347 = vunpack.c.h.b16 %v413
    %v3348 = vunpack.c.l.b16 %v414
    %v3349 = vunpack.c.h.b16 %v414
    %v3350 = vunpack.c.l.b16 %v415
    %v3351 = vunpack.c.h.b16 %v415
    %v3352 = vunpack.c.l.b16 %v416
    %v3353 = vunpack.c.h.b16 %v416
    %v3354 = vunpack.c.l.b16 %v417
    %v3355 = vunpack.c.h.b16 %v417
    %v3356 = vunpack.c.l.b16 %v418
    %v3357 = vunpack.c.h.b16 %v418
    %v3358 = vunpack.c.l.b16 %v419
    %v3359 = vunpack.c.h.b16 %v419
    %v3360 = vunpack.c.l.b16 %v420
    %v3361 = vunpack.c.h.b16 %v420
    %v3362 = vunpack.c.l.b16 %v421
    %v3363 = vunpack.c.h.b16 %v421
    %v3364 = vunpack.c.l.b16 %v422
    %v3365 = vunpack.c.h.b16 %v422
    %v3366 = vunpack.c.l.b16 %v423
    %v3367 = vunpack.c.h.b16 %v423
    %v3368 = vunpack.c.l.b16 %v424
    %v3369 = vunpack.c.h.b16 %v424
    %v3370 = vunpack.c.l.b16 %v425
    %v3371 = vunpack.c.h.b16 %v425
    %v3372 = vunpack.c.l.b16 %v426
    %v3373 = vunpack.c.h.b16 %v426
    %v3374 = vunpack.c.l.b16 %v427
    %v3375 = vunpack.c.h.b16 %v427
    %v3376 = vunpack.c.l.b16 %v428
    %v3377 = vunpack.c.h.b16 %v428
    %v3378 = vunpack.c.l.b16 %v429
    %v3379 = vunpack.c.h.b16 %v429
    %v3380 = vunpack.c.l.b16 %v430
    %v3381 = vunpack.c.h.b16 %v430
    %v3382 = vunpack.c.l.b16 %v431
    %v3383 = vunpack.c.h.b16 %v431
    %v3384 = vunpack.c.l.b16 %v432
    %v3385 = vunpack.c.h.b16 %v432
    %v3386 = vunpack.c.l.b16 %v433
    %v3387 = vunpack.c.h.b16 %v433
    %v3388 = vunpack.c.l.b16 %v434
    %v3389 = vunpack.c.h.b16 %v434
    %v3390 = vunpack.c.l.b16 %v435
    %v3391 = vunpack.c.h.b16 %v435
    %v3392 = vunpack.c.l.b16 %v436
    %v3393 = vunpack.c.h.b16 %v436
    %v3394 = vunpack.c.l.b16 %v437
    %v3395 = vunpack.c.h.b16 %v437
    %v3396 = vunpack.c.l.b16 %v438
    %v3397 = vunpack.c.h.b16 %v438
    %v3398 = vunpack.c.l.b16 %v439
    %v3399 = vunpack.c.h.b16 %v439
    %v3400 = vunpack.c.l.b16 %v440
    %v3401 = vunpack.c.h.b16 %v440
    %v3402 = vunpack.c.l.b16 %v441
    %v3403 = vunpack.c.h.b16 %v441
    %v3404 = vunpack.c.l.b16 %v442
    %v3405 = vunpack.c.h.b16 %v442
    %v3406 = vunpack.c.l.b16 %v443
    %v3407 = vunpack.c.h.b16 %v443
    %v3408 = vunpack.c.l.b16 %v444
    %v3409 = vunpack.c.h.b16 %v444
    %v3410 = vunpack.c.l.b16 %v445
    %v3411 = vunpack.c.h.b16 %v445
    %v3412 = vunpack.c.l.b16 %v446
    %v3413 = vunpack.c.h.b16 %v446
    %v3414 = vunpack.c.l.b16 %v447
    %v3415 = vunpack.c.h.b16 %v447
    %v3416 = vunpack.c.l.b16 %v448
    %v3417 = vunpack.c.h.b16 %v448
    %v3418 = vunpack.c.l.b16 %v449
    %v3419 = vunpack.c.h.b16 %v449
    %v3420 = vunpack.c.l.b16 %v450
    %v3421 = vunpack.c.h.b16 %v450
    %v3422 = vunpack.c.l.b16 %v451
    %v3423 = vunpack.c.h.b16 %v451
    %v3424 = vunpack.c.l.b16 %v452
    %v3425 = vunpack.c.h.b16 %v452
    %v3426 = vunpack.c.l.b16 %v453
    %v3427 = vunpack.c.h.b16 %v453
    %v3428 = vunpack.c.l.b16 %v454
    %v3429 = vunpack.c.h.b16 %v454
    %v3430 = vunpack.c.l.b16 %v455
    %v3431 = vunpack.c.h.b16 %v455
    %v3432 = vunpack.c.l.b16 %v456
    %v3433 = vunpack.c.h.b16 %v456
    %v3434 = vunpack.c.l.b16 %v457
    %v3435 = vunpack.c.h.b16 %v457
    %v3436 = vunpack.c.l.b16 %v458
    %v3437 = vunpack.c.h.b16 %v458
    %v3438 = vunpack.c.l.b16 %v459
    %v3439 = vunpack.c.h.b16 %v459
    %v3440 = vunpack.c.l.b16 %v460
    %v3441 = vunpack.c.h.b16 %v460
    %v3442 = vunpack.c.l.b16 %v461
    %v3443 = vunpack.c.h.b16 %v461
    %v3444 = vunpack.c.l.b16 %v462
    %v3445 = vunpack.c.h.b16 %v462
    %v3446 = vunpack.c.l.b16 %v463
    %v3447 = vunpack.c.h.b16 %v463
    %v3448 = vunpack.c.l.b16 %v464
    %v3449 = vunpack.c.h.b16 %v464
    %v3450 = vunpack.c.l.b16 %v465
    %v3451 = vunpack.c.h.b16 %v465
    %v3452 = vunpack.c.l.b16 %v466
    %v3453 = vunpack.c.h.b16 %v466
    %v3454 = vunpack.c.l.b16 %v467
    %v3455 = vunpack.c.h.b16 %v467
    %v3456 = vunpack.c.l.b16 %v468
    %v3457 = vunpack.c.h.b16 %v468
    %v3458 = vunpack.c.l.b16 %v469
    %v3459 = vunpack.c.h.b16 %v469
    %v3460 = vunpack.c.l.b16 %v470
    %v3461 = vunpack.c.h.b16 %v470
    %v3462 = vunpack.c.l.b16 %v471
    %v3463 = vunpack.c.h.b16 %v471
    %v3464 = vunpack.c.l.b16 %v472
    %v3465 = vunpack.c.h.b16 %v472
    %v3466 = vunpack.c.l.b16 %v473
    %v3467 = vunpack.c.h.b16 %v473
    %v3468 = vunpack.c.l.b16 %v474
    %v3469 = vunpack.c.h.b16 %v474
    %v3470 = vunpack.c.l.b16 %v475
    %v3471 = vunpack.c.h.b16 %v475
    %v3472 = vunpack.c.l.b16 %v476
    %v3473 = vunpack.c.h.b16 %v476
    %v3474 = vunpack.c.l.b16 %v477
    %v3475 = vunpack.c.h.b16 %v477
    %v3476 = vunpack.c.l.b16 %v478
    %v3477 = vunpack.c.h.b16 %v478
    %v3478 = vunpack.c.l.b16 %v479
    %v3479 = vunpack.c.h.b16 %v479
    %v3480 = vunpack.c.l.b16 %v480
    %v3481 = vunpack.c.h.b16 %v480
    %v3482 = vunpack.c.l.b16 %v481
    %v3483 = vunpack.c.h.b16 %v481
    %v3484 = vunpack.c.l.b16 %v482
    %v3485 = vunpack.c.h.b16 %v482
    %v3486 = vunpack.c.l.b16 %v483
    %v3487 = vunpack.c.h.b16 %v483
    %v3488 = vunpack.c.l.b16 %v484
    %v3489 = vunpack.c.h.b16 %v484
    %v3490 = vunpack.c.l.b16 %v485
    %v3491 = vunpack.c.h.b16 %v485
    %v3492 = vunpack.c.l.b16 %v486
    %v3493 = vunpack.c.h.b16 %v486
    %v3494 = vunpack.c.l.b16 %v487
    %v3495 = vunpack.c.h.b16 %v487
    %v3496 = vunpack.c.l.b16 %v488
    %v3497 = vunpack.c.h.b16 %v488
    %v3498 = vunpack.c.l.b16 %v489
    %v3499 = vunpack.c.h.b16 %v489
    %v3500 = vunpack.c.l.b16 %v490
    %v3501 = vunpack.c.h.b16 %v490
    %v3502 = vunpack.c.l.b16 %v491
    %v3503 = vunpack.c.h.b16 %v491
    %v3504 = vunpack.c.l.b16 %v492
    %v3505 = vunpack.c.h.b16 %v492
    %v3506 = vunpack.c.l.b16 %v493
    %v3507 = vunpack.c.h.b16 %v493
    %v3508 = vunpack.c.l.b16 %v494
    %v3509 = vunpack.c.h.b16 %v494
    %v3510 = vunpack.c.l.b16 %v495
    %v3511 = vunpack.c.h.b16 %v495
    %v3512 = vunpack.c.l.b16 %v496
    %v3513 = vunpack.c.h.b16 %v496
    %v3514 = vunpack.c.l.b16 %v497
    %v3515 = vunpack.c.h.b16 %v497
    %v3516 = vunpack.c.l.b16 %v498
    %v3517 = vunpack.c.h.b16 %v498
    %v3518 = vunpack.c.l.b16 %v499
    %v3519 = vunpack.c.h.b16 %v499
    %v3520 = vunpack.c.l.b16 %v500
    %v3521 = vunpack.c.h.b16 %v500
    %v3522 = vunpack.c.l.b16 %v501
    %v3523 = vunpack.c.h.b16 %v501
    %v3524 = vunpack.c.l.b16 %v502
    %v3525 = vunpack.c.h.b16 %v502
    %v3526 = vunpack.c.l.b16 %v503
    %v3527 = vunpack.c.h.b16 %v503
    %v3528 = vunpack.c.l.b16 %v504
    %v3529 = vunpack.c.h.b16 %v504
    %v3530 = vunpack.c.l.b16 %v505
    %v3531 = vunpack.c.h.b16 %v505
    %v3532 = vunpack.c.l.b16 %v506
    %v3533 = vunpack.c.h.b16 %v506
    %v3534 = vunpack.c.l.b16 %v507
    %v3535 = vunpack.c.h.b16 %v507
    %v3536 = vunpack.c.l.b16 %v508
    %v3537 = vunpack.c.h.b16 %v508
    %v3538 = vunpack.c.l.b16 %v509
    %v3539 = vunpack.c.h.b16 %v509
    %v3540 = vunpack.c.l.b16 %v510
    %v3541 = vunpack.c.h.b16 %v510
    %v3542 = vunpack.c.l.b16 %v511
    %v3543 = vunpack.c.h.b16 %v511
    %v3544 = vunpack.c.l.b16 %v512
    %v3545 = vunpack.c.h.b16 %v512
    %v3546 = vunpack.c.l.b16 %v513
    %v3547 = vunpack.c.h.b16 %v513
    %v3548 = vunpack.c.l.b16 %v514
    %v3549 = vunpack.c.h.b16 %v514
    %v3550 = vunpack.c.l.b16 %v515
    %v3551 = vunpack.c.h.b16 %v515
    %v3552 = vunpack.c.l.b16 %v516
    %v3553 = vunpack.c.h.b16 %v516
    %v3554 = vunpack.c.l.b16 %v517
    %v3555 = vunpack.c.h.b16 %v517
    %v3556 = vunpack.c.l.b16 %v518
    %v3557 = vunpack.c.h.b16 %v518
    %v3558 = vunpack.c.l.b16 %v519
    %v3559 = vunpack.c.h.b16 %v519
    %v3560 = vunpack.c.l.b16 %v520
    %v3561 = vunpack.c.h.b16 %v520
    %v3562 = vunpack.c.l.b16 %v521
    %v3563 = vunpack.c.h.b16 %v521
    %v3564 = vunpack.c.l.b16 %v522
    %v3565 = vunpack.c.h.b16 %v522
    %v3566 = vunpack.c.l.b16 %v523
    %v3567 = vunpack.c.h.b16 %v523
    %v3568 = vunpack.c.l.b16 %v524
    %v3569 = vunpack.c.h.b16 %v524
    %v3570 = vunpack.c.l.b16 %v525
    %v3571 = vunpack.c.h.b16 %v525
    %v3572 = vunpack.c.l.b16 %v526
    %v3573 = vunpack.c.h.b16 %v526
    %v3574 = vunpack.c.l.b16 %v527
    %v3575 = vunpack.c.h.b16 %v527
    %v3576 = vunpack.c.l.b16 %v528
    %v3577 = vunpack.c.h.b16 %v528
    %v3578 = vunpack.c.l.b16 %v529
    %v3579 = vunpack.c.h.b16 %v529
    %v3580 = vunpack.c.l.b16 %v530
    %v3581 = vunpack.c.h.b16 %v530
    %v3582 = vunpack.c.l.b16 %v531
    %v3583 = vunpack.c.h.b16 %v531
    %v3584 = vunpack.c.l.b16 %v532
    %v3585 = vunpack.c.h.b16 %v532
    %v3586 = vunpack.c.l.b16 %v533
    %v3587 = vunpack.c.h.b16 %v533
    %v3588 = vunpack.c.l.b16 %v534
    %v3589 = vunpack.c.h.b16 %v534
    %v3590 = vunpack.c.l.b16 %v535
    %v3591 = vunpack.c.h.b16 %v535
    %v3592 = vunpack.c.l.b16 %v536
    %v3593 = vunpack.c.h.b16 %v536
    %v3594 = vunpack.c.l.b16 %v537
    %v3595 = vunpack.c.h.b16 %v537
    %v3596 = vunpack.c.l.b16 %v538
    %v3597 = vunpack.c.h.b16 %v538
    %v3598 = vunpack.c.l.b16 %v539
    %v3599 = vunpack.c.h.b16 %v539
    %v3600 = vunpack.c.l.b16 %v540
    %v3601 = vunpack.c.h.b16 %v540
    %v3602 = vunpack.c.l.b16 %v541
    %v3603 = vunpack.c.h.b16 %v541
    %v3604 = vunpack.c.l.b16 %v542
    %v3605 = vunpack.c.h.b16 %v542
    %v3606 = vunpack.c.l.b16 %v543
    %v3607 = vunpack.c.h.b16 %v543
    %v3608 = vunpack.c.l.b16 %v544
    %v3609 = vunpack.c.h.b16 %v544
    %v3610 = vunpack.c.l.b16 %v545
    %v3611 = vunpack.c.h.b16 %v545
    %v3612 = vunpack.c.l.b16 %v546
    %v3613 = vunpack.c.h.b16 %v546
    %v3614 = vunpack.c.l.b16 %v547
    %v3615 = vunpack.c.h.b16 %v547
    %v3616 = vunpack.c.l.b16 %v548
    %v3617 = vunpack.c.h.b16 %v548
    %v3618 = vunpack.c.l.b16 %v549
    %v3619 = vunpack.c.h.b16 %v549
    %v3620 = vunpack.c.l.b16 %v550
    %v3621 = vunpack.c.h.b16 %v550
    %v3622 = vunpack.c.l.b16 %v551
    %v3623 = vunpack.c.h.b16 %v551
    %v3624 = vunpack.c.l.b16 %v552
    %v3625 = vunpack.c.h.b16 %v552
    %v3626 = vunpack.c.l.b16 %v553
    %v3627 = vunpack.c.h.b16 %v553
    %v3628 = vunpack.c.l.b16 %v554
    %v3629 = vunpack.c.h.b16 %v554
    %v3630 = vunpack.c.l.b16 %v555
    %v3631 = vunpack.c.h.b16 %v555
    %v3632 = vunpack.c.l.b16 %v556
    %v3633 = vunpack.c.h.b16 %v556
    %v3634 = vunpack.c.l.b16 %v557
    %v3635 = vunpack.c.h.b16 %v557
    %v3636 = vunpack.c.l.b16 %v558
    %v3637 = vunpack.c.h.b16 %v558
    %v3638 = vunpack.c.l.b16 %v559
    %v3639 = vunpack.c.h.b16 %v559
    %v3640 = vunpack.c.l.b16 %v560
    %v3641 = vunpack.c.h.b16 %v560
    %v3642 = vunpack.c.l.b16 %v561
    %v3643 = vunpack.c.h.b16 %v561
    %v3644 = vunpack.c.l.b16 %v562
    %v3645 = vunpack.c.h.b16 %v562
    %v3646 = vunpack.c.l.b16 %v563
    %v3647 = vunpack.c.h.b16 %v563
    %v3648 = vunpack.c.l.b16 %v564
    %v3649 = vunpack.c.h.b16 %v564
    %v3650 = vunpack.c.l.b16 %v565
    %v3651 = vunpack.c.h.b16 %v565
    %v3652 = vunpack.c.l.b16 %v566
    %v3653 = vunpack.c.h.b16 %v566
    %v3654 = vunpack.c.l.b16 %v567
    %v3655 = vunpack.c.h.b16 %v567
    %v3656 = vunpack.c.l.b16 %v568
    %v3657 = vunpack.c.h.b16 %v568
    %v3658 = vunpack.c.l.b16 %v569
    %v3659 = vunpack.c.h.b16 %v569
    %v3660 = vunpack.c.l.b16 %v570
    %v3661 = vunpack.c.h.b16 %v570
    %v3662 = vunpack.c.l.b16 %v571
    %v3663 = vunpack.c.h.b16 %v571
    %v3664 = vunpack.c.l.b16 %v572
    %v3665 = vunpack.c.h.b16 %v572
    %v3666 = vunpack.c.l.b16 %v573
    %v3667 = vunpack.c.h.b16 %v573
    %v3668 = vunpack.c.l.b16 %v574
    %v3669 = vunpack.c.h.b16 %v574
    %v3670 = vunpack.c.l.b16 %v575
    %v3671 = vunpack.c.h.b16 %v575
    %v3672 = vunpack.c.l.b16 %v576
    %v3673 = vunpack.c.h.b16 %v576
    %v3674 = vunpack.c.l.b16 %v577
    %v3675 = vunpack.c.h.b16 %v577
    %v3676 = vunpack.c.l.b16 %v578
    %v3677 = vunpack.c.h.b16 %v578
    %v3678 = vunpack.c.l.b16 %v579
    %v3679 = vunpack.c.h.b16 %v579
    %v3680 = vunpack.c.l.b16 %v580
    %v3681 = vunpack.c.h.b16 %v580
    %v3682 = vunpack.c.l.b16 %v581
    %v3683 = vunpack.c.h.b16 %v581
    %v3684 = vunpack.c.l.b16 %v582
    %v3685 = vunpack.c.h.b16 %v582
    %v3686 = vunpack.c.l.b16 %v583
    %v3687 = vunpack.c.h.b16 %v583
    %v3688 = vunpack.c.l.b16 %v584
    %v3689 = vunpack.c.h.b16 %v584
    %v3690 = vunpack.c.l.b16 %v585
    %v3691 = vunpack.c.h.b16 %v585
    %v3692 = vunpack.c.l.b16 %v586
    %v3693 = vunpack.c.h.b16 %v586
    %v3694 = vunpack.c.l.b16 %v587
    %v3695 = vunpack.c.h.b16 %v587
    %v3696 = vunpack.c.l.b16 %v588
    %v3697 = vunpack.c.h.b16 %v588
    %v3698 = vunpack.c.l.b16 %v589
    %v3699 = vunpack.c.h.b16 %v589
    %v3700 = vunpack.c.l.b16 %v590
    %v3701 = vunpack.c.h.b16 %v590
    %v3702 = vunpack.c.l.b16 %v591
    %v3703 = vunpack.c.h.b16 %v591
    %v3704 = vunpack.c.l.b16 %v592
    %v3705 = vunpack.c.h.b16 %v592
    %v3706 = vunpack.c.l.b16 %v593
    %v3707 = vunpack.c.h.b16 %v593
    %v3708 = vunpack.c.l.b16 %v594
    %v3709 = vunpack.c.h.b16 %v594
    %v3710 = vunpack.c.l.b16 %v595
    %v3711 = vunpack.c.h.b16 %v595
    %v3712 = vunpack.c.l.b16 %v596
    %v3713 = vunpack.c.h.b16 %v596
    %v3714 = vunpack.c.l.b16 %v597
    %v3715 = vunpack.c.h.b16 %v597
    %v3716 = vunpack.c.l.b16 %v598
    %v3717 = vunpack.c.h.b16 %v598
    %v3718 = vunpack.c.l.b16 %v599
    %v3719 = vunpack.c.h.b16 %v599
    %v3720 = vunpack.c.l.b16 %v600
    %v3721 = vunpack.c.h.b16 %v600
    %v3722 = vunpack.c.l.b16 %v601
    %v3723 = vunpack.c.h.b16 %v601
    %v3724 = vunpack.c.l.b16 %v602
    %v3725 = vunpack.c.h.b16 %v602
    %v3726 = vunpack.c.l.b16 %v603
    %v3727 = vunpack.c.h.b16 %v603
    %v3728 = vunpack.c.l.b16 %v604
    %v3729 = vunpack.c.h.b16 %v604
    %v3730 = vunpack.c.l.b16 %v605
    %v3731 = vunpack.c.h.b16 %v605
    %v3732 = vunpack.c.l.b16 %v606
    %v3733 = vunpack.c.h.b16 %v606
    %v3734 = vunpack.c.l.b16 %v607
    %v3735 = vunpack.c.h.b16 %v607
    %v3736 = vunpack.c.l.b16 %v608
    %v3737 = vunpack.c.h.b16 %v608
    %v3738 = vunpack.c.l.b16 %v609
    %v3739 = vunpack.c.h.b16 %v609
    %v3740 = vunpack.c.l.b16 %v610
    %v3741 = vunpack.c.h.b16 %v610
    %v3742 = vunpack.c.l.b16 %v611
    %v3743 = vunpack.c.h.b16 %v611
    %v3744 = vunpack.c.l.b16 %v612
    %v3745 = vunpack.c.h.b16 %v612
    %v3746 = vunpack.c.l.b16 %v613
    %v3747 = vunpack.c.h.b16 %v613
    %v3748 = vunpack.c.l.b16 %v614
    %v3749 = vunpack.c.h.b16 %v614
    %v3750 = vunpack.c.l.b16 %v615
    %v3751 = vunpack.c.h.b16 %v615
    %v3752 = vunpack.c.l.b16 %v616
    %v3753 = vunpack.c.h.b16 %v616
    %v3754 = vunpack.c.l.b16 %v617
    %v3755 = vunpack.c.h.b16 %v617
    %v3756 = vunpack.c.l.b16 %v618
    %v3757 = vunpack.c.h.b16 %v618
    %v3758 = vunpack.c.l.b16 %v619
    %v3759 = vunpack.c.h.b16 %v619
    %v3760 = vunpack.c.l.b16 %v620
    %v3761 = vunpack.c.h.b16 %v620
    %v3762 = vunpack.c.l.b16 %v621
    %v3763 = vunpack.c.h.b16 %v621
    %v3764 = vunpack.c.l.b16 %v622
    %v3765 = vunpack.c.h.b16 %v622
    %v3766 = vunpack.c.l.b16 %v623
    %v3767 = vunpack.c.h.b16 %v623
    %v3768 = vunpack.c.l.b16 %v624
    %v3769 = vunpack.c.h.b16 %v624
    %v3770 = vunpack.c.l.b16 %v625
    %v3771 = vunpack.c.h.b16 %v625
    %v3772 = vunpack.c.l.b16 %v626
    %v3773 = vunpack.c.h.b16 %v626
    %v3774 = vunpack.c.l.b16 %v627
    %v3775 = vunpack.c.h.b16 %v627
    %v3776 = vunpack.c.l.b16 %v628
    %v3777 = vunpack.c.h.b16 %v628
    %v3778 = vunpack.c.l.b16 %v629
    %v3779 = vunpack.c.h.b16 %v629
    %v3780 = vunpack.c.l.b16 %v630
    %v3781 = vunpack.c.h.b16 %v630
    %v3782 = vunpack.c.l.b16 %v631
    %v3783 = vunpack.c.h.b16 %v631
    %v3784 = vunpack.c.l.b16 %v632
    %v3785 = vunpack.c.h.b16 %v632
    %v3786 = vunpack.c.l.b16 %v633
    %v3787 = vunpack.c.h.b16 %v633
    %v3788 = vunpack.c.l.b16 %v634
    %v3789 = vunpack.c.h.b16 %v634
    %v3790 = vunpack.c.l.b16 %v635
    %v3791 = vunpack.c.h.b16 %v635
    %v3792 = vunpack.c.l.b16 %v636
    %v3793 = vunpack.c.h.b16 %v636
    %v3794 = vunpack.c.l.b16 %v637
    %v3795 = vunpack.c.h.b16 %v637
    %v3796 = vunpack.c.l.b16 %v638
    %v3797 = vunpack.c.h.b16 %v638
    %v3798 = vunpack.c.l.b16 %v639
    %v3799 = vunpack.c.h.b16 %v639
    %v3800 = vunpack.c.l.b16 %v640
    %v3801 = vunpack.c.h.b16 %v640
    %v3802 = vunpack.c.l.b16 %v641
    %v3803 = vunpack.c.h.b16 %v641
    %v3804 = vunpack.c.l.b16 %v642
    %v3805 = vunpack.c.h.b16 %v642
    %v3806 = vunpack.c.l.b16 %v643
    %v3807 = vunpack.c.h.b16 %v643
    %v3808 = vunpack.c.l.b16 %v644
    %v3809 = vunpack.c.h.b16 %v644
    %v3810 = vunpack.c.l.b16 %v645
    %v3811 = vunpack.c.h.b16 %v645
    %v3812 = vunpack.c.l.b16 %v646
    %v3813 = vunpack.c.h.b16 %v646
    %v3814 = vunpack.c.l.b16 %v647
    %v3815 = vunpack.c.h.b16 %v647
    %v3816 = vunpack.c.l.b16 %v648
    %v3817 = vunpack.c.h.b16 %v648
    %v3818 = vunpack.c.l.b16 %v649
    %v3819 = vunpack.c.h.b16 %v649
    %v3820 = vunpack.c.l.b16 %v650
    %v3821 = vunpack.c.h.b16 %v650
    %v3822 = vunpack.c.l.b16 %v651
    %v3823 = vunpack.c.h.b16 %v651
    %v3824 = vunpack.c.l.b16 %v652
    %v3825 = vunpack.c.h.b16 %v652
    %v3826 = vunpack.c.l.b16 %v653
    %v3827 = vunpack.c.h.b16 %v653
    %v3828 = vunpack.c.l.b16 %v654
    %v3829 = vunpack.c.h.b16 %v654
    %v3830 = vunpack.c.l.b16 %v655
    %v3831 = vunpack.c.h.b16 %v655
    %v3832 = vunpack.c.l.b16 %v656
    %v3833 = vunpack.c.h.b16 %v656
    %v3834 = vunpack.c.l.b16 %v657
    %v3835 = vunpack.c.h.b16 %v657
    %v3836 = vunpack.c.l.b16 %v658
    %v3837 = vunpack.c.h.b16 %v658
    %v3838 = vunpack.c.l.b16 %v659
    %v3839 = vunpack.c.h.b16 %v659
    %v3840 = vunpack.c.l.b16 %v660
    %v3841 = vunpack.c.h.b16 %v660
    %v3842 = vunpack.c.l.b16 %v661
    %v3843 = vunpack.c.h.b16 %v661
    %v3844 = vunpack.c.l.b16 %v662
    %v3845 = vunpack.c.h.b16 %v662
    %v3846 = vunpack.c.l.b16 %v663
    %v3847 = vunpack.c.h.b16 %v663
    %v3848 = vunpack.c.l.b16 %v664
    %v3849 = vunpack.c.h.b16 %v664
    %v3850 = vunpack.c.l.b16 %v665
    %v3851 = vunpack.c.h.b16 %v665
    %v3852 = vunpack.c.l.b16 %v666
    %v3853 = vunpack.c.h.b16 %v666
    %v3854 = vunpack.c.l.b16 %v667
    %v3855 = vunpack.c.h.b16 %v667
    %v3856 = vunpack.c.l.b16 %v668
    %v3857 = vunpack.c.h.b16 %v668
    %v3858 = vunpack.c.l.b16 %v669
    %v3859 = vunpack.c.h.b16 %v669
    %v3860 = vunpack.c.l.b16 %v670
    %v3861 = vunpack.c.h.b16 %v670
    %v3862 = vunpack.c.l.b16 %v671
    %v3863 = vunpack.c.h.b16 %v671
    %v3864 = vunpack.c.l.b16 %v672
    %v3865 = vunpack.c.h.b16 %v672
    %v3866 = vunpack.c.l.b16 %v673
    %v3867 = vunpack.c.h.b16 %v673
    %v3868 = vunpack.c.l.b16 %v674
    %v3869 = vunpack.c.h.b16 %v674
    %v3870 = vunpack.c.l.b16 %v675
    %v3871 = vunpack.c.h.b16 %v675
    %v3872 = vunpack.c.l.b16 %v676
    %v3873 = vunpack.c.h.b16 %v676
    %v3874 = vunpack.c.l.b16 %v677
    %v3875 = vunpack.c.h.b16 %v677
    %v3876 = vunpack.c.l.b16 %v678
    %v3877 = vunpack.c.h.b16 %v678
    %v3878 = vunpack.c.l.b16 %v679
    %v3879 = vunpack.c.h.b16 %v679
    %v3880 = vunpack.c.l.b16 %v680
    %v3881 = vunpack.c.h.b16 %v680
    %v3882 = vunpack.c.l.b16 %v681
    %v3883 = vunpack.c.h.b16 %v681
    %v3884 = vunpack.c.l.b16 %v682
    %v3885 = vunpack.c.h.b16 %v682
    %v3886 = vunpack.c.l.b16 %v683
    %v3887 = vunpack.c.h.b16 %v683
    %v3888 = vunpack.c.l.b16 %v684
    %v3889 = vunpack.c.h.b16 %v684
    %v3890 = vunpack.c.l.b16 %v685
    %v3891 = vunpack.c.h.b16 %v685
    %v3892 = vunpack.c.l.b16 %v686
    %v3893 = vunpack.c.h.b16 %v686
    %v3894 = vunpack.c.l.b16 %v687
    %v3895 = vunpack.c.h.b16 %v687
    %v3896 = vunpack.c.l.b16 %v688
    %v3897 = vunpack.c.h.b16 %v688
    %v3898 = vunpack.c.l.b16 %v689
    %v3899 = vunpack.c.h.b16 %v689
    %v3900 = vunpack.c.l.b16 %v690
    %v3901 = vunpack.c.h.b16 %v690
    %v3902 = vunpack.c.l.b16 %v691
    %v3903 = vunpack.c.h.b16 %v691
    %v3904 = vunpack.c.l.b16 %v692
    %v3905 = vunpack.c.h.b16 %v692
    %v3906 = vunpack.c.l.b16 %v693
    %v3907 = vunpack.c.h.b16 %v693
    %v3908 = vunpack.c.l.b16 %v694
    %v3909 = vunpack.c.h.b16 %v694
    %v3910 = vunpack.c.l.b16 %v695
    %v3911 = vunpack.c.h.b16 %v695
    %v3912 = vunpack.c.l.b16 %v696
    %v3913 = vunpack.c.h.b16 %v696
    %v3914 = vunpack.c.l.b16 %v697
    %v3915 = vunpack.c.h.b16 %v697
    %v3916 = vunpack.c.l.b16 %v698
    %v3917 = vunpack.c.h.b16 %v698
    %v3918 = vunpack.c.l.b16 %v699
    %v3919 = vunpack.c.h.b16 %v699
    %v3920 = vunpack.c.l.b16 %v700
    %v3921 = vunpack.c.h.b16 %v700
    %v3922 = vunpack.c.l.b16 %v701
    %v3923 = vunpack.c.h.b16 %v701
    %v3924 = vunpack.c.l.b16 %v702
    %v3925 = vunpack.c.h.b16 %v702
    %v3926 = vunpack.c.l.b16 %v703
    %v3927 = vunpack.c.h.b16 %v703
    %v3928 = vunpack.c.l.b16 %v704
    %v3929 = vunpack.c.h.b16 %v704
    %v3930 = vunpack.c.l.b16 %v705
    %v3931 = vunpack.c.h.b16 %v705
    %v3932 = vunpack.c.l.b16 %v706
    %v3933 = vunpack.c.h.b16 %v706
    %v3934 = vunpack.c.l.b16 %v707
    %v3935 = vunpack.c.h.b16 %v707
    %v3936 = vunpack.c.l.b16 %v708
    %v3937 = vunpack.c.h.b16 %v708
    %v3938 = vunpack.c.l.b16 %v709
    %v3939 = vunpack.c.h.b16 %v709
    %v3940 = vunpack.c.l.b16 %v710
    %v3941 = vunpack.c.h.b16 %v710
    %v3942 = vunpack.c.l.b16 %v711
    %v3943 = vunpack.c.h.b16 %v711
    %v3944 = vunpack.c.l.b16 %v712
    %v3945 = vunpack.c.h.b16 %v712
    %v3946 = vunpack.c.l.b16 %v713
    %v3947 = vunpack.c.h.b16 %v713
    %v3948 = vunpack.c.l.b16 %v714
    %v3949 = vunpack.c.h.b16 %v714
    %v3950 = vunpack.c.l.b16 %v715
    %v3951 = vunpack.c.h.b16 %v715
    %v3952 = vunpack.c.l.b16 %v716
    %v3953 = vunpack.c.h.b16 %v716
    %v3954 = vunpack.c.l.b16 %v717
    %v3955 = vunpack.c.h.b16 %v717
    %v3956 = vunpack.c.l.b16 %v718
    %v3957 = vunpack.c.h.b16 %v718
    %v3958 = vunpack.c.l.b16 %v719
    %v3959 = vunpack.c.h.b16 %v719
    %v3960 = vunpack.c.l.b16 %v720
    %v3961 = vunpack.c.h.b16 %v720
    %v3962 = vunpack.c.l.b16 %v721
    %v3963 = vunpack.c.h.b16 %v721
    %v3964 = vunpack.c.l.b16 %v722
    %v3965 = vunpack.c.h.b16 %v722
    %v3966 = vunpack.c.l.b16 %v723
    %v3967 = vunpack.c.h.b16 %v723
    %v3968 = vunpack.c.l.b16 %v724
    %v3969 = vunpack.c.h.b16 %v724
    %v3970 = vunpack.c.l.b16 %v725
    %v3971 = vunpack.c.h.b16 %v725
    %v3972 = vunpack.c.l.b16 %v726
    %v3973 = vunpack.c.h.b16 %v726
    %v3974 = vunpack.c.l.b16 %v727
    %v3975 = vunpack.c.h.b16 %v727
    %v3976 = vunpack.c.l.b16 %v728
    %v3977 = vunpack.c.h.b16 %v728
    %v3978 = vunpack.c.l.b16 %v729
    %v3979 = vunpack.c.h.b16 %v729
    %v3980 = vunpack.c.l.b16 %v730
    %v3981 = vunpack.c.h.b16 %v730
    %v3982 = vunpack.c.l.b16 %v731
    %v3983 = vunpack.c.h.b16 %v731
    %v3984 = vunpack.c.l.b16 %v732
    %v3985 = vunpack.c.h.b16 %v732
    %v3986 = vunpack.c.l.b16 %v733
    %v3987 = vunpack.c.h.b16 %v733
    %v3988 = vunpack.c.l.b16 %v734
    %v3989 = vunpack.c.h.b16 %v734
    %v3990 = vunpack.c.l.b16 %v735
    %v3991 = vunpack.c.h.b16 %v735
    %v3992 = vunpack.c.l.b16 %v736
    %v3993 = vunpack.c.h.b16 %v736
    %v3994 = vunpack.c.l.b16 %v737
    %v3995 = vunpack.c.h.b16 %v737
    %v3996 = vunpack.c.l.b16 %v738
    %v3997 = vunpack.c.h.b16 %v738
    %v3998 = vunpack.c.l.b16 %v739
    %v3999 = vunpack.c.h.b16 %v739
    %v4000 = vunpack.c.l.b16 %v740
    %v4001 = vunpack.c.h.b16 %v740
    %v4002 = vunpack.c.l.b16 %v741
    %v4003 = vunpack.c.h.b16 %v741
    %v4004 = vunpack.c.l.b16 %v742
    %v4005 = vunpack.c.h.b16 %v742
    %v4006 = vunpack.c.l.b16 %v743
    %v4007 = vunpack.c.h.b16 %v743
    %v4008 = vunpack.c.l.b16 %v744
    %v4009 = vunpack.c.h.b16 %v744
    %v4010 = vunpack.c.l.b16 %v745
    %v4011 = vunpack.c.h.b16 %v745
    %v4012 = vunpack.c.l.b16 %v746
    %v4013 = vunpack.c.h.b16 %v746
    %v4014 = vunpack.c.l.b16 %v747
    %v4015 = vunpack.c.h.b16 %v747
    %v4016 = vunpack.c.l.b16 %v748
    %v4017 = vunpack.c.h.b16 %v748
    %v4018 = vunpack.c.l.b16 %v749
    %v4019 = vunpack.c.h.b16 %v749
    %v4020 = vunpack.c.l.b16 %v750
    %v4021 = vunpack.c.h.b16 %v750
    %v4022 = vunpack.c.l.b16 %v751
    %v4023 = vunpack.c.h.b16 %v751
    %v4024 = vunpack.c.l.b16 %v752
    %v4025 = vunpack.c.h.b16 %v752
    %v4026 = vunpack.c.l.b16 %v753
    %v4027 = vunpack.c.h.b16 %v753
    %v4028 = vunpack.c.l.b16 %v754
    %v4029 = vunpack.c.h.b16 %v754
    %v4030 = vunpack.c.l.b16 %v755
    %v4031 = vunpack.c.h.b16 %v755
    %v4032 = vunpack.c.l.b16 %v756
    %v4033 = vunpack.c.h.b16 %v756
    %v4034 = vunpack.c.l.b16 %v757
    %v4035 = vunpack.c.h.b16 %v757
    %v4036 = vunpack.c.l.b16 %v758
    %v4037 = vunpack.c.h.b16 %v758
    %v4038 = vunpack.c.l.b16 %v759
    %v4039 = vunpack.c.h.b16 %v759
    %v4040 = vunpack.c.l.b16 %v760
    %v4041 = vunpack.c.h.b16 %v760
    %v4042 = vunpack.c.l.b16 %v761
    %v4043 = vunpack.c.h.b16 %v761
    %v4044 = vunpack.c.l.b16 %v762
    %v4045 = vunpack.c.h.b16 %v762
    %v4046 = vunpack.c.l.b16 %v763
    %v4047 = vunpack.c.h.b16 %v763
    %v4048 = vunpack.c.l.b16 %v764
    %v4049 = vunpack.c.h.b16 %v764
    %v4050 = vunpack.c.l.b16 %v765
    %v4051 = vunpack.c.h.b16 %v765
    %v4052 = vunpack.c.l.b16 %v766
    %v4053 = vunpack.c.h.b16 %v766
    %v4054 = vunpack.c.l.b16 %v767
    %v4055 = vunpack.c.h.b16 %v767
    %v4056 = vunpack.c.l.b16 %v768
    %v4057 = vunpack.c.h.b16 %v768
    %v4058 = vunpack.c.l.b16 %v769
    %v4059 = vunpack.c.h.b16 %v769
    %v4060 = vunpack.c.l.b16 %v770
    %v4061 = vunpack.c.h.b16 %v770
    %v4062 = vunpack.c.l.b16 %v771
    %v4063 = vunpack.c.h.b16 %v771
    %v4064 = vunpack.c.l.b16 %v772
    %v4065 = vunpack.c.h.b16 %v772
    %v4066 = vunpack.c.l.b16 %v773
    %v4067 = vunpack.c.h.b16 %v773
    %v4068 = vunpack.c.l.b16 %v774
    %v4069 = vunpack.c.h.b16 %v774
    %v4070 = vunpack.c.l.b16 %v775
    %v4071 = vunpack.c.h.b16 %v775
    %v4072 = vunpack.c.l.b16 %v776
    %v4073 = vunpack.c.h.b16 %v776
    %v4074 = vunpack.c.l.b16 %v777
    %v4075 = vunpack.c.h.b16 %v777
    %v4076 = vunpack.c.l.b16 %v778
    %v4077 = vunpack.c.h.b16 %v778
    %v4078 = vunpack.c.l.b16 %v779
    %v4079 = vunpack.c.h.b16 %v779
    %v4080 = vunpack.c.l.b16 %v780
    %v4081 = vunpack.c.h.b16 %v780
    %v4082 = vunpack.c.l.b16 %v781
    %v4083 = vunpack.c.h.b16 %v781
    %v4084 = vunpack.c.l.b16 %v782
    %v4085 = vunpack.c.h.b16 %v782
    %v4086 = vunpack.c.l.b16 %v783
    %v4087 = vunpack.c.h.b16 %v783
    %v4088 = vunpack.c.l.b16 %v784
    %v4089 = vunpack.c.h.b16 %v784
    %v4090 = vunpack.c.l.b16 %v785
    %v4091 = vunpack.c.h.b16 %v785
    %v4092 = vunpack.c.l.b16 %v786
    %v4093 = vunpack.c.h.b16 %v786
    %v4094 = vunpack.c.l.b16 %v787
    %v4095 = vunpack.c.h.b16 %v787
    %v4096 = vunpack.c.l.b16 %v788
    %v4097 = vunpack.c.h.b16 %v788
    %v4098 = vunpack.c.l.b16 %v789
    %v4099 = vunpack.c.h.b16 %v789
    %v4100 = vunpack.c.l.b16 %v790
    %v4101 = vunpack.c.h.b16 %v790
    %v4102 = vunpack.c.l.b16 %v791
    %v4103 = vunpack.c.h.b16 %v791
    %v4104 = vunpack.c.l.b16 %v792
    %v4105 = vunpack.c.h.b16 %v792
    %v4106 = vunpack.c.l.b16 %v793
    %v4107 = vunpack.c.h.b16 %v793
    %v4108 = vunpack.c.l.b16 %v794
    %v4109 = vunpack.c.h.b16 %v794
    %v4110 = vunpack.c.l.b16 %v795
    %v4111 = vunpack.c.h.b16 %v795
    %v4112 = vunpack.c.l.b16 %v796
    %v4113 = vunpack.c.h.b16 %v796
    %v4114 = vunpack.c.l.b16 %v797
    %v4115 = vunpack.c.h.b16 %v797
    %v4116 = vunpack.c.l.b16 %v798
    %v4117 = vunpack.c.h.b16 %v798
    %v4118 = vunpack.c.l.b16 %v799
    %v4119 = vunpack.c.h.b16 %v799
    %v4120 = vunpack.c.l.b16 %v800
    %v4121 = vunpack.c.h.b16 %v800
    %v4122 = vunpack.c.l.b16 %v801
    %v4123 = vunpack.c.h.b16 %v801
    %v4124 = vunpack.c.l.b16 %v802
    %v4125 = vunpack.c.h.b16 %v802
    %v4126 = vunpack.c.l.b16 %v803
    %v4127 = vunpack.c.h.b16 %v803
    %v4128 = vunpack.c.l.b16 %v804
    %v4129 = vunpack.c.h.b16 %v804
    %v4130 = vunpack.c.l.b16 %v805
    %v4131 = vunpack.c.h.b16 %v805
    %v4132 = vunpack.c.l.b16 %v806
    %v4133 = vunpack.c.h.b16 %v806
    %v4134 = vunpack.c.l.b16 %v807
    %v4135 = vunpack.c.h.b16 %v807
    %v4136 = vunpack.c.l.b16 %v808
    %v4137 = vunpack.c.h.b16 %v808
    %v4138 = vunpack.c.l.b16 %v809
    %v4139 = vunpack.c.h.b16 %v809
    %v4140 = vunpack.c.l.b16 %v810
    %v4141 = vunpack.c.h.b16 %v810
    %v4142 = vunpack.c.l.b16 %v811
    %v4143 = vunpack.c.h.b16 %v811
    %v4144 = vunpack.c.l.b16 %v812
    %v4145 = vunpack.c.h.b16 %v812
    %v4146 = vunpack.c.l.b16 %v813
    %v4147 = vunpack.c.h.b16 %v813
    %v4148 = vunpack.c.l.b16 %v814
    %v4149 = vunpack.c.h.b16 %v814
    %v4150 = vunpack.c.l.b16 %v815
    %v4151 = vunpack.c.h.b16 %v815
    %v4152 = vunpack.c.l.b16 %v816
    %v4153 = vunpack.c.h.b16 %v816
    %v4154 = vunpack.c.l.b16 %v817
    %v4155 = vunpack.c.h.b16 %v817
    %v4156 = vunpack.c.l.b16 %v818
    %v4157 = vunpack.c.h.b16 %v818
    %v4158 = vunpack.c.l.b16 %v819
    %v4159 = vunpack.c.h.b16 %v819
    %v4160 = vunpack.c.l.b16 %v820
    %v4161 = vunpack.c.h.b16 %v820
    %v4162 = vunpack.c.l.b16 %v821
    %v4163 = vunpack.c.h.b16 %v821
    %v4164 = vunpack.c.l.b16 %v822
    %v4165 = vunpack.c.h.b16 %v822
    %v4166 = vunpack.c.l.b16 %v823
    %v4167 = vunpack.c.h.b16 %v823
    %v4168 = vunpack.c.l.b16 %v824
    %v4169 = vunpack.c.h.b16 %v824
    %v4170 = vunpack.c.l.b16 %v825
    %v4171 = vunpack.c.h.b16 %v825
    %v4172 = vunpack.c.l.b16 %v826
    %v4173 = vunpack.c.h.b16 %v826
    %v4174 = vunpack.c.l.b16 %v827
    %v4175 = vunpack.c.h.b16 %v827
    %v4176 = vunpack.c.l.b16 %v828
    %v4177 = vunpack.c.h.b16 %v828
    %v4178 = vunpack.c.l.b16 %v829
    %v4179 = vunpack.c.h.b16 %v829
    %v4180 = vunpack.c.l.b16 %v830
    %v4181 = vunpack.c.h.b16 %v830
    %v4182 = vunpack.c.l.b16 %v831
    %v4183 = vunpack.c.h.b16 %v831
    %v4184 = vunpack.c.l.b16 %v832
    %v4185 = vunpack.c.h.b16 %v832
    %v4186 = vunpack.c.l.b16 %v833
    %v4187 = vunpack.c.h.b16 %v833
    %v4188 = vunpack.c.l.b16 %v834
    %v4189 = vunpack.c.h.b16 %v834
    %v4190 = vunpack.c.l.b16 %v835
    %v4191 = vunpack.c.h.b16 %v835
    %v4192 = vunpack.c.l.b16 %v836
    %v4193 = vunpack.c.h.b16 %v836
    %v4194 = vunpack.c.l.b16 %v837
    %v4195 = vunpack.c.h.b16 %v837
    %v4196 = vunpack.c.l.b16 %v838
    %v4197 = vunpack.c.h.b16 %v838
    %v4198 = vunpack.c.l.b16 %v839
    %v4199 = vunpack.c.h.b16 %v839
    %v4200 = vunpack.c.l.b16 %v840
    %v4201 = vunpack.c.h.b16 %v840
    %v4202 = vunpack.c.l.b16 %v841
    %v4203 = vunpack.c.h.b16 %v841
    %v4204 = vunpack.c.l.b16 %v842
    %v4205 = vunpack.c.h.b16 %v842
    %v4206 = vunpack.c.l.b16 %v843
    %v4207 = vunpack.c.h.b16 %v843
    %v4208 = vunpack.c.l.b16 %v844
    %v4209 = vunpack.c.h.b16 %v844
    %v4210 = vunpack.c.l.b16 %v845
    %v4211 = vunpack.c.h.b16 %v845
    %v4212 = vunpack.c.l.b16 %v846
    %v4213 = vunpack.c.h.b16 %v846
    %v4214 = vunpack.c.l.b16 %v847
    %v4215 = vunpack.c.h.b16 %v847
    %v4216 = vunpack.c.l.b16 %v848
    %v4217 = vunpack.c.h.b16 %v848
    %v4218 = vunpack.c.l.b16 %v849
    %v4219 = vunpack.c.h.b16 %v849
    %v4220 = vunpack.c.l.b16 %v850
    %v4221 = vunpack.c.h.b16 %v850
    %v4222 = vunpack.c.l.b16 %v851
    %v4223 = vunpack.c.h.b16 %v851
    %v4224 = vunpack.c.l.b16 %v852
    %v4225 = vunpack.c.h.b16 %v852
    %v4226 = vunpack.c.l.b16 %v853
    %v4227 = vunpack.c.h.b16 %v853
    %v4228 = vunpack.c.l.b16 %v854
    %v4229 = vunpack.c.h.b16 %v854
    %v4230 = vunpack.c.l.b16 %v855
    %v4231 = vunpack.c.h.b16 %v855
    %v4232 = vunpack.c.l.b16 %v856
    %v4233 = vunpack.c.h.b16 %v856
    %v4234 = vunpack.c.l.b16 %v857
    %v4235 = vunpack.c.h.b16 %v857
    %v4236 = vunpack.c.l.b16 %v858
    %v4237 = vunpack.c.h.b16 %v858
    %v4238 = vunpack.c.l.b16 %v859
    %v4239 = vunpack.c.h.b16 %v859
    %v4240 = vunpack.c.l.b16 %v860
    %v4241 = vunpack.c.h.b16 %v860
    %v4242 = vunpack.c.l.b16 %v861
    %v4243 = vunpack.c.h.b16 %v861
    %v4244 = vunpack.c.l.b16 %v862
    %v4245 = vunpack.c.h.b16 %v862
    %v4246 = vunpack.c.l.b16 %v863
    %v4247 = vunpack.c.h.b16 %v863
    %v4248 = vunpack.c.l.b16 %v864
    %v4249 = vunpack.c.h.b16 %v864
    %v4250 = vunpack.c.l.b16 %v865
    %v4251 = vunpack.c.h.b16 %v865
    %v4252 = vunpack.c.l.b16 %v866
    %v4253 = vunpack.c.h.b16 %v866
    %v4254 = vunpack.c.l.b16 %v867
    %v4255 = vunpack.c.h.b16 %v867
    %v4256 = vunpack.c.l.b16 %v868
    %v4257 = vunpack.c.h.b16 %v868
    %v4258 = vunpack.c.l.b16 %v869
    %v4259 = vunpack.c.h.b16 %v869
    %v4260 = vunpack.c.l.b16 %v870
    %v4261 = vunpack.c.h.b16 %v870
    %v4262 = vunpack.c.l.b16 %v871
    %v4263 = vunpack.c.h.b16 %v871
    %v4264 = vunpack.c.l.b16 %v872
    %v4265 = vunpack.c.h.b16 %v872
    %v4266 = vunpack.c.l.b16 %v873
    %v4267 = vunpack.c.h.b16 %v873
    %v4268 = vunpack.c.l.b16 %v874
    %v4269 = vunpack.c.h.b16 %v874
    %v4270 = vunpack.c.l.b16 %v875
    %v4271 = vunpack.c.h.b16 %v875
    %v4272 = vunpack.c.l.b16 %v876
    %v4273 = vunpack.c.h.b16 %v876
    %v4274 = vunpack.c.l.b16 %v877
    %v4275 = vunpack.c.h.b16 %v877
    %v4276 = vunpack.c.l.b16 %v878
    %v4277 = vunpack.c.h.b16 %v878
    %v4278 = vunpack.c.l.b16 %v879
    %v4279 = vunpack.c.h.b16 %v879
    %v4280 = vunpack.c.l.b16 %v880
    %v4281 = vunpack.c.h.b16 %v880
    %v4282 = vunpack.c.l.b16 %v881
    %v4283 = vunpack.c.h.b16 %v881
    %v4284 = vunpack.c.l.b16 %v882
    %v4285 = vunpack.c.h.b16 %v882
    %v4286 = vunpack.c.l.b16 %v883
    %v4287 = vunpack.c.h.b16 %v883
    %v4288 = vunpack.c.l.b16 %v884
    %v4289 = vunpack.c.h.b16 %v884
    %v4290 = vunpack.c.l.b16 %v885
    %v4291 = vunpack.c.h.b16 %v885
    %v4292 = vunpack.c.l.b16 %v886
    %v4293 = vunpack.c.h.b16 %v886
    %v4294 = vunpack.c.l.b16 %v887
    %v4295 = vunpack.c.h.b16 %v887
    %v4296 = vunpack.c.l.b16 %v888
    %v4297 = vunpack.c.h.b16 %v888
    %v4298 = vunpack.c.l.b16 %v889
    %v4299 = vunpack.c.h.b16 %v889
    %v4300 = vunpack.c.l.b16 %v890
    %v4301 = vunpack.c.h.b16 %v890
    %v4302 = vunpack.c.l.b16 %v891
    %v4303 = vunpack.c.h.b16 %v891
    %v4304 = vunpack.c.l.b16 %v892
    %v4305 = vunpack.c.h.b16 %v892
    %v4306 = vunpack.c.l.b16 %v893
    %v4307 = vunpack.c.h.b16 %v893
    %v4308 = vunpack.c.l.b16 %v894
    %v4309 = vunpack.c.h.b16 %v894
    %v4310 = vunpack.c.l.b16 %v895
    %v4311 = vunpack.c.h.b16 %v895
    %v4312 = vunpack.c.l.b16 %v896
    %v4313 = vunpack.c.h.b16 %v896
    %v4314 = vunpack.c.l.b16 %v897
    %v4315 = vunpack.c.h.b16 %v897
    %v4316 = vunpack.c.l.b16 %v898
    %v4317 = vunpack.c.h.b16 %v898
    %v4318 = vunpack.c.l.b16 %v899
    %v4319 = vunpack.c.h.b16 %v899
    %v4320 = vunpack.c.l.b16 %v900
    %v4321 = vunpack.c.h.b16 %v900
    %v4322 = vunpack.c.l.b16 %v901
    %v4323 = vunpack.c.h.b16 %v901
    %v4324 = vunpack.c.l.b16 %v902
    %v4325 = vunpack.c.h.b16 %v902
    %v4326 = vunpack.c.l.b16 %v903
    %v4327 = vunpack.c.h.b16 %v903
    %v4328 = vunpack.c.l.b16 %v904
    %v4329 = vunpack.c.h.b16 %v904
    %v4330 = vunpack.c.l.b16 %v905
    %v4331 = vunpack.c.h.b16 %v905
    %v4332 = vunpack.c.l.b16 %v906
    %v4333 = vunpack.c.h.b16 %v906
    %v4334 = vunpack.c.l.b16 %v907
    %v4335 = vunpack.c.h.b16 %v907
    %v4336 = vunpack.c.l.b16 %v908
    %v4337 = vunpack.c.h.b16 %v908
    %v4338 = vunpack.c.l.b16 %v909
    %v4339 = vunpack.c.h.b16 %v909
    %v4340 = vunpack.c.l.b16 %v910
    %v4341 = vunpack.c.h.b16 %v910
    %v4342 = vunpack.c.l.b16 %v911
    %v4343 = vunpack.c.h.b16 %v911
    %v4344 = vunpack.c.l.b16 %v912
    %v4345 = vunpack.c.h.b16 %v912
    %v4346 = vunpack.c.l.b16 %v913
    %v4347 = vunpack.c.h.b16 %v913
    %v4348 = vunpack.c.l.b16 %v914
    %v4349 = vunpack.c.h.b16 %v914
    %v4350 = vunpack.c.l.b16 %v915
    %v4351 = vunpack.c.h.b16 %v915
    %v4352 = vunpack.c.l.b16 %v916
    %v4353 = vunpack.c.h.b16 %v916
    %v4354 = vunpack.c.l.b16 %v917
    %v4355 = vunpack.c.h.b16 %v917
    %v4356 = vunpack.c.l.b16 %v918
    %v4357 = vunpack.c.h.b16 %v918
    %v4358 = vunpack.c.l.b16 %v919
    %v4359 = vunpack.c.h.b16 %v919
    %v4360 = vunpack.c.l.b16 %v920
    %v4361 = vunpack.c.h.b16 %v920
    %v4362 = vunpack.c.l.b16 %v921
    %v4363 = vunpack.c.h.b16 %v921
    %v4364 = vunpack.c.l.b16 %v922
    %v4365 = vunpack.c.h.b16 %v922
    %v4366 = vunpack.c.l.b16 %v923
    %v4367 = vunpack.c.h.b16 %v923
    %v4368 = vunpack.c.l.b16 %v924
    %v4369 = vunpack.c.h.b16 %v924
    %v4370 = vunpack.c.l.b16 %v925
    %v4371 = vunpack.c.h.b16 %v925
    %v4372 = vunpack.c.l.b16 %v926
    %v4373 = vunpack.c.h.b16 %v926
    %v4374 = vunpack.c.l.b16 %v927
    %v4375 = vunpack.c.h.b16 %v927
    %v4376 = vunpack.c.l.b16 %v928
    %v4377 = vunpack.c.h.b16 %v928
    %v4378 = vunpack.c.l.b16 %v929
    %v4379 = vunpack.c.h.b16 %v929
    %v4380 = vunpack.c.l.b16 %v930
    %v4381 = vunpack.c.h.b16 %v930
    %v4382 = vunpack.c.l.b16 %v931
    %v4383 = vunpack.c.h.b16 %v931
    %v4384 = vunpack.c.l.b16 %v932
    %v4385 = vunpack.c.h.b16 %v932
    %v4386 = vunpack.c.l.b16 %v933
    %v4387 = vunpack.c.h.b16 %v933
    %v4388 = vunpack.c.l.b16 %v934
    %v4389 = vunpack.c.h.b16 %v934
    %v4390 = vunpack.c.l.b16 %v935
    %v4391 = vunpack.c.h.b16 %v935
    %v4392 = vunpack.c.l.b16 %v936
    %v4393 = vunpack.c.h.b16 %v936
    %v4394 = vunpack.c.l.b16 %v937
    %v4395 = vunpack.c.h.b16 %v937
    %v4396 = vunpack.c.l.b16 %v938
    %v4397 = vunpack.c.h.b16 %v938
    %v4398 = vunpack.c.l.b16 %v939
    %v4399 = vunpack.c.h.b16 %v939
    %v4400 = vunpack.c.l.b16 %v940
    %v4401 = vunpack.c.h.b16 %v940
    %v4402 = vunpack.c.l.b16 %v941
    %v4403 = vunpack.c.h.b16 %v941
    %v4404 = vunpack.c.l.b16 %v942
    %v4405 = vunpack.c.h.b16 %v942
    %v4406 = vunpack.c.l.b16 %v943
    %v4407 = vunpack.c.h.b16 %v943
    %v4408 = vunpack.c.l.b16 %v944
    %v4409 = vunpack.c.h.b16 %v944
    %v4410 = vunpack.c.l.b16 %v945
    %v4411 = vunpack.c.h.b16 %v945
    %v4412 = vunpack.c.l.b16 %v946
    %v4413 = vunpack.c.h.b16 %v946
    %v4414 = vunpack.c.l.b16 %v947
    %v4415 = vunpack.c.h.b16 %v947
    %v4416 = vunpack.c.l.b16 %v948
    %v4417 = vunpack.c.h.b16 %v948
    %v4418 = vunpack.c.l.b16 %v949
    %v4419 = vunpack.c.h.b16 %v949
    %v4420 = vunpack.c.l.b16 %v950
    %v4421 = vunpack.c.h.b16 %v950
    %v4422 = vunpack.c.l.b16 %v951
    %v4423 = vunpack.c.h.b16 %v951
    %v4424 = vunpack.c.l.b16 %v952
    %v4425 = vunpack.c.h.b16 %v952
    %v4426 = vunpack.c.l.b16 %v953
    %v4427 = vunpack.c.h.b16 %v953
    %v4428 = vunpack.c.l.b16 %v954
    %v4429 = vunpack.c.h.b16 %v954
    %v4430 = vunpack.c.l.b16 %v955
    %v4431 = vunpack.c.h.b16 %v955
    %v4432 = vunpack.c.l.b16 %v956
    %v4433 = vunpack.c.h.b16 %v956
    %v4434 = vunpack.c.l.b16 %v957
    %v4435 = vunpack.c.h.b16 %v957
    %v4436 = vunpack.c.l.b16 %v958
    %v4437 = vunpack.c.h.b16 %v958
    %v4438 = vunpack.c.l.b16 %v959
    %v4439 = vunpack.c.h.b16 %v959
    %v4440 = vunpack.c.l.b16 %v960
    %v4441 = vunpack.c.h.b16 %v960
    %v4442 = vunpack.c.l.b16 %v961
    %v4443 = vunpack.c.h.b16 %v961
    %v4444 = vunpack.c.l.b16 %v962
    %v4445 = vunpack.c.h.b16 %v962
    %v4446 = vunpack.c.l.b16 %v963
    %v4447 = vunpack.c.h.b16 %v963
    %v4448 = vunpack.c.l.b16 %v964
    %v4449 = vunpack.c.h.b16 %v964
    %v4450 = vunpack.c.l.b16 %v965
    %v4451 = vunpack.c.h.b16 %v965
    %v4452 = vunpack.c.l.b16 %v966
    %v4453 = vunpack.c.h.b16 %v966
    %v4454 = vunpack.c.l.b16 %v967
    %v4455 = vunpack.c.h.b16 %v967
    %v4456 = vunpack.c.l.b16 %v968
    %v4457 = vunpack.c.h.b16 %v968
    %v4458 = vunpack.c.l.b16 %v969
    %v4459 = vunpack.c.h.b16 %v969
    %v4460 = vunpack.c.l.b16 %v970
    %v4461 = vunpack.c.h.b16 %v970
    %v4462 = vunpack.c.l.b16 %v971
    %v4463 = vunpack.c.h.b16 %v971
    %v4464 = vunpack.c.l.b16 %v972
    %v4465 = vunpack.c.h.b16 %v972
    %v4466 = vunpack.c.l.b16 %v973
    %v4467 = vunpack.c.h.b16 %v973
    %v4468 = vunpack.c.l.b16 %v974
    %v4469 = vunpack.c.h.b16 %v974
    %v4470 = vunpack.c.l.b16 %v975
    %v4471 = vunpack.c.h.b16 %v975
    %v4472 = vunpack.c.l.b16 %v976
    %v4473 = vunpack.c.h.b16 %v976
    %v4474 = vunpack.c.l.b16 %v977
    %v4475 = vunpack.c.h.b16 %v977
    %v4476 = vunpack.c.l.b16 %v978
    %v4477 = vunpack.c.h.b16 %v978
    %v4478 = vunpack.c.l.b16 %v979
    %v4479 = vunpack.c.h.b16 %v979
    %v4480 = vunpack.c.l.b16 %v980
    %v4481 = vunpack.c.h.b16 %v980
    %v4482 = vunpack.c.l.b16 %v981
    %v4483 = vunpack.c.h.b16 %v981
    %v4484 = vunpack.c.l.b16 %v982
    %v4485 = vunpack.c.h.b16 %v982
    %v4486 = vunpack.c.l.b16 %v983
    %v4487 = vunpack.c.h.b16 %v983
    %v4488 = vunpack.c.l.b16 %v984
    %v4489 = vunpack.c.h.b16 %v984
    %v4490 = vunpack.c.l.b16 %v985
    %v4491 = vunpack.c.h.b16 %v985
    %v4492 = vunpack.c.l.b16 %v986
    %v4493 = vunpack.c.h.b16 %v986
    %v4494 = vunpack.c.l.b16 %v987
    %v4495 = vunpack.c.h.b16 %v987
    %v4496 = vunpack.c.l.b16 %v988
    %v4497 = vunpack.c.h.b16 %v988
    %v4498 = vunpack.c.l.b16 %v989
    %v4499 = vunpack.c.h.b16 %v989
    %v4500 = vunpack.c.l.b16 %v990
    %v4501 = vunpack.c.h.b16 %v990
    %v4502 = vunpack.c.l.b16 %v991
    %v4503 = vunpack.c.h.b16 %v991
    %v4504 = vunpack.c.l.b16 %v992
    %v4505 = vunpack.c.h.b16 %v992
    %v4506 = vunpack.c.l.b16 %v993
    %v4507 = vunpack.c.h.b16 %v993
    %v4508 = vunpack.c.l.b16 %v994
    %v4509 = vunpack.c.h.b16 %v994
    %v4510 = vunpack.c.l.b16 %v995
    %v4511 = vunpack.c.h.b16 %v995
    %v4512 = vunpack.c.l.b16 %v996
    %v4513 = vunpack.c.h.b16 %v996
    %v4514 = vunpack.c.l.b16 %v997
    %v4515 = vunpack.c.h.b16 %v997
    %v4516 = vunpack.c.l.b16 %v998
    %v4517 = vunpack.c.h.b16 %v998
    %v4518 = vunpack.c.l.b16 %v999
    %v4519 = vunpack.c.h.b16 %v999
    %v4520 = vpack.c.b16 %v3244, %v3240
    %v4521 = vpack.c.b16 %v3245, %v3241
    %v4522 = vpack.c.b16 %v3246, %v3242
    %v4523 = vpack.c.b16 %v3247, %v3243
    %v4524 = vpack.c.b16 %v3252, %v3248
    %v4525 = vpack.c.b16 %v3253, %v3249
    %v4526 = vpack.c.b16 %v3254, %v3250
    %v4527 = vpack.c.b16 %v3255, %v3251
    %v4528 = vpack.c.b16 %v3260, %v3256
    %v4529 = vpack.c.b16 %v3261, %v3257
    %v4530 = vpack.c.b16 %v3262, %v3258
    %v4531 = vpack.c.b16 %v3263, %v3259
    %v4532 = vpack.c.b16 %v3268, %v3264
    %v4533 = vpack.c.b16 %v3269, %v3265
    %v4534 = vpack.c.b16 %v3270, %v3266
    %v4535 = vpack.c.b16 %v3271, %v3267
    %v4536 = vpack.c.b16 %v3276, %v3272
    %v4537 = vpack.c.b16 %v3277, %v3273
    %v4538 = vpack.c.b16 %v3278, %v3274
    %v4539 = vpack.c.b16 %v3279, %v3275
    %v4540 = vpack.c.b16 %v3284, %v3280
    %v4541 = vpack.c.b16 %v3285, %v3281
    %v4542 = vpack.c.b16 %v3286, %v3282
    %v4543 = vpack.c.b16 %v3287, %v3283
    %v4544 = vpack.c.b16 %v3292, %v3288
    %v4545 = vpack.c.b16 %v3293, %v3289
    %v4546 = vpack.c.b16 %v3294, %v3290
    %v4547 = vpack.c.b16 %v3295, %v3291
    %v4548 = vpack.c.b16 %v3300, %v3296
    %v4549 = vpack.c.b16 %v3301, %v3297
    %v4550 = vpack.c.b16 %v3302, %v3298
    %v4551 = vpack.c.b16 %v3303, %v3299
    %v4552 = vpack.c.b16 %v3308, %v3304
    %v4553 = vpack.c.b16 %v3309, %v3305
    %v4554 = vpack.c.b16 %v3310, %v3306
    %v4555 = vpack.c.b16 %v3311, %v3307
    %v4556 = vpack.c.b16 %v3316, %v3312
    %v4557 = vpack.c.b16 %v3317, %v3313
    %v4558 = vpack.c.b16 %v3318, %v3314
    %v4559 = vpack.c.b16 %v3319, %v3315
    %v4560 = vpack.c.b16 %v3324, %v3320
    %v4561 = vpack.c.b16 %v3325, %v3321
    %v4562 = vpack.c.b16 %v3326, %v3322
    %v4563 = vpack.c.b16 %v3327, %v3323
    %v4564 = vpack.c.b16 %v3332, %v3328
    %v4565 = vpack.c.b16 %v3333, %v3329
    %v4566 = vpack.c.b16 %v3334, %v3330
    %v4567 = vpack.c.b16 %v3335, %v3331
    %v4568 = vpack.c.b16 %v3340, %v3336
    %v4569 = vpack.c.b16 %v3341, %v3337
    %v4570 = vpack.c.b16 %v3342, %v3338
    %v4571 = vpack.c.b16 %v3343, %v3339
    %v4572 = vpack.c.b16 %v3348, %v3344
    %v4573 = vpack.c.b16 %v3349, %v3345
    %v4574 = vpack.c.b16 %v3350, %v3346
    %v4575 = vpack.c.b16 %v3351, %v3347
    %v4576 = vpack.c.b16 %v3356, %v3352
    %v4577 = vpack.c.b16 %v3357, %v3353
    %v4578 = vpack.c.b16 %v3358, %v3354
    %v4579 = vpack.c.b16 %v3359, %v3355
    %v4580 = vpack.c.b16 %v3364, %v3360
    %v4581 = vpack.c.b16 %v3365, %v3361
    %v4582 = vpack.c.b16 %v3366, %v3362
    %v4583 = vpack.c.b16 %v3367, %v3363
    %v4584 = vpack.c.b16 %v3372, %v3368
    %v4585 = vpack.c.b16 %v3373, %v3369
    %v4586 = vpack.c.b16 %v3374, %v3370
    %v4587 = vpack.c.b16 %v3375, %v3371
    %v4588 = vpack.c.b16 %v3380, %v3376
    %v4589 = vpack.c.b16 %v3381, %v3377
    %v4590 = vpack.c.b16 %v3382, %v3378
    %v4591 = vpack.c.b16 %v3383, %v3379
    %v4592 = vpack.c.b16 %v3388, %v3384
    %v4593 = vpack.c.b16 %v3389, %v3385
    %v4594 = vpack.c.b16 %v3390, %v3386
    %v4595 = vpack.c.b16 %v3391, %v3387
    %v4596 = vpack.c.b16 %v3396, %v3392
    %v4597 = vpack.c.b16 %v3397, %v3393
    %v4598 = vpack.c.b16 %v3398, %v3394
    %v4599 = vpack.c.b16 %v3399, %v3395
    %v4600 = vpack.c.b16 %v3404, %v3400
    %v4601 = vpack.c.b16 %v3405, %v3401
    %v4602 = vpack.c.b16 %v3406, %v3402
    %v4603 = vpack.c.b16 %v3407, %v3403
    %v4604 = vpack.c.b16 %v3412, %v3408
    %v4605 = vpack.c.b16 %v3413, %v3409
    %v4606 = vpack.c.b16 %v3414, %v3410
    %v4607 = vpack.c.b16 %v3415, %v3411
    %v4608 = vpack.c.b16 %v3420, %v3416
    %v4609 = vpack.c.b16 %v3421, %v3417
    %v4610 = vpack.c.b16 %v3422, %v3418
    %v4611 = vpack.c.b16 %v3423, %v3419
    %v4612 = vpack.c.b16 %v3428, %v3424
    %v4613 = vpack.c.b16 %v3429, %v3425
    %v4614 = vpack.c.b16 %v3430, %v3426
    %v4615 = vpack.c.b16 %v3431, %v3427
    %v4616 = vpack.c.b16 %v3436, %v3432
    %v4617 = vpack.c.b16 %v3437, %v3433
    %v4618 = vpack.c.b16 %v3438, %v3434
    %v4619 = vpack.c.b16 %v3439, %v3435
    %v4620 = vpack.c.b16 %v3444, %v3440
    %v4621 = vpack.c.b16 %v3445, %v3441
    %v4622 = vpack.c.b16 %v3446, %v3442
    %v4623 = vpack.c.b16 %v3447, %v3443
    %v4624 = vpack.c.b16 %v3452, %v3448
    %v4625 = vpack.c.b16 %v3453, %v3449
    %v4626 = vpack.c.b16 %v3454, %v3450
    %v4627 = vpack.c.b16 %v3455, %v3451
    %v4628 = vpack.c.b16 %v3460, %v3456
    %v4629 = vpack.c.b16 %v3461, %v3457
    %v4630 = vpack.c.b16 %v3462, %v3458
    %v4631 = vpack.c.b16 %v3463, %v3459
    %v4632 = vpack.c.b16 %v3468, %v3464
    %v4633 = vpack.c.b16 %v3469, %v3465
    %v4634 = vpack.c.b16 %v3470, %v3466
    %v4635 = vpack.c.b16 %v3471, %v3467
    %v4636 = vpack.c.b16 %v3476, %v3472
    %v4637 = vpack.c.b16 %v3477, %v3473
    %v4638 = vpack.c.b16 %v3478, %v3474
    %v4639 = vpack.c.b16 %v3479, %v3475
    %v4640 = vpack.c.b16 %v3484, %v3480
    %v4641 = vpack.c.b16 %v3485, %v3481
    %v4642 = vpack.c.b16 %v3486, %v3482
    %v4643 = vpack.c.b16 %v3487, %v3483
    %v4644 = vpack.c.b16 %v3492, %v3488
    %v4645 = vpack.c.b16 %v3493, %v3489
    %v4646 = vpack.c.b16 %v3494, %v3490
    %v4647 = vpack.c.b16 %v3495, %v3491
    %v4648 = vpack.c.b16 %v3500, %v3496
    %v4649 = vpack.c.b16 %v3501, %v3497
    %v4650 = vpack.c.b16 %v3502, %v3498
    %v4651 = vpack.c.b16 %v3503, %v3499
    %v4652 = vpack.c.b16 %v3508, %v3504
    %v4653 = vpack.c.b16 %v3509, %v3505
    %v4654 = vpack.c.b16 %v3510, %v3506
    %v4655 = vpack.c.b16 %v3511, %v3507
    %v4656 = vpack.c.b16 %v3516, %v3512
    %v4657 = vpack.c.b16 %v3517, %v3513
    %v4658 = vpack.c.b16 %v3518, %v3514
    %v4659 = vpack.c.b16 %v3519, %v3515
    %v4660 = vpack.c.b16 %v3524, %v3520
    %v4661 = vpack.c.b16 %v3525, %v3521
    %v4662 = vpack.c.b16 %v3526, %v3522
    %v4663 = vpack.c.b16 %v3527, %v3523
    %v4664 = vpack.c.b16 %v3532, %v3528
    %v4665 = vpack.c.b16 %v3533, %v3529
    %v4666 = vpack.c.b16 %v3534, %v3530
    %v4667 = vpack.c.b16 %v3535, %v3531
    %v4668 = vpack.c.b16 %v3540, %v3536
    %v4669 = vpack.c.b16 %v3541, %v3537
    %v4670 = vpack.c.b16 %v3542, %v3538
    %v4671 = vpack.c.b16 %v3543, %v3539
    %v4672 = vpack.c.b16 %v3548, %v3544
    %v4673 = vpack.c.b16 %v3549, %v3545
    %v4674 = vpack.c.b16 %v3550, %v3546
    %v4675 = vpack.c.b16 %v3551, %v3547
    %v4676 = vpack.c.b16 %v3556, %v3552
    %v4677 = vpack.c.b16 %v3557, %v3553
    %v4678 = vpack.c.b16 %v3558, %v3554
    %v4679 = vpack.c.b16 %v3559, %v3555
    %v4680 = vpack.c.b16 %v3564, %v3560
    %v4681 = vpack.c.b16 %v3565, %v3561
    %v4682 = vpack.c.b16 %v3566, %v3562
    %v4683 = vpack.c.b16 %v3567, %v3563
    %v4684 = vpack.c.b16 %v3572, %v3568
    %v4685 = vpack.c.b16 %v3573, %v3569
    %v4686 = vpack.c.b16 %v3574, %v3570
    %v4687 = vpack.c.b16 %v3575, %v3571
    %v4688 = vpack.c.b16 %v3580, %v3576
    %v4689 = vpack.c.b16 %v3581, %v3577
    %v4690 = vpack.c.b16 %v3582, %v3578
    %v4691 = vpack.c.b16 %v3583, %v3579
    %v4692 = vpack.c.b16 %v3588, %v3584
    %v4693 = vpack.c.b16 %v3589, %v3585
    %v4694 = vpack.c.b16 %v3590, %v3586
    %v4695 = vpack.c.b16 %v3591, %v3587
    %v4696 = vpack.c.b16 %v3596, %v3592
    %v4697 = vpack.c.b16 %v3597, %v3593
    %v4698 = vpack.c.b16 %v3598, %v3594
    %v4699 = vpack.c.b16 %v3599, %v3595
    %v4700 = vpack.c.b16 %v3604, %v3600
    %v4701 = vpack.c.b16 %v3605, %v3601
    %v4702 = vpack.c.b16 %v3606, %v3602
    %v4703 = vpack.c.b16 %v3607, %v3603
    %v4704 = vpack.c.b16 %v3612, %v3608
    %v4705 = vpack.c.b16 %v3613, %v3609
    %v4706 = vpack.c.b16 %v3614, %v3610
    %v4707 = vpack.c.b16 %v3615, %v3611
    %v4708 = vpack.c.b16 %v3620, %v3616
    %v4709 = vpack.c.b16 %v3621, %v3617
    %v4710 = vpack.c.b16 %v3622, %v3618
    %v4711 = vpack.c.b16 %v3623, %v3619
    %v4712 = vpack.c.b16 %v3628, %v3624
    %v4713 = vpack.c.b16 %v3629, %v3625
    %v4714 = vpack.c.b16 %v3630, %v3626
    %v4715 = vpack.c.b16 %v3631, %v3627
    %v4716 = vpack.c.b16 %v3636, %v3632
    %v4717 = vpack.c.b16 %v3637, %v3633
    %v4718 = vpack.c.b16 %v3638, %v3634
    %v4719 = vpack.c.b16 %v3639, %v3635
    %v4720 = vpack.c.b16 %v3644, %v3640
    %v4721 = vpack.c.b16 %v3645, %v3641
    %v4722 = vpack.c.b16 %v3646, %v3642
    %v4723 = vpack.c.b16 %v3647, %v3643
    %v4724 = vpack.c.b16 %v3652, %v3648
    %v4725 = vpack.c.b16 %v3653, %v3649
    %v4726 = vpack.c.b16 %v3654, %v3650
    %v4727 = vpack.c.b16 %v3655, %v3651
    %v4728 = vpack.c.b16 %v3660, %v3656
    %v4729 = vpack.c.b16 %v3661, %v3657
    %v4730 = vpack.c.b16 %v3662, %v3658
    %v4731 = vpack.c.b16 %v3663, %v3659
    %v4732 = vpack.c.b16 %v3668, %v3664
    %v4733 = vpack.c.b16 %v3669, %v3665
    %v4734 = vpack.c.b16 %v3670, %v3666
    %v4735 = vpack.c.b16 %v3671, %v3667
    %v4736 = vpack.c.b16 %v3676, %v3672
    %v4737 = vpack.c.b16 %v3677, %v3673
    %v4738 = vpack.c.b16 %v3678, %v3674
    %v4739 = vpack.c.b16 %v3679, %v3675
    %v4740 = vpack.c.b16 %v3684, %v3680
    %v4741 = vpack.c.b16 %v3685, %v3681
    %v4742 = vpack.c.b16 %v3686, %v3682
    %v4743 = vpack.c.b16 %v3687, %v3683
    %v4744 = vpack.c.b16 %v3692, %v3688
    %v4745 = vpack.c.b16 %v3693, %v3689
    %v4746 = vpack.c.b16 %v3694, %v3690
    %v4747 = vpack.c.b16 %v3695, %v3691
    %v4748 = vpack.c.b16 %v3700, %v3696
    %v4749 = vpack.c.b16 %v3701, %v3697
    %v4750 = vpack.c.b16 %v3702, %v3698
    %v4751 = vpack.c.b16 %v3703, %v3699
    %v4752 = vpack.c.b16 %v3708, %v3704
    %v4753 = vpack.c.b16 %v3709, %v3705
    %v4754 = vpack.c.b16 %v3710, %v3706
    %v4755 = vpack.c.b16 %v3711, %v3707
    %v4756 = vpack.c.b16 %v3716, %v3712
    %v4757 = vpack.c.b16 %v3717, %v3713
    %v4758 = vpack.c.b16 %v3718, %v3714
    %v4759 = vpack.c.b16 %v3719, %v3715
    %v4760 = vpack.c.b16 %v3724, %v3720
    %v4761 = vpack.c.b16 %v3725, %v3721
    %v4762 = vpack.c.b16 %v3726, %v3722
    %v4763 = vpack.c.b16 %v3727, %v3723
    %v4764 = vpack.c.b16 %v3732, %v3728
    %v4765 = vpack.c.b16 %v3733, %v3729
    %v4766 = vpack.c.b16 %v3734, %v3730
    %v4767 = vpack.c.b16 %v3735, %v3731
    %v4768 = vpack.c.b16 %v3740, %v3736
    %v4769 = vpack.c.b16 %v3741, %v3737
    %v4770 = vpack.c.b16 %v3742, %v3738
    %v4771 = vpack.c.b16 %v3743, %v3739
    %v4772 = vpack.c.b16 %v3748, %v3744
    %v4773 = vpack.c.b16 %v3749, %v3745
    %v4774 = vpack.c.b16 %v3750, %v3746
    %v4775 = vpack.c.b16 %v3751, %v3747
    %v4776 = vpack.c.b16 %v3756, %v3752
    %v4777 = vpack.c.b16 %v3757, %v3753
    %v4778 = vpack.c.b16 %v3758, %v3754
    %v4779 = vpack.c.b16 %v3759, %v3755
    %v4780 = vpack.c.b16 %v3764, %v3760
    %v4781 = vpack.c.b16 %v3765, %v3761
    %v4782 = vpack.c.b16 %v3766, %v3762
    %v4783 = vpack.c.b16 %v3767, %v3763
    %v4784 = vpack.c.b16 %v3772, %v3768
    %v4785 = vpack.c.b16 %v3773, %v3769
    %v4786 = vpack.c.b16 %v3774, %v3770
    %v4787 = vpack.c.b16 %v3775, %v3771
    %v4788 = vpack.c.b16 %v3780, %v3776
    %v4789 = vpack.c.b16 %v3781, %v3777
    %v4790 = vpack.c.b16 %v3782, %v3778
    %v4791 = vpack.c.b16 %v3783, %v3779
    %v4792 = vpack.c.b16 %v3788, %v3784
    %v4793 = vpack.c.b16 %v3789, %v3785
    %v4794 = vpack.c.b16 %v3790, %v3786
    %v4795 = vpack.c.b16 %v3791, %v3787
    %v4796 = vpack.c.b16 %v3796, %v3792
    %v4797 = vpack.c.b16 %v3797, %v3793
    %v4798 = vpack.c.b16 %v3798, %v3794
    %v4799 = vpack.c.b16 %v3799, %v3795
    %v4800 = vpack.c.b16 %v3804, %v3800
    %v4801 = vpack.c.b16 %v3805, %v3801
    %v4802 = vpack.c.b16 %v3806, %v3802
    %v4803 = vpack.c.b16 %v3807, %v3803
    %v4804 = vpack.c.b16 %v3812, %v3808
    %v4805 = vpack.c.b16 %v3813, %v3809
    %v4806 = vpack.c.b16 %v3814, %v3810
    %v4807 = vpack.c.b16 %v3815, %v3811
    %v4808 = vpack.c.b16 %v3820, %v3816
    %v4809 = vpack.c.b16 %v3821, %v3817
    %v4810 = vpack.c.b16 %v3822, %v3818
    %v4811 = vpack.c.b16 %v3823, %v3819
    %v4812 = vpack.c.b16 %v3828, %v3824
    %v4813 = vpack.c.b16 %v3829, %v3825
    %v4814 = vpack.c.b16 %v3830, %v3826
    %v4815 = vpack.c.b16 %v3831, %v3827
    %v4816 = vpack.c.b16 %v3836, %v3832
    %v4817 = vpack.c.b16 %v3837, %v3833
    %v4818 = vpack.c.b16 %v3838, %v3834
    %v4819 = vpack.c.b16 %v3839, %v3835
    %v4820 = vpack.c.b16 %v3844, %v3840
    %v4821 = vpack.c.b16 %v3845, %v3841
    %v4822 = vpack.c.b16 %v3846, %v3842
    %v4823 = vpack.c.b16 %v3847, %v3843
    %v4824 = vpack.c.b16 %v3852, %v3848
    %v4825 = vpack.c.b16 %v3853, %v3849
    %v4826 = vpack.c.b16 %v3854, %v3850
    %v4827 = vpack.c.b16 %v3855, %v3851
    %v4828 = vpack.c.b16 %v3860, %v3856
    %v4829 = vpack.c.b16 %v3861, %v3857
    %v4830 = vpack.c.b16 %v3862, %v3858
    %v4831 = vpack.c.b16 %v3863, %v3859
    %v4832 = vpack.c.b16 %v3868, %v3864
    %v4833 = vpack.c.b16 %v3869, %v3865
    %v4834 = vpack.c.b16 %v3870, %v3866
    %v4835 = vpack.c.b16 %v3871, %v3867
    %v4836 = vpack.c.b16 %v3876, %v3872
    %v4837 = vpack.c.b16 %v3877, %v3873
    %v4838 = vpack.c.b16 %v3878, %v3874
    %v4839 = vpack.c.b16 %v3879, %v3875
    %v4840 = vpack.c.b16 %v3884, %v3880
    %v4841 = vpack.c.b16 %v3885, %v3881
    %v4842 = vpack.c.b16 %v3886, %v3882
    %v4843 = vpack.c.b16 %v3887, %v3883
    %v4844 = vpack.c.b16 %v3892, %v3888
    %v4845 = vpack.c.b16 %v3893, %v3889
    %v4846 = vpack.c.b16 %v3894, %v3890
    %v4847 = vpack.c.b16 %v3895, %v3891
    %v4848 = vpack.c.b16 %v3900, %v3896
    %v4849 = vpack.c.b16 %v3901, %v3897
    %v4850 = vpack.c.b16 %v3902, %v3898
    %v4851 = vpack.c.b16 %v3903, %v3899
    %v4852 = vpack.c.b16 %v3908, %v3904
    %v4853 = vpack.c.b16 %v3909, %v3905
    %v4854 = vpack.c.b16 %v3910, %v3906
    %v4855 = vpack.c.b16 %v3911, %v3907
    %v4856 = vpack.c.b16 %v3916, %v3912
    %v4857 = vpack.c.b16 %v3917, %v3913
    %v4858 = vpack.c.b16 %v3918, %v3914
    %v4859 = vpack.c.b16 %v3919, %v3915
    %v4860 = vpack.c.b16 %v3924, %v3920
    %v4861 = vpack.c.b16 %v3925, %v3921
    %v4862 = vpack.c.b16 %v3926, %v3922
    %v4863 = vpack.c.b16 %v3927, %v3923
    %v4864 = vpack.c.b16 %v3932, %v3928
    %v4865 = vpack.c.b16 %v3933, %v3929
    %v4866 = vpack.c.b16 %v3934, %v3930
    %v4867 = vpack.c.b16 %v3935, %v3931
    %v4868 = vpack.c.b16 %v3940, %v3936
    %v4869 = vpack.c.b16 %v3941, %v3937
    %v4870 = vpack.c.b16 %v3942, %v3938
    %v4871 = vpack.c.b16 %v3943, %v3939
    %v4872 = vpack.c.b16 %v3948, %v3944
    %v4873 = vpack.c.b16 %v3949, %v3945
    %v4874 = vpack.c.b16 %v3950, %v3946
    %v4875 = vpack.c.b16 %v3951, %v3947
    %v4876 = vpack.c.b16 %v3956, %v3952
    %v4877 = vpack.c.b16 %v3957, %v3953
    %v4878 = vpack.c.b16 %v3958, %v3954
    %v4879 = vpack.c.b16 %v3959, %v3955
    %v4880 = vpack.c.b16 %v3964, %v3960
    %v4881 = vpack.c.b16 %v3965, %v3961
    %v4882 = vpack.c.b16 %v3966, %v3962
    %v4883 = vpack.c.b16 %v3967, %v3963
    %v4884 = vpack.c.b16 %v3972, %v3968
    %v4885 = vpack.c.b16 %v3973, %v3969
    %v4886 = vpack.c.b16 %v3974, %v3970
    %v4887 = vpack.c.b16 %v3975, %v3971
    %v4888 = vpack.c.b16 %v3980, %v3976
    %v4889 = vpack.c.b16 %v3981, %v3977
    %v4890 = vpack.c.b16 %v3982, %v3978
    %v4891 = vpack.c.b16 %v3983, %v3979
    %v4892 = vpack.c.b16 %v3988, %v3984
    %v4893 = vpack.c.b16 %v3989, %v3985
    %v4894 = vpack.c.b16 %v3990, %v3986
    %v4895 = vpack.c.b16 %v3991, %v3987
    %v4896 = vpack.c.b16 %v3996, %v3992
    %v4897 = vpack.c.b16 %v3997, %v3993
    %v4898 = vpack.c.b16 %v3998, %v3994
    %v4899 = vpack.c.b16 %v3999, %v3995
    %v4900 = vpack.c.b16 %v4004, %v4000
    %v4901 = vpack.c.b16 %v4005, %v4001
    %v4902 = vpack.c.b16 %v4006, %v4002
    %v4903 = vpack.c.b16 %v4007, %v4003
    %v4904 = vpack.c.b16 %v4012, %v4008
    %v4905 = vpack.c.b16 %v4013, %v4009
    %v4906 = vpack.c.b16 %v4014, %v4010
    %v4907 = vpack.c.b16 %v4015, %v4011
    %v4908 = vpack.c.b16 %v4020, %v4016
    %v4909 = vpack.c.b16 %v4021, %v4017
    %v4910 = vpack.c.b16 %v4022, %v4018
    %v4911 = vpack.c.b16 %v4023, %v4019
    %v4912 = vpack.c.b16 %v4028, %v4024
    %v4913 = vpack.c.b16 %v4029, %v4025
    %v4914 = vpack.c.b16 %v4030, %v4026
    %v4915 = vpack.c.b16 %v4031, %v4027
    %v4916 = vpack.c.b16 %v4036, %v4032
    %v4917 = vpack.c.b16 %v4037, %v4033
    %v4918 = vpack.c.b16 %v4038, %v4034
    %v4919 = vpack.c.b16 %v4039, %v4035
    %v4920 = vpack.c.b16 %v4044, %v4040
    %v4921 = vpack.c.b16 %v4045, %v4041
    %v4922 = vpack.c.b16 %v4046, %v4042
    %v4923 = vpack.c.b16 %v4047, %v4043
    %v4924 = vpack.c.b16 %v4052, %v4048
    %v4925 = vpack.c.b16 %v4053, %v4049
    %v4926 = vpack.c.b16 %v4054, %v4050
    %v4927 = vpack.c.b16 %v4055, %v4051
    %v4928 = vpack.c.b16 %v4060, %v4056
    %v4929 = vpack.c.b16 %v4061, %v4057
    %v4930 = vpack.c.b16 %v4062, %v4058
    %v4931 = vpack.c.b16 %v4063, %v4059
    %v4932 = vpack.c.b16 %v4068, %v4064
    %v4933 = vpack.c.b16 %v4069, %v4065
    %v4934 = vpack.c.b16 %v4070, %v4066
    %v4935 = vpack.c.b16 %v4071, %v4067
    %v4936 = vpack.c.b16 %v4076, %v4072
    %v4937 = vpack.c.b16 %v4077, %v4073
    %v4938 = vpack.c.b16 %v4078, %v4074
    %v4939 = vpack.c.b16 %v4079, %v4075
    %v4940 = vpack.c.b16 %v4084, %v4080
    %v4941 = vpack.c.b16 %v4085, %v4081
    %v4942 = vpack.c.b16 %v4086, %v4082
    %v4943 = vpack.c.b16 %v4087, %v4083
    %v4944 = vpack.c.b16 %v4092, %v4088
    %v4945 = vpack.c.b16 %v4093, %v4089
    %v4946 = vpack.c.b16 %v4094, %v4090
    %v4947 = vpack.c.b16 %v4095, %v4091
    %v4948 = vpack.c.b16 %v4100, %v4096
    %v4949 = vpack.c.b16 %v4101, %v4097
    %v4950 = vpack.c.b16 %v4102, %v4098
    %v4951 = vpack.c.b16 %v4103, %v4099
    %v4952 = vpack.c.b16 %v4108, %v4104
    %v4953 = vpack.c.b16 %v4109, %v4105
    %v4954 = vpack.c.b16 %v4110, %v4106
    %v4955 = vpack.c.b16 %v4111, %v4107
    %v4956 = vpack.c.b16 %v4116, %v4112
    %v4957 = vpack.c.b16 %v4117, %v4113
    %v4958 = vpack.c.b16 %v4118, %v4114
    %v4959 = vpack.c.b16 %v4119, %v4115
    %v4960 = vpack.c.b16 %v4124, %v4120
    %v4961 = vpack.c.b16 %v4125, %v4121
    %v4962 = vpack.c.b16 %v4126, %v4122
    %v4963 = vpack.c.b16 %v4127, %v4123
    %v4964 = vpack.c.b16 %v4132, %v4128
    %v4965 = vpack.c.b16 %v4133, %v4129
    %v4966 = vpack.c.b16 %v4134, %v4130
    %v4967 = vpack.c.b16 %v4135, %v4131
    %v4968 = vpack.c.b16 %v4140, %v4136
    %v4969 = vpack.c.b16 %v4141, %v4137
    %v4970 = vpack.c.b16 %v4142, %v4138
    %v4971 = vpack.c.b16 %v4143, %v4139
    %v4972 = vpack.c.b16 %v4148, %v4144
    %v4973 = vpack.c.b16 %v4149, %v4145
    %v4974 = vpack.c.b16 %v4150, %v4146
    %v4975 = vpack.c.b16 %v4151, %v4147
    %v4976 = vpack.c.b16 %v4156, %v4152
    %v4977 = vpack.c.b16 %v4157, %v4153
    %v4978 = vpack.c.b16 %v4158, %v4154
    %v4979 = vpack.c.b16 %v4159, %v4155
    %v4980 = vpack.c.b16 %v4164, %v4160
    %v4981 = vpack.c.b16 %v4165, %v4161
    %v4982 = vpack.c.b16 %v4166, %v4162
    %v4983 = vpack.c.b16 %v4167, %v4163
    %v4984 = vpack.c.b16 %v4172, %v4168
    %v4985 = vpack.c.b16 %v4173, %v4169
    %v4986 = vpack.c.b16 %v4174, %v4170
    %v4987 = vpack.c.b16 %v4175, %v4171
    %v4988 = vpack.c.b16 %v4180, %v4176
    %v4989 = vpack.c.b16 %v4181, %v4177
    %v4990 = vpack.c.b16 %v4182, %v4178
    %v4991 = vpack.c.b16 %v4183, %v4179
    %v4992 = vpack.c.b16 %v4188, %v4184
    %v4993 = vpack.c.b16 %v4189, %v4185
    %v4994 = vpack.c.b16 %v4190, %v4186
    %v4995 = vpack.c.b16 %v4191, %v4187
    %v4996 = vpack.c.b16 %v4196, %v4192
    %v4997 = vpack.c.b16 %v4197, %v4193
    %v4998 = vpack.c.b16 %v4198, %v4194
    %v4999 = vpack.c.b16 %v4199, %v4195
    %v5000 = vpack.c.b16 %v4204, %v4200
    %v5001 = vpack.c.b16 %v4205, %v4201
    %v5002 = vpack.c.b16 %v4206, %v4202
    %v5003 = vpack.c.b16 %v4207, %v4203
    %v5004 = vpack.c.b16 %v4212, %v4208
    %v5005 = vpack.c.b16 %v4213, %v4209
    %v5006 = vpack.c.b16 %v4214, %v4210
    %v5007 = vpack.c.b16 %v4215, %v4211
    %v5008 = vpack.c.b16 %v4220, %v4216
    %v5009 = vpack.c.b16 %v4221, %v4217
    %v5010 = vpack.c.b16 %v4222, %v4218
    %v5011 = vpack.c.b16 %v4223, %v4219
    %v5012 = vpack.c.b16 %v4228, %v4224
    %v5013 = vpack.c.b16 %v4229, %v4225
    %v5014 = vpack.c.b16 %v4230, %v4226
    %v5015 = vpack.c.b16 %v4231, %v4227
    %v5016 = vpack.c.b16 %v4236, %v4232
    %v5017 = vpack.c.b16 %v4237, %v4233
    %v5018 = vpack.c.b16 %v4238, %v4234
    %v5019 = vpack.c.b16 %v4239, %v4235
    %v5020 = vpack.c.b16 %v4244, %v4240
    %v5021 = vpack.c.b16 %v4245, %v4241
    %v5022 = vpack.c.b16 %v4246, %v4242
    %v5023 = vpack.c.b16 %v4247, %v4243
    %v5024 = vpack.c.b16 %v4252, %v4248
    %v5025 = vpack.c.b16 %v4253, %v4249
    %v5026 = vpack.c.b16 %v4254, %v4250
    %v5027 = vpack.c.b16 %v4255, %v4251
    %v5028 = vpack.c.b16 %v4260, %v4256
    %v5029 = vpack.c.b16 %v4261, %v4257
    %v5030 = vpack.c.b16 %v4262, %v4258
    %v5031 = vpack.c.b16 %v4263, %v4259
    %v5032 = vpack.c.b16 %v4268, %v4264
    %v5033 = vpack.c.b16 %v4269, %v4265
    %v5034 = vpack.c.b16 %v4270, %v4266
    %v5035 = vpack.c.b16 %v4271, %v4267
    %v5036 = vpack.c.b16 %v4276, %v4272
    %v5037 = vpack.c.b16 %v4277, %v4273
    %v5038 = vpack.c.b16 %v4278, %v4274
    %v5039 = vpack.c.b16 %v4279, %v4275
    %v5040 = vpack.c.b16 %v4284, %v4280
    %v5041 = vpack.c.b16 %v4285, %v4281
    %v5042 = vpack.c.b16 %v4286, %v4282
    %v5043 = vpack.c.b16 %v4287, %v4283
    %v5044 = vpack.c.b16 %v4292, %v4288
    %v5045 = vpack.c.b16 %v4293, %v4289
    %v5046 = vpack.c.b16 %v4294, %v4290
    %v5047 = vpack.c.b16 %v4295, %v4291
    %v5048 = vpack.c.b16 %v4300, %v4296
    %v5049 = vpack.c.b16 %v4301, %v4297
    %v5050 = vpack.c.b16 %v4302, %v4298
    %v5051 = vpack.c.b16 %v4303, %v4299
    %v5052 = vpack.c.b16 %v4308, %v4304
    %v5053 = vpack.c.b16 %v4309, %v4305
    %v5054 = vpack.c.b16 %v4310, %v4306
    %v5055 = vpack.c.b16 %v4311, %v4307
    %v5056 = vpack.c.b16 %v4316, %v4312
    %v5057 = vpack.c.b16 %v4317, %v4313
    %v5058 = vpack.c.b16 %v4318, %v4314
    %v5059 = vpack.c.b16 %v4319, %v4315
    %v5060 = vpack.c.b16 %v4324, %v4320
    %v5061 = vpack.c.b16 %v4325, %v4321
    %v5062 = vpack.c.b16 %v4326, %v4322
    %v5063 = vpack.c.b16 %v4327, %v4323
    %v5064 = vpack.c.b16 %v4332, %v4328
    %v5065 = vpack.c.b16 %v4333, %v4329
    %v5066 = vpack.c.b16 %v4334, %v4330
    %v5067 = vpack.c.b16 %v4335, %v4331
    %v5068 = vpack.c.b16 %v4340, %v4336
    %v5069 = vpack.c.b16 %v4341, %v4337
    %v5070 = vpack.c.b16 %v4342, %v4338
    %v5071 = vpack.c.b16 %v4343, %v4339
    %v5072 = vpack.c.b16 %v4348, %v4344
    %v5073 = vpack.c.b16 %v4349, %v4345
    %v5074 = vpack.c.b16 %v4350, %v4346
    %v5075 = vpack.c.b16 %v4351, %v4347
    %v5076 = vpack.c.b16 %v4356, %v4352
    %v5077 = vpack.c.b16 %v4357, %v4353
    %v5078 = vpack.c.b16 %v4358, %v4354
    %v5079 = vpack.c.b16 %v4359, %v4355
    %v5080 = vpack.c.b16 %v4364, %v4360
    %v5081 = vpack.c.b16 %v4365, %v4361
    %v5082 = vpack.c.b16 %v4366, %v4362
    %v5083 = vpack.c.b16 %v4367, %v4363
    %v5084 = vpack.c.b16 %v4372, %v4368
    %v5085 = vpack.c.b16 %v4373, %v4369
    %v5086 = vpack.c.b16 %v4374, %v4370
    %v5087 = vpack.c.b16 %v4375, %v4371
    %v5088 = vpack.c.b16 %v4380, %v4376
    %v5089 = vpack.c.b16 %v4381, %v4377
    %v5090 = vpack.c.b16 %v4382, %v4378
    %v5091 = vpack.c.b16 %v4383, %v4379
    %v5092 = vpack.c.b16 %v4388, %v4384
    %v5093 = vpack.c.b16 %v4389, %v4385
    %v5094 = vpack.c.b16 %v4390, %v4386
    %v5095 = vpack.c.b16 %v4391, %v4387
    %v5096 = vpack.c.b16 %v4396, %v4392
    %v5097 = vpack.c.b16 %v4397, %v4393
    %v5098 = vpack.c.b16 %v4398, %v4394
    %v5099 = vpack.c.b16 %v4399, %v4395
    %v5100 = vpack.c.b16 %v4404, %v4400
    %v5101 = vpack.c.b16 %v4405, %v4401
    %v5102 = vpack.c.b16 %v4406, %v4402
    %v5103 = vpack.c.b16 %v4407, %v4403
    %v5104 = vpack.c.b16 %v4412, %v4408
    %v5105 = vpack.c.b16 %v4413, %v4409
    %v5106 = vpack.c.b16 %v4414, %v4410
    %v5107 = vpack.c.b16 %v4415, %v4411
    %v5108 = vpack.c.b16 %v4420, %v4416
    %v5109 = vpack.c.b16 %v4421, %v4417
    %v5110 = vpack.c.b16 %v4422, %v4418
    %v5111 = vpack.c.b16 %v4423, %v4419
    %v5112 = vpack.c.b16 %v4428, %v4424
    %v5113 = vpack.c.b16 %v4429, %v4425
    %v5114 = vpack.c.b16 %v4430, %v4426
    %v5115 = vpack.c.b16 %v4431, %v4427
    %v5116 = vpack.c.b16 %v4436, %v4432
    %v5117 = vpack.c.b16 %v4437, %v4433
    %v5118 = vpack.c.b16 %v4438, %v4434
    %v5119 = vpack.c.b16 %v4439, %v4435
    %v5120 = vpack.c.b16 %v4444, %v4440
    %v5121 = vpack.c.b16 %v4445, %v4441
    %v5122 = vpack.c.b16 %v4446, %v4442
    %v5123 = vpack.c.b16 %v4447, %v4443
    %v5124 = vpack.c.b16 %v4452, %v4448
    %v5125 = vpack.c.b16 %v4453, %v4449
    %v5126 = vpack.c.b16 %v4454, %v4450
    %v5127 = vpack.c.b16 %v4455, %v4451
    %v5128 = vpack.c.b16 %v4460, %v4456
    %v5129 = vpack.c.b16 %v4461, %v4457
    %v5130 = vpack.c.b16 %v4462, %v4458
    %v5131 = vpack.c.b16 %v4463, %v4459
    %v5132 = vpack.c.b16 %v4468, %v4464
    %v5133 = vpack.c.b16 %v4469, %v4465
    %v5134 = vpack.c.b16 %v4470, %v4466
    %v5135 = vpack.c.b16 %v4471, %v4467
    %v5136 = vpack.c.b16 %v4476, %v4472
    %v5137 = vpack.c.b16 %v4477, %v4473
    %v5138 = vpack.c.b16 %v4478, %v4474
    %v5139 = vpack.c.b16 %v4479, %v4475
    %v5140 = vpack.c.b16 %v4484, %v4480
    %v5141 = vpack.c.b16 %v4485, %v4481
    %v5142 = vpack.c.b16 %v4486, %v4482
    %v5143 = vpack.c.b16 %v4487, %v4483
    %v5144 = vpack.c.b16 %v4492, %v4488
    %v5145 = vpack.c.b16 %v4493, %v4489
    %v5146 = vpack.c.b16 %v4494, %v4490
    %v5147 = vpack.c.b16 %v4495, %v4491
    %v5148 = vpack.c.b16 %v4500, %v4496
    %v5149 = vpack.c.b16 %v4501, %v4497
    %v5150 = vpack.c.b16 %v4502, %v4498
    %v5151 = vpack.c.b16 %v4503, %v4499
    %v5152 = vpack.c.b16 %v4508, %v4504
    %v5153 = vpack.c.b16 %v4509, %v4505
    %v5154 = vpack.c.b16 %v4510, %v4506
    %v5155 = vpack.c.b16 %v4511, %v4507
    %v5156 = vpack.c.b16 %v4516, %v4512
    %v5157 = vpack.c.b16 %v4517, %v4513
    %v5158 = vpack.c.b16 %v4518, %v4514
    %v5159 = vpack.c.b16 %v4519, %v4515
    %5800 = vmatprep.subr.bf16.mxu0 %v4521
    %5801 = vmatpush1.bf16.msra.mxu0 %v4520
    %5802 = vmatprep.subr.bf16.mxu0 %v4525
    %5803 = vmatpush1.bf16.msra.mxu0 %v4524
    %5804 = vmatprep.subr.bf16.mxu0 %v4529
    %5805 = vmatpush1.bf16.msra.mxu0 %v4528
    %5806 = vmatprep.subr.bf16.mxu0 %v4533
    %5807 = vmatpush1.bf16.msra.mxu0 %v4532
    %5808 = vmatprep.subr.bf16.mxu0 %v4537
    %5809 = vmatpush1.bf16.msra.mxu0 %v4536
    %5810 = vmatprep.subr.bf16.mxu0 %v4541
    %5811 = vmatpush1.bf16.msra.mxu0 %v4540
    %5812 = vmatprep.subr.bf16.mxu0 %v4545
    %5813 = vmatpush1.bf16.msra.mxu0 %v4544
    %5814 = vmatprep.subr.bf16.mxu0 %v4549
    %5815 = vmatpush1.bf16.msra.mxu0 %v4548
    %5816 = vmatprep.subr.bf16.mxu0 %v4553
    %5817 = vmatpush1.bf16.msra.mxu0 %v4552
    %5818 = vmatprep.subr.bf16.mxu0 %v4557
    %5819 = vmatpush1.bf16.msra.mxu0 %v4556
    %5820 = vmatprep.subr.bf16.mxu0 %v4561
    %5821 = vmatpush1.bf16.msra.mxu0 %v4560
    %5822 = vmatprep.subr.bf16.mxu0 %v4565
    %5823 = vmatpush1.bf16.msra.mxu0 %v4564
    %5824 = vmatprep.subr.bf16.mxu0 %v4569
    %5825 = vmatpush1.bf16.msra.mxu0 %v4568
    %5826 = vmatprep.subr.bf16.mxu0 %v4573
    %5827 = vmatpush1.bf16.msra.mxu0 %v4572
    %5828 = vmatprep.subr.bf16.mxu0 %v4577
    %5829 = vmatpush1.bf16.msra.mxu0 %v4576
    %5830 = vmatprep.subr.bf16.mxu0 %v4581
    %5831 = vmatpush1.bf16.msra.mxu0 %v4580
    %5832 = vmatprep.mubr.bf16.mxu0 %v1961
    %5833 = vmatmul.mubr.bf16.gmra.mrb[0].mxu0 %v1960
    %v5834 = vpop.f32.mrb[0].mxu0
    %v5835 = vadd.f32 0.0, %v5834
    %v5836 = vpop.f32.mrb[0].mxu0
    %v5837 = vadd.f32 0.0, %v5836
    %v5838 = vpop.f32.mrb[0].mxu0
    %v5839 = vadd.f32 0.0, %v5838
    %v5840 = vpop.f32.mrb[0].mxu0
    %v5841 = vadd.f32 0.0, %v5840
    %5842 = vmatprep.mubr.bf16.mxu0 %v1981
    %5843 = vmatmul.mubr.bf16.gmra.mrb[0].mxu0 %v1980
    %v5844 = vpop.f32.mrb[0].mxu0
    %v5845 = vadd.f32 0.0, %v5844
    %v5846 = vpop.f32.mrb[0].mxu0
    %v5847 = vadd.f32 0.0, %v5846
    %v5848 = vpop.f32.mrb[0].mxu0
    %v5849 = vadd.f32 0.0, %v5848
    %v5850 = vpop.f32.mrb[0].mxu0
    %v5851 = vadd.f32 0.0, %v5850
    %5852 = vmatprep.mubr.bf16.mxu0 %v2001
    %5853 = vmatmul.mubr.bf16.gmra.mrb[0].mxu0 %v2000
    %v5854 = vpop.f32.mrb[0].mxu0
    %v5855 = vadd.f32 0.0, %v5854
    %v5856 = vpop.f32.mrb[0].mxu0
    %v5857 = vadd.f32 0.0, %v5856
    %v5858 = vpop.f32.mrb[0].mxu0
    %v5859 = vadd.f32 0.0, %v5858
    %v5860 = vpop.f32.mrb[0].mxu0
    %v5861 = vadd.f32 0.0, %v5860
    %5862 = vmatprep.mubr.bf16.mxu0 %v2021
    %5863 = vmatmul.mubr.bf16.gmra.mrb[0].mxu0 %v2020
    %v5864 = vpop.f32.mrb[0].mxu0
    %v5865 = vadd.f32 0.0, %v5864
    %v5866 = vpop.f32.mrb[0].mxu0
    %v5867 = vadd.f32 0.0, %v5866
    %v5868 = vpop.f32.mrb[0].mxu0
    %v5869 = vadd.f32 0.0, %v5868
    %v5870 = vpop.f32.mrb[0].mxu0
    %v5871 = vadd.f32 0.0, %v5870
    %5872 = vmatprep.mubr.bf16.mxu0 %v2041
    %5873 = vmatmul.mubr.bf16.gmra.mrb[0].mxu0 %v2040
    %v5874 = vpop.f32.mrb[0].mxu0
    %v5875 = vadd.f32 0.0, %v5874
    %v5876 = vpop.f32.mrb[0].mxu0
    %v5877 = vadd.f32 0.0, %v5876
    %v5878 = vpop.f32.mrb[0].mxu0
    %v5879 = vadd.f32 0.0, %v5878
    %v5880 = vpop.f32.mrb[0].mxu0
    %v5881 = vadd.f32 0.0, %v5880
    %5882 = vmatprep.mubr.bf16.mxu0 %v2061
    %5883 = vmatmul.mubr.bf16.gmra.mrb[0].mxu0 %v2060
    %v5884 = vpop.f32.mrb[0].mxu0
    %v5885 = vadd.f32 0.0, %v5884
    %v5886 = vpop.f32.mrb[0].mxu0
    %v5887 = vadd.f32 0.0, %v5886
    %v5888 = vpop.f32.mrb[0].mxu0
    %v5889 = vadd.f32 0.0, %v5888
    %v5890 = vpop.f32.mrb[0].mxu0
    %v5891 = vadd.f32 0.0, %v5890
    %5892 = vmatprep.mubr.bf16.mxu0 %v2081
    %5893 = vmatmul.mubr.bf16.gmra.mrb[0].mxu0 %v2080
    %v5894 = vpop.f32.mrb[0].mxu0
    %v5895 = vadd.f32 0.0, %v5894
    %v5896 = vpop.f32.mrb[0].mxu0
    %v5897 = vadd.f32 0.0, %v5896
    %v5898 = vpop.f32.mrb[0].mxu0
    %v5899 = vadd.f32 0.0, %v5898
    %v5900 = vpop.f32.mrb[0].mxu0
    %v5901 = vadd.f32 0.0, %v5900
    %5902 = vmatprep.mubr.bf16.mxu0 %v2101
    %5903 = vmatmul.mubr.bf16.gmra.mrb[0].mxu0 %v2100
    %v5904 = vpop.f32.mrb[0].mxu0
    %v5905 = vadd.f32 0.0, %v5904
    %v5906 = vpop.f32.mrb[0].mxu0
    %v5907 = vadd.f32 0.0, %v5906
    %v5908 = vpop.f32.mrb[0].mxu0
    %v5909 = vadd.f32 0.0, %v5908
    %v5910 = vpop.f32.mrb[0].mxu0
    %v5911 = vadd.f32 0.0, %v5910
    %5912 = vmatprep.mubr.bf16.mxu0 %v2121
    %5913 = vmatmul.mubr.bf16.gmra.mrb[0].mxu0 %v2120
    %v5914 = vpop.f32.mrb[0].mxu0
    %v5915 = vadd.f32 0.0, %v5914
    %v5916 = vpop.f32.mrb[0].mxu0
    %v5917 = vadd.f32 0.0, %v5916
    %v5918 = vpop.f32.mrb[0].mxu0
    %v5919 = vadd.f32 0.0, %v5918
    %v5920 = vpop.f32.mrb[0].mxu0
    %v5921 = vadd.f32 0.0, %v5920
    %5922 = vmatprep.mubr.bf16.mxu0 %v2141
    %5923 = vmatmul.mubr.bf16.gmra.mrb[0].mxu0 %v2140
    %v5924 = vpop.f32.mrb[0].mxu0
    %v5925 = vadd.f32 0.0, %v5924
    %v5926 = vpop.f32.mrb[0].mxu0
    %v5927 = vadd.f32 0.0, %v5926
    %v5928 = vpop.f32.mrb[0].mxu0
    %v5929 = vadd.f32 0.0, %v5928
    %v5930 = vpop.f32.mrb[0].mxu0
    %v5931 = vadd.f32 0.0, %v5930
    %5932 = vmatprep.mubr.bf16.mxu0 %v2161
    %5933 = vmatmul.mubr.bf16.gmra.mrb[0].mxu0 %v2160
    %v5934 = vpop.f32.mrb[0].mxu0
    %v5935 = vadd.f32 0.0, %v5934
    %v5936 = vpop.f32.mrb[0].mxu0
    %v5937 = vadd.f32 0.0, %v5936
    %v5938 = vpop.f32.mrb[0].mxu0
    %v5939 = vadd.f32 0.0, %v5938
    %v5940 = vpop.f32.mrb[0].mxu0
    %v5941 = vadd.f32 0.0, %v5940
    %5942 = vmatprep.mubr.bf16.mxu0 %v2181
    %5943 = vmatmul.mubr.bf16.gmra.mrb[0].mxu0 %v2180
    %v5944 = vpop.f32.mrb[0].mxu0
    %v5945 = vadd.f32 0.0, %v5944
    %v5946 = vpop.f32.mrb[0].mxu0
    %v5947 = vadd.f32 0.0, %v5946
    %v5948 = vpop.f32.mrb[0].mxu0
    %v5949 = vadd.f32 0.0, %v5948
    %v5950 = vpop.f32.mrb[0].mxu0
    %v5951 = vadd.f32 0.0, %v5950
    %5952 = vmatprep.mubr.bf16.mxu0 %v2201
    %5953 = vmatmul.mubr.bf16.gmra.mrb[0].mxu0 %v2200
    %v5954 = vpop.f32.mrb[0].mxu0
    %v5955 = vadd.f32 0.0, %v5954
    %v5956 = vpop.f32.mrb[0].mxu0
    %v5957 = vadd.f32 0.0, %v5956
    %v5958 = vpop.f32.mrb[0].mxu0
    %v5959 = vadd.f32 0.0, %v5958
    %v5960 = vpop.f32.mrb[0].mxu0
    %v5961 = vadd.f32 0.0, %v5960
    %5962 = vmatprep.mubr.bf16.mxu0 %v2221
    %5963 = vmatmul.mubr.bf16.gmra.mrb[0].mxu0 %v2220
    %v5964 = vpop.f32.mrb[0].mxu0
    %v5965 = vadd.f32 0.0, %v5964
    %v5966 = vpop.f32.mrb[0].mxu0
    %v5967 = vadd.f32 0.0, %v5966
    %v5968 = vpop.f32.mrb[0].mxu0
    %v5969 = vadd.f32 0.0, %v5968
    %v5970 = vpop.f32.mrb[0].mxu0
    %v5971 = vadd.f32 0.0, %v5970
    %5972 = vmatprep.mubr.bf16.mxu0 %v2241
    %5973 = vmatmul.mubr.bf16.gmra.mrb[0].mxu0 %v2240
    %v5974 = vpop.f32.mrb[0].mxu0
    %v5975 = vadd.f32 0.0, %v5974
    %v5976 = vpop.f32.mrb[0].mxu0
    %v5977 = vadd.f32 0.0, %v5976
    %v5978 = vpop.f32.mrb[0].mxu0
    %v5979 = vadd.f32 0.0, %v5978
    %v5980 = vpop.f32.mrb[0].mxu0
    %v5981 = vadd.f32 0.0, %v5980
    %5982 = vmatprep.mubr.bf16.mxu0 %v2261
    %5983 = vmatmul.mubr.bf16.gmra.mrb[0].mxu0 %v2260
    %v5984 = vpop.f32.mrb[0].mxu0
    %v5985 = vadd.f32 0.0, %v5984
    %v5986 = vpop.f32.mrb[0].mxu0
    %v5987 = vadd.f32 0.0, %v5986
    %v5988 = vpop.f32.mrb[0].mxu0
    %v5989 = vadd.f32 0.0, %v5988
    %v5990 = vpop.f32.mrb[0].mxu0
    %v5991 = vadd.f32 0.0, %v5990
    %5992 = vdwg.mxu0
    %5993 = vmatprep.subr.bf16.mxu0 %v4585
    %5994 = vmatpush1.bf16.msra.mxu0 %v4584
    %5995 = vmatprep.subr.bf16.mxu0 %v4589
    %5996 = vmatpush1.bf16.msra.mxu0 %v4588
    %5997 = vmatprep.subr.bf16.mxu0 %v4593
    %5998 = vmatpush1.bf16.msra.mxu0 %v4592
    %5999 = vmatprep.subr.bf16.mxu0 %v4597
    %6000 = vmatpush1.bf16.msra.mxu0 %v4596
    %6001 = vmatprep.subr.bf16.mxu0 %v4601
    %6002 = vmatpush1.bf16.msra.mxu0 %v4600
    %6003 = vmatprep.subr.bf16.mxu0 %v4605
    %6004 = vmatpush1.bf16.msra.mxu0 %v4604
    %6005 = vmatprep.subr.bf16.mxu0 %v4609
    %6006 = vmatpush1.bf16.msra.mxu0 %v4608
    %6007 = vmatprep.subr.bf16.mxu0 %v4613
    %6008 = vmatpush1.bf16.msra.mxu0 %v4612
    %6009 = vmatprep.subr.bf16.mxu0 %v4617
    %6010 = vmatpush1.bf16.msra.mxu0 %v4616
    %6011 = vmatprep.subr.bf16.mxu0 %v4621
    %6012 = vmatpush1.bf16.msra.mxu0 %v4620
    %6013 = vmatprep.subr.bf16.mxu0 %v4625
    %6014 = vmatpush1.bf16.msra.mxu0 %v4624
    %6015 = vmatprep.subr.bf16.mxu0 %v4629
    %6016 = vmatpush1.bf16.msra.mxu0 %v4628
    %6017 = vmatprep.subr.bf16.mxu0 %v4633
    %6018 = vmatpush1.bf16.msra.mxu0 %v4632
    %6019 = vmatprep.subr.bf16.mxu0 %v4637
    %6020 = vmatpush1.bf16.msra.mxu0 %v4636
    %6021 = vmatprep.subr.bf16.mxu0 %v4641
    %6022 = vmatpush1.bf16.msra.mxu0 %v4640
    %6023 = vmatprep.subr.bf16.mxu0 %v4645
    %6024 = vmatpush1.bf16.msra.mxu0 %v4644
    %6025 = vmatprep.mubr.bf16.mxu0 %v1963
    %6026 = vmatmul.mubr.bf16.gmra.mrb[0].mxu0 %v1962
    %v6027 = vpop.f32.mrb[0].mxu0
    %v6028 = vadd.f32 %v5835, %v6027
    %v6029 = vpop.f32.mrb[0].mxu0
    %v6030 = vadd.f32 %v5837, %v6029
    %v6031 = vpop.f32.mrb[0].mxu0
    %v6032 = vadd.f32 %v5839, %v6031
    %v6033 = vpop.f32.mrb[0].mxu0
    %v6034 = vadd.f32 %v5841, %v6033
    %6035 = vmatprep.mubr.bf16.mxu0 %v1983
    %6036 = vmatmul.mubr.bf16.gmra.mrb[0].mxu0 %v1982
    %v6037 = vpop.f32.mrb[0].mxu0
    %v6038 = vadd.f32 %v5845, %v6037
    %v6039 = vpop.f32.mrb[0].mxu0
    %v6040 = vadd.f32 %v5847, %v6039
    %v6041 = vpop.f32.mrb[0].mxu0
    %v6042 = vadd.f32 %v5849, %v6041
    %v6043 = vpop.f32.mrb[0].mxu0
    %v6044 = vadd.f32 %v5851, %v6043
    %6045 = vmatprep.mubr.bf16.mxu0 %v2003
    %6046 = vmatmul.mubr.bf16.gmra.mrb[0].mxu0 %v2002
    %v6047 = vpop.f32.mrb[0].mxu0
    %v6048 = vadd.f32 %v5855, %v6047
    %v6049 = vpop.f32.mrb[0].mxu0
    %v6050 = vadd.f32 %v5857, %v6049
    %v6051 = vpop.f32.mrb[0].mxu0
    %v6052 = vadd.f32 %v5859, %v6051
    %v6053 = vpop.f32.mrb[0].mxu0
    %v6054 = vadd.f32 %v5861, %v6053
    %6055 = vmatprep.mubr.bf16.mxu0 %v2023
    %6056 = vmatmul.mubr.bf16.gmra.mrb[0].mxu0 %v2022
    %v6057 = vpop.f32.mrb[0].mxu0
    %v6058 = vadd.f32 %v5865, %v6057
    %v6059 = vpop.f32.mrb[0].mxu0
    %v6060 = vadd.f32 %v5867, %v6059
    %v6061 = vpop.f32.mrb[0].mxu0
    %v6062 = vadd.f32 %v5869, %v6061
    %v6063 = vpop.f32.mrb[0].mxu0
    %v6064 = vadd.f32 %v5871, %v6063
    %6065 = vmatprep.mubr.bf16.mxu0 %v2043
    %6066 = vmatmul.mubr.bf16.gmra.mrb[0].mxu0 %v2042
    %v6067 = vpop.f32.mrb[0].mxu0
    %v6068 = vadd.f32 %v5875, %v6067
    %v6069 = vpop.f32.mrb[0].mxu0
    %v6070 = vadd.f32 %v5877, %v6069
    %v6071 = vpop.f32.mrb[0].mxu0
    %v6072 = vadd.f32 %v5879, %v6071
    %v6073 = vpop.f32.mrb[0].mxu0
    %v6074 = vadd.f32 %v5881, %v6073
    %6075 = vmatprep.mubr.bf16.mxu0 %v2063
    %6076 = vmatmul.mubr.bf16.gmra.mrb[0].mxu0 %v2062
    %v6077 = vpop.f32.mrb[0].mxu0
    %v6078 = vadd.f32 %v5885, %v6077
    %v6079 = vpop.f32.mrb[0].mxu0
    %v6080 = vadd.f32 %v5887, %v6079
    %v6081 = vpop.f32.mrb[0].mxu0
    %v6082 = vadd.f32 %v5889, %v6081
    %v6083 = vpop.f32.mrb[0].mxu0
    %v6084 = vadd.f32 %v5891, %v6083
    %6085 = vmatprep.mubr.bf16.mxu0 %v2083
    %6086 = vmatmul.mubr.bf16.gmra.mrb[0].mxu0 %v2082
    %v6087 = vpop.f32.mrb[0].mxu0
    %v6088 = vadd.f32 %v5895, %v6087
    %v6089 = vpop.f32.mrb[0].mxu0
    %v6090 = vadd.f32 %v5897, %v6089
    %v6091 = vpop.f32.mrb[0].mxu0
    %v6092 = vadd.f32 %v5899, %v6091
    %v6093 = vpop.f32.mrb[0].mxu0
    %v6094 = vadd.f32 %v5901, %v6093
    %6095 = vmatprep.mubr.bf16.mxu0 %v2103
    %6096 = vmatmul.mubr.bf16.gmra.mrb[0].mxu0 %v2102
    %v6097 = vpop.f32.mrb[0].mxu0
    %v6098 = vadd.f32 %v5905, %v6097
    %v6099 = vpop.f32.mrb[0].mxu0
    %v6100 = vadd.f32 %v5907, %v6099
    %v6101 = vpop.f32.mrb[0].mxu0
    %v6102 = vadd.f32 %v5909, %v6101
    %v6103 = vpop.f32.mrb[0].mxu0
    %v6104 = vadd.f32 %v5911, %v6103
    %6105 = vmatprep.mubr.bf16.mxu0 %v2123
    %6106 = vmatmul.mubr.bf16.gmra.mrb[0].mxu0 %v2122
    %v6107 = vpop.f32.mrb[0].mxu0
    %v6108 = vadd.f32 %v5915, %v6107
    %v6109 = vpop.f32.mrb[0].mxu0
    %v6110 = vadd.f32 %v5917, %v6109
    %v6111 = vpop.f32.mrb[0].mxu0
    %v6112 = vadd.f32 %v5919, %v6111
    %v6113 = vpop.f32.mrb[0].mxu0
    %v6114 = vadd.f32 %v5921, %v6113
    %6115 = vmatprep.mubr.bf16.mxu0 %v2143
    %6116 = vmatmul.mubr.bf16.gmra.mrb[0].mxu0 %v2142
    %v6117 = vpop.f32.mrb[0].mxu0
    %v6118 = vadd.f32 %v5925, %v6117
    %v6119 = vpop.f32.mrb[0].mxu0
    %v6120 = vadd.f32 %v5927, %v6119
    %v6121 = vpop.f32.mrb[0].mxu0
    %v6122 = vadd.f32 %v5929, %v6121
    %v6123 = vpop.f32.mrb[0].mxu0
    %v6124 = vadd.f32 %v5931, %v6123
    %6125 = vmatprep.mubr.bf16.mxu0 %v2163
    %6126 = vmatmul.mubr.bf16.gmra.mrb[0].mxu0 %v2162
    %v6127 = vpop.f32.mrb[0].mxu0
    %v6128 = vadd.f32 %v5935, %v6127
    %v6129 = vpop.f32.mrb[0].mxu0
    %v6130 = vadd.f32 %v5937, %v6129
    %v6131 = vpop.f32.mrb[0].mxu0
    %v6132 = vadd.f32 %v5939, %v6131
    %v6133 = vpop.f32.mrb[0].mxu0
    %v6134 = vadd.f32 %v5941, %v6133
    %6135 = vmatprep.mubr.bf16.mxu0 %v2183
    %6136 = vmatmul.mubr.bf16.gmra.mrb[0].mxu0 %v2182
    %v6137 = vpop.f32.mrb[0].mxu0
    %v6138 = vadd.f32 %v5945, %v6137
    %v6139 = vpop.f32.mrb[0].mxu0
    %v6140 = vadd.f32 %v5947, %v6139
    %v6141 = vpop.f32.mrb[0].mxu0
    %v6142 = vadd.f32 %v5949, %v6141
    %v6143 = vpop.f32.mrb[0].mxu0
    %v6144 = vadd.f32 %v5951, %v6143
    %6145 = vmatprep.mubr.bf16.mxu0 %v2203
    %6146 = vmatmul.mubr.bf16.gmra.mrb[0].mxu0 %v2202
    %v6147 = vpop.f32.mrb[0].mxu0
    %v6148 = vadd.f32 %v5955, %v6147
    %v6149 = vpop.f32.mrb[0].mxu0
    %v6150 = vadd.f32 %v5957, %v6149
    %v6151 = vpop.f32.mrb[0].mxu0
    %v6152 = vadd.f32 %v5959, %v6151
    %v6153 = vpop.f32.mrb[0].mxu0
    %v6154 = vadd.f32 %v5961, %v6153
    %6155 = vmatprep.mubr.bf16.mxu0 %v2223
    %6156 = vmatmul.mubr.bf16.gmra.mrb[0].mxu0 %v2222
    %v6157 = vpop.f32.mrb[0].mxu0
    %v6158 = vadd.f32 %v5965, %v6157
    %v6159 = vpop.f32.mrb[0].mxu0
    %v6160 = vadd.f32 %v5967, %v6159
    %v6161 = vpop.f32.mrb[0].mxu0
    %v6162 = vadd.f32 %v5969, %v6161
    %v6163 = vpop.f32.mrb[0].mxu0
    %v6164 = vadd.f32 %v5971, %v6163
    %6165 = vmatprep.mubr.bf16.mxu0 %v2243
    %6166 = vmatmul.mubr.bf16.gmra.mrb[0].mxu0 %v2242
    %v6167 = vpop.f32.mrb[0].mxu0
    %v6168 = vadd.f32 %v5975, %v6167
    %v6169 = vpop.f32.mrb[0].mxu0
    %v6170 = vadd.f32 %v5977, %v6169
    %v6171 = vpop.f32.mrb[0].mxu0
    %v6172 = vadd.f32 %v5979, %v6171
    %v6173 = vpop.f32.mrb[0].mxu0
    %v6174 = vadd.f32 %v5981, %v6173
    %6175 = vmatprep.mubr.bf16.mxu0 %v2263
    %6176 = vmatmul.mubr.bf16.gmra.mrb[0].mxu0 %v2262
    %v6177 = vpop.f32.mrb[0].mxu0
    %v6178 = vadd.f32 %v5985, %v6177
    %v6179 = vpop.f32.mrb[0].mxu0
    %v6180 = vadd.f32 %v5987, %v6179
    %v6181 = vpop.f32.mrb[0].mxu0
    %v6182 = vadd.f32 %v5989, %v6181
    %v6183 = vpop.f32.mrb[0].mxu0
    %v6184 = vadd.f32 %v5991, %v6183
    %6185 = vdwg.mxu0
    %6186 = vmatprep.subr.bf16.mxu0 %v4649
    %6187 = vmatpush1.bf16.msra.mxu0 %v4648
    %6188 = vmatprep.subr.bf16.mxu0 %v4653
    %6189 = vmatpush1.bf16.msra.mxu0 %v4652
    %6190 = vmatprep.subr.bf16.mxu0 %v4657
    %6191 = vmatpush1.bf16.msra.mxu0 %v4656
    %6192 = vmatprep.subr.bf16.mxu0 %v4661
    %6193 = vmatpush1.bf16.msra.mxu0 %v4660
    %6194 = vmatprep.subr.bf16.mxu0 %v4665
    %6195 = vmatpush1.bf16.msra.mxu0 %v4664
    %6196 = vmatprep.subr.bf16.mxu0 %v4669
    %6197 = vmatpush1.bf16.msra.mxu0 %v4668
    %6198 = vmatprep.subr.bf16.mxu0 %v4673
    %6199 = vmatpush1.bf16.msra.mxu0 %v4672
    %6200 = vmatprep.subr.bf16.mxu0 %v4677
    %6201 = vmatpush1.bf16.msra.mxu0 %v4676
    %6202 = vmatprep.subr.bf16.mxu0 %v4681
    %6203 = vmatpush1.bf16.msra.mxu0 %v4680
    %6204 = vmatprep.subr.bf16.mxu0 %v4685
    %6205 = vmatpush1.bf16.msra.mxu0 %v4684
    %6206 = vmatprep.subr.bf16.mxu0 %v4689
    %6207 = vmatpush1.bf16.msra.mxu0 %v4688
    %6208 = vmatprep.subr.bf16.mxu0 %v4693
    %6209 = vmatpush1.bf16.msra.mxu0 %v4692
    %6210 = vmatprep.subr.bf16.mxu0 %v4697
    %6211 = vmatpush1.bf16.msra.mxu0 %v4696
    %6212 = vmatprep.subr.bf16.mxu0 %v4701
    %6213 = vmatpush1.bf16.msra.mxu0 %v4700
    %6214 = vmatprep.subr.bf16.mxu0 %v4705
    %6215 = vmatpush1.bf16.msra.mxu0 %v4704
    %6216 = vmatprep.subr.bf16.mxu0 %v4709
    %6217 = vmatpush1.bf16.msra.mxu0 %v4708
    %6218 = vmatprep.mubr.bf16.mxu0 %v1965
    %6219 = vmatmul.mubr.bf16.gmra.mrb[0].mxu0 %v1964
    %v6220 = vpop.f32.mrb[0].mxu0
    %v6221 = vadd.f32 %v6028, %v6220
    %v6222 = vpop.f32.mrb[0].mxu0
    %v6223 = vadd.f32 %v6030, %v6222
    %v6224 = vpop.f32.mrb[0].mxu0
    %v6225 = vadd.f32 %v6032, %v6224
    %v6226 = vpop.f32.mrb[0].mxu0
    %v6227 = vadd.f32 %v6034, %v6226
    %6228 = vmatprep.mubr.bf16.mxu0 %v1985
    %6229 = vmatmul.mubr.bf16.gmra.mrb[0].mxu0 %v1984
    %v6230 = vpop.f32.mrb[0].mxu0
    %v6231 = vadd.f32 %v6038, %v6230
    %v6232 = vpop.f32.mrb[0].mxu0
    %v6233 = vadd.f32 %v6040, %v6232
    %v6234 = vpop.f32.mrb[0].mxu0
    %v6235 = vadd.f32 %v6042, %v6234
    %v6236 = vpop.f32.mrb[0].mxu0
    %v6237 = vadd.f32 %v6044, %v6236
    %6238 = vmatprep.mubr.bf16.mxu0 %v2005
    %6239 = vmatmul.mubr.bf16.gmra.mrb[0].mxu0 %v2004
    %v6240 = vpop.f32.mrb[0].mxu0
    %v6241 = vadd.f32 %v6048, %v6240
    %v6242 = vpop.f32.mrb[0].mxu0
    %v6243 = vadd.f32 %v6050, %v6242
    %v6244 = vpop.f32.mrb[0].mxu0
    %v6245 = vadd.f32 %v6052, %v6244
    %v6246 = vpop.f32.mrb[0].mxu0
    %v6247 = vadd.f32 %v6054, %v6246
    %6248 = vmatprep.mubr.bf16.mxu0 %v2025
    %6249 = vmatmul.mubr.bf16.gmra.mrb[0].mxu0 %v2024
    %v6250 = vpop.f32.mrb[0].mxu0
    %v6251 = vadd.f32 %v6058, %v6250
    %v6252 = vpop.f32.mrb[0].mxu0
    %v6253 = vadd.f32 %v6060, %v6252
    %v6254 = vpop.f32.mrb[0].mxu0
    %v6255 = vadd.f32 %v6062, %v6254
    %v6256 = vpop.f32.mrb[0].mxu0
    %v6257 = vadd.f32 %v6064, %v6256
    %6258 = vmatprep.mubr.bf16.mxu0 %v2045
    %6259 = vmatmul.mubr.bf16.gmra.mrb[0].mxu0 %v2044
    %v6260 = vpop.f32.mrb[0].mxu0
    %v6261 = vadd.f32 %v6068, %v6260
    %v6262 = vpop.f32.mrb[0].mxu0
    %v6263 = vadd.f32 %v6070, %v6262
    %v6264 = vpop.f32.mrb[0].mxu0
    %v6265 = vadd.f32 %v6072, %v6264
    %v6266 = vpop.f32.mrb[0].mxu0
    %v6267 = vadd.f32 %v6074, %v6266
    %6268 = vmatprep.mubr.bf16.mxu0 %v2065
    %6269 = vmatmul.mubr.bf16.gmra.mrb[0].mxu0 %v2064
    %v6270 = vpop.f32.mrb[0].mxu0
    %v6271 = vadd.f32 %v6078, %v6270
    %v6272 = vpop.f32.mrb[0].mxu0
    %v6273 = vadd.f32 %v6080, %v6272
    %v6274 = vpop.f32.mrb[0].mxu0
    %v6275 = vadd.f32 %v6082, %v6274
    %v6276 = vpop.f32.mrb[0].mxu0
    %v6277 = vadd.f32 %v6084, %v6276
    %6278 = vmatprep.mubr.bf16.mxu0 %v2085
    %6279 = vmatmul.mubr.bf16.gmra.mrb[0].mxu0 %v2084
    %v6280 = vpop.f32.mrb[0].mxu0
    %v6281 = vadd.f32 %v6088, %v6280
    %v6282 = vpop.f32.mrb[0].mxu0
    %v6283 = vadd.f32 %v6090, %v6282
    %v6284 = vpop.f32.mrb[0].mxu0
    %v6285 = vadd.f32 %v6092, %v6284
    %v6286 = vpop.f32.mrb[0].mxu0
    %v6287 = vadd.f32 %v6094, %v6286
    %6288 = vmatprep.mubr.bf16.mxu0 %v2105
    %6289 = vmatmul.mubr.bf16.gmra.mrb[0].mxu0 %v2104
    %v6290 = vpop.f32.mrb[0].mxu0
    %v6291 = vadd.f32 %v6098, %v6290
    %v6292 = vpop.f32.mrb[0].mxu0
    %v6293 = vadd.f32 %v6100, %v6292
    %v6294 = vpop.f32.mrb[0].mxu0
    %v6295 = vadd.f32 %v6102, %v6294
    %v6296 = vpop.f32.mrb[0].mxu0
    %v6297 = vadd.f32 %v6104, %v6296
    %6298 = vmatprep.mubr.bf16.mxu0 %v2125
    %6299 = vmatmul.mubr.bf16.gmra.mrb[0].mxu0 %v2124
    %v6300 = vpop.f32.mrb[0].mxu0
    %v6301 = vadd.f32 %v6108, %v6300
    %v6302 = vpop.f32.mrb[0].mxu0
    %v6303 = vadd.f32 %v6110, %v6302
    %v6304 = vpop.f32.mrb[0].mxu0
    %v6305 = vadd.f32 %v6112, %v6304
    %v6306 = vpop.f32.mrb[0].mxu0
    %v6307 = vadd.f32 %v6114, %v6306
    %6308 = vmatprep.mubr.bf16.mxu0 %v2145
    %6309 = vmatmul.mubr.bf16.gmra.mrb[0].mxu0 %v2144
    %v6310 = vpop.f32.mrb[0].mxu0
    %v6311 = vadd.f32 %v6118, %v6310
    %v6312 = vpop.f32.mrb[0].mxu0
    %v6313 = vadd.f32 %v6120, %v6312
    %v6314 = vpop.f32.mrb[0].mxu0
    %v6315 = vadd.f32 %v6122, %v6314
    %v6316 = vpop.f32.mrb[0].mxu0
    %v6317 = vadd.f32 %v6124, %v6316
    %6318 = vmatprep.mubr.bf16.mxu0 %v2165
    %6319 = vmatmul.mubr.bf16.gmra.mrb[0].mxu0 %v2164
    %v6320 = vpop.f32.mrb[0].mxu0
    %v6321 = vadd.f32 %v6128, %v6320
    %v6322 = vpop.f32.mrb[0].mxu0
    %v6323 = vadd.f32 %v6130, %v6322
    %v6324 = vpop.f32.mrb[0].mxu0
    %v6325 = vadd.f32 %v6132, %v6324
    %v6326 = vpop.f32.mrb[0].mxu0
    %v6327 = vadd.f32 %v6134, %v6326
    %6328 = vmatprep.mubr.bf16.mxu0 %v2185
    %6329 = vmatmul.mubr.bf16.gmra.mrb[0].mxu0 %v2184
    %v6330 = vpop.f32.mrb[0].mxu0
    %v6331 = vadd.f32 %v6138, %v6330
    %v6332 = vpop.f32.mrb[0].mxu0
    %v6333 = vadd.f32 %v6140, %v6332
    %v6334 = vpop.f32.mrb[0].mxu0
    %v6335 = vadd.f32 %v6142, %v6334
    %v6336 = vpop.f32.mrb[0].mxu0
    %v6337 = vadd.f32 %v6144, %v6336
    %6338 = vmatprep.mubr.bf16.mxu0 %v2205
    %6339 = vmatmul.mubr.bf16.gmra.mrb[0].mxu0 %v2204
    %v6340 = vpop.f32.mrb[0].mxu0
    %v6341 = vadd.f32 %v6148, %v6340
    %v6342 = vpop.f32.mrb[0].mxu0
    %v6343 = vadd.f32 %v6150, %v6342
    %v6344 = vpop.f32.mrb[0].mxu0
    %v6345 = vadd.f32 %v6152, %v6344
    %v6346 = vpop.f32.mrb[0].mxu0
    %v6347 = vadd.f32 %v6154, %v6346
    %6348 = vmatprep.mubr.bf16.mxu0 %v2225
    %6349 = vmatmul.mubr.bf16.gmra.mrb[0].mxu0 %v2224
    %v6350 = vpop.f32.mrb[0].mxu0
    %v6351 = vadd.f32 %v6158, %v6350
    %v6352 = vpop.f32.mrb[0].mxu0
    %v6353 = vadd.f32 %v6160, %v6352
    %v6354 = vpop.f32.mrb[0].mxu0
    %v6355 = vadd.f32 %v6162, %v6354
    %v6356 = vpop.f32.mrb[0].mxu0
    %v6357 = vadd.f32 %v6164, %v6356
    %6358 = vmatprep.mubr.bf16.mxu0 %v2245
    %6359 = vmatmul.mubr.bf16.gmra.mrb[0].mxu0 %v2244
    %v6360 = vpop.f32.mrb[0].mxu0
    %v6361 = vadd.f32 %v6168, %v6360
    %v6362 = vpop.f32.mrb[0].mxu0
    %v6363 = vadd.f32 %v6170, %v6362
    %v6364 = vpop.f32.mrb[0].mxu0
    %v6365 = vadd.f32 %v6172, %v6364
    %v6366 = vpop.f32.mrb[0].mxu0
    %v6367 = vadd.f32 %v6174, %v6366
    %6368 = vmatprep.mubr.bf16.mxu0 %v2265
    %6369 = vmatmul.mubr.bf16.gmra.mrb[0].mxu0 %v2264
    %v6370 = vpop.f32.mrb[0].mxu0
    %v6371 = vadd.f32 %v6178, %v6370
    %v6372 = vpop.f32.mrb[0].mxu0
    %v6373 = vadd.f32 %v6180, %v6372
    %v6374 = vpop.f32.mrb[0].mxu0
    %v6375 = vadd.f32 %v6182, %v6374
    %v6376 = vpop.f32.mrb[0].mxu0
    %v6377 = vadd.f32 %v6184, %v6376
    %6378 = vdwg.mxu0
    %6379 = vmatprep.subr.bf16.mxu0 %v4713
    %6380 = vmatpush1.bf16.msra.mxu0 %v4712
    %6381 = vmatprep.subr.bf16.mxu0 %v4717
    %6382 = vmatpush1.bf16.msra.mxu0 %v4716
    %6383 = vmatprep.subr.bf16.mxu0 %v4721
    %6384 = vmatpush1.bf16.msra.mxu0 %v4720
    %6385 = vmatprep.subr.bf16.mxu0 %v4725
    %6386 = vmatpush1.bf16.msra.mxu0 %v4724
    %6387 = vmatprep.subr.bf16.mxu0 %v4729
    %6388 = vmatpush1.bf16.msra.mxu0 %v4728
    %6389 = vmatprep.subr.bf16.mxu0 %v4733
    %6390 = vmatpush1.bf16.msra.mxu0 %v4732
    %6391 = vmatprep.subr.bf16.mxu0 %v4737
    %6392 = vmatpush1.bf16.msra.mxu0 %v4736
    %6393 = vmatprep.subr.bf16.mxu0 %v4741
    %6394 = vmatpush1.bf16.msra.mxu0 %v4740
    %6395 = vmatprep.subr.bf16.mxu0 %v4745
    %6396 = vmatpush1.bf16.msra.mxu0 %v4744
    %6397 = vmatprep.subr.bf16.mxu0 %v4749
    %6398 = vmatpush1.bf16.msra.mxu0 %v4748
    %6399 = vmatprep.subr.bf16.mxu0 %v4753
    %6400 = vmatpush1.bf16.msra.mxu0 %v4752
    %6401 = vmatprep.subr.bf16.mxu0 %v4757
    %6402 = vmatpush1.bf16.msra.mxu0 %v4756
    %6403 = vmatprep.subr.bf16.mxu0 %v4761
    %6404 = vmatpush1.bf16.msra.mxu0 %v4760
    %6405 = vmatprep.subr.bf16.mxu0 %v4765
    %6406 = vmatpush1.bf16.msra.mxu0 %v4764
    %6407 = vmatprep.subr.bf16.mxu0 %v4769
    %6408 = vmatpush1.bf16.msra.mxu0 %v4768
    %6409 = vmatprep.subr.bf16.mxu0 %v4773
    %6410 = vmatpush1.bf16.msra.mxu0 %v4772
    %6411 = vmatprep.mubr.bf16.mxu0 %v1967
    %6412 = vmatmul.mubr.bf16.gmra.mrb[0].mxu0 %v1966
    %v6413 = vpop.f32.mrb[0].mxu0
    %v6414 = vadd.f32 %v6221, %v6413
    %v6415 = vpop.f32.mrb[0].mxu0
    %v6416 = vadd.f32 %v6223, %v6415
    %v6417 = vpop.f32.mrb[0].mxu0
    %v6418 = vadd.f32 %v6225, %v6417
    %v6419 = vpop.f32.mrb[0].mxu0
    %v6420 = vadd.f32 %v6227, %v6419
    %6421 = vmatprep.mubr.bf16.mxu0 %v1987
    %6422 = vmatmul.mubr.bf16.gmra.mrb[0].mxu0 %v1986
    %v6423 = vpop.f32.mrb[0].mxu0
    %v6424 = vadd.f32 %v6231, %v6423
    %v6425 = vpop.f32.mrb[0].mxu0
    %v6426 = vadd.f32 %v6233, %v6425
    %v6427 = vpop.f32.mrb[0].mxu0
    %v6428 = vadd.f32 %v6235, %v6427
    %v6429 = vpop.f32.mrb[0].mxu0
    %v6430 = vadd.f32 %v6237, %v6429
    %6431 = vmatprep.mubr.bf16.mxu0 %v2007
    %6432 = vmatmul.mubr.bf16.gmra.mrb[0].mxu0 %v2006
    %v6433 = vpop.f32.mrb[0].mxu0
    %v6434 = vadd.f32 %v6241, %v6433
    %v6435 = vpop.f32.mrb[0].mxu0
    %v6436 = vadd.f32 %v6243, %v6435
    %v6437 = vpop.f32.mrb[0].mxu0
    %v6438 = vadd.f32 %v6245, %v6437
    %v6439 = vpop.f32.mrb[0].mxu0
    %v6440 = vadd.f32 %v6247, %v6439
    %6441 = vmatprep.mubr.bf16.mxu0 %v2027
    %6442 = vmatmul.mubr.bf16.gmra.mrb[0].mxu0 %v2026
    %v6443 = vpop.f32.mrb[0].mxu0
    %v6444 = vadd.f32 %v6251, %v6443
    %v6445 = vpop.f32.mrb[0].mxu0
    %v6446 = vadd.f32 %v6253, %v6445
    %v6447 = vpop.f32.mrb[0].mxu0
    %v6448 = vadd.f32 %v6255, %v6447
    %v6449 = vpop.f32.mrb[0].mxu0
    %v6450 = vadd.f32 %v6257, %v6449
    %6451 = vmatprep.mubr.bf16.mxu0 %v2047
    %6452 = vmatmul.mubr.bf16.gmra.mrb[0].mxu0 %v2046
    %v6453 = vpop.f32.mrb[0].mxu0
    %v6454 = vadd.f32 %v6261, %v6453
    %v6455 = vpop.f32.mrb[0].mxu0
    %v6456 = vadd.f32 %v6263, %v6455
    %v6457 = vpop.f32.mrb[0].mxu0
    %v6458 = vadd.f32 %v6265, %v6457
    %v6459 = vpop.f32.mrb[0].mxu0
    %v6460 = vadd.f32 %v6267, %v6459
    %6461 = vmatprep.mubr.bf16.mxu0 %v2067
    %6462 = vmatmul.mubr.bf16.gmra.mrb[0].mxu0 %v2066
    %v6463 = vpop.f32.mrb[0].mxu0
    %v6464 = vadd.f32 %v6271, %v6463
    %v6465 = vpop.f32.mrb[0].mxu0
    %v6466 = vadd.f32 %v6273, %v6465
    %v6467 = vpop.f32.mrb[0].mxu0
    %v6468 = vadd.f32 %v6275, %v6467
    %v6469 = vpop.f32.mrb[0].mxu0
    %v6470 = vadd.f32 %v6277, %v6469
    %6471 = vmatprep.mubr.bf16.mxu0 %v2087
    %6472 = vmatmul.mubr.bf16.gmra.mrb[0].mxu0 %v2086
    %v6473 = vpop.f32.mrb[0].mxu0
    %v6474 = vadd.f32 %v6281, %v6473
    %v6475 = vpop.f32.mrb[0].mxu0
    %v6476 = vadd.f32 %v6283, %v6475
    %v6477 = vpop.f32.mrb[0].mxu0
    %v6478 = vadd.f32 %v6285, %v6477
    %v6479 = vpop.f32.mrb[0].mxu0
    %v6480 = vadd.f32 %v6287, %v6479
    %6481 = vmatprep.mubr.bf16.mxu0 %v2107
    %6482 = vmatmul.mubr.bf16.gmra.mrb[0].mxu0 %v2106
    %v6483 = vpop.f32.mrb[0].mxu0
    %v6484 = vadd.f32 %v6291, %v6483
    %v6485 = vpop.f32.mrb[0].mxu0
    %v6486 = vadd.f32 %v6293, %v6485
    %v6487 = vpop.f32.mrb[0].mxu0
    %v6488 = vadd.f32 %v6295, %v6487
    %v6489 = vpop.f32.mrb[0].mxu0
    %v6490 = vadd.f32 %v6297, %v6489
    %6491 = vmatprep.mubr.bf16.mxu0 %v2127
    %6492 = vmatmul.mubr.bf16.gmra.mrb[0].mxu0 %v2126
    %v6493 = vpop.f32.mrb[0].mxu0
    %v6494 = vadd.f32 %v6301, %v6493
    %v6495 = vpop.f32.mrb[0].mxu0
    %v6496 = vadd.f32 %v6303, %v6495
    %v6497 = vpop.f32.mrb[0].mxu0
    %v6498 = vadd.f32 %v6305, %v6497
    %v6499 = vpop.f32.mrb[0].mxu0
    %v6500 = vadd.f32 %v6307, %v6499
    %6501 = vmatprep.mubr.bf16.mxu0 %v2147
    %6502 = vmatmul.mubr.bf16.gmra.mrb[0].mxu0 %v2146
    %v6503 = vpop.f32.mrb[0].mxu0
    %v6504 = vadd.f32 %v6311, %v6503
    %v6505 = vpop.f32.mrb[0].mxu0
    %v6506 = vadd.f32 %v6313, %v6505
    %v6507 = vpop.f32.mrb[0].mxu0
    %v6508 = vadd.f32 %v6315, %v6507
    %v6509 = vpop.f32.mrb[0].mxu0
    %v6510 = vadd.f32 %v6317, %v6509
    %6511 = vmatprep.mubr.bf16.mxu0 %v2167
    %6512 = vmatmul.mubr.bf16.gmra.mrb[0].mxu0 %v2166
    %v6513 = vpop.f32.mrb[0].mxu0
    %v6514 = vadd.f32 %v6321, %v6513
    %v6515 = vpop.f32.mrb[0].mxu0
    %v6516 = vadd.f32 %v6323, %v6515
    %v6517 = vpop.f32.mrb[0].mxu0
    %v6518 = vadd.f32 %v6325, %v6517
    %v6519 = vpop.f32.mrb[0].mxu0
    %v6520 = vadd.f32 %v6327, %v6519
    %6521 = vmatprep.mubr.bf16.mxu0 %v2187
    %6522 = vmatmul.mubr.bf16.gmra.mrb[0].mxu0 %v2186
    %v6523 = vpop.f32.mrb[0].mxu0
    %v6524 = vadd.f32 %v6331, %v6523
    %v6525 = vpop.f32.mrb[0].mxu0
    %v6526 = vadd.f32 %v6333, %v6525
    %v6527 = vpop.f32.mrb[0].mxu0
    %v6528 = vadd.f32 %v6335, %v6527
    %v6529 = vpop.f32.mrb[0].mxu0
    %v6530 = vadd.f32 %v6337, %v6529
    %6531 = vmatprep.mubr.bf16.mxu0 %v2207
    %6532 = vmatmul.mubr.bf16.gmra.mrb[0].mxu0 %v2206
    %v6533 = vpop.f32.mrb[0].mxu0
    %v6534 = vadd.f32 %v6341, %v6533
    %v6535 = vpop.f32.mrb[0].mxu0
    %v6536 = vadd.f32 %v6343, %v6535
    %v6537 = vpop.f32.mrb[0].mxu0
    %v6538 = vadd.f32 %v6345, %v6537
    %v6539 = vpop.f32.mrb[0].mxu0
    %v6540 = vadd.f32 %v6347, %v6539
    %6541 = vmatprep.mubr.bf16.mxu0 %v2227
    %6542 = vmatmul.mubr.bf16.gmra.mrb[0].mxu0 %v2226
    %v6543 = vpop.f32.mrb[0].mxu0
    %v6544 = vadd.f32 %v6351, %v6543
    %v6545 = vpop.f32.mrb[0].mxu0
    %v6546 = vadd.f32 %v6353, %v6545
    %v6547 = vpop.f32.mrb[0].mxu0
    %v6548 = vadd.f32 %v6355, %v6547
    %v6549 = vpop.f32.mrb[0].mxu0
    %v6550 = vadd.f32 %v6357, %v6549
    %6551 = vmatprep.mubr.bf16.mxu0 %v2247
    %6552 = vmatmul.mubr.bf16.gmra.mrb[0].mxu0 %v2246
    %v6553 = vpop.f32.mrb[0].mxu0
    %v6554 = vadd.f32 %v6361, %v6553
    %v6555 = vpop.f32.mrb[0].mxu0
    %v6556 = vadd.f32 %v6363, %v6555
    %v6557 = vpop.f32.mrb[0].mxu0
    %v6558 = vadd.f32 %v6365, %v6557
    %v6559 = vpop.f32.mrb[0].mxu0
    %v6560 = vadd.f32 %v6367, %v6559
    %6561 = vmatprep.mubr.bf16.mxu0 %v2267
    %6562 = vmatmul.mubr.bf16.gmra.mrb[0].mxu0 %v2266
    %v6563 = vpop.f32.mrb[0].mxu0
    %v6564 = vadd.f32 %v6371, %v6563
    %v6565 = vpop.f32.mrb[0].mxu0
    %v6566 = vadd.f32 %v6373, %v6565
    %v6567 = vpop.f32.mrb[0].mxu0
    %v6568 = vadd.f32 %v6375, %v6567
    %v6569 = vpop.f32.mrb[0].mxu0
    %v6570 = vadd.f32 %v6377, %v6569
    %6571 = vdwg.mxu0
    %6572 = vmatprep.subr.bf16.mxu0 %v4777
    %6573 = vmatpush1.bf16.msra.mxu0 %v4776
    %6574 = vmatprep.subr.bf16.mxu0 %v4781
    %6575 = vmatpush1.bf16.msra.mxu0 %v4780
    %6576 = vmatprep.subr.bf16.mxu0 %v4785
    %6577 = vmatpush1.bf16.msra.mxu0 %v4784
    %6578 = vmatprep.subr.bf16.mxu0 %v4789
    %6579 = vmatpush1.bf16.msra.mxu0 %v4788
    %6580 = vmatprep.subr.bf16.mxu0 %v4793
    %6581 = vmatpush1.bf16.msra.mxu0 %v4792
    %6582 = vmatprep.subr.bf16.mxu0 %v4797
    %6583 = vmatpush1.bf16.msra.mxu0 %v4796
    %6584 = vmatprep.subr.bf16.mxu0 %v4801
    %6585 = vmatpush1.bf16.msra.mxu0 %v4800
    %6586 = vmatprep.subr.bf16.mxu0 %v4805
    %6587 = vmatpush1.bf16.msra.mxu0 %v4804
    %6588 = vmatprep.subr.bf16.mxu0 %v4809
    %6589 = vmatpush1.bf16.msra.mxu0 %v4808
    %6590 = vmatprep.subr.bf16.mxu0 %v4813
    %6591 = vmatpush1.bf16.msra.mxu0 %v4812
    %6592 = vmatprep.subr.bf16.mxu0 %v4817
    %6593 = vmatpush1.bf16.msra.mxu0 %v4816
    %6594 = vmatprep.subr.bf16.mxu0 %v4821
    %6595 = vmatpush1.bf16.msra.mxu0 %v4820
    %6596 = vmatprep.subr.bf16.mxu0 %v4825
    %6597 = vmatpush1.bf16.msra.mxu0 %v4824
    %6598 = vmatprep.subr.bf16.mxu0 %v4829
    %6599 = vmatpush1.bf16.msra.mxu0 %v4828
    %6600 = vmatprep.subr.bf16.mxu0 %v4833
    %6601 = vmatpush1.bf16.msra.mxu0 %v4832
    %6602 = vmatprep.subr.bf16.mxu0 %v4837
    %6603 = vmatpush1.bf16.msra.mxu0 %v4836
    %6604 = vmatprep.mubr.bf16.mxu0 %v1969
    %6605 = vmatmul.mubr.bf16.gmra.mrb[0].mxu0 %v1968
    %v6606 = vpop.f32.mrb[0].mxu0
    %v6607 = vadd.f32 %v6414, %v6606
    %v6608 = vpop.f32.mrb[0].mxu0
    %v6609 = vadd.f32 %v6416, %v6608
    %v6610 = vpop.f32.mrb[0].mxu0
    %v6611 = vadd.f32 %v6418, %v6610
    %v6612 = vpop.f32.mrb[0].mxu0
    %v6613 = vadd.f32 %v6420, %v6612
    %6614 = vmatprep.mubr.bf16.mxu0 %v1989
    %6615 = vmatmul.mubr.bf16.gmra.mrb[0].mxu0 %v1988
    %v6616 = vpop.f32.mrb[0].mxu0
    %v6617 = vadd.f32 %v6424, %v6616
    %v6618 = vpop.f32.mrb[0].mxu0
    %v6619 = vadd.f32 %v6426, %v6618
    %v6620 = vpop.f32.mrb[0].mxu0
    %v6621 = vadd.f32 %v6428, %v6620
    %v6622 = vpop.f32.mrb[0].mxu0
    %v6623 = vadd.f32 %v6430, %v6622
    %6624 = vmatprep.mubr.bf16.mxu0 %v2009
    %6625 = vmatmul.mubr.bf16.gmra.mrb[0].mxu0 %v2008
    %v6626 = vpop.f32.mrb[0].mxu0
    %v6627 = vadd.f32 %v6434, %v6626
    %v6628 = vpop.f32.mrb[0].mxu0
    %v6629 = vadd.f32 %v6436, %v6628
    %v6630 = vpop.f32.mrb[0].mxu0
    %v6631 = vadd.f32 %v6438, %v6630
    %v6632 = vpop.f32.mrb[0].mxu0
    %v6633 = vadd.f32 %v6440, %v6632
    %6634 = vmatprep.mubr.bf16.mxu0 %v2029
    %6635 = vmatmul.mubr.bf16.gmra.mrb[0].mxu0 %v2028
    %v6636 = vpop.f32.mrb[0].mxu0
    %v6637 = vadd.f32 %v6444, %v6636
    %v6638 = vpop.f32.mrb[0].mxu0
    %v6639 = vadd.f32 %v6446, %v6638
    %v6640 = vpop.f32.mrb[0].mxu0
    %v6641 = vadd.f32 %v6448, %v6640
    %v6642 = vpop.f32.mrb[0].mxu0
    %v6643 = vadd.f32 %v6450, %v6642
    %6644 = vmatprep.mubr.bf16.mxu0 %v2049
    %6645 = vmatmul.mubr.bf16.gmra.mrb[0].mxu0 %v2048
    %v6646 = vpop.f32.mrb[0].mxu0
    %v6647 = vadd.f32 %v6454, %v6646
    %v6648 = vpop.f32.mrb[0].mxu0
    %v6649 = vadd.f32 %v6456, %v6648
    %v6650 = vpop.f32.mrb[0].mxu0
    %v6651 = vadd.f32 %v6458, %v6650
    %v6652 = vpop.f32.mrb[0].mxu0
    %v6653 = vadd.f32 %v6460, %v6652
    %6654 = vmatprep.mubr.bf16.mxu0 %v2069
    %6655 = vmatmul.mubr.bf16.gmra.mrb[0].mxu0 %v2068
    %v6656 = vpop.f32.mrb[0].mxu0
    %v6657 = vadd.f32 %v6464, %v6656
    %v6658 = vpop.f32.mrb[0].mxu0
    %v6659 = vadd.f32 %v6466, %v6658
    %v6660 = vpop.f32.mrb[0].mxu0
    %v6661 = vadd.f32 %v6468, %v6660
    %v6662 = vpop.f32.mrb[0].mxu0
    %v6663 = vadd.f32 %v6470, %v6662
    %6664 = vmatprep.mubr.bf16.mxu0 %v2089
    %6665 = vmatmul.mubr.bf16.gmra.mrb[0].mxu0 %v2088
    %v6666 = vpop.f32.mrb[0].mxu0
    %v6667 = vadd.f32 %v6474, %v6666
    %v6668 = vpop.f32.mrb[0].mxu0
    %v6669 = vadd.f32 %v6476, %v6668
    %v6670 = vpop.f32.mrb[0].mxu0
    %v6671 = vadd.f32 %v6478, %v6670
    %v6672 = vpop.f32.mrb[0].mxu0
    %v6673 = vadd.f32 %v6480, %v6672
    %6674 = vmatprep.mubr.bf16.mxu0 %v2109
    %6675 = vmatmul.mubr.bf16.gmra.mrb[0].mxu0 %v2108
    %v6676 = vpop.f32.mrb[0].mxu0
    %v6677 = vadd.f32 %v6484, %v6676
    %v6678 = vpop.f32.mrb[0].mxu0
    %v6679 = vadd.f32 %v6486, %v6678
    %v6680 = vpop.f32.mrb[0].mxu0
    %v6681 = vadd.f32 %v6488, %v6680
    %v6682 = vpop.f32.mrb[0].mxu0
    %v6683 = vadd.f32 %v6490, %v6682
    %6684 = vmatprep.mubr.bf16.mxu0 %v2129
    %6685 = vmatmul.mubr.bf16.gmra.mrb[0].mxu0 %v2128
    %v6686 = vpop.f32.mrb[0].mxu0
    %v6687 = vadd.f32 %v6494, %v6686
    %v6688 = vpop.f32.mrb[0].mxu0
    %v6689 = vadd.f32 %v6496, %v6688
    %v6690 = vpop.f32.mrb[0].mxu0
    %v6691 = vadd.f32 %v6498, %v6690
    %v6692 = vpop.f32.mrb[0].mxu0
    %v6693 = vadd.f32 %v6500, %v6692
    %6694 = vmatprep.mubr.bf16.mxu0 %v2149
    %6695 = vmatmul.mubr.bf16.gmra.mrb[0].mxu0 %v2148
    %v6696 = vpop.f32.mrb[0].mxu0
    %v6697 = vadd.f32 %v6504, %v6696
    %v6698 = vpop.f32.mrb[0].mxu0
    %v6699 = vadd.f32 %v6506, %v6698
    %v6700 = vpop.f32.mrb[0].mxu0
    %v6701 = vadd.f32 %v6508, %v6700
    %v6702 = vpop.f32.mrb[0].mxu0
    %v6703 = vadd.f32 %v6510, %v6702
    %6704 = vmatprep.mubr.bf16.mxu0 %v2169
    %6705 = vmatmul.mubr.bf16.gmra.mrb[0].mxu0 %v2168
    %v6706 = vpop.f32.mrb[0].mxu0
    %v6707 = vadd.f32 %v6514, %v6706
    %v6708 = vpop.f32.mrb[0].mxu0
    %v6709 = vadd.f32 %v6516, %v6708
    %v6710 = vpop.f32.mrb[0].mxu0
    %v6711 = vadd.f32 %v6518, %v6710
    %v6712 = vpop.f32.mrb[0].mxu0
    %v6713 = vadd.f32 %v6520, %v6712
    %6714 = vmatprep.mubr.bf16.mxu0 %v2189
    %6715 = vmatmul.mubr.bf16.gmra.mrb[0].mxu0 %v2188
    %v6716 = vpop.f32.mrb[0].mxu0
    %v6717 = vadd.f32 %v6524, %v6716
    %v6718 = vpop.f32.mrb[0].mxu0
    %v6719 = vadd.f32 %v6526, %v6718
    %v6720 = vpop.f32.mrb[0].mxu0
    %v6721 = vadd.f32 %v6528, %v6720
    %v6722 = vpop.f32.mrb[0].mxu0
    %v6723 = vadd.f32 %v6530, %v6722
    %6724 = vmatprep.mubr.bf16.mxu0 %v2209
    %6725 = vmatmul.mubr.bf16.gmra.mrb[0].mxu0 %v2208
    %v6726 = vpop.f32.mrb[0].mxu0
    %v6727 = vadd.f32 %v6534, %v6726
    %v6728 = vpop.f32.mrb[0].mxu0
    %v6729 = vadd.f32 %v6536, %v6728
    %v6730 = vpop.f32.mrb[0].mxu0
    %v6731 = vadd.f32 %v6538, %v6730
    %v6732 = vpop.f32.mrb[0].mxu0
    %v6733 = vadd.f32 %v6540, %v6732
    %6734 = vmatprep.mubr.bf16.mxu0 %v2229
    %6735 = vmatmul.mubr.bf16.gmra.mrb[0].mxu0 %v2228
    %v6736 = vpop.f32.mrb[0].mxu0
    %v6737 = vadd.f32 %v6544, %v6736
    %v6738 = vpop.f32.mrb[0].mxu0
    %v6739 = vadd.f32 %v6546, %v6738
    %v6740 = vpop.f32.mrb[0].mxu0
    %v6741 = vadd.f32 %v6548, %v6740
    %v6742 = vpop.f32.mrb[0].mxu0
    %v6743 = vadd.f32 %v6550, %v6742
    %6744 = vmatprep.mubr.bf16.mxu0 %v2249
    %6745 = vmatmul.mubr.bf16.gmra.mrb[0].mxu0 %v2248
    %v6746 = vpop.f32.mrb[0].mxu0
    %v6747 = vadd.f32 %v6554, %v6746
    %v6748 = vpop.f32.mrb[0].mxu0
    %v6749 = vadd.f32 %v6556, %v6748
    %v6750 = vpop.f32.mrb[0].mxu0
    %v6751 = vadd.f32 %v6558, %v6750
    %v6752 = vpop.f32.mrb[0].mxu0
    %v6753 = vadd.f32 %v6560, %v6752
    %6754 = vmatprep.mubr.bf16.mxu0 %v2269
    %6755 = vmatmul.mubr.bf16.gmra.mrb[0].mxu0 %v2268
    %v6756 = vpop.f32.mrb[0].mxu0
    %v6757 = vadd.f32 %v6564, %v6756
    %v6758 = vpop.f32.mrb[0].mxu0
    %v6759 = vadd.f32 %v6566, %v6758
    %v6760 = vpop.f32.mrb[0].mxu0
    %v6761 = vadd.f32 %v6568, %v6760
    %v6762 = vpop.f32.mrb[0].mxu0
    %v6763 = vadd.f32 %v6570, %v6762
    %6764 = vdwg.mxu0
    %6765 = vmatprep.subr.bf16.mxu0 %v4841
    %6766 = vmatpush1.bf16.msra.mxu0 %v4840
    %6767 = vmatprep.subr.bf16.mxu0 %v4845
    %6768 = vmatpush1.bf16.msra.mxu0 %v4844
    %6769 = vmatprep.subr.bf16.mxu0 %v4849
    %6770 = vmatpush1.bf16.msra.mxu0 %v4848
    %6771 = vmatprep.subr.bf16.mxu0 %v4853
    %6772 = vmatpush1.bf16.msra.mxu0 %v4852
    %6773 = vmatprep.subr.bf16.mxu0 %v4857
    %6774 = vmatpush1.bf16.msra.mxu0 %v4856
    %6775 = vmatprep.subr.bf16.mxu0 %v4861
    %6776 = vmatpush1.bf16.msra.mxu0 %v4860
    %6777 = vmatprep.subr.bf16.mxu0 %v4865
    %6778 = vmatpush1.bf16.msra.mxu0 %v4864
    %6779 = vmatprep.subr.bf16.mxu0 %v4869
    %6780 = vmatpush1.bf16.msra.mxu0 %v4868
    %6781 = vmatprep.subr.bf16.mxu0 %v4873
    %6782 = vmatpush1.bf16.msra.mxu0 %v4872
    %6783 = vmatprep.subr.bf16.mxu0 %v4877
    %6784 = vmatpush1.bf16.msra.mxu0 %v4876
    %6785 = vmatprep.subr.bf16.mxu0 %v4881
    %6786 = vmatpush1.bf16.msra.mxu0 %v4880
    %6787 = vmatprep.subr.bf16.mxu0 %v4885
    %6788 = vmatpush1.bf16.msra.mxu0 %v4884
    %6789 = vmatprep.subr.bf16.mxu0 %v4889
    %6790 = vmatpush1.bf16.msra.mxu0 %v4888
    %6791 = vmatprep.subr.bf16.mxu0 %v4893
    %6792 = vmatpush1.bf16.msra.mxu0 %v4892
    %6793 = vmatprep.subr.bf16.mxu0 %v4897
    %6794 = vmatpush1.bf16.msra.mxu0 %v4896
    %6795 = vmatprep.subr.bf16.mxu0 %v4901
    %6796 = vmatpush1.bf16.msra.mxu0 %v4900
    %6797 = vmatprep.mubr.bf16.mxu0 %v1971
    %6798 = vmatmul.mubr.bf16.gmra.mrb[0].mxu0 %v1970
    %v6799 = vpop.f32.mrb[0].mxu0
    %v6800 = vadd.f32 %v6607, %v6799
    %v6801 = vpop.f32.mrb[0].mxu0
    %v6802 = vadd.f32 %v6609, %v6801
    %v6803 = vpop.f32.mrb[0].mxu0
    %v6804 = vadd.f32 %v6611, %v6803
    %v6805 = vpop.f32.mrb[0].mxu0
    %v6806 = vadd.f32 %v6613, %v6805
    %6807 = vmatprep.mubr.bf16.mxu0 %v1991
    %6808 = vmatmul.mubr.bf16.gmra.mrb[0].mxu0 %v1990
    %v6809 = vpop.f32.mrb[0].mxu0
    %v6810 = vadd.f32 %v6617, %v6809
    %v6811 = vpop.f32.mrb[0].mxu0
    %v6812 = vadd.f32 %v6619, %v6811
    %v6813 = vpop.f32.mrb[0].mxu0
    %v6814 = vadd.f32 %v6621, %v6813
    %v6815 = vpop.f32.mrb[0].mxu0
    %v6816 = vadd.f32 %v6623, %v6815
    %6817 = vmatprep.mubr.bf16.mxu0 %v2011
    %6818 = vmatmul.mubr.bf16.gmra.mrb[0].mxu0 %v2010
    %v6819 = vpop.f32.mrb[0].mxu0
    %v6820 = vadd.f32 %v6627, %v6819
    %v6821 = vpop.f32.mrb[0].mxu0
    %v6822 = vadd.f32 %v6629, %v6821
    %v6823 = vpop.f32.mrb[0].mxu0
    %v6824 = vadd.f32 %v6631, %v6823
    %v6825 = vpop.f32.mrb[0].mxu0
    %v6826 = vadd.f32 %v6633, %v6825
    %6827 = vmatprep.mubr.bf16.mxu0 %v2031
    %6828 = vmatmul.mubr.bf16.gmra.mrb[0].mxu0 %v2030
    %v6829 = vpop.f32.mrb[0].mxu0
    %v6830 = vadd.f32 %v6637, %v6829
    %v6831 = vpop.f32.mrb[0].mxu0
    %v6832 = vadd.f32 %v6639, %v6831
    %v6833 = vpop.f32.mrb[0].mxu0
    %v6834 = vadd.f32 %v6641, %v6833
    %v6835 = vpop.f32.mrb[0].mxu0
    %v6836 = vadd.f32 %v6643, %v6835
    %6837 = vmatprep.mubr.bf16.mxu0 %v2051
    %6838 = vmatmul.mubr.bf16.gmra.mrb[0].mxu0 %v2050
    %v6839 = vpop.f32.mrb[0].mxu0
    %v6840 = vadd.f32 %v6647, %v6839
    %v6841 = vpop.f32.mrb[0].mxu0
    %v6842 = vadd.f32 %v6649, %v6841
    %v6843 = vpop.f32.mrb[0].mxu0
    %v6844 = vadd.f32 %v6651, %v6843
    %v6845 = vpop.f32.mrb[0].mxu0
    %v6846 = vadd.f32 %v6653, %v6845
    %6847 = vmatprep.mubr.bf16.mxu0 %v2071
    %6848 = vmatmul.mubr.bf16.gmra.mrb[0].mxu0 %v2070
    %v6849 = vpop.f32.mrb[0].mxu0
    %v6850 = vadd.f32 %v6657, %v6849
    %v6851 = vpop.f32.mrb[0].mxu0
    %v6852 = vadd.f32 %v6659, %v6851
    %v6853 = vpop.f32.mrb[0].mxu0
    %v6854 = vadd.f32 %v6661, %v6853
    %v6855 = vpop.f32.mrb[0].mxu0
    %v6856 = vadd.f32 %v6663, %v6855
    %6857 = vmatprep.mubr.bf16.mxu0 %v2091
    %6858 = vmatmul.mubr.bf16.gmra.mrb[0].mxu0 %v2090
    %v6859 = vpop.f32.mrb[0].mxu0
    %v6860 = vadd.f32 %v6667, %v6859
    %v6861 = vpop.f32.mrb[0].mxu0
    %v6862 = vadd.f32 %v6669, %v6861
    %v6863 = vpop.f32.mrb[0].mxu0
    %v6864 = vadd.f32 %v6671, %v6863
    %v6865 = vpop.f32.mrb[0].mxu0
    %v6866 = vadd.f32 %v6673, %v6865
    %6867 = vmatprep.mubr.bf16.mxu0 %v2111
    %6868 = vmatmul.mubr.bf16.gmra.mrb[0].mxu0 %v2110
    %v6869 = vpop.f32.mrb[0].mxu0
    %v6870 = vadd.f32 %v6677, %v6869
    %v6871 = vpop.f32.mrb[0].mxu0
    %v6872 = vadd.f32 %v6679, %v6871
    %v6873 = vpop.f32.mrb[0].mxu0
    %v6874 = vadd.f32 %v6681, %v6873
    %v6875 = vpop.f32.mrb[0].mxu0
    %v6876 = vadd.f32 %v6683, %v6875
    %6877 = vmatprep.mubr.bf16.mxu0 %v2131
    %6878 = vmatmul.mubr.bf16.gmra.mrb[0].mxu0 %v2130
    %v6879 = vpop.f32.mrb[0].mxu0
    %v6880 = vadd.f32 %v6687, %v6879
    %v6881 = vpop.f32.mrb[0].mxu0
    %v6882 = vadd.f32 %v6689, %v6881
    %v6883 = vpop.f32.mrb[0].mxu0
    %v6884 = vadd.f32 %v6691, %v6883
    %v6885 = vpop.f32.mrb[0].mxu0
    %v6886 = vadd.f32 %v6693, %v6885
    %6887 = vmatprep.mubr.bf16.mxu0 %v2151
    %6888 = vmatmul.mubr.bf16.gmra.mrb[0].mxu0 %v2150
    %v6889 = vpop.f32.mrb[0].mxu0
    %v6890 = vadd.f32 %v6697, %v6889
    %v6891 = vpop.f32.mrb[0].mxu0
    %v6892 = vadd.f32 %v6699, %v6891
    %v6893 = vpop.f32.mrb[0].mxu0
    %v6894 = vadd.f32 %v6701, %v6893
    %v6895 = vpop.f32.mrb[0].mxu0
    %v6896 = vadd.f32 %v6703, %v6895
    %6897 = vmatprep.mubr.bf16.mxu0 %v2171
    %6898 = vmatmul.mubr.bf16.gmra.mrb[0].mxu0 %v2170
    %v6899 = vpop.f32.mrb[0].mxu0
    %v6900 = vadd.f32 %v6707, %v6899
    %v6901 = vpop.f32.mrb[0].mxu0
    %v6902 = vadd.f32 %v6709, %v6901
    %v6903 = vpop.f32.mrb[0].mxu0
    %v6904 = vadd.f32 %v6711, %v6903
    %v6905 = vpop.f32.mrb[0].mxu0
    %v6906 = vadd.f32 %v6713, %v6905
    %6907 = vmatprep.mubr.bf16.mxu0 %v2191
    %6908 = vmatmul.mubr.bf16.gmra.mrb[0].mxu0 %v2190
    %v6909 = vpop.f32.mrb[0].mxu0
    %v6910 = vadd.f32 %v6717, %v6909
    %v6911 = vpop.f32.mrb[0].mxu0
    %v6912 = vadd.f32 %v6719, %v6911
    %v6913 = vpop.f32.mrb[0].mxu0
    %v6914 = vadd.f32 %v6721, %v6913
    %v6915 = vpop.f32.mrb[0].mxu0
    %v6916 = vadd.f32 %v6723, %v6915
    %6917 = vmatprep.mubr.bf16.mxu0 %v2211
    %6918 = vmatmul.mubr.bf16.gmra.mrb[0].mxu0 %v2210
    %v6919 = vpop.f32.mrb[0].mxu0
    %v6920 = vadd.f32 %v6727, %v6919
    %v6921 = vpop.f32.mrb[0].mxu0
    %v6922 = vadd.f32 %v6729, %v6921
    %v6923 = vpop.f32.mrb[0].mxu0
    %v6924 = vadd.f32 %v6731, %v6923
    %v6925 = vpop.f32.mrb[0].mxu0
    %v6926 = vadd.f32 %v6733, %v6925
    %6927 = vmatprep.mubr.bf16.mxu0 %v2231
    %6928 = vmatmul.mubr.bf16.gmra.mrb[0].mxu0 %v2230
    %v6929 = vpop.f32.mrb[0].mxu0
    %v6930 = vadd.f32 %v6737, %v6929
    %v6931 = vpop.f32.mrb[0].mxu0
    %v6932 = vadd.f32 %v6739, %v6931
    %v6933 = vpop.f32.mrb[0].mxu0
    %v6934 = vadd.f32 %v6741, %v6933
    %v6935 = vpop.f32.mrb[0].mxu0
    %v6936 = vadd.f32 %v6743, %v6935
    %6937 = vmatprep.mubr.bf16.mxu0 %v2251
    %6938 = vmatmul.mubr.bf16.gmra.mrb[0].mxu0 %v2250
    %v6939 = vpop.f32.mrb[0].mxu0
    %v6940 = vadd.f32 %v6747, %v6939
    %v6941 = vpop.f32.mrb[0].mxu0
    %v6942 = vadd.f32 %v6749, %v6941
    %v6943 = vpop.f32.mrb[0].mxu0
    %v6944 = vadd.f32 %v6751, %v6943
    %v6945 = vpop.f32.mrb[0].mxu0
    %v6946 = vadd.f32 %v6753, %v6945
    %6947 = vmatprep.mubr.bf16.mxu0 %v2271
    %6948 = vmatmul.mubr.bf16.gmra.mrb[0].mxu0 %v2270
    %v6949 = vpop.f32.mrb[0].mxu0
    %v6950 = vadd.f32 %v6757, %v6949
    %v6951 = vpop.f32.mrb[0].mxu0
    %v6952 = vadd.f32 %v6759, %v6951
    %v6953 = vpop.f32.mrb[0].mxu0
    %v6954 = vadd.f32 %v6761, %v6953
    %v6955 = vpop.f32.mrb[0].mxu0
    %v6956 = vadd.f32 %v6763, %v6955
    %6957 = vdwg.mxu0
    %6958 = vmatprep.subr.bf16.mxu0 %v4905
    %6959 = vmatpush1.bf16.msra.mxu0 %v4904
    %6960 = vmatprep.subr.bf16.mxu0 %v4909
    %6961 = vmatpush1.bf16.msra.mxu0 %v4908
    %6962 = vmatprep.subr.bf16.mxu0 %v4913
    %6963 = vmatpush1.bf16.msra.mxu0 %v4912
    %6964 = vmatprep.subr.bf16.mxu0 %v4917
    %6965 = vmatpush1.bf16.msra.mxu0 %v4916
    %6966 = vmatprep.subr.bf16.mxu0 %v4921
    %6967 = vmatpush1.bf16.msra.mxu0 %v4920
    %6968 = vmatprep.subr.bf16.mxu0 %v4925
    %6969 = vmatpush1.bf16.msra.mxu0 %v4924
    %6970 = vmatprep.subr.bf16.mxu0 %v4929
    %6971 = vmatpush1.bf16.msra.mxu0 %v4928
    %6972 = vmatprep.subr.bf16.mxu0 %v4933
    %6973 = vmatpush1.bf16.msra.mxu0 %v4932
    %6974 = vmatprep.subr.bf16.mxu0 %v4937
    %6975 = vmatpush1.bf16.msra.mxu0 %v4936
    %6976 = vmatprep.subr.bf16.mxu0 %v4941
    %6977 = vmatpush1.bf16.msra.mxu0 %v4940
    %6978 = vmatprep.subr.bf16.mxu0 %v4945
    %6979 = vmatpush1.bf16.msra.mxu0 %v4944
    %6980 = vmatprep.subr.bf16.mxu0 %v4949
    %6981 = vmatpush1.bf16.msra.mxu0 %v4948
    %6982 = vmatprep.subr.bf16.mxu0 %v4953
    %6983 = vmatpush1.bf16.msra.mxu0 %v4952
    %6984 = vmatprep.subr.bf16.mxu0 %v4957
    %6985 = vmatpush1.bf16.msra.mxu0 %v4956
    %6986 = vmatprep.subr.bf16.mxu0 %v4961
    %6987 = vmatpush1.bf16.msra.mxu0 %v4960
    %6988 = vmatprep.subr.bf16.mxu0 %v4965
    %6989 = vmatpush1.bf16.msra.mxu0 %v4964
    %6990 = vmatprep.mubr.bf16.mxu0 %v1973
    %6991 = vmatmul.mubr.bf16.gmra.mrb[0].mxu0 %v1972
    %v6992 = vpop.f32.mrb[0].mxu0
    %v6993 = vadd.f32 %v6800, %v6992
    %v6994 = vpop.f32.mrb[0].mxu0
    %v6995 = vadd.f32 %v6802, %v6994
    %v6996 = vpop.f32.mrb[0].mxu0
    %v6997 = vadd.f32 %v6804, %v6996
    %v6998 = vpop.f32.mrb[0].mxu0
    %v6999 = vadd.f32 %v6806, %v6998
    %7000 = vmatprep.mubr.bf16.mxu0 %v1993
    %7001 = vmatmul.mubr.bf16.gmra.mrb[0].mxu0 %v1992
    %v7002 = vpop.f32.mrb[0].mxu0
    %v7003 = vadd.f32 %v6810, %v7002
    %v7004 = vpop.f32.mrb[0].mxu0
    %v7005 = vadd.f32 %v6812, %v7004
    %v7006 = vpop.f32.mrb[0].mxu0
    %v7007 = vadd.f32 %v6814, %v7006
    %v7008 = vpop.f32.mrb[0].mxu0
    %v7009 = vadd.f32 %v6816, %v7008
    %7010 = vmatprep.mubr.bf16.mxu0 %v2013
    %7011 = vmatmul.mubr.bf16.gmra.mrb[0].mxu0 %v2012
    %v7012 = vpop.f32.mrb[0].mxu0
    %v7013 = vadd.f32 %v6820, %v7012
    %v7014 = vpop.f32.mrb[0].mxu0
    %v7015 = vadd.f32 %v6822, %v7014
    %v7016 = vpop.f32.mrb[0].mxu0
    %v7017 = vadd.f32 %v6824, %v7016
    %v7018 = vpop.f32.mrb[0].mxu0
    %v7019 = vadd.f32 %v6826, %v7018
    %7020 = vmatprep.mubr.bf16.mxu0 %v2033
    %7021 = vmatmul.mubr.bf16.gmra.mrb[0].mxu0 %v2032
    %v7022 = vpop.f32.mrb[0].mxu0
    %v7023 = vadd.f32 %v6830, %v7022
    %v7024 = vpop.f32.mrb[0].mxu0
    %v7025 = vadd.f32 %v6832, %v7024
    %v7026 = vpop.f32.mrb[0].mxu0
    %v7027 = vadd.f32 %v6834, %v7026
    %v7028 = vpop.f32.mrb[0].mxu0
    %v7029 = vadd.f32 %v6836, %v7028
    %7030 = vmatprep.mubr.bf16.mxu0 %v2053
    %7031 = vmatmul.mubr.bf16.gmra.mrb[0].mxu0 %v2052
    %v7032 = vpop.f32.mrb[0].mxu0
    %v7033 = vadd.f32 %v6840, %v7032
    %v7034 = vpop.f32.mrb[0].mxu0
    %v7035 = vadd.f32 %v6842, %v7034
    %v7036 = vpop.f32.mrb[0].mxu0
    %v7037 = vadd.f32 %v6844, %v7036
    %v7038 = vpop.f32.mrb[0].mxu0
    %v7039 = vadd.f32 %v6846, %v7038
    %7040 = vmatprep.mubr.bf16.mxu0 %v2073
    %7041 = vmatmul.mubr.bf16.gmra.mrb[0].mxu0 %v2072
    %v7042 = vpop.f32.mrb[0].mxu0
    %v7043 = vadd.f32 %v6850, %v7042
    %v7044 = vpop.f32.mrb[0].mxu0
    %v7045 = vadd.f32 %v6852, %v7044
    %v7046 = vpop.f32.mrb[0].mxu0
    %v7047 = vadd.f32 %v6854, %v7046
    %v7048 = vpop.f32.mrb[0].mxu0
    %v7049 = vadd.f32 %v6856, %v7048
    %7050 = vmatprep.mubr.bf16.mxu0 %v2093
    %7051 = vmatmul.mubr.bf16.gmra.mrb[0].mxu0 %v2092
    %v7052 = vpop.f32.mrb[0].mxu0
    %v7053 = vadd.f32 %v6860, %v7052
    %v7054 = vpop.f32.mrb[0].mxu0
    %v7055 = vadd.f32 %v6862, %v7054
    %v7056 = vpop.f32.mrb[0].mxu0
    %v7057 = vadd.f32 %v6864, %v7056
    %v7058 = vpop.f32.mrb[0].mxu0
    %v7059 = vadd.f32 %v6866, %v7058
    %7060 = vmatprep.mubr.bf16.mxu0 %v2113
    %7061 = vmatmul.mubr.bf16.gmra.mrb[0].mxu0 %v2112
    %v7062 = vpop.f32.mrb[0].mxu0
    %v7063 = vadd.f32 %v6870, %v7062
    %v7064 = vpop.f32.mrb[0].mxu0
    %v7065 = vadd.f32 %v6872, %v7064
    %v7066 = vpop.f32.mrb[0].mxu0
    %v7067 = vadd.f32 %v6874, %v7066
    %v7068 = vpop.f32.mrb[0].mxu0
    %v7069 = vadd.f32 %v6876, %v7068
    %7070 = vmatprep.mubr.bf16.mxu0 %v2133
    %7071 = vmatmul.mubr.bf16.gmra.mrb[0].mxu0 %v2132
    %v7072 = vpop.f32.mrb[0].mxu0
    %v7073 = vadd.f32 %v6880, %v7072
    %v7074 = vpop.f32.mrb[0].mxu0
    %v7075 = vadd.f32 %v6882, %v7074
    %v7076 = vpop.f32.mrb[0].mxu0
    %v7077 = vadd.f32 %v6884, %v7076
    %v7078 = vpop.f32.mrb[0].mxu0
    %v7079 = vadd.f32 %v6886, %v7078
    %7080 = vmatprep.mubr.bf16.mxu0 %v2153
    %7081 = vmatmul.mubr.bf16.gmra.mrb[0].mxu0 %v2152
    %v7082 = vpop.f32.mrb[0].mxu0
    %v7083 = vadd.f32 %v6890, %v7082
    %v7084 = vpop.f32.mrb[0].mxu0
    %v7085 = vadd.f32 %v6892, %v7084
    %v7086 = vpop.f32.mrb[0].mxu0
    %v7087 = vadd.f32 %v6894, %v7086
    %v7088 = vpop.f32.mrb[0].mxu0
    %v7089 = vadd.f32 %v6896, %v7088
    %7090 = vmatprep.mubr.bf16.mxu0 %v2173
    %7091 = vmatmul.mubr.bf16.gmra.mrb[0].mxu0 %v2172
    %v7092 = vpop.f32.mrb[0].mxu0
    %v7093 = vadd.f32 %v6900, %v7092
    %v7094 = vpop.f32.mrb[0].mxu0
    %v7095 = vadd.f32 %v6902, %v7094
    %v7096 = vpop.f32.mrb[0].mxu0
    %v7097 = vadd.f32 %v6904, %v7096
    %v7098 = vpop.f32.mrb[0].mxu0
    %v7099 = vadd.f32 %v6906, %v7098
    %7100 = vmatprep.mubr.bf16.mxu0 %v2193
    %7101 = vmatmul.mubr.bf16.gmra.mrb[0].mxu0 %v2192
    %v7102 = vpop.f32.mrb[0].mxu0
    %v7103 = vadd.f32 %v6910, %v7102
    %v7104 = vpop.f32.mrb[0].mxu0
    %v7105 = vadd.f32 %v6912, %v7104
    %v7106 = vpop.f32.mrb[0].mxu0
    %v7107 = vadd.f32 %v6914, %v7106
    %v7108 = vpop.f32.mrb[0].mxu0
    %v7109 = vadd.f32 %v6916, %v7108
    %7110 = vmatprep.mubr.bf16.mxu0 %v2213
    %7111 = vmatmul.mubr.bf16.gmra.mrb[0].mxu0 %v2212
    %v7112 = vpop.f32.mrb[0].mxu0
    %v7113 = vadd.f32 %v6920, %v7112
    %v7114 = vpop.f32.mrb[0].mxu0
    %v7115 = vadd.f32 %v6922, %v7114
    %v7116 = vpop.f32.mrb[0].mxu0
    %v7117 = vadd.f32 %v6924, %v7116
    %v7118 = vpop.f32.mrb[0].mxu0
    %v7119 = vadd.f32 %v6926, %v7118
    %7120 = vmatprep.mubr.bf16.mxu0 %v2233
    %7121 = vmatmul.mubr.bf16.gmra.mrb[0].mxu0 %v2232
    %v7122 = vpop.f32.mrb[0].mxu0
    %v7123 = vadd.f32 %v6930, %v7122
    %v7124 = vpop.f32.mrb[0].mxu0
    %v7125 = vadd.f32 %v6932, %v7124
    %v7126 = vpop.f32.mrb[0].mxu0
    %v7127 = vadd.f32 %v6934, %v7126
    %v7128 = vpop.f32.mrb[0].mxu0
    %v7129 = vadd.f32 %v6936, %v7128
    %7130 = vmatprep.mubr.bf16.mxu0 %v2253
    %7131 = vmatmul.mubr.bf16.gmra.mrb[0].mxu0 %v2252
    %v7132 = vpop.f32.mrb[0].mxu0
    %v7133 = vadd.f32 %v6940, %v7132
    %v7134 = vpop.f32.mrb[0].mxu0
    %v7135 = vadd.f32 %v6942, %v7134
    %v7136 = vpop.f32.mrb[0].mxu0
    %v7137 = vadd.f32 %v6944, %v7136
    %v7138 = vpop.f32.mrb[0].mxu0
    %v7139 = vadd.f32 %v6946, %v7138
    %7140 = vmatprep.mubr.bf16.mxu0 %v2273
    %7141 = vmatmul.mubr.bf16.gmra.mrb[0].mxu0 %v2272
    %v7142 = vpop.f32.mrb[0].mxu0
    %v7143 = vadd.f32 %v6950, %v7142
    %v7144 = vpop.f32.mrb[0].mxu0
    %v7145 = vadd.f32 %v6952, %v7144
    %v7146 = vpop.f32.mrb[0].mxu0
    %v7147 = vadd.f32 %v6954, %v7146
    %v7148 = vpop.f32.mrb[0].mxu0
    %v7149 = vadd.f32 %v6956, %v7148
    %7150 = vdwg.mxu0
    %7151 = vmatprep.subr.bf16.mxu0 %v4969
    %7152 = vmatpush1.bf16.msra.mxu0 %v4968
    %7153 = vmatprep.subr.bf16.mxu0 %v4973
    %7154 = vmatpush1.bf16.msra.mxu0 %v4972
    %7155 = vmatprep.subr.bf16.mxu0 %v4977
    %7156 = vmatpush1.bf16.msra.mxu0 %v4976
    %7157 = vmatprep.subr.bf16.mxu0 %v4981
    %7158 = vmatpush1.bf16.msra.mxu0 %v4980
    %7159 = vmatprep.subr.bf16.mxu0 %v4985
    %7160 = vmatpush1.bf16.msra.mxu0 %v4984
    %7161 = vmatprep.subr.bf16.mxu0 %v4989
    %7162 = vmatpush1.bf16.msra.mxu0 %v4988
    %7163 = vmatprep.subr.bf16.mxu0 %v4993
    %7164 = vmatpush1.bf16.msra.mxu0 %v4992
    %7165 = vmatprep.subr.bf16.mxu0 %v4997
    %7166 = vmatpush1.bf16.msra.mxu0 %v4996
    %7167 = vmatprep.subr.bf16.mxu0 %v5001
    %7168 = vmatpush1.bf16.msra.mxu0 %v5000
    %7169 = vmatprep.subr.bf16.mxu0 %v5005
    %7170 = vmatpush1.bf16.msra.mxu0 %v5004
    %7171 = vmatprep.subr.bf16.mxu0 %v5009
    %7172 = vmatpush1.bf16.msra.mxu0 %v5008
    %7173 = vmatprep.subr.bf16.mxu0 %v5013
    %7174 = vmatpush1.bf16.msra.mxu0 %v5012
    %7175 = vmatprep.subr.bf16.mxu0 %v5017
    %7176 = vmatpush1.bf16.msra.mxu0 %v5016
    %7177 = vmatprep.subr.bf16.mxu0 %v5021
    %7178 = vmatpush1.bf16.msra.mxu0 %v5020
    %7179 = vmatprep.subr.bf16.mxu0 %v5025
    %7180 = vmatpush1.bf16.msra.mxu0 %v5024
    %7181 = vmatprep.subr.bf16.mxu0 %v5029
    %7182 = vmatpush1.bf16.msra.mxu0 %v5028
    %7183 = vmatprep.mubr.bf16.mxu0 %v1975
    %7184 = vmatmul.mubr.bf16.gmra.mrb[0].mxu0 %v1974
    %v7185 = vpop.f32.mrb[0].mxu0
    %v7186 = vadd.f32 %v6993, %v7185
    %v7187 = vpop.f32.mrb[0].mxu0
    %v7188 = vadd.f32 %v6995, %v7187
    %v7189 = vpop.f32.mrb[0].mxu0
    %v7190 = vadd.f32 %v6997, %v7189
    %v7191 = vpop.f32.mrb[0].mxu0
    %v7192 = vadd.f32 %v6999, %v7191
    %7193 = vmatprep.mubr.bf16.mxu0 %v1995
    %7194 = vmatmul.mubr.bf16.gmra.mrb[0].mxu0 %v1994
    %v7195 = vpop.f32.mrb[0].mxu0
    %v7196 = vadd.f32 %v7003, %v7195
    %v7197 = vpop.f32.mrb[0].mxu0
    %v7198 = vadd.f32 %v7005, %v7197
    %v7199 = vpop.f32.mrb[0].mxu0
    %v7200 = vadd.f32 %v7007, %v7199
    %v7201 = vpop.f32.mrb[0].mxu0
    %v7202 = vadd.f32 %v7009, %v7201
    %7203 = vmatprep.mubr.bf16.mxu0 %v2015
    %7204 = vmatmul.mubr.bf16.gmra.mrb[0].mxu0 %v2014
    %v7205 = vpop.f32.mrb[0].mxu0
    %v7206 = vadd.f32 %v7013, %v7205
    %v7207 = vpop.f32.mrb[0].mxu0
    %v7208 = vadd.f32 %v7015, %v7207
    %v7209 = vpop.f32.mrb[0].mxu0
    %v7210 = vadd.f32 %v7017, %v7209
    %v7211 = vpop.f32.mrb[0].mxu0
    %v7212 = vadd.f32 %v7019, %v7211
    %7213 = vmatprep.mubr.bf16.mxu0 %v2035
    %7214 = vmatmul.mubr.bf16.gmra.mrb[0].mxu0 %v2034
    %v7215 = vpop.f32.mrb[0].mxu0
    %v7216 = vadd.f32 %v7023, %v7215
    %v7217 = vpop.f32.mrb[0].mxu0
    %v7218 = vadd.f32 %v7025, %v7217
    %v7219 = vpop.f32.mrb[0].mxu0
    %v7220 = vadd.f32 %v7027, %v7219
    %v7221 = vpop.f32.mrb[0].mxu0
    %v7222 = vadd.f32 %v7029, %v7221
    %7223 = vmatprep.mubr.bf16.mxu0 %v2055
    %7224 = vmatmul.mubr.bf16.gmra.mrb[0].mxu0 %v2054
    %v7225 = vpop.f32.mrb[0].mxu0
    %v7226 = vadd.f32 %v7033, %v7225
    %v7227 = vpop.f32.mrb[0].mxu0
    %v7228 = vadd.f32 %v7035, %v7227
    %v7229 = vpop.f32.mrb[0].mxu0
    %v7230 = vadd.f32 %v7037, %v7229
    %v7231 = vpop.f32.mrb[0].mxu0
    %v7232 = vadd.f32 %v7039, %v7231
    %7233 = vmatprep.mubr.bf16.mxu0 %v2075
    %7234 = vmatmul.mubr.bf16.gmra.mrb[0].mxu0 %v2074
    %v7235 = vpop.f32.mrb[0].mxu0
    %v7236 = vadd.f32 %v7043, %v7235
    %v7237 = vpop.f32.mrb[0].mxu0
    %v7238 = vadd.f32 %v7045, %v7237
    %v7239 = vpop.f32.mrb[0].mxu0
    %v7240 = vadd.f32 %v7047, %v7239
    %v7241 = vpop.f32.mrb[0].mxu0
    %v7242 = vadd.f32 %v7049, %v7241
    %7243 = vmatprep.mubr.bf16.mxu0 %v2095
    %7244 = vmatmul.mubr.bf16.gmra.mrb[0].mxu0 %v2094
    %v7245 = vpop.f32.mrb[0].mxu0
    %v7246 = vadd.f32 %v7053, %v7245
    %v7247 = vpop.f32.mrb[0].mxu0
    %v7248 = vadd.f32 %v7055, %v7247
    %v7249 = vpop.f32.mrb[0].mxu0
    %v7250 = vadd.f32 %v7057, %v7249
    %v7251 = vpop.f32.mrb[0].mxu0
    %v7252 = vadd.f32 %v7059, %v7251
    %7253 = vmatprep.mubr.bf16.mxu0 %v2115
    %7254 = vmatmul.mubr.bf16.gmra.mrb[0].mxu0 %v2114
    %v7255 = vpop.f32.mrb[0].mxu0
    %v7256 = vadd.f32 %v7063, %v7255
    %v7257 = vpop.f32.mrb[0].mxu0
    %v7258 = vadd.f32 %v7065, %v7257
    %v7259 = vpop.f32.mrb[0].mxu0
    %v7260 = vadd.f32 %v7067, %v7259
    %v7261 = vpop.f32.mrb[0].mxu0
    %v7262 = vadd.f32 %v7069, %v7261
    %7263 = vmatprep.mubr.bf16.mxu0 %v2135
    %7264 = vmatmul.mubr.bf16.gmra.mrb[0].mxu0 %v2134
    %v7265 = vpop.f32.mrb[0].mxu0
    %v7266 = vadd.f32 %v7073, %v7265
    %v7267 = vpop.f32.mrb[0].mxu0
    %v7268 = vadd.f32 %v7075, %v7267
    %v7269 = vpop.f32.mrb[0].mxu0
    %v7270 = vadd.f32 %v7077, %v7269
    %v7271 = vpop.f32.mrb[0].mxu0
    %v7272 = vadd.f32 %v7079, %v7271
    %7273 = vmatprep.mubr.bf16.mxu0 %v2155
    %7274 = vmatmul.mubr.bf16.gmra.mrb[0].mxu0 %v2154
    %v7275 = vpop.f32.mrb[0].mxu0
    %v7276 = vadd.f32 %v7083, %v7275
    %v7277 = vpop.f32.mrb[0].mxu0
    %v7278 = vadd.f32 %v7085, %v7277
    %v7279 = vpop.f32.mrb[0].mxu0
    %v7280 = vadd.f32 %v7087, %v7279
    %v7281 = vpop.f32.mrb[0].mxu0
    %v7282 = vadd.f32 %v7089, %v7281
    %7283 = vmatprep.mubr.bf16.mxu0 %v2175
    %7284 = vmatmul.mubr.bf16.gmra.mrb[0].mxu0 %v2174
    %v7285 = vpop.f32.mrb[0].mxu0
    %v7286 = vadd.f32 %v7093, %v7285
    %v7287 = vpop.f32.mrb[0].mxu0
    %v7288 = vadd.f32 %v7095, %v7287
    %v7289 = vpop.f32.mrb[0].mxu0
    %v7290 = vadd.f32 %v7097, %v7289
    %v7291 = vpop.f32.mrb[0].mxu0
    %v7292 = vadd.f32 %v7099, %v7291
    %7293 = vmatprep.mubr.bf16.mxu0 %v2195
    %7294 = vmatmul.mubr.bf16.gmra.mrb[0].mxu0 %v2194
    %v7295 = vpop.f32.mrb[0].mxu0
    %v7296 = vadd.f32 %v7103, %v7295
    %v7297 = vpop.f32.mrb[0].mxu0
    %v7298 = vadd.f32 %v7105, %v7297
    %v7299 = vpop.f32.mrb[0].mxu0
    %v7300 = vadd.f32 %v7107, %v7299
    %v7301 = vpop.f32.mrb[0].mxu0
    %v7302 = vadd.f32 %v7109, %v7301
    %7303 = vmatprep.mubr.bf16.mxu0 %v2215
    %7304 = vmatmul.mubr.bf16.gmra.mrb[0].mxu0 %v2214
    %v7305 = vpop.f32.mrb[0].mxu0
    %v7306 = vadd.f32 %v7113, %v7305
    %v7307 = vpop.f32.mrb[0].mxu0
    %v7308 = vadd.f32 %v7115, %v7307
    %v7309 = vpop.f32.mrb[0].mxu0
    %v7310 = vadd.f32 %v7117, %v7309
    %v7311 = vpop.f32.mrb[0].mxu0
    %v7312 = vadd.f32 %v7119, %v7311
    %7313 = vmatprep.mubr.bf16.mxu0 %v2235
    %7314 = vmatmul.mubr.bf16.gmra.mrb[0].mxu0 %v2234
    %v7315 = vpop.f32.mrb[0].mxu0
    %v7316 = vadd.f32 %v7123, %v7315
    %v7317 = vpop.f32.mrb[0].mxu0
    %v7318 = vadd.f32 %v7125, %v7317
    %v7319 = vpop.f32.mrb[0].mxu0
    %v7320 = vadd.f32 %v7127, %v7319
    %v7321 = vpop.f32.mrb[0].mxu0
    %v7322 = vadd.f32 %v7129, %v7321
    %7323 = vmatprep.mubr.bf16.mxu0 %v2255
    %7324 = vmatmul.mubr.bf16.gmra.mrb[0].mxu0 %v2254
    %v7325 = vpop.f32.mrb[0].mxu0
    %v7326 = vadd.f32 %v7133, %v7325
    %v7327 = vpop.f32.mrb[0].mxu0
    %v7328 = vadd.f32 %v7135, %v7327
    %v7329 = vpop.f32.mrb[0].mxu0
    %v7330 = vadd.f32 %v7137, %v7329
    %v7331 = vpop.f32.mrb[0].mxu0
    %v7332 = vadd.f32 %v7139, %v7331
    %7333 = vmatprep.mubr.bf16.mxu0 %v2275
    %7334 = vmatmul.mubr.bf16.gmra.mrb[0].mxu0 %v2274
    %v7335 = vpop.f32.mrb[0].mxu0
    %v7336 = vadd.f32 %v7143, %v7335
    %v7337 = vpop.f32.mrb[0].mxu0
    %v7338 = vadd.f32 %v7145, %v7337
    %v7339 = vpop.f32.mrb[0].mxu0
    %v7340 = vadd.f32 %v7147, %v7339
    %v7341 = vpop.f32.mrb[0].mxu0
    %v7342 = vadd.f32 %v7149, %v7341
    %7343 = vdwg.mxu0
    %7344 = vmatprep.subr.bf16.mxu0 %v5033
    %7345 = vmatpush1.bf16.msra.mxu0 %v5032
    %7346 = vmatprep.subr.bf16.mxu0 %v5037
    %7347 = vmatpush1.bf16.msra.mxu0 %v5036
    %7348 = vmatprep.subr.bf16.mxu0 %v5041
    %7349 = vmatpush1.bf16.msra.mxu0 %v5040
    %7350 = vmatprep.subr.bf16.mxu0 %v5045
    %7351 = vmatpush1.bf16.msra.mxu0 %v5044
    %7352 = vmatprep.subr.bf16.mxu0 %v5049
    %7353 = vmatpush1.bf16.msra.mxu0 %v5048
    %7354 = vmatprep.subr.bf16.mxu0 %v5053
    %7355 = vmatpush1.bf16.msra.mxu0 %v5052
    %7356 = vmatprep.subr.bf16.mxu0 %v5057
    %7357 = vmatpush1.bf16.msra.mxu0 %v5056
    %7358 = vmatprep.subr.bf16.mxu0 %v5061
    %7359 = vmatpush1.bf16.msra.mxu0 %v5060
    %7360 = vmatprep.subr.bf16.mxu0 %v5065
    %7361 = vmatpush1.bf16.msra.mxu0 %v5064
    %7362 = vmatprep.subr.bf16.mxu0 %v5069
    %7363 = vmatpush1.bf16.msra.mxu0 %v5068
    %7364 = vmatprep.subr.bf16.mxu0 %v5073
    %7365 = vmatpush1.bf16.msra.mxu0 %v5072
    %7366 = vmatprep.subr.bf16.mxu0 %v5077
    %7367 = vmatpush1.bf16.msra.mxu0 %v5076
    %7368 = vmatprep.subr.bf16.mxu0 %v5081
    %7369 = vmatpush1.bf16.msra.mxu0 %v5080
    %7370 = vmatprep.subr.bf16.mxu0 %v5085
    %7371 = vmatpush1.bf16.msra.mxu0 %v5084
    %7372 = vmatprep.subr.bf16.mxu0 %v5089
    %7373 = vmatpush1.bf16.msra.mxu0 %v5088
    %7374 = vmatprep.subr.bf16.mxu0 %v5093
    %7375 = vmatpush1.bf16.msra.mxu0 %v5092
    %7376 = vmatprep.mubr.bf16.mxu0 %v1977
    %7377 = vmatmul.mubr.bf16.gmra.mrb[0].mxu0 %v1976
    %v7378 = vpop.f32.mrb[0].mxu0
    %v7379 = vadd.f32 %v7186, %v7378
    %v7380 = vpop.f32.mrb[0].mxu0
    %v7381 = vadd.f32 %v7188, %v7380
    %v7382 = vpop.f32.mrb[0].mxu0
    %v7383 = vadd.f32 %v7190, %v7382
    %v7384 = vpop.f32.mrb[0].mxu0
    %v7385 = vadd.f32 %v7192, %v7384
    %7386 = vmatprep.mubr.bf16.mxu0 %v1997
    %7387 = vmatmul.mubr.bf16.gmra.mrb[0].mxu0 %v1996
    %v7388 = vpop.f32.mrb[0].mxu0
    %v7389 = vadd.f32 %v7196, %v7388
    %v7390 = vpop.f32.mrb[0].mxu0
    %v7391 = vadd.f32 %v7198, %v7390
    %v7392 = vpop.f32.mrb[0].mxu0
    %v7393 = vadd.f32 %v7200, %v7392
    %v7394 = vpop.f32.mrb[0].mxu0
    %v7395 = vadd.f32 %v7202, %v7394
    %7396 = vmatprep.mubr.bf16.mxu0 %v2017
    %7397 = vmatmul.mubr.bf16.gmra.mrb[0].mxu0 %v2016
    %v7398 = vpop.f32.mrb[0].mxu0
    %v7399 = vadd.f32 %v7206, %v7398
    %v7400 = vpop.f32.mrb[0].mxu0
    %v7401 = vadd.f32 %v7208, %v7400
    %v7402 = vpop.f32.mrb[0].mxu0
    %v7403 = vadd.f32 %v7210, %v7402
    %v7404 = vpop.f32.mrb[0].mxu0
    %v7405 = vadd.f32 %v7212, %v7404
    %7406 = vmatprep.mubr.bf16.mxu0 %v2037
    %7407 = vmatmul.mubr.bf16.gmra.mrb[0].mxu0 %v2036
    %v7408 = vpop.f32.mrb[0].mxu0
    %v7409 = vadd.f32 %v7216, %v7408
    %v7410 = vpop.f32.mrb[0].mxu0
    %v7411 = vadd.f32 %v7218, %v7410
    %v7412 = vpop.f32.mrb[0].mxu0
    %v7413 = vadd.f32 %v7220, %v7412
    %v7414 = vpop.f32.mrb[0].mxu0
    %v7415 = vadd.f32 %v7222, %v7414
    %7416 = vmatprep.mubr.bf16.mxu0 %v2057
    %7417 = vmatmul.mubr.bf16.gmra.mrb[0].mxu0 %v2056
    %v7418 = vpop.f32.mrb[0].mxu0
    %v7419 = vadd.f32 %v7226, %v7418
    %v7420 = vpop.f32.mrb[0].mxu0
    %v7421 = vadd.f32 %v7228, %v7420
    %v7422 = vpop.f32.mrb[0].mxu0
    %v7423 = vadd.f32 %v7230, %v7422
    %v7424 = vpop.f32.mrb[0].mxu0
    %v7425 = vadd.f32 %v7232, %v7424
    %7426 = vmatprep.mubr.bf16.mxu0 %v2077
    %7427 = vmatmul.mubr.bf16.gmra.mrb[0].mxu0 %v2076
    %v7428 = vpop.f32.mrb[0].mxu0
    %v7429 = vadd.f32 %v7236, %v7428
    %v7430 = vpop.f32.mrb[0].mxu0
    %v7431 = vadd.f32 %v7238, %v7430
    %v7432 = vpop.f32.mrb[0].mxu0
    %v7433 = vadd.f32 %v7240, %v7432
    %v7434 = vpop.f32.mrb[0].mxu0
    %v7435 = vadd.f32 %v7242, %v7434
    %7436 = vmatprep.mubr.bf16.mxu0 %v2097
    %7437 = vmatmul.mubr.bf16.gmra.mrb[0].mxu0 %v2096
    %v7438 = vpop.f32.mrb[0].mxu0
    %v7439 = vadd.f32 %v7246, %v7438
    %v7440 = vpop.f32.mrb[0].mxu0
    %v7441 = vadd.f32 %v7248, %v7440
    %v7442 = vpop.f32.mrb[0].mxu0
    %v7443 = vadd.f32 %v7250, %v7442
    %v7444 = vpop.f32.mrb[0].mxu0
    %v7445 = vadd.f32 %v7252, %v7444
    %7446 = vmatprep.mubr.bf16.mxu0 %v2117
    %7447 = vmatmul.mubr.bf16.gmra.mrb[0].mxu0 %v2116
    %v7448 = vpop.f32.mrb[0].mxu0
    %v7449 = vadd.f32 %v7256, %v7448
    %v7450 = vpop.f32.mrb[0].mxu0
    %v7451 = vadd.f32 %v7258, %v7450
    %v7452 = vpop.f32.mrb[0].mxu0
    %v7453 = vadd.f32 %v7260, %v7452
    %v7454 = vpop.f32.mrb[0].mxu0
    %v7455 = vadd.f32 %v7262, %v7454
    %7456 = vmatprep.mubr.bf16.mxu0 %v2137
    %7457 = vmatmul.mubr.bf16.gmra.mrb[0].mxu0 %v2136
    %v7458 = vpop.f32.mrb[0].mxu0
    %v7459 = vadd.f32 %v7266, %v7458
    %v7460 = vpop.f32.mrb[0].mxu0
    %v7461 = vadd.f32 %v7268, %v7460
    %v7462 = vpop.f32.mrb[0].mxu0
    %v7463 = vadd.f32 %v7270, %v7462
    %v7464 = vpop.f32.mrb[0].mxu0
    %v7465 = vadd.f32 %v7272, %v7464
    %7466 = vmatprep.mubr.bf16.mxu0 %v2157
    %7467 = vmatmul.mubr.bf16.gmra.mrb[0].mxu0 %v2156
    %v7468 = vpop.f32.mrb[0].mxu0
    %v7469 = vadd.f32 %v7276, %v7468
    %v7470 = vpop.f32.mrb[0].mxu0
    %v7471 = vadd.f32 %v7278, %v7470
    %v7472 = vpop.f32.mrb[0].mxu0
    %v7473 = vadd.f32 %v7280, %v7472
    %v7474 = vpop.f32.mrb[0].mxu0
    %v7475 = vadd.f32 %v7282, %v7474
    %7476 = vmatprep.mubr.bf16.mxu0 %v2177
    %7477 = vmatmul.mubr.bf16.gmra.mrb[0].mxu0 %v2176
    %v7478 = vpop.f32.mrb[0].mxu0
    %v7479 = vadd.f32 %v7286, %v7478
    %v7480 = vpop.f32.mrb[0].mxu0
    %v7481 = vadd.f32 %v7288, %v7480
    %v7482 = vpop.f32.mrb[0].mxu0
    %v7483 = vadd.f32 %v7290, %v7482
    %v7484 = vpop.f32.mrb[0].mxu0
    %v7485 = vadd.f32 %v7292, %v7484
    %7486 = vmatprep.mubr.bf16.mxu0 %v2197
    %7487 = vmatmul.mubr.bf16.gmra.mrb[0].mxu0 %v2196
    %v7488 = vpop.f32.mrb[0].mxu0
    %v7489 = vadd.f32 %v7296, %v7488
    %v7490 = vpop.f32.mrb[0].mxu0
    %v7491 = vadd.f32 %v7298, %v7490
    %v7492 = vpop.f32.mrb[0].mxu0
    %v7493 = vadd.f32 %v7300, %v7492
    %v7494 = vpop.f32.mrb[0].mxu0
    %v7495 = vadd.f32 %v7302, %v7494
    %7496 = vmatprep.mubr.bf16.mxu0 %v2217
    %7497 = vmatmul.mubr.bf16.gmra.mrb[0].mxu0 %v2216
    %v7498 = vpop.f32.mrb[0].mxu0
    %v7499 = vadd.f32 %v7306, %v7498
    %v7500 = vpop.f32.mrb[0].mxu0
    %v7501 = vadd.f32 %v7308, %v7500
    %v7502 = vpop.f32.mrb[0].mxu0
    %v7503 = vadd.f32 %v7310, %v7502
    %v7504 = vpop.f32.mrb[0].mxu0
    %v7505 = vadd.f32 %v7312, %v7504
    %7506 = vmatprep.mubr.bf16.mxu0 %v2237
    %7507 = vmatmul.mubr.bf16.gmra.mrb[0].mxu0 %v2236
    %v7508 = vpop.f32.mrb[0].mxu0
    %v7509 = vadd.f32 %v7316, %v7508
    %v7510 = vpop.f32.mrb[0].mxu0
    %v7511 = vadd.f32 %v7318, %v7510
    %v7512 = vpop.f32.mrb[0].mxu0
    %v7513 = vadd.f32 %v7320, %v7512
    %v7514 = vpop.f32.mrb[0].mxu0
    %v7515 = vadd.f32 %v7322, %v7514
    %7516 = vmatprep.mubr.bf16.mxu0 %v2257
    %7517 = vmatmul.mubr.bf16.gmra.mrb[0].mxu0 %v2256
    %v7518 = vpop.f32.mrb[0].mxu0
    %v7519 = vadd.f32 %v7326, %v7518
    %v7520 = vpop.f32.mrb[0].mxu0
    %v7521 = vadd.f32 %v7328, %v7520
    %v7522 = vpop.f32.mrb[0].mxu0
    %v7523 = vadd.f32 %v7330, %v7522
    %v7524 = vpop.f32.mrb[0].mxu0
    %v7525 = vadd.f32 %v7332, %v7524
    %7526 = vmatprep.mubr.bf16.mxu0 %v2277
    %7527 = vmatmul.mubr.bf16.gmra.mrb[0].mxu0 %v2276
    %v7528 = vpop.f32.mrb[0].mxu0
    %v7529 = vadd.f32 %v7336, %v7528
    %v7530 = vpop.f32.mrb[0].mxu0
    %v7531 = vadd.f32 %v7338, %v7530
    %v7532 = vpop.f32.mrb[0].mxu0
    %v7533 = vadd.f32 %v7340, %v7532
    %v7534 = vpop.f32.mrb[0].mxu0
    %v7535 = vadd.f32 %v7342, %v7534
    %7536 = vdwg.mxu0
    %7537 = vmatprep.subr.bf16.mxu0 %v5097
    %7538 = vmatpush1.bf16.msra.mxu0 %v5096
    %7539 = vmatprep.subr.bf16.mxu0 %v5101
    %7540 = vmatpush1.bf16.msra.mxu0 %v5100
    %7541 = vmatprep.subr.bf16.mxu0 %v5105
    %7542 = vmatpush1.bf16.msra.mxu0 %v5104
    %7543 = vmatprep.subr.bf16.mxu0 %v5109
    %7544 = vmatpush1.bf16.msra.mxu0 %v5108
    %7545 = vmatprep.subr.bf16.mxu0 %v5113
    %7546 = vmatpush1.bf16.msra.mxu0 %v5112
    %7547 = vmatprep.subr.bf16.mxu0 %v5117
    %7548 = vmatpush1.bf16.msra.mxu0 %v5116
    %7549 = vmatprep.subr.bf16.mxu0 %v5121
    %7550 = vmatpush1.bf16.msra.mxu0 %v5120
    %7551 = vmatprep.subr.bf16.mxu0 %v5125
    %7552 = vmatpush1.bf16.msra.mxu0 %v5124
    %7553 = vmatprep.subr.bf16.mxu0 %v5129
    %7554 = vmatpush1.bf16.msra.mxu0 %v5128
    %7555 = vmatprep.subr.bf16.mxu0 %v5133
    %7556 = vmatpush1.bf16.msra.mxu0 %v5132
    %7557 = vmatprep.subr.bf16.mxu0 %v5137
    %7558 = vmatpush1.bf16.msra.mxu0 %v5136
    %7559 = vmatprep.subr.bf16.mxu0 %v5141
    %7560 = vmatpush1.bf16.msra.mxu0 %v5140
    %7561 = vmatprep.subr.bf16.mxu0 %v5145
    %7562 = vmatpush1.bf16.msra.mxu0 %v5144
    %7563 = vmatprep.subr.bf16.mxu0 %v5149
    %7564 = vmatpush1.bf16.msra.mxu0 %v5148
    %7565 = vmatprep.subr.bf16.mxu0 %v5153
    %7566 = vmatpush1.bf16.msra.mxu0 %v5152
    %7567 = vmatprep.subr.bf16.mxu0 %v5157
    %7568 = vmatpush1.bf16.msra.mxu0 %v5156
    %7569 = vmatprep.mubr.bf16.mxu0 %v1979
    %7570 = vmatmul.mubr.bf16.gmra.mrb[0].mxu0 %v1978
    %v7571 = vpop.f32.mrb[0].mxu0
    %v7572 = vadd.f32 %v7379, %v7571
    %v7573 = vpop.f32.mrb[0].mxu0
    %v7574 = vadd.f32 %v7381, %v7573
    %v7575 = vpop.f32.mrb[0].mxu0
    %v7576 = vadd.f32 %v7383, %v7575
    %v7577 = vpop.f32.mrb[0].mxu0
    %v7578 = vadd.f32 %v7385, %v7577
    %7579 = vmatprep.mubr.bf16.mxu0 %v1999
    %7580 = vmatmul.mubr.bf16.gmra.mrb[0].mxu0 %v1998
    %v7581 = vpop.f32.mrb[0].mxu0
    %v7582 = vadd.f32 %v7389, %v7581
    %v7583 = vpop.f32.mrb[0].mxu0
    %v7584 = vadd.f32 %v7391, %v7583
    %v7585 = vpop.f32.mrb[0].mxu0
    %v7586 = vadd.f32 %v7393, %v7585
    %v7587 = vpop.f32.mrb[0].mxu0
    %v7588 = vadd.f32 %v7395, %v7587
    %7589 = vmatprep.mubr.bf16.mxu0 %v2019
    %7590 = vmatmul.mubr.bf16.gmra.mrb[0].mxu0 %v2018
    %v7591 = vpop.f32.mrb[0].mxu0
    %v7592 = vadd.f32 %v7399, %v7591
    %v7593 = vpop.f32.mrb[0].mxu0
    %v7594 = vadd.f32 %v7401, %v7593
    %v7595 = vpop.f32.mrb[0].mxu0
    %v7596 = vadd.f32 %v7403, %v7595
    %v7597 = vpop.f32.mrb[0].mxu0
    %v7598 = vadd.f32 %v7405, %v7597
    %7599 = vmatprep.mubr.bf16.mxu0 %v2039
    %7600 = vmatmul.mubr.bf16.gmra.mrb[0].mxu0 %v2038
    %v7601 = vpop.f32.mrb[0].mxu0
    %v7602 = vadd.f32 %v7409, %v7601
    %v7603 = vpop.f32.mrb[0].mxu0
    %v7604 = vadd.f32 %v7411, %v7603
    %v7605 = vpop.f32.mrb[0].mxu0
    %v7606 = vadd.f32 %v7413, %v7605
    %v7607 = vpop.f32.mrb[0].mxu0
    %v7608 = vadd.f32 %v7415, %v7607
    %7609 = vmatprep.mubr.bf16.mxu0 %v2059
    %7610 = vmatmul.mubr.bf16.gmra.mrb[0].mxu0 %v2058
    %v7611 = vpop.f32.mrb[0].mxu0
    %v7612 = vadd.f32 %v7419, %v7611
    %v7613 = vpop.f32.mrb[0].mxu0
    %v7614 = vadd.f32 %v7421, %v7613
    %v7615 = vpop.f32.mrb[0].mxu0
    %v7616 = vadd.f32 %v7423, %v7615
    %v7617 = vpop.f32.mrb[0].mxu0
    %v7618 = vadd.f32 %v7425, %v7617
    %7619 = vmatprep.mubr.bf16.mxu0 %v2079
    %7620 = vmatmul.mubr.bf16.gmra.mrb[0].mxu0 %v2078
    %v7621 = vpop.f32.mrb[0].mxu0
    %v7622 = vadd.f32 %v7429, %v7621
    %v7623 = vpop.f32.mrb[0].mxu0
    %v7624 = vadd.f32 %v7431, %v7623
    %v7625 = vpop.f32.mrb[0].mxu0
    %v7626 = vadd.f32 %v7433, %v7625
    %v7627 = vpop.f32.mrb[0].mxu0
    %v7628 = vadd.f32 %v7435, %v7627
    %7629 = vmatprep.mubr.bf16.mxu0 %v2099
    %7630 = vmatmul.mubr.bf16.gmra.mrb[0].mxu0 %v2098
    %v7631 = vpop.f32.mrb[0].mxu0
    %v7632 = vadd.f32 %v7439, %v7631
    %v7633 = vpop.f32.mrb[0].mxu0
    %v7634 = vadd.f32 %v7441, %v7633
    %v7635 = vpop.f32.mrb[0].mxu0
    %v7636 = vadd.f32 %v7443, %v7635
    %v7637 = vpop.f32.mrb[0].mxu0
    %v7638 = vadd.f32 %v7445, %v7637
    %7639 = vmatprep.mubr.bf16.mxu0 %v2119
    %7640 = vmatmul.mubr.bf16.gmra.mrb[0].mxu0 %v2118
    %v7641 = vpop.f32.mrb[0].mxu0
    %v7642 = vadd.f32 %v7449, %v7641
    %v7643 = vpop.f32.mrb[0].mxu0
    %v7644 = vadd.f32 %v7451, %v7643
    %v7645 = vpop.f32.mrb[0].mxu0
    %v7646 = vadd.f32 %v7453, %v7645
    %v7647 = vpop.f32.mrb[0].mxu0
    %v7648 = vadd.f32 %v7455, %v7647
    %7649 = vmatprep.mubr.bf16.mxu0 %v2139
    %7650 = vmatmul.mubr.bf16.gmra.mrb[0].mxu0 %v2138
    %v7651 = vpop.f32.mrb[0].mxu0
    %v7652 = vadd.f32 %v7459, %v7651
    %v7653 = vpop.f32.mrb[0].mxu0
    %v7654 = vadd.f32 %v7461, %v7653
    %v7655 = vpop.f32.mrb[0].mxu0
    %v7656 = vadd.f32 %v7463, %v7655
    %v7657 = vpop.f32.mrb[0].mxu0
    %v7658 = vadd.f32 %v7465, %v7657
    %7659 = vmatprep.mubr.bf16.mxu0 %v2159
    %7660 = vmatmul.mubr.bf16.gmra.mrb[0].mxu0 %v2158
    %v7661 = vpop.f32.mrb[0].mxu0
    %v7662 = vadd.f32 %v7469, %v7661
    %v7663 = vpop.f32.mrb[0].mxu0
    %v7664 = vadd.f32 %v7471, %v7663
    %v7665 = vpop.f32.mrb[0].mxu0
    %v7666 = vadd.f32 %v7473, %v7665
    %v7667 = vpop.f32.mrb[0].mxu0
    %v7668 = vadd.f32 %v7475, %v7667
    %7669 = vmatprep.mubr.bf16.mxu0 %v2179
    %7670 = vmatmul.mubr.bf16.gmra.mrb[0].mxu0 %v2178
    %v7671 = vpop.f32.mrb[0].mxu0
    %v7672 = vadd.f32 %v7479, %v7671
    %v7673 = vpop.f32.mrb[0].mxu0
    %v7674 = vadd.f32 %v7481, %v7673
    %v7675 = vpop.f32.mrb[0].mxu0
    %v7676 = vadd.f32 %v7483, %v7675
    %v7677 = vpop.f32.mrb[0].mxu0
    %v7678 = vadd.f32 %v7485, %v7677
    %7679 = vmatprep.mubr.bf16.mxu0 %v2199
    %7680 = vmatmul.mubr.bf16.gmra.mrb[0].mxu0 %v2198
    %v7681 = vpop.f32.mrb[0].mxu0
    %v7682 = vadd.f32 %v7489, %v7681
    %v7683 = vpop.f32.mrb[0].mxu0
    %v7684 = vadd.f32 %v7491, %v7683
    %v7685 = vpop.f32.mrb[0].mxu0
    %v7686 = vadd.f32 %v7493, %v7685
    %v7687 = vpop.f32.mrb[0].mxu0
    %v7688 = vadd.f32 %v7495, %v7687
    %7689 = vmatprep.mubr.bf16.mxu0 %v2219
    %7690 = vmatmul.mubr.bf16.gmra.mrb[0].mxu0 %v2218
    %v7691 = vpop.f32.mrb[0].mxu0
    %v7692 = vadd.f32 %v7499, %v7691
    %v7693 = vpop.f32.mrb[0].mxu0
    %v7694 = vadd.f32 %v7501, %v7693
    %v7695 = vpop.f32.mrb[0].mxu0
    %v7696 = vadd.f32 %v7503, %v7695
    %v7697 = vpop.f32.mrb[0].mxu0
    %v7698 = vadd.f32 %v7505, %v7697
    %7699 = vmatprep.mubr.bf16.mxu0 %v2239
    %7700 = vmatmul.mubr.bf16.gmra.mrb[0].mxu0 %v2238
    %v7701 = vpop.f32.mrb[0].mxu0
    %v7702 = vadd.f32 %v7509, %v7701
    %v7703 = vpop.f32.mrb[0].mxu0
    %v7704 = vadd.f32 %v7511, %v7703
    %v7705 = vpop.f32.mrb[0].mxu0
    %v7706 = vadd.f32 %v7513, %v7705
    %v7707 = vpop.f32.mrb[0].mxu0
    %v7708 = vadd.f32 %v7515, %v7707
    %7709 = vmatprep.mubr.bf16.mxu0 %v2259
    %7710 = vmatmul.mubr.bf16.gmra.mrb[0].mxu0 %v2258
    %v7711 = vpop.f32.mrb[0].mxu0
    %v7712 = vadd.f32 %v7519, %v7711
    %v7713 = vpop.f32.mrb[0].mxu0
    %v7714 = vadd.f32 %v7521, %v7713
    %v7715 = vpop.f32.mrb[0].mxu0
    %v7716 = vadd.f32 %v7523, %v7715
    %v7717 = vpop.f32.mrb[0].mxu0
    %v7718 = vadd.f32 %v7525, %v7717
    %7719 = vmatprep.mubr.bf16.mxu0 %v2279
    %7720 = vmatmul.mubr.bf16.gmra.mrb[0].mxu0 %v2278
    %v7721 = vpop.f32.mrb[0].mxu0
    %v7722 = vadd.f32 %v7529, %v7721
    %v7723 = vpop.f32.mrb[0].mxu0
    %v7724 = vadd.f32 %v7531, %v7723
    %v7725 = vpop.f32.mrb[0].mxu0
    %v7726 = vadd.f32 %v7533, %v7725
    %v7727 = vpop.f32.mrb[0].mxu0
    %v7728 = vadd.f32 %v7535, %v7727
    %7729 = vdwg.mxu0
    %7730 = vmatprep.subr.bf16.mxu0 %v4523
    %7731 = vmatpush1.bf16.msra.mxu0 %v4522
    %7732 = vmatprep.subr.bf16.mxu0 %v4527
    %7733 = vmatpush1.bf16.msra.mxu0 %v4526
    %7734 = vmatprep.subr.bf16.mxu0 %v4531
    %7735 = vmatpush1.bf16.msra.mxu0 %v4530
    %7736 = vmatprep.subr.bf16.mxu0 %v4535
    %7737 = vmatpush1.bf16.msra.mxu0 %v4534
    %7738 = vmatprep.subr.bf16.mxu0 %v4539
    %7739 = vmatpush1.bf16.msra.mxu0 %v4538
    %7740 = vmatprep.subr.bf16.mxu0 %v4543
    %7741 = vmatpush1.bf16.msra.mxu0 %v4542
    %7742 = vmatprep.subr.bf16.mxu0 %v4547
    %7743 = vmatpush1.bf16.msra.mxu0 %v4546
    %7744 = vmatprep.subr.bf16.mxu0 %v4551
    %7745 = vmatpush1.bf16.msra.mxu0 %v4550
    %7746 = vmatprep.subr.bf16.mxu0 %v4555
    %7747 = vmatpush1.bf16.msra.mxu0 %v4554
    %7748 = vmatprep.subr.bf16.mxu0 %v4559
    %7749 = vmatpush1.bf16.msra.mxu0 %v4558
    %7750 = vmatprep.subr.bf16.mxu0 %v4563
    %7751 = vmatpush1.bf16.msra.mxu0 %v4562
    %7752 = vmatprep.subr.bf16.mxu0 %v4567
    %7753 = vmatpush1.bf16.msra.mxu0 %v4566
    %7754 = vmatprep.subr.bf16.mxu0 %v4571
    %7755 = vmatpush1.bf16.msra.mxu0 %v4570
    %7756 = vmatprep.subr.bf16.mxu0 %v4575
    %7757 = vmatpush1.bf16.msra.mxu0 %v4574
    %7758 = vmatprep.subr.bf16.mxu0 %v4579
    %7759 = vmatpush1.bf16.msra.mxu0 %v4578
    %7760 = vmatprep.subr.bf16.mxu0 %v4583
    %7761 = vmatpush1.bf16.msra.mxu0 %v4582
    %7762 = vmatprep.mubr.bf16.mxu0 %v1961
    %7763 = vmatmul.mubr.bf16.gmra.mrb[0].mxu0 %v1960
    %v7764 = vpop.f32.mrb[0].mxu0
    %v7765 = vadd.f32 0.0, %v7764
    %v7766 = vpop.f32.mrb[0].mxu0
    %v7767 = vadd.f32 0.0, %v7766
    %v7768 = vpop.f32.mrb[0].mxu0
    %v7769 = vadd.f32 0.0, %v7768
    %v7770 = vpop.f32.mrb[0].mxu0
    %v7771 = vadd.f32 0.0, %v7770
    %7772 = vmatprep.mubr.bf16.mxu0 %v1981
    %7773 = vmatmul.mubr.bf16.gmra.mrb[0].mxu0 %v1980
    %v7774 = vpop.f32.mrb[0].mxu0
    %v7775 = vadd.f32 0.0, %v7774
    %v7776 = vpop.f32.mrb[0].mxu0
    %v7777 = vadd.f32 0.0, %v7776
    %v7778 = vpop.f32.mrb[0].mxu0
    %v7779 = vadd.f32 0.0, %v7778
    %v7780 = vpop.f32.mrb[0].mxu0
    %v7781 = vadd.f32 0.0, %v7780
    %7782 = vmatprep.mubr.bf16.mxu0 %v2001
    %7783 = vmatmul.mubr.bf16.gmra.mrb[0].mxu0 %v2000
    %v7784 = vpop.f32.mrb[0].mxu0
    %v7785 = vadd.f32 0.0, %v7784
    %v7786 = vpop.f32.mrb[0].mxu0
    %v7787 = vadd.f32 0.0, %v7786
    %v7788 = vpop.f32.mrb[0].mxu0
    %v7789 = vadd.f32 0.0, %v7788
    %v7790 = vpop.f32.mrb[0].mxu0
    %v7791 = vadd.f32 0.0, %v7790
    %7792 = vmatprep.mubr.bf16.mxu0 %v2021
    %7793 = vmatmul.mubr.bf16.gmra.mrb[0].mxu0 %v2020
    %v7794 = vpop.f32.mrb[0].mxu0
    %v7795 = vadd.f32 0.0, %v7794
    %v7796 = vpop.f32.mrb[0].mxu0
    %v7797 = vadd.f32 0.0, %v7796
    %v7798 = vpop.f32.mrb[0].mxu0
    %v7799 = vadd.f32 0.0, %v7798
    %v7800 = vpop.f32.mrb[0].mxu0
    %v7801 = vadd.f32 0.0, %v7800
    %7802 = vmatprep.mubr.bf16.mxu0 %v2041
    %7803 = vmatmul.mubr.bf16.gmra.mrb[0].mxu0 %v2040
    %v7804 = vpop.f32.mrb[0].mxu0
    %v7805 = vadd.f32 0.0, %v7804
    %v7806 = vpop.f32.mrb[0].mxu0
    %v7807 = vadd.f32 0.0, %v7806
    %v7808 = vpop.f32.mrb[0].mxu0
    %v7809 = vadd.f32 0.0, %v7808
    %v7810 = vpop.f32.mrb[0].mxu0
    %v7811 = vadd.f32 0.0, %v7810
    %7812 = vmatprep.mubr.bf16.mxu0 %v2061
    %7813 = vmatmul.mubr.bf16.gmra.mrb[0].mxu0 %v2060
    %v7814 = vpop.f32.mrb[0].mxu0
    %v7815 = vadd.f32 0.0, %v7814
    %v7816 = vpop.f32.mrb[0].mxu0
    %v7817 = vadd.f32 0.0, %v7816
    %v7818 = vpop.f32.mrb[0].mxu0
    %v7819 = vadd.f32 0.0, %v7818
    %v7820 = vpop.f32.mrb[0].mxu0
    %v7821 = vadd.f32 0.0, %v7820
    %7822 = vmatprep.mubr.bf16.mxu0 %v2081
    %7823 = vmatmul.mubr.bf16.gmra.mrb[0].mxu0 %v2080
    %v7824 = vpop.f32.mrb[0].mxu0
    %v7825 = vadd.f32 0.0, %v7824
    %v7826 = vpop.f32.mrb[0].mxu0
    %v7827 = vadd.f32 0.0, %v7826
    %v7828 = vpop.f32.mrb[0].mxu0
    %v7829 = vadd.f32 0.0, %v7828
    %v7830 = vpop.f32.mrb[0].mxu0
    %v7831 = vadd.f32 0.0, %v7830
    %7832 = vmatprep.mubr.bf16.mxu0 %v2101
    %7833 = vmatmul.mubr.bf16.gmra.mrb[0].mxu0 %v2100
    %v7834 = vpop.f32.mrb[0].mxu0
    %v7835 = vadd.f32 0.0, %v7834
    %v7836 = vpop.f32.mrb[0].mxu0
    %v7837 = vadd.f32 0.0, %v7836
    %v7838 = vpop.f32.mrb[0].mxu0
    %v7839 = vadd.f32 0.0, %v7838
    %v7840 = vpop.f32.mrb[0].mxu0
    %v7841 = vadd.f32 0.0, %v7840
    %7842 = vmatprep.mubr.bf16.mxu0 %v2121
    %7843 = vmatmul.mubr.bf16.gmra.mrb[0].mxu0 %v2120
    %v7844 = vpop.f32.mrb[0].mxu0
    %v7845 = vadd.f32 0.0, %v7844
    %v7846 = vpop.f32.mrb[0].mxu0
    %v7847 = vadd.f32 0.0, %v7846
    %v7848 = vpop.f32.mrb[0].mxu0
    %v7849 = vadd.f32 0.0, %v7848
    %v7850 = vpop.f32.mrb[0].mxu0
    %v7851 = vadd.f32 0.0, %v7850
    %7852 = vmatprep.mubr.bf16.mxu0 %v2141
    %7853 = vmatmul.mubr.bf16.gmra.mrb[0].mxu0 %v2140
    %v7854 = vpop.f32.mrb[0].mxu0
    %v7855 = vadd.f32 0.0, %v7854
    %v7856 = vpop.f32.mrb[0].mxu0
    %v7857 = vadd.f32 0.0, %v7856
    %v7858 = vpop.f32.mrb[0].mxu0
    %v7859 = vadd.f32 0.0, %v7858
    %v7860 = vpop.f32.mrb[0].mxu0
    %v7861 = vadd.f32 0.0, %v7860
    %7862 = vmatprep.mubr.bf16.mxu0 %v2161
    %7863 = vmatmul.mubr.bf16.gmra.mrb[0].mxu0 %v2160
    %v7864 = vpop.f32.mrb[0].mxu0
    %v7865 = vadd.f32 0.0, %v7864
    %v7866 = vpop.f32.mrb[0].mxu0
    %v7867 = vadd.f32 0.0, %v7866
    %v7868 = vpop.f32.mrb[0].mxu0
    %v7869 = vadd.f32 0.0, %v7868
    %v7870 = vpop.f32.mrb[0].mxu0
    %v7871 = vadd.f32 0.0, %v7870
    %7872 = vmatprep.mubr.bf16.mxu0 %v2181
    %7873 = vmatmul.mubr.bf16.gmra.mrb[0].mxu0 %v2180
    %v7874 = vpop.f32.mrb[0].mxu0
    %v7875 = vadd.f32 0.0, %v7874
    %v7876 = vpop.f32.mrb[0].mxu0
    %v7877 = vadd.f32 0.0, %v7876
    %v7878 = vpop.f32.mrb[0].mxu0
    %v7879 = vadd.f32 0.0, %v7878
    %v7880 = vpop.f32.mrb[0].mxu0
    %v7881 = vadd.f32 0.0, %v7880
    %7882 = vmatprep.mubr.bf16.mxu0 %v2201
    %7883 = vmatmul.mubr.bf16.gmra.mrb[0].mxu0 %v2200
    %v7884 = vpop.f32.mrb[0].mxu0
    %v7885 = vadd.f32 0.0, %v7884
    %v7886 = vpop.f32.mrb[0].mxu0
    %v7887 = vadd.f32 0.0, %v7886
    %v7888 = vpop.f32.mrb[0].mxu0
    %v7889 = vadd.f32 0.0, %v7888
    %v7890 = vpop.f32.mrb[0].mxu0
    %v7891 = vadd.f32 0.0, %v7890
    %7892 = vmatprep.mubr.bf16.mxu0 %v2221
    %7893 = vmatmul.mubr.bf16.gmra.mrb[0].mxu0 %v2220
    %v7894 = vpop.f32.mrb[0].mxu0
    %v7895 = vadd.f32 0.0, %v7894
    %v7896 = vpop.f32.mrb[0].mxu0
    %v7897 = vadd.f32 0.0, %v7896
    %v7898 = vpop.f32.mrb[0].mxu0
    %v7899 = vadd.f32 0.0, %v7898
    %v7900 = vpop.f32.mrb[0].mxu0
    %v7901 = vadd.f32 0.0, %v7900
    %7902 = vmatprep.mubr.bf16.mxu0 %v2241
    %7903 = vmatmul.mubr.bf16.gmra.mrb[0].mxu0 %v2240
    %v7904 = vpop.f32.mrb[0].mxu0
    %v7905 = vadd.f32 0.0, %v7904
    %v7906 = vpop.f32.mrb[0].mxu0
    %v7907 = vadd.f32 0.0, %v7906
    %v7908 = vpop.f32.mrb[0].mxu0
    %v7909 = vadd.f32 0.0, %v7908
    %v7910 = vpop.f32.mrb[0].mxu0
    %v7911 = vadd.f32 0.0, %v7910
    %7912 = vmatprep.mubr.bf16.mxu0 %v2261
    %7913 = vmatmul.mubr.bf16.gmra.mrb[0].mxu0 %v2260
    %v7914 = vpop.f32.mrb[0].mxu0
    %v7915 = vadd.f32 0.0, %v7914
    %v7916 = vpop.f32.mrb[0].mxu0
    %v7917 = vadd.f32 0.0, %v7916
    %v7918 = vpop.f32.mrb[0].mxu0
    %v7919 = vadd.f32 0.0, %v7918
    %v7920 = vpop.f32.mrb[0].mxu0
    %v7921 = vadd.f32 0.0, %v7920
    %7922 = vdwg.mxu0
    %7923 = vmatprep.subr.bf16.mxu0 %v4587
    %7924 = vmatpush1.bf16.msra.mxu0 %v4586
    %7925 = vmatprep.subr.bf16.mxu0 %v4591
    %7926 = vmatpush1.bf16.msra.mxu0 %v4590
    %7927 = vmatprep.subr.bf16.mxu0 %v4595
    %7928 = vmatpush1.bf16.msra.mxu0 %v4594
    %7929 = vmatprep.subr.bf16.mxu0 %v4599
    %7930 = vmatpush1.bf16.msra.mxu0 %v4598
    %7931 = vmatprep.subr.bf16.mxu0 %v4603
    %7932 = vmatpush1.bf16.msra.mxu0 %v4602
    %7933 = vmatprep.subr.bf16.mxu0 %v4607
    %7934 = vmatpush1.bf16.msra.mxu0 %v4606
    %7935 = vmatprep.subr.bf16.mxu0 %v4611
    %7936 = vmatpush1.bf16.msra.mxu0 %v4610
    %7937 = vmatprep.subr.bf16.mxu0 %v4615
    %7938 = vmatpush1.bf16.msra.mxu0 %v4614
    %7939 = vmatprep.subr.bf16.mxu0 %v4619
    %7940 = vmatpush1.bf16.msra.mxu0 %v4618
    %7941 = vmatprep.subr.bf16.mxu0 %v4623
    %7942 = vmatpush1.bf16.msra.mxu0 %v4622
    %7943 = vmatprep.subr.bf16.mxu0 %v4627
    %7944 = vmatpush1.bf16.msra.mxu0 %v4626
    %7945 = vmatprep.subr.bf16.mxu0 %v4631
    %7946 = vmatpush1.bf16.msra.mxu0 %v4630
    %7947 = vmatprep.subr.bf16.mxu0 %v4635
    %7948 = vmatpush1.bf16.msra.mxu0 %v4634
    %7949 = vmatprep.subr.bf16.mxu0 %v4639
    %7950 = vmatpush1.bf16.msra.mxu0 %v4638
    %7951 = vmatprep.subr.bf16.mxu0 %v4643
    %7952 = vmatpush1.bf16.msra.mxu0 %v4642
    %7953 = vmatprep.subr.bf16.mxu0 %v4647
    %7954 = vmatpush1.bf16.msra.mxu0 %v4646
    %7955 = vmatprep.mubr.bf16.mxu0 %v1963
    %7956 = vmatmul.mubr.bf16.gmra.mrb[0].mxu0 %v1962
    %v7957 = vpop.f32.mrb[0].mxu0
    %v7958 = vadd.f32 %v7765, %v7957
    %v7959 = vpop.f32.mrb[0].mxu0
    %v7960 = vadd.f32 %v7767, %v7959
    %v7961 = vpop.f32.mrb[0].mxu0
    %v7962 = vadd.f32 %v7769, %v7961
    %v7963 = vpop.f32.mrb[0].mxu0
    %v7964 = vadd.f32 %v7771, %v7963
    %7965 = vmatprep.mubr.bf16.mxu0 %v1983
    %7966 = vmatmul.mubr.bf16.gmra.mrb[0].mxu0 %v1982
    %v7967 = vpop.f32.mrb[0].mxu0
    %v7968 = vadd.f32 %v7775, %v7967
    %v7969 = vpop.f32.mrb[0].mxu0
    %v7970 = vadd.f32 %v7777, %v7969
    %v7971 = vpop.f32.mrb[0].mxu0
    %v7972 = vadd.f32 %v7779, %v7971
    %v7973 = vpop.f32.mrb[0].mxu0
    %v7974 = vadd.f32 %v7781, %v7973
    %7975 = vmatprep.mubr.bf16.mxu0 %v2003
    %7976 = vmatmul.mubr.bf16.gmra.mrb[0].mxu0 %v2002
    %v7977 = vpop.f32.mrb[0].mxu0
    %v7978 = vadd.f32 %v7785, %v7977
    %v7979 = vpop.f32.mrb[0].mxu0
    %v7980 = vadd.f32 %v7787, %v7979
    %v7981 = vpop.f32.mrb[0].mxu0
    %v7982 = vadd.f32 %v7789, %v7981
    %v7983 = vpop.f32.mrb[0].mxu0
    %v7984 = vadd.f32 %v7791, %v7983
    %7985 = vmatprep.mubr.bf16.mxu0 %v2023
    %7986 = vmatmul.mubr.bf16.gmra.mrb[0].mxu0 %v2022
    %v7987 = vpop.f32.mrb[0].mxu0
    %v7988 = vadd.f32 %v7795, %v7987
    %v7989 = vpop.f32.mrb[0].mxu0
    %v7990 = vadd.f32 %v7797, %v7989
    %v7991 = vpop.f32.mrb[0].mxu0
    %v7992 = vadd.f32 %v7799, %v7991
    %v7993 = vpop.f32.mrb[0].mxu0
    %v7994 = vadd.f32 %v7801, %v7993
    %7995 = vmatprep.mubr.bf16.mxu0 %v2043
    %7996 = vmatmul.mubr.bf16.gmra.mrb[0].mxu0 %v2042
    %v7997 = vpop.f32.mrb[0].mxu0
    %v7998 = vadd.f32 %v7805, %v7997
    %v7999 = vpop.f32.mrb[0].mxu0
    %v8000 = vadd.f32 %v7807, %v7999
    %v8001 = vpop.f32.mrb[0].mxu0
    %v8002 = vadd.f32 %v7809, %v8001
    %v8003 = vpop.f32.mrb[0].mxu0
    %v8004 = vadd.f32 %v7811, %v8003
    %8005 = vmatprep.mubr.bf16.mxu0 %v2063
    %8006 = vmatmul.mubr.bf16.gmra.mrb[0].mxu0 %v2062
    %v8007 = vpop.f32.mrb[0].mxu0
    %v8008 = vadd.f32 %v7815, %v8007
    %v8009 = vpop.f32.mrb[0].mxu0
    %v8010 = vadd.f32 %v7817, %v8009
    %v8011 = vpop.f32.mrb[0].mxu0
    %v8012 = vadd.f32 %v7819, %v8011
    %v8013 = vpop.f32.mrb[0].mxu0
    %v8014 = vadd.f32 %v7821, %v8013
    %8015 = vmatprep.mubr.bf16.mxu0 %v2083
    %8016 = vmatmul.mubr.bf16.gmra.mrb[0].mxu0 %v2082
    %v8017 = vpop.f32.mrb[0].mxu0
    %v8018 = vadd.f32 %v7825, %v8017
    %v8019 = vpop.f32.mrb[0].mxu0
    %v8020 = vadd.f32 %v7827, %v8019
    %v8021 = vpop.f32.mrb[0].mxu0
    %v8022 = vadd.f32 %v7829, %v8021
    %v8023 = vpop.f32.mrb[0].mxu0
    %v8024 = vadd.f32 %v7831, %v8023
    %8025 = vmatprep.mubr.bf16.mxu0 %v2103
    %8026 = vmatmul.mubr.bf16.gmra.mrb[0].mxu0 %v2102
    %v8027 = vpop.f32.mrb[0].mxu0
    %v8028 = vadd.f32 %v7835, %v8027
    %v8029 = vpop.f32.mrb[0].mxu0
    %v8030 = vadd.f32 %v7837, %v8029
    %v8031 = vpop.f32.mrb[0].mxu0
    %v8032 = vadd.f32 %v7839, %v8031
    %v8033 = vpop.f32.mrb[0].mxu0
    %v8034 = vadd.f32 %v7841, %v8033
    %8035 = vmatprep.mubr.bf16.mxu0 %v2123
    %8036 = vmatmul.mubr.bf16.gmra.mrb[0].mxu0 %v2122
    %v8037 = vpop.f32.mrb[0].mxu0
    %v8038 = vadd.f32 %v7845, %v8037
    %v8039 = vpop.f32.mrb[0].mxu0
    %v8040 = vadd.f32 %v7847, %v8039
    %v8041 = vpop.f32.mrb[0].mxu0
    %v8042 = vadd.f32 %v7849, %v8041
    %v8043 = vpop.f32.mrb[0].mxu0
    %v8044 = vadd.f32 %v7851, %v8043
    %8045 = vmatprep.mubr.bf16.mxu0 %v2143
    %8046 = vmatmul.mubr.bf16.gmra.mrb[0].mxu0 %v2142
    %v8047 = vpop.f32.mrb[0].mxu0
    %v8048 = vadd.f32 %v7855, %v8047
    %v8049 = vpop.f32.mrb[0].mxu0
    %v8050 = vadd.f32 %v7857, %v8049
    %v8051 = vpop.f32.mrb[0].mxu0
    %v8052 = vadd.f32 %v7859, %v8051
    %v8053 = vpop.f32.mrb[0].mxu0
    %v8054 = vadd.f32 %v7861, %v8053
    %8055 = vmatprep.mubr.bf16.mxu0 %v2163
    %8056 = vmatmul.mubr.bf16.gmra.mrb[0].mxu0 %v2162
    %v8057 = vpop.f32.mrb[0].mxu0
    %v8058 = vadd.f32 %v7865, %v8057
    %v8059 = vpop.f32.mrb[0].mxu0
    %v8060 = vadd.f32 %v7867, %v8059
    %v8061 = vpop.f32.mrb[0].mxu0
    %v8062 = vadd.f32 %v7869, %v8061
    %v8063 = vpop.f32.mrb[0].mxu0
    %v8064 = vadd.f32 %v7871, %v8063
    %8065 = vmatprep.mubr.bf16.mxu0 %v2183
    %8066 = vmatmul.mubr.bf16.gmra.mrb[0].mxu0 %v2182
    %v8067 = vpop.f32.mrb[0].mxu0
    %v8068 = vadd.f32 %v7875, %v8067
    %v8069 = vpop.f32.mrb[0].mxu0
    %v8070 = vadd.f32 %v7877, %v8069
    %v8071 = vpop.f32.mrb[0].mxu0
    %v8072 = vadd.f32 %v7879, %v8071
    %v8073 = vpop.f32.mrb[0].mxu0
    %v8074 = vadd.f32 %v7881, %v8073
    %8075 = vmatprep.mubr.bf16.mxu0 %v2203
    %8076 = vmatmul.mubr.bf16.gmra.mrb[0].mxu0 %v2202
    %v8077 = vpop.f32.mrb[0].mxu0
    %v8078 = vadd.f32 %v7885, %v8077
    %v8079 = vpop.f32.mrb[0].mxu0
    %v8080 = vadd.f32 %v7887, %v8079
    %v8081 = vpop.f32.mrb[0].mxu0
    %v8082 = vadd.f32 %v7889, %v8081
    %v8083 = vpop.f32.mrb[0].mxu0
    %v8084 = vadd.f32 %v7891, %v8083
    %8085 = vmatprep.mubr.bf16.mxu0 %v2223
    %8086 = vmatmul.mubr.bf16.gmra.mrb[0].mxu0 %v2222
    %v8087 = vpop.f32.mrb[0].mxu0
    %v8088 = vadd.f32 %v7895, %v8087
    %v8089 = vpop.f32.mrb[0].mxu0
    %v8090 = vadd.f32 %v7897, %v8089
    %v8091 = vpop.f32.mrb[0].mxu0
    %v8092 = vadd.f32 %v7899, %v8091
    %v8093 = vpop.f32.mrb[0].mxu0
    %v8094 = vadd.f32 %v7901, %v8093
    %8095 = vmatprep.mubr.bf16.mxu0 %v2243
    %8096 = vmatmul.mubr.bf16.gmra.mrb[0].mxu0 %v2242
    %v8097 = vpop.f32.mrb[0].mxu0
    %v8098 = vadd.f32 %v7905, %v8097
    %v8099 = vpop.f32.mrb[0].mxu0
    %v8100 = vadd.f32 %v7907, %v8099
    %v8101 = vpop.f32.mrb[0].mxu0
    %v8102 = vadd.f32 %v7909, %v8101
    %v8103 = vpop.f32.mrb[0].mxu0
    %v8104 = vadd.f32 %v7911, %v8103
    %8105 = vmatprep.mubr.bf16.mxu0 %v2263
    %8106 = vmatmul.mubr.bf16.gmra.mrb[0].mxu0 %v2262
    %v8107 = vpop.f32.mrb[0].mxu0
    %v8108 = vadd.f32 %v7915, %v8107
    %v8109 = vpop.f32.mrb[0].mxu0
    %v8110 = vadd.f32 %v7917, %v8109
    %v8111 = vpop.f32.mrb[0].mxu0
    %v8112 = vadd.f32 %v7919, %v8111
    %v8113 = vpop.f32.mrb[0].mxu0
    %v8114 = vadd.f32 %v7921, %v8113
    %8115 = vdwg.mxu0
    %8116 = vmatprep.subr.bf16.mxu0 %v4651
    %8117 = vmatpush1.bf16.msra.mxu0 %v4650
    %8118 = vmatprep.subr.bf16.mxu0 %v4655
    %8119 = vmatpush1.bf16.msra.mxu0 %v4654
    %8120 = vmatprep.subr.bf16.mxu0 %v4659
    %8121 = vmatpush1.bf16.msra.mxu0 %v4658
    %8122 = vmatprep.subr.bf16.mxu0 %v4663
    %8123 = vmatpush1.bf16.msra.mxu0 %v4662
    %8124 = vmatprep.subr.bf16.mxu0 %v4667
    %8125 = vmatpush1.bf16.msra.mxu0 %v4666
    %8126 = vmatprep.subr.bf16.mxu0 %v4671
    %8127 = vmatpush1.bf16.msra.mxu0 %v4670
    %8128 = vmatprep.subr.bf16.mxu0 %v4675
    %8129 = vmatpush1.bf16.msra.mxu0 %v4674
    %8130 = vmatprep.subr.bf16.mxu0 %v4679
    %8131 = vmatpush1.bf16.msra.mxu0 %v4678
    %8132 = vmatprep.subr.bf16.mxu0 %v4683
    %8133 = vmatpush1.bf16.msra.mxu0 %v4682
    %8134 = vmatprep.subr.bf16.mxu0 %v4687
    %8135 = vmatpush1.bf16.msra.mxu0 %v4686
    %8136 = vmatprep.subr.bf16.mxu0 %v4691
    %8137 = vmatpush1.bf16.msra.mxu0 %v4690
    %8138 = vmatprep.subr.bf16.mxu0 %v4695
    %8139 = vmatpush1.bf16.msra.mxu0 %v4694
    %8140 = vmatprep.subr.bf16.mxu0 %v4699
    %8141 = vmatpush1.bf16.msra.mxu0 %v4698
    %8142 = vmatprep.subr.bf16.mxu0 %v4703
    %8143 = vmatpush1.bf16.msra.mxu0 %v4702
    %8144 = vmatprep.subr.bf16.mxu0 %v4707
    %8145 = vmatpush1.bf16.msra.mxu0 %v4706
    %8146 = vmatprep.subr.bf16.mxu0 %v4711
    %8147 = vmatpush1.bf16.msra.mxu0 %v4710
    %8148 = vmatprep.mubr.bf16.mxu0 %v1965
    %8149 = vmatmul.mubr.bf16.gmra.mrb[0].mxu0 %v1964
    %v8150 = vpop.f32.mrb[0].mxu0
    %v8151 = vadd.f32 %v7958, %v8150
    %v8152 = vpop.f32.mrb[0].mxu0
    %v8153 = vadd.f32 %v7960, %v8152
    %v8154 = vpop.f32.mrb[0].mxu0
    %v8155 = vadd.f32 %v7962, %v8154
    %v8156 = vpop.f32.mrb[0].mxu0
    %v8157 = vadd.f32 %v7964, %v8156
    %8158 = vmatprep.mubr.bf16.mxu0 %v1985
    %8159 = vmatmul.mubr.bf16.gmra.mrb[0].mxu0 %v1984
    %v8160 = vpop.f32.mrb[0].mxu0
    %v8161 = vadd.f32 %v7968, %v8160
    %v8162 = vpop.f32.mrb[0].mxu0
    %v8163 = vadd.f32 %v7970, %v8162
    %v8164 = vpop.f32.mrb[0].mxu0
    %v8165 = vadd.f32 %v7972, %v8164
    %v8166 = vpop.f32.mrb[0].mxu0
    %v8167 = vadd.f32 %v7974, %v8166
    %8168 = vmatprep.mubr.bf16.mxu0 %v2005
    %8169 = vmatmul.mubr.bf16.gmra.mrb[0].mxu0 %v2004
    %v8170 = vpop.f32.mrb[0].mxu0
    %v8171 = vadd.f32 %v7978, %v8170
    %v8172 = vpop.f32.mrb[0].mxu0
    %v8173 = vadd.f32 %v7980, %v8172
    %v8174 = vpop.f32.mrb[0].mxu0
    %v8175 = vadd.f32 %v7982, %v8174
    %v8176 = vpop.f32.mrb[0].mxu0
    %v8177 = vadd.f32 %v7984, %v8176
    %8178 = vmatprep.mubr.bf16.mxu0 %v2025
    %8179 = vmatmul.mubr.bf16.gmra.mrb[0].mxu0 %v2024
    %v8180 = vpop.f32.mrb[0].mxu0
    %v8181 = vadd.f32 %v7988, %v8180
    %v8182 = vpop.f32.mrb[0].mxu0
    %v8183 = vadd.f32 %v7990, %v8182
    %v8184 = vpop.f32.mrb[0].mxu0
    %v8185 = vadd.f32 %v7992, %v8184
    %v8186 = vpop.f32.mrb[0].mxu0
    %v8187 = vadd.f32 %v7994, %v8186
    %8188 = vmatprep.mubr.bf16.mxu0 %v2045
    %8189 = vmatmul.mubr.bf16.gmra.mrb[0].mxu0 %v2044
    %v8190 = vpop.f32.mrb[0].mxu0
    %v8191 = vadd.f32 %v7998, %v8190
    %v8192 = vpop.f32.mrb[0].mxu0
    %v8193 = vadd.f32 %v8000, %v8192
    %v8194 = vpop.f32.mrb[0].mxu0
    %v8195 = vadd.f32 %v8002, %v8194
    %v8196 = vpop.f32.mrb[0].mxu0
    %v8197 = vadd.f32 %v8004, %v8196
    %8198 = vmatprep.mubr.bf16.mxu0 %v2065
    %8199 = vmatmul.mubr.bf16.gmra.mrb[0].mxu0 %v2064
    %v8200 = vpop.f32.mrb[0].mxu0
    %v8201 = vadd.f32 %v8008, %v8200
    %v8202 = vpop.f32.mrb[0].mxu0
    %v8203 = vadd.f32 %v8010, %v8202
    %v8204 = vpop.f32.mrb[0].mxu0
    %v8205 = vadd.f32 %v8012, %v8204
    %v8206 = vpop.f32.mrb[0].mxu0
    %v8207 = vadd.f32 %v8014, %v8206
    %8208 = vmatprep.mubr.bf16.mxu0 %v2085
    %8209 = vmatmul.mubr.bf16.gmra.mrb[0].mxu0 %v2084
    %v8210 = vpop.f32.mrb[0].mxu0
    %v8211 = vadd.f32 %v8018, %v8210
    %v8212 = vpop.f32.mrb[0].mxu0
    %v8213 = vadd.f32 %v8020, %v8212
    %v8214 = vpop.f32.mrb[0].mxu0
    %v8215 = vadd.f32 %v8022, %v8214
    %v8216 = vpop.f32.mrb[0].mxu0
    %v8217 = vadd.f32 %v8024, %v8216
    %8218 = vmatprep.mubr.bf16.mxu0 %v2105
    %8219 = vmatmul.mubr.bf16.gmra.mrb[0].mxu0 %v2104
    %v8220 = vpop.f32.mrb[0].mxu0
    %v8221 = vadd.f32 %v8028, %v8220
    %v8222 = vpop.f32.mrb[0].mxu0
    %v8223 = vadd.f32 %v8030, %v8222
    %v8224 = vpop.f32.mrb[0].mxu0
    %v8225 = vadd.f32 %v8032, %v8224
    %v8226 = vpop.f32.mrb[0].mxu0
    %v8227 = vadd.f32 %v8034, %v8226
    %8228 = vmatprep.mubr.bf16.mxu0 %v2125
    %8229 = vmatmul.mubr.bf16.gmra.mrb[0].mxu0 %v2124
    %v8230 = vpop.f32.mrb[0].mxu0
    %v8231 = vadd.f32 %v8038, %v8230
    %v8232 = vpop.f32.mrb[0].mxu0
    %v8233 = vadd.f32 %v8040, %v8232
    %v8234 = vpop.f32.mrb[0].mxu0
    %v8235 = vadd.f32 %v8042, %v8234
    %v8236 = vpop.f32.mrb[0].mxu0
    %v8237 = vadd.f32 %v8044, %v8236
    %8238 = vmatprep.mubr.bf16.mxu0 %v2145
    %8239 = vmatmul.mubr.bf16.gmra.mrb[0].mxu0 %v2144
    %v8240 = vpop.f32.mrb[0].mxu0
    %v8241 = vadd.f32 %v8048, %v8240
    %v8242 = vpop.f32.mrb[0].mxu0
    %v8243 = vadd.f32 %v8050, %v8242
    %v8244 = vpop.f32.mrb[0].mxu0
    %v8245 = vadd.f32 %v8052, %v8244
    %v8246 = vpop.f32.mrb[0].mxu0
    %v8247 = vadd.f32 %v8054, %v8246
    %8248 = vmatprep.mubr.bf16.mxu0 %v2165
    %8249 = vmatmul.mubr.bf16.gmra.mrb[0].mxu0 %v2164
    %v8250 = vpop.f32.mrb[0].mxu0
    %v8251 = vadd.f32 %v8058, %v8250
    %v8252 = vpop.f32.mrb[0].mxu0
    %v8253 = vadd.f32 %v8060, %v8252
    %v8254 = vpop.f32.mrb[0].mxu0
    %v8255 = vadd.f32 %v8062, %v8254
    %v8256 = vpop.f32.mrb[0].mxu0
    %v8257 = vadd.f32 %v8064, %v8256
    %8258 = vmatprep.mubr.bf16.mxu0 %v2185
    %8259 = vmatmul.mubr.bf16.gmra.mrb[0].mxu0 %v2184
    %v8260 = vpop.f32.mrb[0].mxu0
    %v8261 = vadd.f32 %v8068, %v8260
    %v8262 = vpop.f32.mrb[0].mxu0
    %v8263 = vadd.f32 %v8070, %v8262
    %v8264 = vpop.f32.mrb[0].mxu0
    %v8265 = vadd.f32 %v8072, %v8264
    %v8266 = vpop.f32.mrb[0].mxu0
    %v8267 = vadd.f32 %v8074, %v8266
    %8268 = vmatprep.mubr.bf16.mxu0 %v2205
    %8269 = vmatmul.mubr.bf16.gmra.mrb[0].mxu0 %v2204
    %v8270 = vpop.f32.mrb[0].mxu0
    %v8271 = vadd.f32 %v8078, %v8270
    %v8272 = vpop.f32.mrb[0].mxu0
    %v8273 = vadd.f32 %v8080, %v8272
    %v8274 = vpop.f32.mrb[0].mxu0
    %v8275 = vadd.f32 %v8082, %v8274
    %v8276 = vpop.f32.mrb[0].mxu0
    %v8277 = vadd.f32 %v8084, %v8276
    %8278 = vmatprep.mubr.bf16.mxu0 %v2225
    %8279 = vmatmul.mubr.bf16.gmra.mrb[0].mxu0 %v2224
    %v8280 = vpop.f32.mrb[0].mxu0
    %v8281 = vadd.f32 %v8088, %v8280
    %v8282 = vpop.f32.mrb[0].mxu0
    %v8283 = vadd.f32 %v8090, %v8282
    %v8284 = vpop.f32.mrb[0].mxu0
    %v8285 = vadd.f32 %v8092, %v8284
    %v8286 = vpop.f32.mrb[0].mxu0
    %v8287 = vadd.f32 %v8094, %v8286
    %8288 = vmatprep.mubr.bf16.mxu0 %v2245
    %8289 = vmatmul.mubr.bf16.gmra.mrb[0].mxu0 %v2244
    %v8290 = vpop.f32.mrb[0].mxu0
    %v8291 = vadd.f32 %v8098, %v8290
    %v8292 = vpop.f32.mrb[0].mxu0
    %v8293 = vadd.f32 %v8100, %v8292
    %v8294 = vpop.f32.mrb[0].mxu0
    %v8295 = vadd.f32 %v8102, %v8294
    %v8296 = vpop.f32.mrb[0].mxu0
    %v8297 = vadd.f32 %v8104, %v8296
    %8298 = vmatprep.mubr.bf16.mxu0 %v2265
    %8299 = vmatmul.mubr.bf16.gmra.mrb[0].mxu0 %v2264
    %v8300 = vpop.f32.mrb[0].mxu0
    %v8301 = vadd.f32 %v8108, %v8300
    %v8302 = vpop.f32.mrb[0].mxu0
    %v8303 = vadd.f32 %v8110, %v8302
    %v8304 = vpop.f32.mrb[0].mxu0
    %v8305 = vadd.f32 %v8112, %v8304
    %v8306 = vpop.f32.mrb[0].mxu0
    %v8307 = vadd.f32 %v8114, %v8306
    %8308 = vdwg.mxu0
    %8309 = vmatprep.subr.bf16.mxu0 %v4715
    %8310 = vmatpush1.bf16.msra.mxu0 %v4714
    %8311 = vmatprep.subr.bf16.mxu0 %v4719
    %8312 = vmatpush1.bf16.msra.mxu0 %v4718
    %8313 = vmatprep.subr.bf16.mxu0 %v4723
    %8314 = vmatpush1.bf16.msra.mxu0 %v4722
    %8315 = vmatprep.subr.bf16.mxu0 %v4727
    %8316 = vmatpush1.bf16.msra.mxu0 %v4726
    %8317 = vmatprep.subr.bf16.mxu0 %v4731
    %8318 = vmatpush1.bf16.msra.mxu0 %v4730
    %8319 = vmatprep.subr.bf16.mxu0 %v4735
    %8320 = vmatpush1.bf16.msra.mxu0 %v4734
    %8321 = vmatprep.subr.bf16.mxu0 %v4739
    %8322 = vmatpush1.bf16.msra.mxu0 %v4738
    %8323 = vmatprep.subr.bf16.mxu0 %v4743
    %8324 = vmatpush1.bf16.msra.mxu0 %v4742
    %8325 = vmatprep.subr.bf16.mxu0 %v4747
    %8326 = vmatpush1.bf16.msra.mxu0 %v4746
    %8327 = vmatprep.subr.bf16.mxu0 %v4751
    %8328 = vmatpush1.bf16.msra.mxu0 %v4750
    %8329 = vmatprep.subr.bf16.mxu0 %v4755
    %8330 = vmatpush1.bf16.msra.mxu0 %v4754
    %8331 = vmatprep.subr.bf16.mxu0 %v4759
    %8332 = vmatpush1.bf16.msra.mxu0 %v4758
    %8333 = vmatprep.subr.bf16.mxu0 %v4763
    %8334 = vmatpush1.bf16.msra.mxu0 %v4762
    %8335 = vmatprep.subr.bf16.mxu0 %v4767
    %8336 = vmatpush1.bf16.msra.mxu0 %v4766
    %8337 = vmatprep.subr.bf16.mxu0 %v4771
    %8338 = vmatpush1.bf16.msra.mxu0 %v4770
    %8339 = vmatprep.subr.bf16.mxu0 %v4775
    %8340 = vmatpush1.bf16.msra.mxu0 %v4774
    %8341 = vmatprep.mubr.bf16.mxu0 %v1967
    %8342 = vmatmul.mubr.bf16.gmra.mrb[0].mxu0 %v1966
    %v8343 = vpop.f32.mrb[0].mxu0
    %v8344 = vadd.f32 %v8151, %v8343
    %v8345 = vpop.f32.mrb[0].mxu0
    %v8346 = vadd.f32 %v8153, %v8345
    %v8347 = vpop.f32.mrb[0].mxu0
    %v8348 = vadd.f32 %v8155, %v8347
    %v8349 = vpop.f32.mrb[0].mxu0
    %v8350 = vadd.f32 %v8157, %v8349
    %8351 = vmatprep.mubr.bf16.mxu0 %v1987
    %8352 = vmatmul.mubr.bf16.gmra.mrb[0].mxu0 %v1986
    %v8353 = vpop.f32.mrb[0].mxu0
    %v8354 = vadd.f32 %v8161, %v8353
    %v8355 = vpop.f32.mrb[0].mxu0
    %v8356 = vadd.f32 %v8163, %v8355
    %v8357 = vpop.f32.mrb[0].mxu0
    %v8358 = vadd.f32 %v8165, %v8357
    %v8359 = vpop.f32.mrb[0].mxu0
    %v8360 = vadd.f32 %v8167, %v8359
    %8361 = vmatprep.mubr.bf16.mxu0 %v2007
    %8362 = vmatmul.mubr.bf16.gmra.mrb[0].mxu0 %v2006
    %v8363 = vpop.f32.mrb[0].mxu0
    %v8364 = vadd.f32 %v8171, %v8363
    %v8365 = vpop.f32.mrb[0].mxu0
    %v8366 = vadd.f32 %v8173, %v8365
    %v8367 = vpop.f32.mrb[0].mxu0
    %v8368 = vadd.f32 %v8175, %v8367
    %v8369 = vpop.f32.mrb[0].mxu0
    %v8370 = vadd.f32 %v8177, %v8369
    %8371 = vmatprep.mubr.bf16.mxu0 %v2027
    %8372 = vmatmul.mubr.bf16.gmra.mrb[0].mxu0 %v2026
    %v8373 = vpop.f32.mrb[0].mxu0
    %v8374 = vadd.f32 %v8181, %v8373
    %v8375 = vpop.f32.mrb[0].mxu0
    %v8376 = vadd.f32 %v8183, %v8375
    %v8377 = vpop.f32.mrb[0].mxu0
    %v8378 = vadd.f32 %v8185, %v8377
    %v8379 = vpop.f32.mrb[0].mxu0
    %v8380 = vadd.f32 %v8187, %v8379
    %8381 = vmatprep.mubr.bf16.mxu0 %v2047
    %8382 = vmatmul.mubr.bf16.gmra.mrb[0].mxu0 %v2046
    %v8383 = vpop.f32.mrb[0].mxu0
    %v8384 = vadd.f32 %v8191, %v8383
    %v8385 = vpop.f32.mrb[0].mxu0
    %v8386 = vadd.f32 %v8193, %v8385
    %v8387 = vpop.f32.mrb[0].mxu0
    %v8388 = vadd.f32 %v8195, %v8387
    %v8389 = vpop.f32.mrb[0].mxu0
    %v8390 = vadd.f32 %v8197, %v8389
    %8391 = vmatprep.mubr.bf16.mxu0 %v2067
    %8392 = vmatmul.mubr.bf16.gmra.mrb[0].mxu0 %v2066
    %v8393 = vpop.f32.mrb[0].mxu0
    %v8394 = vadd.f32 %v8201, %v8393
    %v8395 = vpop.f32.mrb[0].mxu0
    %v8396 = vadd.f32 %v8203, %v8395
    %v8397 = vpop.f32.mrb[0].mxu0
    %v8398 = vadd.f32 %v8205, %v8397
    %v8399 = vpop.f32.mrb[0].mxu0
    %v8400 = vadd.f32 %v8207, %v8399
    %8401 = vmatprep.mubr.bf16.mxu0 %v2087
    %8402 = vmatmul.mubr.bf16.gmra.mrb[0].mxu0 %v2086
    %v8403 = vpop.f32.mrb[0].mxu0
    %v8404 = vadd.f32 %v8211, %v8403
    %v8405 = vpop.f32.mrb[0].mxu0
    %v8406 = vadd.f32 %v8213, %v8405
    %v8407 = vpop.f32.mrb[0].mxu0
    %v8408 = vadd.f32 %v8215, %v8407
    %v8409 = vpop.f32.mrb[0].mxu0
    %v8410 = vadd.f32 %v8217, %v8409
    %8411 = vmatprep.mubr.bf16.mxu0 %v2107
    %8412 = vmatmul.mubr.bf16.gmra.mrb[0].mxu0 %v2106
    %v8413 = vpop.f32.mrb[0].mxu0
    %v8414 = vadd.f32 %v8221, %v8413
    %v8415 = vpop.f32.mrb[0].mxu0
    %v8416 = vadd.f32 %v8223, %v8415
    %v8417 = vpop.f32.mrb[0].mxu0
    %v8418 = vadd.f32 %v8225, %v8417
    %v8419 = vpop.f32.mrb[0].mxu0
    %v8420 = vadd.f32 %v8227, %v8419
    %8421 = vmatprep.mubr.bf16.mxu0 %v2127
    %8422 = vmatmul.mubr.bf16.gmra.mrb[0].mxu0 %v2126
    %v8423 = vpop.f32.mrb[0].mxu0
    %v8424 = vadd.f32 %v8231, %v8423
    %v8425 = vpop.f32.mrb[0].mxu0
    %v8426 = vadd.f32 %v8233, %v8425
    %v8427 = vpop.f32.mrb[0].mxu0
    %v8428 = vadd.f32 %v8235, %v8427
    %v8429 = vpop.f32.mrb[0].mxu0
    %v8430 = vadd.f32 %v8237, %v8429
    %8431 = vmatprep.mubr.bf16.mxu0 %v2147
    %8432 = vmatmul.mubr.bf16.gmra.mrb[0].mxu0 %v2146
    %v8433 = vpop.f32.mrb[0].mxu0
    %v8434 = vadd.f32 %v8241, %v8433
    %v8435 = vpop.f32.mrb[0].mxu0
    %v8436 = vadd.f32 %v8243, %v8435
    %v8437 = vpop.f32.mrb[0].mxu0
    %v8438 = vadd.f32 %v8245, %v8437
    %v8439 = vpop.f32.mrb[0].mxu0
    %v8440 = vadd.f32 %v8247, %v8439
    %8441 = vmatprep.mubr.bf16.mxu0 %v2167
    %8442 = vmatmul.mubr.bf16.gmra.mrb[0].mxu0 %v2166
    %v8443 = vpop.f32.mrb[0].mxu0
    %v8444 = vadd.f32 %v8251, %v8443
    %v8445 = vpop.f32.mrb[0].mxu0
    %v8446 = vadd.f32 %v8253, %v8445
    %v8447 = vpop.f32.mrb[0].mxu0
    %v8448 = vadd.f32 %v8255, %v8447
    %v8449 = vpop.f32.mrb[0].mxu0
    %v8450 = vadd.f32 %v8257, %v8449
    %8451 = vmatprep.mubr.bf16.mxu0 %v2187
    %8452 = vmatmul.mubr.bf16.gmra.mrb[0].mxu0 %v2186
    %v8453 = vpop.f32.mrb[0].mxu0
    %v8454 = vadd.f32 %v8261, %v8453
    %v8455 = vpop.f32.mrb[0].mxu0
    %v8456 = vadd.f32 %v8263, %v8455
    %v8457 = vpop.f32.mrb[0].mxu0
    %v8458 = vadd.f32 %v8265, %v8457
    %v8459 = vpop.f32.mrb[0].mxu0
    %v8460 = vadd.f32 %v8267, %v8459
    %8461 = vmatprep.mubr.bf16.mxu0 %v2207
    %8462 = vmatmul.mubr.bf16.gmra.mrb[0].mxu0 %v2206
    %v8463 = vpop.f32.mrb[0].mxu0
    %v8464 = vadd.f32 %v8271, %v8463
    %v8465 = vpop.f32.mrb[0].mxu0
    %v8466 = vadd.f32 %v8273, %v8465
    %v8467 = vpop.f32.mrb[0].mxu0
    %v8468 = vadd.f32 %v8275, %v8467
    %v8469 = vpop.f32.mrb[0].mxu0
    %v8470 = vadd.f32 %v8277, %v8469
    %8471 = vmatprep.mubr.bf16.mxu0 %v2227
    %8472 = vmatmul.mubr.bf16.gmra.mrb[0].mxu0 %v2226
    %v8473 = vpop.f32.mrb[0].mxu0
    %v8474 = vadd.f32 %v8281, %v8473
    %v8475 = vpop.f32.mrb[0].mxu0
    %v8476 = vadd.f32 %v8283, %v8475
    %v8477 = vpop.f32.mrb[0].mxu0
    %v8478 = vadd.f32 %v8285, %v8477
    %v8479 = vpop.f32.mrb[0].mxu0
    %v8480 = vadd.f32 %v8287, %v8479
    %8481 = vmatprep.mubr.bf16.mxu0 %v2247
    %8482 = vmatmul.mubr.bf16.gmra.mrb[0].mxu0 %v2246
    %v8483 = vpop.f32.mrb[0].mxu0
    %v8484 = vadd.f32 %v8291, %v8483
    %v8485 = vpop.f32.mrb[0].mxu0
    %v8486 = vadd.f32 %v8293, %v8485
    %v8487 = vpop.f32.mrb[0].mxu0
    %v8488 = vadd.f32 %v8295, %v8487
    %v8489 = vpop.f32.mrb[0].mxu0
    %v8490 = vadd.f32 %v8297, %v8489
    %8491 = vmatprep.mubr.bf16.mxu0 %v2267
    %8492 = vmatmul.mubr.bf16.gmra.mrb[0].mxu0 %v2266
    %v8493 = vpop.f32.mrb[0].mxu0
    %v8494 = vadd.f32 %v8301, %v8493
    %v8495 = vpop.f32.mrb[0].mxu0
    %v8496 = vadd.f32 %v8303, %v8495
    %v8497 = vpop.f32.mrb[0].mxu0
    %v8498 = vadd.f32 %v8305, %v8497
    %v8499 = vpop.f32.mrb[0].mxu0
    %v8500 = vadd.f32 %v8307, %v8499
    %8501 = vdwg.mxu0
    %8502 = vmatprep.subr.bf16.mxu0 %v4779
    %8503 = vmatpush1.bf16.msra.mxu0 %v4778
    %8504 = vmatprep.subr.bf16.mxu0 %v4783
    %8505 = vmatpush1.bf16.msra.mxu0 %v4782
    %8506 = vmatprep.subr.bf16.mxu0 %v4787
    %8507 = vmatpush1.bf16.msra.mxu0 %v4786
    %8508 = vmatprep.subr.bf16.mxu0 %v4791
    %8509 = vmatpush1.bf16.msra.mxu0 %v4790
    %8510 = vmatprep.subr.bf16.mxu0 %v4795
    %8511 = vmatpush1.bf16.msra.mxu0 %v4794
    %8512 = vmatprep.subr.bf16.mxu0 %v4799
    %8513 = vmatpush1.bf16.msra.mxu0 %v4798
    %8514 = vmatprep.subr.bf16.mxu0 %v4803
    %8515 = vmatpush1.bf16.msra.mxu0 %v4802
    %8516 = vmatprep.subr.bf16.mxu0 %v4807
    %8517 = vmatpush1.bf16.msra.mxu0 %v4806
    %8518 = vmatprep.subr.bf16.mxu0 %v4811
    %8519 = vmatpush1.bf16.msra.mxu0 %v4810
    %8520 = vmatprep.subr.bf16.mxu0 %v4815
    %8521 = vmatpush1.bf16.msra.mxu0 %v4814
    %8522 = vmatprep.subr.bf16.mxu0 %v4819
    %8523 = vmatpush1.bf16.msra.mxu0 %v4818
    %8524 = vmatprep.subr.bf16.mxu0 %v4823
    %8525 = vmatpush1.bf16.msra.mxu0 %v4822
    %8526 = vmatprep.subr.bf16.mxu0 %v4827
    %8527 = vmatpush1.bf16.msra.mxu0 %v4826
    %8528 = vmatprep.subr.bf16.mxu0 %v4831
    %8529 = vmatpush1.bf16.msra.mxu0 %v4830
    %8530 = vmatprep.subr.bf16.mxu0 %v4835
    %8531 = vmatpush1.bf16.msra.mxu0 %v4834
    %8532 = vmatprep.subr.bf16.mxu0 %v4839
    %8533 = vmatpush1.bf16.msra.mxu0 %v4838
    %8534 = vmatprep.mubr.bf16.mxu0 %v1969
    %8535 = vmatmul.mubr.bf16.gmra.mrb[0].mxu0 %v1968
    %v8536 = vpop.f32.mrb[0].mxu0
    %v8537 = vadd.f32 %v8344, %v8536
    %v8538 = vpop.f32.mrb[0].mxu0
    %v8539 = vadd.f32 %v8346, %v8538
    %v8540 = vpop.f32.mrb[0].mxu0
    %v8541 = vadd.f32 %v8348, %v8540
    %v8542 = vpop.f32.mrb[0].mxu0
    %v8543 = vadd.f32 %v8350, %v8542
    %8544 = vmatprep.mubr.bf16.mxu0 %v1989
    %8545 = vmatmul.mubr.bf16.gmra.mrb[0].mxu0 %v1988
    %v8546 = vpop.f32.mrb[0].mxu0
    %v8547 = vadd.f32 %v8354, %v8546
    %v8548 = vpop.f32.mrb[0].mxu0
    %v8549 = vadd.f32 %v8356, %v8548
    %v8550 = vpop.f32.mrb[0].mxu0
    %v8551 = vadd.f32 %v8358, %v8550
    %v8552 = vpop.f32.mrb[0].mxu0
    %v8553 = vadd.f32 %v8360, %v8552
    %8554 = vmatprep.mubr.bf16.mxu0 %v2009
    %8555 = vmatmul.mubr.bf16.gmra.mrb[0].mxu0 %v2008
    %v8556 = vpop.f32.mrb[0].mxu0
    %v8557 = vadd.f32 %v8364, %v8556
    %v8558 = vpop.f32.mrb[0].mxu0
    %v8559 = vadd.f32 %v8366, %v8558
    %v8560 = vpop.f32.mrb[0].mxu0
    %v8561 = vadd.f32 %v8368, %v8560
    %v8562 = vpop.f32.mrb[0].mxu0
    %v8563 = vadd.f32 %v8370, %v8562
    %8564 = vmatprep.mubr.bf16.mxu0 %v2029
    %8565 = vmatmul.mubr.bf16.gmra.mrb[0].mxu0 %v2028
    %v8566 = vpop.f32.mrb[0].mxu0
    %v8567 = vadd.f32 %v8374, %v8566
    %v8568 = vpop.f32.mrb[0].mxu0
    %v8569 = vadd.f32 %v8376, %v8568
    %v8570 = vpop.f32.mrb[0].mxu0
    %v8571 = vadd.f32 %v8378, %v8570
    %v8572 = vpop.f32.mrb[0].mxu0
    %v8573 = vadd.f32 %v8380, %v8572
    %8574 = vmatprep.mubr.bf16.mxu0 %v2049
    %8575 = vmatmul.mubr.bf16.gmra.mrb[0].mxu0 %v2048
    %v8576 = vpop.f32.mrb[0].mxu0
    %v8577 = vadd.f32 %v8384, %v8576
    %v8578 = vpop.f32.mrb[0].mxu0
    %v8579 = vadd.f32 %v8386, %v8578
    %v8580 = vpop.f32.mrb[0].mxu0
    %v8581 = vadd.f32 %v8388, %v8580
    %v8582 = vpop.f32.mrb[0].mxu0
    %v8583 = vadd.f32 %v8390, %v8582
    %8584 = vmatprep.mubr.bf16.mxu0 %v2069
    %8585 = vmatmul.mubr.bf16.gmra.mrb[0].mxu0 %v2068
    %v8586 = vpop.f32.mrb[0].mxu0
    %v8587 = vadd.f32 %v8394, %v8586
    %v8588 = vpop.f32.mrb[0].mxu0
    %v8589 = vadd.f32 %v8396, %v8588
    %v8590 = vpop.f32.mrb[0].mxu0
    %v8591 = vadd.f32 %v8398, %v8590
    %v8592 = vpop.f32.mrb[0].mxu0
    %v8593 = vadd.f32 %v8400, %v8592
    %8594 = vmatprep.mubr.bf16.mxu0 %v2089
    %8595 = vmatmul.mubr.bf16.gmra.mrb[0].mxu0 %v2088
    %v8596 = vpop.f32.mrb[0].mxu0
    %v8597 = vadd.f32 %v8404, %v8596
    %v8598 = vpop.f32.mrb[0].mxu0
    %v8599 = vadd.f32 %v8406, %v8598
    %v8600 = vpop.f32.mrb[0].mxu0
    %v8601 = vadd.f32 %v8408, %v8600
    %v8602 = vpop.f32.mrb[0].mxu0
    %v8603 = vadd.f32 %v8410, %v8602
    %8604 = vmatprep.mubr.bf16.mxu0 %v2109
    %8605 = vmatmul.mubr.bf16.gmra.mrb[0].mxu0 %v2108
    %v8606 = vpop.f32.mrb[0].mxu0
    %v8607 = vadd.f32 %v8414, %v8606
    %v8608 = vpop.f32.mrb[0].mxu0
    %v8609 = vadd.f32 %v8416, %v8608
    %v8610 = vpop.f32.mrb[0].mxu0
    %v8611 = vadd.f32 %v8418, %v8610
    %v8612 = vpop.f32.mrb[0].mxu0
    %v8613 = vadd.f32 %v8420, %v8612
    %8614 = vmatprep.mubr.bf16.mxu0 %v2129
    %8615 = vmatmul.mubr.bf16.gmra.mrb[0].mxu0 %v2128
    %v8616 = vpop.f32.mrb[0].mxu0
    %v8617 = vadd.f32 %v8424, %v8616
    %v8618 = vpop.f32.mrb[0].mxu0
    %v8619 = vadd.f32 %v8426, %v8618
    %v8620 = vpop.f32.mrb[0].mxu0
    %v8621 = vadd.f32 %v8428, %v8620
    %v8622 = vpop.f32.mrb[0].mxu0
    %v8623 = vadd.f32 %v8430, %v8622
    %8624 = vmatprep.mubr.bf16.mxu0 %v2149
    %8625 = vmatmul.mubr.bf16.gmra.mrb[0].mxu0 %v2148
    %v8626 = vpop.f32.mrb[0].mxu0
    %v8627 = vadd.f32 %v8434, %v8626
    %v8628 = vpop.f32.mrb[0].mxu0
    %v8629 = vadd.f32 %v8436, %v8628
    %v8630 = vpop.f32.mrb[0].mxu0
    %v8631 = vadd.f32 %v8438, %v8630
    %v8632 = vpop.f32.mrb[0].mxu0
    %v8633 = vadd.f32 %v8440, %v8632
    %8634 = vmatprep.mubr.bf16.mxu0 %v2169
    %8635 = vmatmul.mubr.bf16.gmra.mrb[0].mxu0 %v2168
    %v8636 = vpop.f32.mrb[0].mxu0
    %v8637 = vadd.f32 %v8444, %v8636
    %v8638 = vpop.f32.mrb[0].mxu0
    %v8639 = vadd.f32 %v8446, %v8638
    %v8640 = vpop.f32.mrb[0].mxu0
    %v8641 = vadd.f32 %v8448, %v8640
    %v8642 = vpop.f32.mrb[0].mxu0
    %v8643 = vadd.f32 %v8450, %v8642
    %8644 = vmatprep.mubr.bf16.mxu0 %v2189
    %8645 = vmatmul.mubr.bf16.gmra.mrb[0].mxu0 %v2188
    %v8646 = vpop.f32.mrb[0].mxu0
    %v8647 = vadd.f32 %v8454, %v8646
    %v8648 = vpop.f32.mrb[0].mxu0
    %v8649 = vadd.f32 %v8456, %v8648
    %v8650 = vpop.f32.mrb[0].mxu0
    %v8651 = vadd.f32 %v8458, %v8650
    %v8652 = vpop.f32.mrb[0].mxu0
    %v8653 = vadd.f32 %v8460, %v8652
    %8654 = vmatprep.mubr.bf16.mxu0 %v2209
    %8655 = vmatmul.mubr.bf16.gmra.mrb[0].mxu0 %v2208
    %v8656 = vpop.f32.mrb[0].mxu0
    %v8657 = vadd.f32 %v8464, %v8656
    %v8658 = vpop.f32.mrb[0].mxu0
    %v8659 = vadd.f32 %v8466, %v8658
    %v8660 = vpop.f32.mrb[0].mxu0
    %v8661 = vadd.f32 %v8468, %v8660
    %v8662 = vpop.f32.mrb[0].mxu0
    %v8663 = vadd.f32 %v8470, %v8662
    %8664 = vmatprep.mubr.bf16.mxu0 %v2229
    %8665 = vmatmul.mubr.bf16.gmra.mrb[0].mxu0 %v2228
    %v8666 = vpop.f32.mrb[0].mxu0
    %v8667 = vadd.f32 %v8474, %v8666
    %v8668 = vpop.f32.mrb[0].mxu0
    %v8669 = vadd.f32 %v8476, %v8668
    %v8670 = vpop.f32.mrb[0].mxu0
    %v8671 = vadd.f32 %v8478, %v8670
    %v8672 = vpop.f32.mrb[0].mxu0
    %v8673 = vadd.f32 %v8480, %v8672
    %8674 = vmatprep.mubr.bf16.mxu0 %v2249
    %8675 = vmatmul.mubr.bf16.gmra.mrb[0].mxu0 %v2248
    %v8676 = vpop.f32.mrb[0].mxu0
    %v8677 = vadd.f32 %v8484, %v8676
    %v8678 = vpop.f32.mrb[0].mxu0
    %v8679 = vadd.f32 %v8486, %v8678
    %v8680 = vpop.f32.mrb[0].mxu0
    %v8681 = vadd.f32 %v8488, %v8680
    %v8682 = vpop.f32.mrb[0].mxu0
    %v8683 = vadd.f32 %v8490, %v8682
    %8684 = vmatprep.mubr.bf16.mxu0 %v2269
    %8685 = vmatmul.mubr.bf16.gmra.mrb[0].mxu0 %v2268
    %v8686 = vpop.f32.mrb[0].mxu0
    %v8687 = vadd.f32 %v8494, %v8686
    %v8688 = vpop.f32.mrb[0].mxu0
    %v8689 = vadd.f32 %v8496, %v8688
    %v8690 = vpop.f32.mrb[0].mxu0
    %v8691 = vadd.f32 %v8498, %v8690
    %v8692 = vpop.f32.mrb[0].mxu0
    %v8693 = vadd.f32 %v8500, %v8692
    %8694 = vdwg.mxu0
    %8695 = vmatprep.subr.bf16.mxu0 %v4843
    %8696 = vmatpush1.bf16.msra.mxu0 %v4842
    %8697 = vmatprep.subr.bf16.mxu0 %v4847
    %8698 = vmatpush1.bf16.msra.mxu0 %v4846
    %8699 = vmatprep.subr.bf16.mxu0 %v4851
    %8700 = vmatpush1.bf16.msra.mxu0 %v4850
    %8701 = vmatprep.subr.bf16.mxu0 %v4855
    %8702 = vmatpush1.bf16.msra.mxu0 %v4854
    %8703 = vmatprep.subr.bf16.mxu0 %v4859
    %8704 = vmatpush1.bf16.msra.mxu0 %v4858
    %8705 = vmatprep.subr.bf16.mxu0 %v4863
    %8706 = vmatpush1.bf16.msra.mxu0 %v4862
    %8707 = vmatprep.subr.bf16.mxu0 %v4867
    %8708 = vmatpush1.bf16.msra.mxu0 %v4866
    %8709 = vmatprep.subr.bf16.mxu0 %v4871
    %8710 = vmatpush1.bf16.msra.mxu0 %v4870
    %8711 = vmatprep.subr.bf16.mxu0 %v4875
    %8712 = vmatpush1.bf16.msra.mxu0 %v4874
    %8713 = vmatprep.subr.bf16.mxu0 %v4879
    %8714 = vmatpush1.bf16.msra.mxu0 %v4878
    %8715 = vmatprep.subr.bf16.mxu0 %v4883
    %8716 = vmatpush1.bf16.msra.mxu0 %v4882
    %8717 = vmatprep.subr.bf16.mxu0 %v4887
    %8718 = vmatpush1.bf16.msra.mxu0 %v4886
    %8719 = vmatprep.subr.bf16.mxu0 %v4891
    %8720 = vmatpush1.bf16.msra.mxu0 %v4890
    %8721 = vmatprep.subr.bf16.mxu0 %v4895
    %8722 = vmatpush1.bf16.msra.mxu0 %v4894
    %8723 = vmatprep.subr.bf16.mxu0 %v4899
    %8724 = vmatpush1.bf16.msra.mxu0 %v4898
    %8725 = vmatprep.subr.bf16.mxu0 %v4903
    %8726 = vmatpush1.bf16.msra.mxu0 %v4902
    %8727 = vmatprep.mubr.bf16.mxu0 %v1971
    %8728 = vmatmul.mubr.bf16.gmra.mrb[0].mxu0 %v1970
    %v8729 = vpop.f32.mrb[0].mxu0
    %v8730 = vadd.f32 %v8537, %v8729
    %v8731 = vpop.f32.mrb[0].mxu0
    %v8732 = vadd.f32 %v8539, %v8731
    %v8733 = vpop.f32.mrb[0].mxu0
    %v8734 = vadd.f32 %v8541, %v8733
    %v8735 = vpop.f32.mrb[0].mxu0
    %v8736 = vadd.f32 %v8543, %v8735
    %8737 = vmatprep.mubr.bf16.mxu0 %v1991
    %8738 = vmatmul.mubr.bf16.gmra.mrb[0].mxu0 %v1990
    %v8739 = vpop.f32.mrb[0].mxu0
    %v8740 = vadd.f32 %v8547, %v8739
    %v8741 = vpop.f32.mrb[0].mxu0
    %v8742 = vadd.f32 %v8549, %v8741
    %v8743 = vpop.f32.mrb[0].mxu0
    %v8744 = vadd.f32 %v8551, %v8743
    %v8745 = vpop.f32.mrb[0].mxu0
    %v8746 = vadd.f32 %v8553, %v8745
    %8747 = vmatprep.mubr.bf16.mxu0 %v2011
    %8748 = vmatmul.mubr.bf16.gmra.mrb[0].mxu0 %v2010
    %v8749 = vpop.f32.mrb[0].mxu0
    %v8750 = vadd.f32 %v8557, %v8749
    %v8751 = vpop.f32.mrb[0].mxu0
    %v8752 = vadd.f32 %v8559, %v8751
    %v8753 = vpop.f32.mrb[0].mxu0
    %v8754 = vadd.f32 %v8561, %v8753
    %v8755 = vpop.f32.mrb[0].mxu0
    %v8756 = vadd.f32 %v8563, %v8755
    %8757 = vmatprep.mubr.bf16.mxu0 %v2031
    %8758 = vmatmul.mubr.bf16.gmra.mrb[0].mxu0 %v2030
    %v8759 = vpop.f32.mrb[0].mxu0
    %v8760 = vadd.f32 %v8567, %v8759
    %v8761 = vpop.f32.mrb[0].mxu0
    %v8762 = vadd.f32 %v8569, %v8761
    %v8763 = vpop.f32.mrb[0].mxu0
    %v8764 = vadd.f32 %v8571, %v8763
    %v8765 = vpop.f32.mrb[0].mxu0
    %v8766 = vadd.f32 %v8573, %v8765
    %8767 = vmatprep.mubr.bf16.mxu0 %v2051
    %8768 = vmatmul.mubr.bf16.gmra.mrb[0].mxu0 %v2050
    %v8769 = vpop.f32.mrb[0].mxu0
    %v8770 = vadd.f32 %v8577, %v8769
    %v8771 = vpop.f32.mrb[0].mxu0
    %v8772 = vadd.f32 %v8579, %v8771
    %v8773 = vpop.f32.mrb[0].mxu0
    %v8774 = vadd.f32 %v8581, %v8773
    %v8775 = vpop.f32.mrb[0].mxu0
    %v8776 = vadd.f32 %v8583, %v8775
    %8777 = vmatprep.mubr.bf16.mxu0 %v2071
    %8778 = vmatmul.mubr.bf16.gmra.mrb[0].mxu0 %v2070
    %v8779 = vpop.f32.mrb[0].mxu0
    %v8780 = vadd.f32 %v8587, %v8779
    %v8781 = vpop.f32.mrb[0].mxu0
    %v8782 = vadd.f32 %v8589, %v8781
    %v8783 = vpop.f32.mrb[0].mxu0
    %v8784 = vadd.f32 %v8591, %v8783
    %v8785 = vpop.f32.mrb[0].mxu0
    %v8786 = vadd.f32 %v8593, %v8785
    %8787 = vmatprep.mubr.bf16.mxu0 %v2091
    %8788 = vmatmul.mubr.bf16.gmra.mrb[0].mxu0 %v2090
    %v8789 = vpop.f32.mrb[0].mxu0
    %v8790 = vadd.f32 %v8597, %v8789
    %v8791 = vpop.f32.mrb[0].mxu0
    %v8792 = vadd.f32 %v8599, %v8791
    %v8793 = vpop.f32.mrb[0].mxu0
    %v8794 = vadd.f32 %v8601, %v8793
    %v8795 = vpop.f32.mrb[0].mxu0
    %v8796 = vadd.f32 %v8603, %v8795
    %8797 = vmatprep.mubr.bf16.mxu0 %v2111
    %8798 = vmatmul.mubr.bf16.gmra.mrb[0].mxu0 %v2110
    %v8799 = vpop.f32.mrb[0].mxu0
    %v8800 = vadd.f32 %v8607, %v8799
    %v8801 = vpop.f32.mrb[0].mxu0
    %v8802 = vadd.f32 %v8609, %v8801
    %v8803 = vpop.f32.mrb[0].mxu0
    %v8804 = vadd.f32 %v8611, %v8803
    %v8805 = vpop.f32.mrb[0].mxu0
    %v8806 = vadd.f32 %v8613, %v8805
    %8807 = vmatprep.mubr.bf16.mxu0 %v2131
    %8808 = vmatmul.mubr.bf16.gmra.mrb[0].mxu0 %v2130
    %v8809 = vpop.f32.mrb[0].mxu0
    %v8810 = vadd.f32 %v8617, %v8809
    %v8811 = vpop.f32.mrb[0].mxu0
    %v8812 = vadd.f32 %v8619, %v8811
    %v8813 = vpop.f32.mrb[0].mxu0
    %v8814 = vadd.f32 %v8621, %v8813
    %v8815 = vpop.f32.mrb[0].mxu0
    %v8816 = vadd.f32 %v8623, %v8815
    %8817 = vmatprep.mubr.bf16.mxu0 %v2151
    %8818 = vmatmul.mubr.bf16.gmra.mrb[0].mxu0 %v2150
    %v8819 = vpop.f32.mrb[0].mxu0
    %v8820 = vadd.f32 %v8627, %v8819
    %v8821 = vpop.f32.mrb[0].mxu0
    %v8822 = vadd.f32 %v8629, %v8821
    %v8823 = vpop.f32.mrb[0].mxu0
    %v8824 = vadd.f32 %v8631, %v8823
    %v8825 = vpop.f32.mrb[0].mxu0
    %v8826 = vadd.f32 %v8633, %v8825
    %8827 = vmatprep.mubr.bf16.mxu0 %v2171
    %8828 = vmatmul.mubr.bf16.gmra.mrb[0].mxu0 %v2170
    %v8829 = vpop.f32.mrb[0].mxu0
    %v8830 = vadd.f32 %v8637, %v8829
    %v8831 = vpop.f32.mrb[0].mxu0
    %v8832 = vadd.f32 %v8639, %v8831
    %v8833 = vpop.f32.mrb[0].mxu0
    %v8834 = vadd.f32 %v8641, %v8833
    %v8835 = vpop.f32.mrb[0].mxu0
    %v8836 = vadd.f32 %v8643, %v8835
    %8837 = vmatprep.mubr.bf16.mxu0 %v2191
    %8838 = vmatmul.mubr.bf16.gmra.mrb[0].mxu0 %v2190
    %v8839 = vpop.f32.mrb[0].mxu0
    %v8840 = vadd.f32 %v8647, %v8839
    %v8841 = vpop.f32.mrb[0].mxu0
    %v8842 = vadd.f32 %v8649, %v8841
    %v8843 = vpop.f32.mrb[0].mxu0
    %v8844 = vadd.f32 %v8651, %v8843
    %v8845 = vpop.f32.mrb[0].mxu0
    %v8846 = vadd.f32 %v8653, %v8845
    %8847 = vmatprep.mubr.bf16.mxu0 %v2211
    %8848 = vmatmul.mubr.bf16.gmra.mrb[0].mxu0 %v2210
    %v8849 = vpop.f32.mrb[0].mxu0
    %v8850 = vadd.f32 %v8657, %v8849
    %v8851 = vpop.f32.mrb[0].mxu0
    %v8852 = vadd.f32 %v8659, %v8851
    %v8853 = vpop.f32.mrb[0].mxu0
    %v8854 = vadd.f32 %v8661, %v8853
    %v8855 = vpop.f32.mrb[0].mxu0
    %v8856 = vadd.f32 %v8663, %v8855
    %8857 = vmatprep.mubr.bf16.mxu0 %v2231
    %8858 = vmatmul.mubr.bf16.gmra.mrb[0].mxu0 %v2230
    %v8859 = vpop.f32.mrb[0].mxu0
    %v8860 = vadd.f32 %v8667, %v8859
    %v8861 = vpop.f32.mrb[0].mxu0
    %v8862 = vadd.f32 %v8669, %v8861
    %v8863 = vpop.f32.mrb[0].mxu0
    %v8864 = vadd.f32 %v8671, %v8863
    %v8865 = vpop.f32.mrb[0].mxu0
    %v8866 = vadd.f32 %v8673, %v8865
    %8867 = vmatprep.mubr.bf16.mxu0 %v2251
    %8868 = vmatmul.mubr.bf16.gmra.mrb[0].mxu0 %v2250
    %v8869 = vpop.f32.mrb[0].mxu0
    %v8870 = vadd.f32 %v8677, %v8869
    %v8871 = vpop.f32.mrb[0].mxu0
    %v8872 = vadd.f32 %v8679, %v8871
    %v8873 = vpop.f32.mrb[0].mxu0
    %v8874 = vadd.f32 %v8681, %v8873
    %v8875 = vpop.f32.mrb[0].mxu0
    %v8876 = vadd.f32 %v8683, %v8875
    %8877 = vmatprep.mubr.bf16.mxu0 %v2271
    %8878 = vmatmul.mubr.bf16.gmra.mrb[0].mxu0 %v2270
    %v8879 = vpop.f32.mrb[0].mxu0
    %v8880 = vadd.f32 %v8687, %v8879
    %v8881 = vpop.f32.mrb[0].mxu0
    %v8882 = vadd.f32 %v8689, %v8881
    %v8883 = vpop.f32.mrb[0].mxu0
    %v8884 = vadd.f32 %v8691, %v8883
    %v8885 = vpop.f32.mrb[0].mxu0
    %v8886 = vadd.f32 %v8693, %v8885
    %8887 = vdwg.mxu0
    %8888 = vmatprep.subr.bf16.mxu0 %v4907
    %8889 = vmatpush1.bf16.msra.mxu0 %v4906
    %8890 = vmatprep.subr.bf16.mxu0 %v4911
    %8891 = vmatpush1.bf16.msra.mxu0 %v4910
    %8892 = vmatprep.subr.bf16.mxu0 %v4915
    %8893 = vmatpush1.bf16.msra.mxu0 %v4914
    %8894 = vmatprep.subr.bf16.mxu0 %v4919
    %8895 = vmatpush1.bf16.msra.mxu0 %v4918
    %8896 = vmatprep.subr.bf16.mxu0 %v4923
    %8897 = vmatpush1.bf16.msra.mxu0 %v4922
    %8898 = vmatprep.subr.bf16.mxu0 %v4927
    %8899 = vmatpush1.bf16.msra.mxu0 %v4926
    %8900 = vmatprep.subr.bf16.mxu0 %v4931
    %8901 = vmatpush1.bf16.msra.mxu0 %v4930
    %8902 = vmatprep.subr.bf16.mxu0 %v4935
    %8903 = vmatpush1.bf16.msra.mxu0 %v4934
    %8904 = vmatprep.subr.bf16.mxu0 %v4939
    %8905 = vmatpush1.bf16.msra.mxu0 %v4938
    %8906 = vmatprep.subr.bf16.mxu0 %v4943
    %8907 = vmatpush1.bf16.msra.mxu0 %v4942
    %8908 = vmatprep.subr.bf16.mxu0 %v4947
    %8909 = vmatpush1.bf16.msra.mxu0 %v4946
    %8910 = vmatprep.subr.bf16.mxu0 %v4951
    %8911 = vmatpush1.bf16.msra.mxu0 %v4950
    %8912 = vmatprep.subr.bf16.mxu0 %v4955
    %8913 = vmatpush1.bf16.msra.mxu0 %v4954
    %8914 = vmatprep.subr.bf16.mxu0 %v4959
    %8915 = vmatpush1.bf16.msra.mxu0 %v4958
    %8916 = vmatprep.subr.bf16.mxu0 %v4963
    %8917 = vmatpush1.bf16.msra.mxu0 %v4962
    %8918 = vmatprep.subr.bf16.mxu0 %v4967
    %8919 = vmatpush1.bf16.msra.mxu0 %v4966
    %8920 = vmatprep.mubr.bf16.mxu0 %v1973
    %8921 = vmatmul.mubr.bf16.gmra.mrb[0].mxu0 %v1972
    %v8922 = vpop.f32.mrb[0].mxu0
    %v8923 = vadd.f32 %v8730, %v8922
    %v8924 = vpop.f32.mrb[0].mxu0
    %v8925 = vadd.f32 %v8732, %v8924
    %v8926 = vpop.f32.mrb[0].mxu0
    %v8927 = vadd.f32 %v8734, %v8926
    %v8928 = vpop.f32.mrb[0].mxu0
    %v8929 = vadd.f32 %v8736, %v8928
    %8930 = vmatprep.mubr.bf16.mxu0 %v1993
    %8931 = vmatmul.mubr.bf16.gmra.mrb[0].mxu0 %v1992
    %v8932 = vpop.f32.mrb[0].mxu0
    %v8933 = vadd.f32 %v8740, %v8932
    %v8934 = vpop.f32.mrb[0].mxu0
    %v8935 = vadd.f32 %v8742, %v8934
    %v8936 = vpop.f32.mrb[0].mxu0
    %v8937 = vadd.f32 %v8744, %v8936
    %v8938 = vpop.f32.mrb[0].mxu0
    %v8939 = vadd.f32 %v8746, %v8938
    %8940 = vmatprep.mubr.bf16.mxu0 %v2013
    %8941 = vmatmul.mubr.bf16.gmra.mrb[0].mxu0 %v2012
    %v8942 = vpop.f32.mrb[0].mxu0
    %v8943 = vadd.f32 %v8750, %v8942
    %v8944 = vpop.f32.mrb[0].mxu0
    %v8945 = vadd.f32 %v8752, %v8944
    %v8946 = vpop.f32.mrb[0].mxu0
    %v8947 = vadd.f32 %v8754, %v8946
    %v8948 = vpop.f32.mrb[0].mxu0
    %v8949 = vadd.f32 %v8756, %v8948
    %8950 = vmatprep.mubr.bf16.mxu0 %v2033
    %8951 = vmatmul.mubr.bf16.gmra.mrb[0].mxu0 %v2032
    %v8952 = vpop.f32.mrb[0].mxu0
    %v8953 = vadd.f32 %v8760, %v8952
    %v8954 = vpop.f32.mrb[0].mxu0
    %v8955 = vadd.f32 %v8762, %v8954
    %v8956 = vpop.f32.mrb[0].mxu0
    %v8957 = vadd.f32 %v8764, %v8956
    %v8958 = vpop.f32.mrb[0].mxu0
    %v8959 = vadd.f32 %v8766, %v8958
    %8960 = vmatprep.mubr.bf16.mxu0 %v2053
    %8961 = vmatmul.mubr.bf16.gmra.mrb[0].mxu0 %v2052
    %v8962 = vpop.f32.mrb[0].mxu0
    %v8963 = vadd.f32 %v8770, %v8962
    %v8964 = vpop.f32.mrb[0].mxu0
    %v8965 = vadd.f32 %v8772, %v8964
    %v8966 = vpop.f32.mrb[0].mxu0
    %v8967 = vadd.f32 %v8774, %v8966
    %v8968 = vpop.f32.mrb[0].mxu0
    %v8969 = vadd.f32 %v8776, %v8968
    %8970 = vmatprep.mubr.bf16.mxu0 %v2073
    %8971 = vmatmul.mubr.bf16.gmra.mrb[0].mxu0 %v2072
    %v8972 = vpop.f32.mrb[0].mxu0
    %v8973 = vadd.f32 %v8780, %v8972
    %v8974 = vpop.f32.mrb[0].mxu0
    %v8975 = vadd.f32 %v8782, %v8974
    %v8976 = vpop.f32.mrb[0].mxu0
    %v8977 = vadd.f32 %v8784, %v8976
    %v8978 = vpop.f32.mrb[0].mxu0
    %v8979 = vadd.f32 %v8786, %v8978
    %8980 = vmatprep.mubr.bf16.mxu0 %v2093
    %8981 = vmatmul.mubr.bf16.gmra.mrb[0].mxu0 %v2092
    %v8982 = vpop.f32.mrb[0].mxu0
    %v8983 = vadd.f32 %v8790, %v8982
    %v8984 = vpop.f32.mrb[0].mxu0
    %v8985 = vadd.f32 %v8792, %v8984
    %v8986 = vpop.f32.mrb[0].mxu0
    %v8987 = vadd.f32 %v8794, %v8986
    %v8988 = vpop.f32.mrb[0].mxu0
    %v8989 = vadd.f32 %v8796, %v8988
    %8990 = vmatprep.mubr.bf16.mxu0 %v2113
    %8991 = vmatmul.mubr.bf16.gmra.mrb[0].mxu0 %v2112
    %v8992 = vpop.f32.mrb[0].mxu0
    %v8993 = vadd.f32 %v8800, %v8992
    %v8994 = vpop.f32.mrb[0].mxu0
    %v8995 = vadd.f32 %v8802, %v8994
    %v8996 = vpop.f32.mrb[0].mxu0
    %v8997 = vadd.f32 %v8804, %v8996
    %v8998 = vpop.f32.mrb[0].mxu0
    %v8999 = vadd.f32 %v8806, %v8998
    %9000 = vmatprep.mubr.bf16.mxu0 %v2133
    %9001 = vmatmul.mubr.bf16.gmra.mrb[0].mxu0 %v2132
    %v9002 = vpop.f32.mrb[0].mxu0
    %v9003 = vadd.f32 %v8810, %v9002
    %v9004 = vpop.f32.mrb[0].mxu0
    %v9005 = vadd.f32 %v8812, %v9004
    %v9006 = vpop.f32.mrb[0].mxu0
    %v9007 = vadd.f32 %v8814, %v9006
    %v9008 = vpop.f32.mrb[0].mxu0
    %v9009 = vadd.f32 %v8816, %v9008
    %9010 = vmatprep.mubr.bf16.mxu0 %v2153
    %9011 = vmatmul.mubr.bf16.gmra.mrb[0].mxu0 %v2152
    %v9012 = vpop.f32.mrb[0].mxu0
    %v9013 = vadd.f32 %v8820, %v9012
    %v9014 = vpop.f32.mrb[0].mxu0
    %v9015 = vadd.f32 %v8822, %v9014
    %v9016 = vpop.f32.mrb[0].mxu0
    %v9017 = vadd.f32 %v8824, %v9016
    %v9018 = vpop.f32.mrb[0].mxu0
    %v9019 = vadd.f32 %v8826, %v9018
    %9020 = vmatprep.mubr.bf16.mxu0 %v2173
    %9021 = vmatmul.mubr.bf16.gmra.mrb[0].mxu0 %v2172
    %v9022 = vpop.f32.mrb[0].mxu0
    %v9023 = vadd.f32 %v8830, %v9022
    %v9024 = vpop.f32.mrb[0].mxu0
    %v9025 = vadd.f32 %v8832, %v9024
    %v9026 = vpop.f32.mrb[0].mxu0
    %v9027 = vadd.f32 %v8834, %v9026
    %v9028 = vpop.f32.mrb[0].mxu0
    %v9029 = vadd.f32 %v8836, %v9028
    %9030 = vmatprep.mubr.bf16.mxu0 %v2193
    %9031 = vmatmul.mubr.bf16.gmra.mrb[0].mxu0 %v2192
    %v9032 = vpop.f32.mrb[0].mxu0
    %v9033 = vadd.f32 %v8840, %v9032
    %v9034 = vpop.f32.mrb[0].mxu0
    %v9035 = vadd.f32 %v8842, %v9034
    %v9036 = vpop.f32.mrb[0].mxu0
    %v9037 = vadd.f32 %v8844, %v9036
    %v9038 = vpop.f32.mrb[0].mxu0
    %v9039 = vadd.f32 %v8846, %v9038
    %9040 = vmatprep.mubr.bf16.mxu0 %v2213
    %9041 = vmatmul.mubr.bf16.gmra.mrb[0].mxu0 %v2212
    %v9042 = vpop.f32.mrb[0].mxu0
    %v9043 = vadd.f32 %v8850, %v9042
    %v9044 = vpop.f32.mrb[0].mxu0
    %v9045 = vadd.f32 %v8852, %v9044
    %v9046 = vpop.f32.mrb[0].mxu0
    %v9047 = vadd.f32 %v8854, %v9046
    %v9048 = vpop.f32.mrb[0].mxu0
    %v9049 = vadd.f32 %v8856, %v9048
    %9050 = vmatprep.mubr.bf16.mxu0 %v2233
    %9051 = vmatmul.mubr.bf16.gmra.mrb[0].mxu0 %v2232
    %v9052 = vpop.f32.mrb[0].mxu0
    %v9053 = vadd.f32 %v8860, %v9052
    %v9054 = vpop.f32.mrb[0].mxu0
    %v9055 = vadd.f32 %v8862, %v9054
    %v9056 = vpop.f32.mrb[0].mxu0
    %v9057 = vadd.f32 %v8864, %v9056
    %v9058 = vpop.f32.mrb[0].mxu0
    %v9059 = vadd.f32 %v8866, %v9058
    %9060 = vmatprep.mubr.bf16.mxu0 %v2253
    %9061 = vmatmul.mubr.bf16.gmra.mrb[0].mxu0 %v2252
    %v9062 = vpop.f32.mrb[0].mxu0
    %v9063 = vadd.f32 %v8870, %v9062
    %v9064 = vpop.f32.mrb[0].mxu0
    %v9065 = vadd.f32 %v8872, %v9064
    %v9066 = vpop.f32.mrb[0].mxu0
    %v9067 = vadd.f32 %v8874, %v9066
    %v9068 = vpop.f32.mrb[0].mxu0
    %v9069 = vadd.f32 %v8876, %v9068
    %9070 = vmatprep.mubr.bf16.mxu0 %v2273
    %9071 = vmatmul.mubr.bf16.gmra.mrb[0].mxu0 %v2272
    %v9072 = vpop.f32.mrb[0].mxu0
    %v9073 = vadd.f32 %v8880, %v9072
    %v9074 = vpop.f32.mrb[0].mxu0
    %v9075 = vadd.f32 %v8882, %v9074
    %v9076 = vpop.f32.mrb[0].mxu0
    %v9077 = vadd.f32 %v8884, %v9076
    %v9078 = vpop.f32.mrb[0].mxu0
    %v9079 = vadd.f32 %v8886, %v9078
    %9080 = vdwg.mxu0
    %9081 = vmatprep.subr.bf16.mxu0 %v4971
    %9082 = vmatpush1.bf16.msra.mxu0 %v4970
    %9083 = vmatprep.subr.bf16.mxu0 %v4975
    %9084 = vmatpush1.bf16.msra.mxu0 %v4974
    %9085 = vmatprep.subr.bf16.mxu0 %v4979
    %9086 = vmatpush1.bf16.msra.mxu0 %v4978
    %9087 = vmatprep.subr.bf16.mxu0 %v4983
    %9088 = vmatpush1.bf16.msra.mxu0 %v4982
    %9089 = vmatprep.subr.bf16.mxu0 %v4987
    %9090 = vmatpush1.bf16.msra.mxu0 %v4986
    %9091 = vmatprep.subr.bf16.mxu0 %v4991
    %9092 = vmatpush1.bf16.msra.mxu0 %v4990
    %9093 = vmatprep.subr.bf16.mxu0 %v4995
    %9094 = vmatpush1.bf16.msra.mxu0 %v4994
    %9095 = vmatprep.subr.bf16.mxu0 %v4999
    %9096 = vmatpush1.bf16.msra.mxu0 %v4998
    %9097 = vmatprep.subr.bf16.mxu0 %v5003
    %9098 = vmatpush1.bf16.msra.mxu0 %v5002
    %9099 = vmatprep.subr.bf16.mxu0 %v5007
    %9100 = vmatpush1.bf16.msra.mxu0 %v5006
    %9101 = vmatprep.subr.bf16.mxu0 %v5011
    %9102 = vmatpush1.bf16.msra.mxu0 %v5010
    %9103 = vmatprep.subr.bf16.mxu0 %v5015
    %9104 = vmatpush1.bf16.msra.mxu0 %v5014
    %9105 = vmatprep.subr.bf16.mxu0 %v5019
    %9106 = vmatpush1.bf16.msra.mxu0 %v5018
    %9107 = vmatprep.subr.bf16.mxu0 %v5023
    %9108 = vmatpush1.bf16.msra.mxu0 %v5022
    %9109 = vmatprep.subr.bf16.mxu0 %v5027
    %9110 = vmatpush1.bf16.msra.mxu0 %v5026
    %9111 = vmatprep.subr.bf16.mxu0 %v5031
    %9112 = vmatpush1.bf16.msra.mxu0 %v5030
    %9113 = vmatprep.mubr.bf16.mxu0 %v1975
    %9114 = vmatmul.mubr.bf16.gmra.mrb[0].mxu0 %v1974
    %v9115 = vpop.f32.mrb[0].mxu0
    %v9116 = vadd.f32 %v8923, %v9115
    %v9117 = vpop.f32.mrb[0].mxu0
    %v9118 = vadd.f32 %v8925, %v9117
    %v9119 = vpop.f32.mrb[0].mxu0
    %v9120 = vadd.f32 %v8927, %v9119
    %v9121 = vpop.f32.mrb[0].mxu0
    %v9122 = vadd.f32 %v8929, %v9121
    %9123 = vmatprep.mubr.bf16.mxu0 %v1995
    %9124 = vmatmul.mubr.bf16.gmra.mrb[0].mxu0 %v1994
    %v9125 = vpop.f32.mrb[0].mxu0
    %v9126 = vadd.f32 %v8933, %v9125
    %v9127 = vpop.f32.mrb[0].mxu0
    %v9128 = vadd.f32 %v8935, %v9127
    %v9129 = vpop.f32.mrb[0].mxu0
    %v9130 = vadd.f32 %v8937, %v9129
    %v9131 = vpop.f32.mrb[0].mxu0
    %v9132 = vadd.f32 %v8939, %v9131
    %9133 = vmatprep.mubr.bf16.mxu0 %v2015
    %9134 = vmatmul.mubr.bf16.gmra.mrb[0].mxu0 %v2014
    %v9135 = vpop.f32.mrb[0].mxu0
    %v9136 = vadd.f32 %v8943, %v9135
    %v9137 = vpop.f32.mrb[0].mxu0
    %v9138 = vadd.f32 %v8945, %v9137
    %v9139 = vpop.f32.mrb[0].mxu0
    %v9140 = vadd.f32 %v8947, %v9139
    %v9141 = vpop.f32.mrb[0].mxu0
    %v9142 = vadd.f32 %v8949, %v9141
    %9143 = vmatprep.mubr.bf16.mxu0 %v2035
    %9144 = vmatmul.mubr.bf16.gmra.mrb[0].mxu0 %v2034
    %v9145 = vpop.f32.mrb[0].mxu0
    %v9146 = vadd.f32 %v8953, %v9145
    %v9147 = vpop.f32.mrb[0].mxu0
    %v9148 = vadd.f32 %v8955, %v9147
    %v9149 = vpop.f32.mrb[0].mxu0
    %v9150 = vadd.f32 %v8957, %v9149
    %v9151 = vpop.f32.mrb[0].mxu0
    %v9152 = vadd.f32 %v8959, %v9151
    %9153 = vmatprep.mubr.bf16.mxu0 %v2055
    %9154 = vmatmul.mubr.bf16.gmra.mrb[0].mxu0 %v2054
    %v9155 = vpop.f32.mrb[0].mxu0
    %v9156 = vadd.f32 %v8963, %v9155
    %v9157 = vpop.f32.mrb[0].mxu0
    %v9158 = vadd.f32 %v8965, %v9157
    %v9159 = vpop.f32.mrb[0].mxu0
    %v9160 = vadd.f32 %v8967, %v9159
    %v9161 = vpop.f32.mrb[0].mxu0
    %v9162 = vadd.f32 %v8969, %v9161
    %9163 = vmatprep.mubr.bf16.mxu0 %v2075
    %9164 = vmatmul.mubr.bf16.gmra.mrb[0].mxu0 %v2074
    %v9165 = vpop.f32.mrb[0].mxu0
    %v9166 = vadd.f32 %v8973, %v9165
    %v9167 = vpop.f32.mrb[0].mxu0
    %v9168 = vadd.f32 %v8975, %v9167
    %v9169 = vpop.f32.mrb[0].mxu0
    %v9170 = vadd.f32 %v8977, %v9169
    %v9171 = vpop.f32.mrb[0].mxu0
    %v9172 = vadd.f32 %v8979, %v9171
    %9173 = vmatprep.mubr.bf16.mxu0 %v2095
    %9174 = vmatmul.mubr.bf16.gmra.mrb[0].mxu0 %v2094
    %v9175 = vpop.f32.mrb[0].mxu0
    %v9176 = vadd.f32 %v8983, %v9175
    %v9177 = vpop.f32.mrb[0].mxu0
    %v9178 = vadd.f32 %v8985, %v9177
    %v9179 = vpop.f32.mrb[0].mxu0
    %v9180 = vadd.f32 %v8987, %v9179
    %v9181 = vpop.f32.mrb[0].mxu0
    %v9182 = vadd.f32 %v8989, %v9181
    %9183 = vmatprep.mubr.bf16.mxu0 %v2115
    %9184 = vmatmul.mubr.bf16.gmra.mrb[0].mxu0 %v2114
    %v9185 = vpop.f32.mrb[0].mxu0
    %v9186 = vadd.f32 %v8993, %v9185
    %v9187 = vpop.f32.mrb[0].mxu0
    %v9188 = vadd.f32 %v8995, %v9187
    %v9189 = vpop.f32.mrb[0].mxu0
    %v9190 = vadd.f32 %v8997, %v9189
    %v9191 = vpop.f32.mrb[0].mxu0
    %v9192 = vadd.f32 %v8999, %v9191
    %9193 = vmatprep.mubr.bf16.mxu0 %v2135
    %9194 = vmatmul.mubr.bf16.gmra.mrb[0].mxu0 %v2134
    %v9195 = vpop.f32.mrb[0].mxu0
    %v9196 = vadd.f32 %v9003, %v9195
    %v9197 = vpop.f32.mrb[0].mxu0
    %v9198 = vadd.f32 %v9005, %v9197
    %v9199 = vpop.f32.mrb[0].mxu0
    %v9200 = vadd.f32 %v9007, %v9199
    %v9201 = vpop.f32.mrb[0].mxu0
    %v9202 = vadd.f32 %v9009, %v9201
    %9203 = vmatprep.mubr.bf16.mxu0 %v2155
    %9204 = vmatmul.mubr.bf16.gmra.mrb[0].mxu0 %v2154
    %v9205 = vpop.f32.mrb[0].mxu0
    %v9206 = vadd.f32 %v9013, %v9205
    %v9207 = vpop.f32.mrb[0].mxu0
    %v9208 = vadd.f32 %v9015, %v9207
    %v9209 = vpop.f32.mrb[0].mxu0
    %v9210 = vadd.f32 %v9017, %v9209
    %v9211 = vpop.f32.mrb[0].mxu0
    %v9212 = vadd.f32 %v9019, %v9211
    %9213 = vmatprep.mubr.bf16.mxu0 %v2175
    %9214 = vmatmul.mubr.bf16.gmra.mrb[0].mxu0 %v2174
    %v9215 = vpop.f32.mrb[0].mxu0
    %v9216 = vadd.f32 %v9023, %v9215
    %v9217 = vpop.f32.mrb[0].mxu0
    %v9218 = vadd.f32 %v9025, %v9217
    %v9219 = vpop.f32.mrb[0].mxu0
    %v9220 = vadd.f32 %v9027, %v9219
    %v9221 = vpop.f32.mrb[0].mxu0
    %v9222 = vadd.f32 %v9029, %v9221
    %9223 = vmatprep.mubr.bf16.mxu0 %v2195
    %9224 = vmatmul.mubr.bf16.gmra.mrb[0].mxu0 %v2194
    %v9225 = vpop.f32.mrb[0].mxu0
    %v9226 = vadd.f32 %v9033, %v9225
    %v9227 = vpop.f32.mrb[0].mxu0
    %v9228 = vadd.f32 %v9035, %v9227
    %v9229 = vpop.f32.mrb[0].mxu0
    %v9230 = vadd.f32 %v9037, %v9229
    %v9231 = vpop.f32.mrb[0].mxu0
    %v9232 = vadd.f32 %v9039, %v9231
    %9233 = vmatprep.mubr.bf16.mxu0 %v2215
    %9234 = vmatmul.mubr.bf16.gmra.mrb[0].mxu0 %v2214
    %v9235 = vpop.f32.mrb[0].mxu0
    %v9236 = vadd.f32 %v9043, %v9235
    %v9237 = vpop.f32.mrb[0].mxu0
    %v9238 = vadd.f32 %v9045, %v9237
    %v9239 = vpop.f32.mrb[0].mxu0
    %v9240 = vadd.f32 %v9047, %v9239
    %v9241 = vpop.f32.mrb[0].mxu0
    %v9242 = vadd.f32 %v9049, %v9241
    %9243 = vmatprep.mubr.bf16.mxu0 %v2235
    %9244 = vmatmul.mubr.bf16.gmra.mrb[0].mxu0 %v2234
    %v9245 = vpop.f32.mrb[0].mxu0
    %v9246 = vadd.f32 %v9053, %v9245
    %v9247 = vpop.f32.mrb[0].mxu0
    %v9248 = vadd.f32 %v9055, %v9247
    %v9249 = vpop.f32.mrb[0].mxu0
    %v9250 = vadd.f32 %v9057, %v9249
    %v9251 = vpop.f32.mrb[0].mxu0
    %v9252 = vadd.f32 %v9059, %v9251
    %9253 = vmatprep.mubr.bf16.mxu0 %v2255
    %9254 = vmatmul.mubr.bf16.gmra.mrb[0].mxu0 %v2254
    %v9255 = vpop.f32.mrb[0].mxu0
    %v9256 = vadd.f32 %v9063, %v9255
    %v9257 = vpop.f32.mrb[0].mxu0
    %v9258 = vadd.f32 %v9065, %v9257
    %v9259 = vpop.f32.mrb[0].mxu0
    %v9260 = vadd.f32 %v9067, %v9259
    %v9261 = vpop.f32.mrb[0].mxu0
    %v9262 = vadd.f32 %v9069, %v9261
    %9263 = vmatprep.mubr.bf16.mxu0 %v2275
    %9264 = vmatmul.mubr.bf16.gmra.mrb[0].mxu0 %v2274
    %v9265 = vpop.f32.mrb[0].mxu0
    %v9266 = vadd.f32 %v9073, %v9265
    %v9267 = vpop.f32.mrb[0].mxu0
    %v9268 = vadd.f32 %v9075, %v9267
    %v9269 = vpop.f32.mrb[0].mxu0
    %v9270 = vadd.f32 %v9077, %v9269
    %v9271 = vpop.f32.mrb[0].mxu0
    %v9272 = vadd.f32 %v9079, %v9271
    %9273 = vdwg.mxu0
    %9274 = vmatprep.subr.bf16.mxu0 %v5035
    %9275 = vmatpush1.bf16.msra.mxu0 %v5034
    %9276 = vmatprep.subr.bf16.mxu0 %v5039
    %9277 = vmatpush1.bf16.msra.mxu0 %v5038
    %9278 = vmatprep.subr.bf16.mxu0 %v5043
    %9279 = vmatpush1.bf16.msra.mxu0 %v5042
    %9280 = vmatprep.subr.bf16.mxu0 %v5047
    %9281 = vmatpush1.bf16.msra.mxu0 %v5046
    %9282 = vmatprep.subr.bf16.mxu0 %v5051
    %9283 = vmatpush1.bf16.msra.mxu0 %v5050
    %9284 = vmatprep.subr.bf16.mxu0 %v5055
    %9285 = vmatpush1.bf16.msra.mxu0 %v5054
    %9286 = vmatprep.subr.bf16.mxu0 %v5059
    %9287 = vmatpush1.bf16.msra.mxu0 %v5058
    %9288 = vmatprep.subr.bf16.mxu0 %v5063
    %9289 = vmatpush1.bf16.msra.mxu0 %v5062
    %9290 = vmatprep.subr.bf16.mxu0 %v5067
    %9291 = vmatpush1.bf16.msra.mxu0 %v5066
    %9292 = vmatprep.subr.bf16.mxu0 %v5071
    %9293 = vmatpush1.bf16.msra.mxu0 %v5070
    %9294 = vmatprep.subr.bf16.mxu0 %v5075
    %9295 = vmatpush1.bf16.msra.mxu0 %v5074
    %9296 = vmatprep.subr.bf16.mxu0 %v5079
    %9297 = vmatpush1.bf16.msra.mxu0 %v5078
    %9298 = vmatprep.subr.bf16.mxu0 %v5083
    %9299 = vmatpush1.bf16.msra.mxu0 %v5082
    %9300 = vmatprep.subr.bf16.mxu0 %v5087
    %9301 = vmatpush1.bf16.msra.mxu0 %v5086
    %9302 = vmatprep.subr.bf16.mxu0 %v5091
    %9303 = vmatpush1.bf16.msra.mxu0 %v5090
    %9304 = vmatprep.subr.bf16.mxu0 %v5095
    %9305 = vmatpush1.bf16.msra.mxu0 %v5094
    %9306 = vmatprep.mubr.bf16.mxu0 %v1977
    %9307 = vmatmul.mubr.bf16.gmra.mrb[0].mxu0 %v1976
    %v9308 = vpop.f32.mrb[0].mxu0
    %v9309 = vadd.f32 %v9116, %v9308
    %v9310 = vpop.f32.mrb[0].mxu0
    %v9311 = vadd.f32 %v9118, %v9310
    %v9312 = vpop.f32.mrb[0].mxu0
    %v9313 = vadd.f32 %v9120, %v9312
    %v9314 = vpop.f32.mrb[0].mxu0
    %v9315 = vadd.f32 %v9122, %v9314
    %9316 = vmatprep.mubr.bf16.mxu0 %v1997
    %9317 = vmatmul.mubr.bf16.gmra.mrb[0].mxu0 %v1996
    %v9318 = vpop.f32.mrb[0].mxu0
    %v9319 = vadd.f32 %v9126, %v9318
    %v9320 = vpop.f32.mrb[0].mxu0
    %v9321 = vadd.f32 %v9128, %v9320
    %v9322 = vpop.f32.mrb[0].mxu0
    %v9323 = vadd.f32 %v9130, %v9322
    %v9324 = vpop.f32.mrb[0].mxu0
    %v9325 = vadd.f32 %v9132, %v9324
    %9326 = vmatprep.mubr.bf16.mxu0 %v2017
    %9327 = vmatmul.mubr.bf16.gmra.mrb[0].mxu0 %v2016
    %v9328 = vpop.f32.mrb[0].mxu0
    %v9329 = vadd.f32 %v9136, %v9328
    %v9330 = vpop.f32.mrb[0].mxu0
    %v9331 = vadd.f32 %v9138, %v9330
    %v9332 = vpop.f32.mrb[0].mxu0
    %v9333 = vadd.f32 %v9140, %v9332
    %v9334 = vpop.f32.mrb[0].mxu0
    %v9335 = vadd.f32 %v9142, %v9334
    %9336 = vmatprep.mubr.bf16.mxu0 %v2037
    %9337 = vmatmul.mubr.bf16.gmra.mrb[0].mxu0 %v2036
    %v9338 = vpop.f32.mrb[0].mxu0
    %v9339 = vadd.f32 %v9146, %v9338
    %v9340 = vpop.f32.mrb[0].mxu0
    %v9341 = vadd.f32 %v9148, %v9340
    %v9342 = vpop.f32.mrb[0].mxu0
    %v9343 = vadd.f32 %v9150, %v9342
    %v9344 = vpop.f32.mrb[0].mxu0
    %v9345 = vadd.f32 %v9152, %v9344
    %9346 = vmatprep.mubr.bf16.mxu0 %v2057
    %9347 = vmatmul.mubr.bf16.gmra.mrb[0].mxu0 %v2056
    %v9348 = vpop.f32.mrb[0].mxu0
    %v9349 = vadd.f32 %v9156, %v9348
    %v9350 = vpop.f32.mrb[0].mxu0
    %v9351 = vadd.f32 %v9158, %v9350
    %v9352 = vpop.f32.mrb[0].mxu0
    %v9353 = vadd.f32 %v9160, %v9352
    %v9354 = vpop.f32.mrb[0].mxu0
    %v9355 = vadd.f32 %v9162, %v9354
    %9356 = vmatprep.mubr.bf16.mxu0 %v2077
    %9357 = vmatmul.mubr.bf16.gmra.mrb[0].mxu0 %v2076
    %v9358 = vpop.f32.mrb[0].mxu0
    %v9359 = vadd.f32 %v9166, %v9358
    %v9360 = vpop.f32.mrb[0].mxu0
    %v9361 = vadd.f32 %v9168, %v9360
    %v9362 = vpop.f32.mrb[0].mxu0
    %v9363 = vadd.f32 %v9170, %v9362
    %v9364 = vpop.f32.mrb[0].mxu0
    %v9365 = vadd.f32 %v9172, %v9364
    %9366 = vmatprep.mubr.bf16.mxu0 %v2097
    %9367 = vmatmul.mubr.bf16.gmra.mrb[0].mxu0 %v2096
    %v9368 = vpop.f32.mrb[0].mxu0
    %v9369 = vadd.f32 %v9176, %v9368
    %v9370 = vpop.f32.mrb[0].mxu0
    %v9371 = vadd.f32 %v9178, %v9370
    %v9372 = vpop.f32.mrb[0].mxu0
    %v9373 = vadd.f32 %v9180, %v9372
    %v9374 = vpop.f32.mrb[0].mxu0
    %v9375 = vadd.f32 %v9182, %v9374
    %9376 = vmatprep.mubr.bf16.mxu0 %v2117
    %9377 = vmatmul.mubr.bf16.gmra.mrb[0].mxu0 %v2116
    %v9378 = vpop.f32.mrb[0].mxu0
    %v9379 = vadd.f32 %v9186, %v9378
    %v9380 = vpop.f32.mrb[0].mxu0
    %v9381 = vadd.f32 %v9188, %v9380
    %v9382 = vpop.f32.mrb[0].mxu0
    %v9383 = vadd.f32 %v9190, %v9382
    %v9384 = vpop.f32.mrb[0].mxu0
    %v9385 = vadd.f32 %v9192, %v9384
    %9386 = vmatprep.mubr.bf16.mxu0 %v2137
    %9387 = vmatmul.mubr.bf16.gmra.mrb[0].mxu0 %v2136
    %v9388 = vpop.f32.mrb[0].mxu0
    %v9389 = vadd.f32 %v9196, %v9388
    %v9390 = vpop.f32.mrb[0].mxu0
    %v9391 = vadd.f32 %v9198, %v9390
    %v9392 = vpop.f32.mrb[0].mxu0
    %v9393 = vadd.f32 %v9200, %v9392
    %v9394 = vpop.f32.mrb[0].mxu0
    %v9395 = vadd.f32 %v9202, %v9394
    %9396 = vmatprep.mubr.bf16.mxu0 %v2157
    %9397 = vmatmul.mubr.bf16.gmra.mrb[0].mxu0 %v2156
    %v9398 = vpop.f32.mrb[0].mxu0
    %v9399 = vadd.f32 %v9206, %v9398
    %v9400 = vpop.f32.mrb[0].mxu0
    %v9401 = vadd.f32 %v9208, %v9400
    %v9402 = vpop.f32.mrb[0].mxu0
    %v9403 = vadd.f32 %v9210, %v9402
    %v9404 = vpop.f32.mrb[0].mxu0
    %v9405 = vadd.f32 %v9212, %v9404
    %9406 = vmatprep.mubr.bf16.mxu0 %v2177
    %9407 = vmatmul.mubr.bf16.gmra.mrb[0].mxu0 %v2176
    %v9408 = vpop.f32.mrb[0].mxu0
    %v9409 = vadd.f32 %v9216, %v9408
    %v9410 = vpop.f32.mrb[0].mxu0
    %v9411 = vadd.f32 %v9218, %v9410
    %v9412 = vpop.f32.mrb[0].mxu0
    %v9413 = vadd.f32 %v9220, %v9412
    %v9414 = vpop.f32.mrb[0].mxu0
    %v9415 = vadd.f32 %v9222, %v9414
    %9416 = vmatprep.mubr.bf16.mxu0 %v2197
    %9417 = vmatmul.mubr.bf16.gmra.mrb[0].mxu0 %v2196
    %v9418 = vpop.f32.mrb[0].mxu0
    %v9419 = vadd.f32 %v9226, %v9418
    %v9420 = vpop.f32.mrb[0].mxu0
    %v9421 = vadd.f32 %v9228, %v9420
    %v9422 = vpop.f32.mrb[0].mxu0
    %v9423 = vadd.f32 %v9230, %v9422
    %v9424 = vpop.f32.mrb[0].mxu0
    %v9425 = vadd.f32 %v9232, %v9424
    %9426 = vmatprep.mubr.bf16.mxu0 %v2217
    %9427 = vmatmul.mubr.bf16.gmra.mrb[0].mxu0 %v2216
    %v9428 = vpop.f32.mrb[0].mxu0
    %v9429 = vadd.f32 %v9236, %v9428
    %v9430 = vpop.f32.mrb[0].mxu0
    %v9431 = vadd.f32 %v9238, %v9430
    %v9432 = vpop.f32.mrb[0].mxu0
    %v9433 = vadd.f32 %v9240, %v9432
    %v9434 = vpop.f32.mrb[0].mxu0
    %v9435 = vadd.f32 %v9242, %v9434
    %9436 = vmatprep.mubr.bf16.mxu0 %v2237
    %9437 = vmatmul.mubr.bf16.gmra.mrb[0].mxu0 %v2236
    %v9438 = vpop.f32.mrb[0].mxu0
    %v9439 = vadd.f32 %v9246, %v9438
    %v9440 = vpop.f32.mrb[0].mxu0
    %v9441 = vadd.f32 %v9248, %v9440
    %v9442 = vpop.f32.mrb[0].mxu0
    %v9443 = vadd.f32 %v9250, %v9442
    %v9444 = vpop.f32.mrb[0].mxu0
    %v9445 = vadd.f32 %v9252, %v9444
    %9446 = vmatprep.mubr.bf16.mxu0 %v2257
    %9447 = vmatmul.mubr.bf16.gmra.mrb[0].mxu0 %v2256
    %v9448 = vpop.f32.mrb[0].mxu0
    %v9449 = vadd.f32 %v9256, %v9448
    %v9450 = vpop.f32.mrb[0].mxu0
    %v9451 = vadd.f32 %v9258, %v9450
    %v9452 = vpop.f32.mrb[0].mxu0
    %v9453 = vadd.f32 %v9260, %v9452
    %v9454 = vpop.f32.mrb[0].mxu0
    %v9455 = vadd.f32 %v9262, %v9454
    %9456 = vmatprep.mubr.bf16.mxu0 %v2277
    %9457 = vmatmul.mubr.bf16.gmra.mrb[0].mxu0 %v2276
    %v9458 = vpop.f32.mrb[0].mxu0
    %v9459 = vadd.f32 %v9266, %v9458
    %v9460 = vpop.f32.mrb[0].mxu0
    %v9461 = vadd.f32 %v9268, %v9460
    %v9462 = vpop.f32.mrb[0].mxu0
    %v9463 = vadd.f32 %v9270, %v9462
    %v9464 = vpop.f32.mrb[0].mxu0
    %v9465 = vadd.f32 %v9272, %v9464
    %9466 = vdwg.mxu0
    %9467 = vmatprep.subr.bf16.mxu0 %v5099
    %9468 = vmatpush1.bf16.msra.mxu0 %v5098
    %9469 = vmatprep.subr.bf16.mxu0 %v5103
    %9470 = vmatpush1.bf16.msra.mxu0 %v5102
    %9471 = vmatprep.subr.bf16.mxu0 %v5107
    %9472 = vmatpush1.bf16.msra.mxu0 %v5106
    %9473 = vmatprep.subr.bf16.mxu0 %v5111
    %9474 = vmatpush1.bf16.msra.mxu0 %v5110
    %9475 = vmatprep.subr.bf16.mxu0 %v5115
    %9476 = vmatpush1.bf16.msra.mxu0 %v5114
    %9477 = vmatprep.subr.bf16.mxu0 %v5119
    %9478 = vmatpush1.bf16.msra.mxu0 %v5118
    %9479 = vmatprep.subr.bf16.mxu0 %v5123
    %9480 = vmatpush1.bf16.msra.mxu0 %v5122
    %9481 = vmatprep.subr.bf16.mxu0 %v5127
    %9482 = vmatpush1.bf16.msra.mxu0 %v5126
    %9483 = vmatprep.subr.bf16.mxu0 %v5131
    %9484 = vmatpush1.bf16.msra.mxu0 %v5130
    %9485 = vmatprep.subr.bf16.mxu0 %v5135
    %9486 = vmatpush1.bf16.msra.mxu0 %v5134
    %9487 = vmatprep.subr.bf16.mxu0 %v5139
    %9488 = vmatpush1.bf16.msra.mxu0 %v5138
    %9489 = vmatprep.subr.bf16.mxu0 %v5143
    %9490 = vmatpush1.bf16.msra.mxu0 %v5142
    %9491 = vmatprep.subr.bf16.mxu0 %v5147
    %9492 = vmatpush1.bf16.msra.mxu0 %v5146
    %9493 = vmatprep.subr.bf16.mxu0 %v5151
    %9494 = vmatpush1.bf16.msra.mxu0 %v5150
    %9495 = vmatprep.subr.bf16.mxu0 %v5155
    %9496 = vmatpush1.bf16.msra.mxu0 %v5154
    %9497 = vmatprep.subr.bf16.mxu0 %v5159
    %9498 = vmatpush1.bf16.msra.mxu0 %v5158
    %9499 = vmatprep.mubr.bf16.mxu0 %v1979
    %9500 = vmatmul.mubr.bf16.gmra.mrb[0].mxu0 %v1978
    %v9501 = vpop.f32.mrb[0].mxu0
    %v9502 = vadd.f32 %v9309, %v9501
    %v9503 = vpop.f32.mrb[0].mxu0
    %v9504 = vadd.f32 %v9311, %v9503
    %v9505 = vpop.f32.mrb[0].mxu0
    %v9506 = vadd.f32 %v9313, %v9505
    %v9507 = vpop.f32.mrb[0].mxu0
    %v9508 = vadd.f32 %v9315, %v9507
    %9509 = vmatprep.mubr.bf16.mxu0 %v1999
    %9510 = vmatmul.mubr.bf16.gmra.mrb[0].mxu0 %v1998
    %v9511 = vpop.f32.mrb[0].mxu0
    %v9512 = vadd.f32 %v9319, %v9511
    %v9513 = vpop.f32.mrb[0].mxu0
    %v9514 = vadd.f32 %v9321, %v9513
    %v9515 = vpop.f32.mrb[0].mxu0
    %v9516 = vadd.f32 %v9323, %v9515
    %v9517 = vpop.f32.mrb[0].mxu0
    %v9518 = vadd.f32 %v9325, %v9517
    %9519 = vmatprep.mubr.bf16.mxu0 %v2019
    %9520 = vmatmul.mubr.bf16.gmra.mrb[0].mxu0 %v2018
    %v9521 = vpop.f32.mrb[0].mxu0
    %v9522 = vadd.f32 %v9329, %v9521
    %v9523 = vpop.f32.mrb[0].mxu0
    %v9524 = vadd.f32 %v9331, %v9523
    %v9525 = vpop.f32.mrb[0].mxu0
    %v9526 = vadd.f32 %v9333, %v9525
    %v9527 = vpop.f32.mrb[0].mxu0
    %v9528 = vadd.f32 %v9335, %v9527
    %9529 = vmatprep.mubr.bf16.mxu0 %v2039
    %9530 = vmatmul.mubr.bf16.gmra.mrb[0].mxu0 %v2038
    %v9531 = vpop.f32.mrb[0].mxu0
    %v9532 = vadd.f32 %v9339, %v9531
    %v9533 = vpop.f32.mrb[0].mxu0
    %v9534 = vadd.f32 %v9341, %v9533
    %v9535 = vpop.f32.mrb[0].mxu0
    %v9536 = vadd.f32 %v9343, %v9535
    %v9537 = vpop.f32.mrb[0].mxu0
    %v9538 = vadd.f32 %v9345, %v9537
    %9539 = vmatprep.mubr.bf16.mxu0 %v2059
    %9540 = vmatmul.mubr.bf16.gmra.mrb[0].mxu0 %v2058
    %v9541 = vpop.f32.mrb[0].mxu0
    %v9542 = vadd.f32 %v9349, %v9541
    %v9543 = vpop.f32.mrb[0].mxu0
    %v9544 = vadd.f32 %v9351, %v9543
    %v9545 = vpop.f32.mrb[0].mxu0
    %v9546 = vadd.f32 %v9353, %v9545
    %v9547 = vpop.f32.mrb[0].mxu0
    %v9548 = vadd.f32 %v9355, %v9547
    %9549 = vmatprep.mubr.bf16.mxu0 %v2079
    %9550 = vmatmul.mubr.bf16.gmra.mrb[0].mxu0 %v2078
    %v9551 = vpop.f32.mrb[0].mxu0
    %v9552 = vadd.f32 %v9359, %v9551
    %v9553 = vpop.f32.mrb[0].mxu0
    %v9554 = vadd.f32 %v9361, %v9553
    %v9555 = vpop.f32.mrb[0].mxu0
    %v9556 = vadd.f32 %v9363, %v9555
    %v9557 = vpop.f32.mrb[0].mxu0
    %v9558 = vadd.f32 %v9365, %v9557
    %9559 = vmatprep.mubr.bf16.mxu0 %v2099
    %9560 = vmatmul.mubr.bf16.gmra.mrb[0].mxu0 %v2098
    %v9561 = vpop.f32.mrb[0].mxu0
    %v9562 = vadd.f32 %v9369, %v9561
    %v9563 = vpop.f32.mrb[0].mxu0
    %v9564 = vadd.f32 %v9371, %v9563
    %v9565 = vpop.f32.mrb[0].mxu0
    %v9566 = vadd.f32 %v9373, %v9565
    %v9567 = vpop.f32.mrb[0].mxu0
    %v9568 = vadd.f32 %v9375, %v9567
    %9569 = vmatprep.mubr.bf16.mxu0 %v2119
    %9570 = vmatmul.mubr.bf16.gmra.mrb[0].mxu0 %v2118
    %v9571 = vpop.f32.mrb[0].mxu0
    %v9572 = vadd.f32 %v9379, %v9571
    %v9573 = vpop.f32.mrb[0].mxu0
    %v9574 = vadd.f32 %v9381, %v9573
    %v9575 = vpop.f32.mrb[0].mxu0
    %v9576 = vadd.f32 %v9383, %v9575
    %v9577 = vpop.f32.mrb[0].mxu0
    %v9578 = vadd.f32 %v9385, %v9577
    %9579 = vmatprep.mubr.bf16.mxu0 %v2139
    %9580 = vmatmul.mubr.bf16.gmra.mrb[0].mxu0 %v2138
    %v9581 = vpop.f32.mrb[0].mxu0
    %v9582 = vadd.f32 %v9389, %v9581
    %v9583 = vpop.f32.mrb[0].mxu0
    %v9584 = vadd.f32 %v9391, %v9583
    %v9585 = vpop.f32.mrb[0].mxu0
    %v9586 = vadd.f32 %v9393, %v9585
    %v9587 = vpop.f32.mrb[0].mxu0
    %v9588 = vadd.f32 %v9395, %v9587
    %9589 = vmatprep.mubr.bf16.mxu0 %v2159
    %9590 = vmatmul.mubr.bf16.gmra.mrb[0].mxu0 %v2158
    %v9591 = vpop.f32.mrb[0].mxu0
    %v9592 = vadd.f32 %v9399, %v9591
    %v9593 = vpop.f32.mrb[0].mxu0
    %v9594 = vadd.f32 %v9401, %v9593
    %v9595 = vpop.f32.mrb[0].mxu0
    %v9596 = vadd.f32 %v9403, %v9595
    %v9597 = vpop.f32.mrb[0].mxu0
    %v9598 = vadd.f32 %v9405, %v9597
    %9599 = vmatprep.mubr.bf16.mxu0 %v2179
    %9600 = vmatmul.mubr.bf16.gmra.mrb[0].mxu0 %v2178
    %v9601 = vpop.f32.mrb[0].mxu0
    %v9602 = vadd.f32 %v9409, %v9601
    %v9603 = vpop.f32.mrb[0].mxu0
    %v9604 = vadd.f32 %v9411, %v9603
    %v9605 = vpop.f32.mrb[0].mxu0
    %v9606 = vadd.f32 %v9413, %v9605
    %v9607 = vpop.f32.mrb[0].mxu0
    %v9608 = vadd.f32 %v9415, %v9607
    %9609 = vmatprep.mubr.bf16.mxu0 %v2199
    %9610 = vmatmul.mubr.bf16.gmra.mrb[0].mxu0 %v2198
    %v9611 = vpop.f32.mrb[0].mxu0
    %v9612 = vadd.f32 %v9419, %v9611
    %v9613 = vpop.f32.mrb[0].mxu0
    %v9614 = vadd.f32 %v9421, %v9613
    %v9615 = vpop.f32.mrb[0].mxu0
    %v9616 = vadd.f32 %v9423, %v9615
    %v9617 = vpop.f32.mrb[0].mxu0
    %v9618 = vadd.f32 %v9425, %v9617
    %9619 = vmatprep.mubr.bf16.mxu0 %v2219
    %9620 = vmatmul.mubr.bf16.gmra.mrb[0].mxu0 %v2218
    %v9621 = vpop.f32.mrb[0].mxu0
    %v9622 = vadd.f32 %v9429, %v9621
    %v9623 = vpop.f32.mrb[0].mxu0
    %v9624 = vadd.f32 %v9431, %v9623
    %v9625 = vpop.f32.mrb[0].mxu0
    %v9626 = vadd.f32 %v9433, %v9625
    %v9627 = vpop.f32.mrb[0].mxu0
    %v9628 = vadd.f32 %v9435, %v9627
    %9629 = vmatprep.mubr.bf16.mxu0 %v2239
    %9630 = vmatmul.mubr.bf16.gmra.mrb[0].mxu0 %v2238
    %v9631 = vpop.f32.mrb[0].mxu0
    %v9632 = vadd.f32 %v9439, %v9631
    %v9633 = vpop.f32.mrb[0].mxu0
    %v9634 = vadd.f32 %v9441, %v9633
    %v9635 = vpop.f32.mrb[0].mxu0
    %v9636 = vadd.f32 %v9443, %v9635
    %v9637 = vpop.f32.mrb[0].mxu0
    %v9638 = vadd.f32 %v9445, %v9637
    %9639 = vmatprep.mubr.bf16.mxu0 %v2259
    %9640 = vmatmul.mubr.bf16.gmra.mrb[0].mxu0 %v2258
    %v9641 = vpop.f32.mrb[0].mxu0
    %v9642 = vadd.f32 %v9449, %v9641
    %v9643 = vpop.f32.mrb[0].mxu0
    %v9644 = vadd.f32 %v9451, %v9643
    %v9645 = vpop.f32.mrb[0].mxu0
    %v9646 = vadd.f32 %v9453, %v9645
    %v9647 = vpop.f32.mrb[0].mxu0
    %v9648 = vadd.f32 %v9455, %v9647
    %9649 = vmatprep.mubr.bf16.mxu0 %v2279
    %9650 = vmatmul.mubr.bf16.gmra.mrb[0].mxu0 %v2278
    %v9651 = vpop.f32.mrb[0].mxu0
    %v9652 = vadd.f32 %v9459, %v9651
    %v9653 = vpop.f32.mrb[0].mxu0
    %v9654 = vadd.f32 %v9461, %v9653
    %v9655 = vpop.f32.mrb[0].mxu0
    %v9656 = vadd.f32 %v9463, %v9655
    %v9657 = vpop.f32.mrb[0].mxu0
    %v9658 = vadd.f32 %v9465, %v9657
    %9659 = vdwg.mxu0
    %9660 = vst [vmem:[#allocation7] sm:$0xff] %v7572
    %9661 = vst [vmem:[#allocation7 + $0x8] sm:$0xff] %v7574
    %9662 = vst [vmem:[#allocation7 + $0x10] sm:$0xff] %v9502
    %9663 = vst [vmem:[#allocation7 + $0x18] sm:$0xff] %v9504
    %9664 = vst [vmem:[#allocation7 + $0x20] sm:$0xff] %v7576
    %9665 = vst [vmem:[#allocation7 + $0x28] sm:$0xff] %v7578
    %9666 = vst [vmem:[#allocation7 + $0x30] sm:$0xff] %v9506
    %9667 = vst [vmem:[#allocation7 + $0x38] sm:$0xff] %v9508
    %9668 = vst [vmem:[#allocation7 + $0x40] sm:$0xff] %v7582
    %9669 = vst [vmem:[#allocation7 + $0x48] sm:$0xff] %v7584
    %9670 = vst [vmem:[#allocation7 + $0x50] sm:$0xff] %v9512
    %9671 = vst [vmem:[#allocation7 + $0x58] sm:$0xff] %v9514
    %9672 = vst [vmem:[#allocation7 + $0x60] sm:$0xff] %v7586
    %9673 = vst [vmem:[#allocation7 + $0x68] sm:$0xff] %v7588
    %9674 = vst [vmem:[#allocation7 + $0x70] sm:$0xff] %v9516
    %9675 = vst [vmem:[#allocation7 + $0x78] sm:$0xff] %v9518
    %9676 = vst [vmem:[#allocation7 + $0x80] sm:$0xff] %v7592
    %9677 = vst [vmem:[#allocation7 + $0x88] sm:$0xff] %v7594
    %9678 = vst [vmem:[#allocation7 + $0x90] sm:$0xff] %v9522
    %9679 = vst [vmem:[#allocation7 + $0x98] sm:$0xff] %v9524
    %9680 = vst [vmem:[#allocation7 + $0xa0] sm:$0xff] %v7596
    %9681 = vst [vmem:[#allocation7 + $0xa8] sm:$0xff] %v7598
    %9682 = vst [vmem:[#allocation7 + $0xb0] sm:$0xff] %v9526
    %9683 = vst [vmem:[#allocation7 + $0xb8] sm:$0xff] %v9528
    %9684 = vst [vmem:[#allocation7 + $0xc0] sm:$0xff] %v7602
    %9685 = vst [vmem:[#allocation7 + $0xc8] sm:$0xff] %v7604
    %9686 = vst [vmem:[#allocation7 + $0xd0] sm:$0xff] %v9532
    %9687 = vst [vmem:[#allocation7 + $0xd8] sm:$0xff] %v9534
    %9688 = vst [vmem:[#allocation7 + $0xe0] sm:$0xff] %v7606
    %9689 = vst [vmem:[#allocation7 + $0xe8] sm:$0xff] %v7608
    %9690 = vst [vmem:[#allocation7 + $0xf0] sm:$0xff] %v9536
    %9691 = vst [vmem:[#allocation7 + $0xf8] sm:$0xff] %v9538
    %9692 = vst [vmem:[#allocation7 + $0x100] sm:$0xff] %v7612
    %9693 = vst [vmem:[#allocation7 + $0x108] sm:$0xff] %v7614
    %9694 = vst [vmem:[#allocation7 + $0x110] sm:$0xff] %v9542
    %9695 = vst [vmem:[#allocation7 + $0x118] sm:$0xff] %v9544
    %9696 = vst [vmem:[#allocation7 + $0x120] sm:$0xff] %v7616
    %9697 = vst [vmem:[#allocation7 + $0x128] sm:$0xff] %v7618
    %9698 = vst [vmem:[#allocation7 + $0x130] sm:$0xff] %v9546
    %9699 = vst [vmem:[#allocation7 + $0x138] sm:$0xff] %v9548
    %9700 = vst [vmem:[#allocation7 + $0x140] sm:$0xff] %v7622
    %9701 = vst [vmem:[#allocation7 + $0x148] sm:$0xff] %v7624
    %9702 = vst [vmem:[#allocation7 + $0x150] sm:$0xff] %v9552
    %9703 = vst [vmem:[#allocation7 + $0x158] sm:$0xff] %v9554
    %9704 = vst [vmem:[#allocation7 + $0x160] sm:$0xff] %v7626
    %9705 = vst [vmem:[#allocation7 + $0x168] sm:$0xff] %v7628
    %9706 = vst [vmem:[#allocation7 + $0x170] sm:$0xff] %v9556
    %9707 = vst [vmem:[#allocation7 + $0x178] sm:$0xff] %v9558
    %9708 = vst [vmem:[#allocation7 + $0x180] sm:$0xff] %v7632
    %9709 = vst [vmem:[#allocation7 + $0x188] sm:$0xff] %v7634
    %9710 = vst [vmem:[#allocation7 + $0x190] sm:$0xff] %v9562
    %9711 = vst [vmem:[#allocation7 + $0x198] sm:$0xff] %v9564
    %9712 = vst [vmem:[#allocation7 + $0x1a0] sm:$0xff] %v7636
    %9713 = vst [vmem:[#allocation7 + $0x1a8] sm:$0xff] %v7638
    %9714 = vst [vmem:[#allocation7 + $0x1b0] sm:$0xff] %v9566
    %9715 = vst [vmem:[#allocation7 + $0x1b8] sm:$0xff] %v9568
    %9716 = vst [vmem:[#allocation7 + $0x1c0] sm:$0xff] %v7642
    %9717 = vst [vmem:[#allocation7 + $0x1c8] sm:$0xff] %v7644
    %9718 = vst [vmem:[#allocation7 + $0x1d0] sm:$0xff] %v9572
    %9719 = vst [vmem:[#allocation7 + $0x1d8] sm:$0xff] %v9574
    %9720 = vst [vmem:[#allocation7 + $0x1e0] sm:$0xff] %v7646
    %9721 = vst [vmem:[#allocation7 + $0x1e8] sm:$0xff] %v7648
    %9722 = vst [vmem:[#allocation7 + $0x1f0] sm:$0xff] %v9576
    %9723 = vst [vmem:[#allocation7 + $0x1f8] sm:$0xff] %v9578
    %9724 = vst [vmem:[#allocation7 + $0x200] sm:$0xff] %v7652
    %9725 = vst [vmem:[#allocation7 + $0x208] sm:$0xff] %v7654
    %9726 = vst [vmem:[#allocation7 + $0x210] sm:$0xff] %v9582
    %9727 = vst [vmem:[#allocation7 + $0x218] sm:$0xff] %v9584
    %9728 = vst [vmem:[#allocation7 + $0x220] sm:$0xff] %v7656
    %9729 = vst [vmem:[#allocation7 + $0x228] sm:$0xff] %v7658
    %9730 = vst [vmem:[#allocation7 + $0x230] sm:$0xff] %v9586
    %9731 = vst [vmem:[#allocation7 + $0x238] sm:$0xff] %v9588
    %9732 = vst [vmem:[#allocation7 + $0x240] sm:$0xff] %v7662
    %9733 = vst [vmem:[#allocation7 + $0x248] sm:$0xff] %v7664
    %9734 = vst [vmem:[#allocation7 + $0x250] sm:$0xff] %v9592
    %9735 = vst [vmem:[#allocation7 + $0x258] sm:$0xff] %v9594
    %9736 = vst [vmem:[#allocation7 + $0x260] sm:$0xff] %v7666
    %9737 = vst [vmem:[#allocation7 + $0x268] sm:$0xff] %v7668
    %9738 = vst [vmem:[#allocation7 + $0x270] sm:$0xff] %v9596
    %9739 = vst [vmem:[#allocation7 + $0x278] sm:$0xff] %v9598
    %9740 = vst [vmem:[#allocation7 + $0x280] sm:$0xff] %v7672
    %9741 = vst [vmem:[#allocation7 + $0x288] sm:$0xff] %v7674
    %9742 = vst [vmem:[#allocation7 + $0x290] sm:$0xff] %v9602
    %9743 = vst [vmem:[#allocation7 + $0x298] sm:$0xff] %v9604
    %9744 = vst [vmem:[#allocation7 + $0x2a0] sm:$0xff] %v7676
    %9745 = vst [vmem:[#allocation7 + $0x2a8] sm:$0xff] %v7678
    %9746 = vst [vmem:[#allocation7 + $0x2b0] sm:$0xff] %v9606
    %9747 = vst [vmem:[#allocation7 + $0x2b8] sm:$0xff] %v9608
    %9748 = vst [vmem:[#allocation7 + $0x2c0] sm:$0xff] %v7682
    %9749 = vst [vmem:[#allocation7 + $0x2c8] sm:$0xff] %v7684
    %9750 = vst [vmem:[#allocation7 + $0x2d0] sm:$0xff] %v9612
    %9751 = vst [vmem:[#allocation7 + $0x2d8] sm:$0xff] %v9614
    %9752 = vst [vmem:[#allocation7 + $0x2e0] sm:$0xff] %v7686
    %9753 = vst [vmem:[#allocation7 + $0x2e8] sm:$0xff] %v7688
    %9754 = vst [vmem:[#allocation7 + $0x2f0] sm:$0xff] %v9616
    %9755 = vst [vmem:[#allocation7 + $0x2f8] sm:$0xff] %v9618
    %9756 = vst [vmem:[#allocation7 + $0x300] sm:$0xff] %v7692
    %9757 = vst [vmem:[#allocation7 + $0x308] sm:$0xff] %v7694
    %9758 = vst [vmem:[#allocation7 + $0x310] sm:$0xff] %v9622
    %9759 = vst [vmem:[#allocation7 + $0x318] sm:$0xff] %v9624
    %9760 = vst [vmem:[#allocation7 + $0x320] sm:$0xff] %v7696
    %9761 = vst [vmem:[#allocation7 + $0x328] sm:$0xff] %v7698
    %9762 = vst [vmem:[#allocation7 + $0x330] sm:$0xff] %v9626
    %9763 = vst [vmem:[#allocation7 + $0x338] sm:$0xff] %v9628
    %9764 = vst [vmem:[#allocation7 + $0x340] sm:$0xff] %v7702
    %9765 = vst [vmem:[#allocation7 + $0x348] sm:$0xff] %v7704
    %9766 = vst [vmem:[#allocation7 + $0x350] sm:$0xff] %v9632
    %9767 = vst [vmem:[#allocation7 + $0x358] sm:$0xff] %v9634
    %9768 = vst [vmem:[#allocation7 + $0x360] sm:$0xff] %v7706
    %9769 = vst [vmem:[#allocation7 + $0x368] sm:$0xff] %v7708
    %9770 = vst [vmem:[#allocation7 + $0x370] sm:$0xff] %v9636
    %9771 = vst [vmem:[#allocation7 + $0x378] sm:$0xff] %v9638
    %9772 = vst [vmem:[#allocation7 + $0x380] sm:$0xff] %v7712
    %9773 = vst [vmem:[#allocation7 + $0x388] sm:$0xff] %v7714
    %9774 = vst [vmem:[#allocation7 + $0x390] sm:$0xff] %v9642
    %9775 = vst [vmem:[#allocation7 + $0x398] sm:$0xff] %v9644
    %9776 = vst [vmem:[#allocation7 + $0x3a0] sm:$0xff] %v7716
    %9777 = vst [vmem:[#allocation7 + $0x3a8] sm:$0xff] %v7718
    %9778 = vst [vmem:[#allocation7 + $0x3b0] sm:$0xff] %v9646
    %9779 = vst [vmem:[#allocation7 + $0x3b8] sm:$0xff] %v9648
    %9780 = vst [vmem:[#allocation7 + $0x3c0] sm:$0xff] %v7722
    %9781 = vst [vmem:[#allocation7 + $0x3c8] sm:$0xff] %v7724
    %9782 = vst [vmem:[#allocation7 + $0x3d0] sm:$0xff] %v9652
    %9783 = vst [vmem:[#allocation7 + $0x3d8] sm:$0xff] %v9654
    %9784 = vst [vmem:[#allocation7 + $0x3e0] sm:$0xff] %v7726
    %9785 = vst [vmem:[#allocation7 + $0x3e8] sm:$0xff] %v7728
    %9786 = vst [vmem:[#allocation7 + $0x3f0] sm:$0xff] %v9656
    %9787 = vst [vmem:[#allocation7 + $0x3f8] sm:$0xff] %v9658
    // Predicated region
    $region18: #{tpu_custom_call.1} parent=1 // pred_check
      _
    $region19: #{tpu_custom_call.1} parent=1 // pred_check_branch
      %9789 = sbr.rel (0) target = $region21
    $region20: #{tpu_custom_call.1} parent=1 // pred_region
      %s9791 = ssub.s32 16384, 16384
      %9792 = vsyncadd [#allocation4], %s9791
      %s9793 = sshll.u32 [#allocation7], 4
      %s9794 = int_to_ptr.vmem [resolvable:$true] %s9793
      %9799 = dma.vmem_to_hbm [thread:$0]  %s9794, 16384, %s2, [#allocation4], 512, 512, 32
    $region21: #{tpu_custom_call.1} parent=1 // pred_fallthru
      _
    // Predicated region
    $region22: #{tpu_custom_call.1} parent=1 // pred_check
      _
    $region23: #{tpu_custom_call.1} parent=1 // pred_check_branch
      %9801 = sbr.rel (0) target = $region25
    $region24: #{tpu_custom_call.1} parent=1 // pred_region
      %9802 = dma.done [#allocation4], 16384
    $region25: #{tpu_custom_call.1} parent=1 // pred_fallthru
      _
    %9803 = vsyncpa [#allocation3], 1
    %9804 = vsyncpa [#allocation6], 1
    %9805 = vsyncpa [#allocation4], 1

</llo_original>
